<compile_context>
chip_gen: v7x
topology: tpu7x:2x2x1
jax: 0.10.0
libtpu: 0.0.40
codegen_flags: <defaults>
</compile_context>

<pallas_src>
import functools

import jax
import jax.numpy as jnp
from jax.experimental import pallas as pl
from jax.experimental.pallas import tpu as pltpu


def _round_up(x, m):
    return ((x + m - 1) // m) * m


def _divisor_tile(dim, t_max):
    """Largest multiple of 128 <= t_max that divides dim (dim % 128 == 0)."""
    if dim <= t_max:
        return dim
    n = dim // 128
    g = max(t_max // 128, 1)
    while g > 1 and n % g:
        g -= 1
    return g * 128


def _vmem_limit_bytes():
    try:
        cap = pltpu.get_tpu_info().vmem_capacity_bytes
    except Exception:
        cap = 64 * 1024 * 1024          # conservative fallback (v7x physical)
    return int(cap * 3 // 4)            # leave headroom for the compiler


_VMEM_LIMIT = _vmem_limit_bytes()


def _pad_axis(x, axis, new_size):
    if x.shape[axis] == new_size:
        return x
    pads = [(0, 0)] * x.ndim
    pads[axis] = (0, new_size - x.shape[axis])
    return jnp.pad(x, pads)


# ----------------------------- tiled linear ---------------------------------

def _linear_acc_kernel(x_ref, w_ref, b_ref, o_ref, acc_ref, *, activation):
    @pl.when(pl.program_id(2) == 0)
    def _():
        acc_ref[...] = jnp.zeros_like(acc_ref)

    acc_ref[...] += jnp.dot(x_ref[...], w_ref[...],
                            preferred_element_type=jnp.float32)

    @pl.when(pl.program_id(2) == pl.num_programs(2) - 1)
    def _():
        y = acc_ref[...] + b_ref[...]
        if activation == "relu":
            y = jnp.maximum(y, 0.0)
        o_ref[...] = y.astype(o_ref.dtype)


def _linear_single_kernel(x_ref, w_ref, b_ref, o_ref, *, activation):
    y = jnp.dot(x_ref[...], w_ref[...],
                preferred_element_type=jnp.float32) + b_ref[...]
    if activation == "relu":
        y = jnp.maximum(y, 0.0)
    o_ref[...] = y.astype(o_ref.dtype)


def linear(x, w, b, activation=None, out_dtype=jnp.bfloat16, *,
           tm=512, tn=512, tk=512):
    """x: (..., Kp) @ w: (Kp, Np) bf16 (pre-padded) + b: (1, Np) f32."""
    lead = x.shape[:-1]
    Kp, Np = w.shape
    x2 = x.reshape(-1, Kp).astype(jnp.bfloat16)
    M = x2.shape[0]

    tm = min(tm, _round_up(M, 8))
    Mp = _round_up(M, tm)
    if Mp != M:
        x2 = _pad_axis(x2, 0, Mp)
    tn = _divisor_tile(Np, tn)
    tk = _divisor_tile(Kp, tk)
    nk = Kp // tk

    if nk == 1:
        out = pl.pallas_call(
            functools.partial(_linear_single_kernel, activation=activation),
            out_shape=jax.ShapeDtypeStruct((Mp, Np), out_dtype),
            grid=(Mp // tm, Np // tn),
            in_specs=[
                pl.BlockSpec((tm, Kp), lambda i, j: (i, 0)),
                pl.BlockSpec((Kp, tn), lambda i, j: (0, j)),
                pl.BlockSpec((1, tn), lambda i, j: (0, j)),
            ],
            out_specs=pl.BlockSpec((tm, tn), lambda i, j: (i, j)),
            compiler_params=pltpu.CompilerParams(
                dimension_semantics=("parallel", "parallel"),
                vmem_limit_bytes=_VMEM_LIMIT),
        )(x2, w, b)
    else:
        out = pl.pallas_call(
            functools.partial(_linear_acc_kernel, activation=activation),
            out_shape=jax.ShapeDtypeStruct((Mp, Np), out_dtype),
            grid=(Mp // tm, Np // tn, nk),
            in_specs=[
                pl.BlockSpec((tm, tk), lambda i, j, k: (i, k)),
                pl.BlockSpec((tk, tn), lambda i, j, k: (k, j)),
                pl.BlockSpec((1, tn), lambda i, j, k: (0, j)),
            ],
            out_specs=pl.BlockSpec((tm, tn), lambda i, j, k: (i, j)),
            scratch_shapes=[pltpu.VMEM((tm, tn), jnp.float32)],
            compiler_params=pltpu.CompilerParams(
                dimension_semantics=("parallel", "parallel", "arbitrary"),
                vmem_limit_bytes=_VMEM_LIMIT),
        )(x2, w, b)

    if Mp != M:
        out = out[:M]
    return out.reshape(*lead, Np)


# ------------------------- fused add + layernorm ----------------------------

def _add_ln_kernel(x_ref, a_ref, g_ref, b_ref, o_ref, *, eps, d_true):
    # Padded feature columns are zero by construction, so moments computed
    # over the padded width with a 1/d_true scale are exact.
    x = x_ref[...].astype(jnp.float32) + a_ref[...].astype(jnp.float32)
    inv_d = 1.0 / d_true
    mu = jnp.sum(x, axis=-1, keepdims=True) * inv_d
    var = jnp.sum(x * x, axis=-1, keepdims=True) * inv_d - mu * mu
    var = jnp.maximum(var, 0.0)
    inv = jax.lax.rsqrt(var + eps)
    o_ref[...] = ((x - mu) * inv * g_ref[...] + b_ref[...]).astype(o_ref.dtype)


def add_layernorm(x, a, gamma, beta, d_true, eps=1e-5, *, tm=512):
    """LayerNorm(x + a) fused; f32 statistics, bf16 output."""
    lead = x.shape[:-1]
    Dp = x.shape[-1]
    x2 = x.reshape(-1, Dp)
    a2 = a.reshape(-1, Dp)
    M = x2.shape[0]
    tm = min(tm, _round_up(M, 8))
    Mp = _round_up(M, tm)
    if Mp != M:
        x2 = _pad_axis(x2, 0, Mp)
        a2 = _pad_axis(a2, 0, Mp)
    out = pl.pallas_call(
        functools.partial(_add_ln_kernel, eps=eps, d_true=d_true),
        out_shape=jax.ShapeDtypeStruct((Mp, Dp), jnp.bfloat16),
        grid=(Mp // tm,),
        in_specs=[
            pl.BlockSpec((tm, Dp), lambda i: (i, 0)),
            pl.BlockSpec((tm, Dp), lambda i: (i, 0)),
            pl.BlockSpec((1, Dp), lambda i: (0, 0)),
            pl.BlockSpec((1, Dp), lambda i: (0, 0)),
        ],
        out_specs=pl.BlockSpec((tm, Dp), lambda i: (i, 0)),
        compiler_params=pltpu.CompilerParams(
            dimension_semantics=("parallel",),
            vmem_limit_bytes=_VMEM_LIMIT),
    )(x2, a2, gamma, beta)
    if Mp != M:
        out = out[:M]
    return out.reshape(*lead, Dp)


# ----------------------- flash-style multi-head attention --------------------

def _mha_kernel(qv_ref, kv_ref, q_ref, k_ref, v_ref, o_ref,
                m_sc, l_sc, acc_sc, *, n_heads, d_head, d_model, scale, causal):
    # q_ref: (tq, Dp) bf16; k_ref/v_ref: (tk, Dp) bf16
    # qv_ref: (tq, 1) f32 query validity; kv_ref: (1, tk) f32 key validity
    tq = q_ref.shape[0]
    tk = k_ref.shape[0]
    ki = pl.program_id(2)

    @pl.when(ki == 0)
    def _():
        m_sc[...] = jnp.full_like(m_sc, -jnp.inf)
        l_sc[...] = jnp.zeros_like(l_sc)
        acc_sc[...] = jnp.zeros_like(acc_sc)

    # Rebuild the pad (and causal) mask from O(S) validity flags as an
    # additive f32 bias (single add per head instead of compare+select).
    bias = (qv_ref[...] * kv_ref[...] - 1.0) * 1e9            # (tq, tk)
    if causal:
        qi = pl.program_id(1)
        row = qi * tq + jax.lax.broadcasted_iota(jnp.int32, (tq, tk), 0)
        col = ki * tk + jax.lax.broadcasted_iota(jnp.int32, (tq, tk), 1)
        bias = jnp.where(col <= row, bias, -1e9)

    q = q_ref[...]
    k = k_ref[...]
    v = v_ref[...]

    for h in range(n_heads):
        lo, hi = h * d_head, (h + 1) * d_head
        # bf16 operands, f32 scores; contract last axes (no .T / XLU transpose)
        s = jax.lax.dot_general(q[:, lo:hi], k[:, lo:hi],
                                (((1,), (1,)), ((), ())),
                                preferred_element_type=jnp.float32)
        s = s * scale + bias
        m_prev = m_sc[h]                                      # (tq, 1)
        m_new = jnp.maximum(m_prev, jnp.max(s, axis=-1, keepdims=True))
        alpha = jnp.exp(m_prev - m_new)
        p = jnp.exp(s - m_new)
        l_sc[h] = alpha * l_sc[h] + jnp.sum(p, axis=-1, keepdims=True)
        acc_sc[h] = alpha * acc_sc[h] + jnp.dot(
            p.astype(jnp.bfloat16), v[:, lo:hi],
            preferred_element_type=jnp.float32)
        m_sc[h] = m_new

    @pl.when(ki == pl.num_programs(2) - 1)
    def _():
        parts = [acc_sc[h] * pl.reciprocal(l_sc[h], approx=True)
                 for h in range(n_heads)]
        d_pad = o_ref.shape[-1] - d_model
        if d_pad:
            parts.append(jnp.zeros((o_ref.shape[0], d_pad), jnp.float32))
        # single lane-dense (tq, Dp) store
        o_ref[...] = jnp.concatenate(parts, axis=-1).astype(o_ref.dtype)


def attention(q_in, k_in, v_in, q_blk, k_blk, v_blk, q_valid, k_valid, *,
              causal, n_heads, d_model, out_dtype=jnp.bfloat16,
              tq=256, tk=512):
    """q_in/k_in/v_in: (B, S, n*Dp) activations (possibly the same fused qkv
    array); q_blk/k_blk/v_blk select the Dp-wide block along the last dim."""
    B, Sq = q_in.shape[0], q_in.shape[1]
    Sk = k_in.shape[1]
    Dp = _round_up(d_model, 128)
    d_head = d_model // n_heads
    scale = 1.0 / float(d_head) ** 0.5

    # Sequence tiling: single tile for short sequences, fixed aligned tiles
    # (with zero padding + masked validity) otherwise.
    if Sq <= tq:
        tq = _round_up(Sq, 8)
    Sqp = _round_up(Sq, tq)
    if Sk <= tk:
        tk = _round_up(Sk, 8)
    Skp = _round_up(Sk, tk)

    qp = _pad_axis(q_in, 1, Sqp)
    kp = qp if (k_in is q_in and Skp == Sqp) else _pad_axis(k_in, 1, Skp)
    vp = kp if v_in is k_in else _pad_axis(v_in, 1, Skp)
    qvp = _pad_axis(q_valid, 1, Sqp)
    kvp = _pad_axis(k_valid, 2, Skp)

    out = pl.pallas_call(
        functools.partial(_mha_kernel, n_heads=n_heads, d_head=d_head,
                          d_model=d_model, scale=scale, causal=causal),
        out_shape=jax.ShapeDtypeStruct((B, Sqp, Dp), out_dtype),
        grid=(B, Sqp // tq, Skp // tk),
        in_specs=[
            pl.BlockSpec((None, tq, 1), lambda b, qi, ki: (b, qi, 0)),
            pl.BlockSpec((None, 1, tk), lambda b, qi, ki: (b, 0, ki)),
            pl.BlockSpec((None, tq, Dp), lambda b, qi, ki: (b, qi, q_blk)),
            pl.BlockSpec((None, tk, Dp), lambda b, qi, ki: (b, ki, k_blk)),
            pl.BlockSpec((None, tk, Dp), lambda b, qi, ki: (b, ki, v_blk)),
        ],
        out_specs=pl.BlockSpec((None, tq, Dp), lambda b, qi, ki: (b, qi, 0)),
        scratch_shapes=[
            pltpu.VMEM((n_heads, tq, 1), jnp.float32),       # running max
            pltpu.VMEM((n_heads, tq, 1), jnp.float32),       # running denom
            pltpu.VMEM((n_heads, tq, d_head), jnp.float32),  # output acc
        ],
        compiler_params=pltpu.CompilerParams(
            dimension_semantics=("parallel", "parallel", "arbitrary"),
            vmem_limit_bytes=_VMEM_LIMIT),
    )(qvp, kvp, qp, kp, vp)
    if Sqp != Sq:
        out = out[:, :Sq]
    return out


# ------------------------------- model glue ---------------------------------

def mha_self(x, q_valid, k_valid, causal, p, n_heads, d_model):
    qkv = linear(x, p["w_qkv"], p["b_qkv"])              # (B, S, 3*Dp), no split
    o = attention(qkv, qkv, qkv, 0, 1, 2, q_valid, k_valid,
                  causal=causal, n_heads=n_heads, d_model=d_model)
    return linear(o, p["wo"], p["bo"])


def mha_cross(x_q, x_kv, q_valid, k_valid, p, n_heads, d_model):
    q = linear(x_q, p["wq"], p["bq"])                    # (B, St, Dp)
    kv = linear(x_kv, p["w_kv"], p["b_kv"])              # (B, Ss, 2*Dp), no split
    o = attention(q, kv, kv, 0, 0, 1, q_valid, k_valid,
                  causal=False, n_heads=n_heads, d_model=d_model)
    return linear(o, p["wo"], p["bo"])


def feed_forward(x, p):
    h = linear(x, p["w1"], p["b1"], activation="relu")
    return linear(h, p["w2"], p["b2"])


def encoder_layer(x, q_valid, k_valid, p, n_heads, d_model):
    a = mha_self(x, q_valid, k_valid, False, p["attn"], n_heads, d_model)
    x = add_layernorm(x, a, p["ln1_g"], p["ln1_b"], d_model)
    f = feed_forward(x, p["ffn"])
    return add_layernorm(x, f, p["ln2_g"], p["ln2_b"], d_model)


def decoder_layer(x, ctx, trg_qv, trg_kv, src_kv, p, n_heads, d_model):
    a = mha_self(x, trg_qv, trg_kv, True, p["self_attn"], n_heads, d_model)
    x = add_layernorm(x, a, p["ln1_g"], p["ln1_b"], d_model)
    c = mha_cross(x, ctx, trg_qv, src_kv, p["cross_attn"], n_heads, d_model)
    x = add_layernorm(x, c, p["ln2_g"], p["ln2_b"], d_model)
    f = feed_forward(x, p["ffn"])
    return add_layernorm(x, f, p["ln3_g"], p["ln3_b"], d_model)


def sinusoidal_pe(seq_len, d_model):
    pos = jnp.arange(seq_len, dtype=jnp.float32)[:, None]
    i = jnp.arange(d_model, dtype=jnp.float32)[None, :]
    angle = pos / jnp.power(10000.0, (2.0 * jnp.floor(i / 2.0)) / d_model)
    return jnp.where(i % 2 == 0, jnp.sin(angle), jnp.cos(angle))


def embed(tokens, emb_table, d_model):
    # TODO(synk): token-id gather kept in plain JAX (tiny, data-dependent).
    S = tokens.shape[1]
    Dp = emb_table.shape[1]
    pe = sinusoidal_pe(S, d_model)
    if Dp != d_model:
        pe = jnp.pad(pe, ((0, 0), (0, Dp - d_model)))
    return (emb_table[tokens] + pe[None, :, :]).astype(jnp.bfloat16)


def transformer_forward(params, src, trg, *, n_heads, d_model, n_trg_tokens,
                        src_pad_idx, trg_pad_idx):
    # Per-token validity flags; reproduces the reference make_pad_mask exactly
    # (query tokens checked against src_pad_idx, key tokens against
    # trg_pad_idx in every mask).
    src_qv = (src != src_pad_idx).astype(jnp.float32)[:, :, None]   # (B,Ss,1)
    src_kv = (src != trg_pad_idx).astype(jnp.float32)[:, None, :]   # (B,1,Ss)
    trg_qv = (trg != src_pad_idx).astype(jnp.float32)[:, :, None]   # (B,St,1)
    trg_kv = (trg != trg_pad_idx).astype(jnp.float32)[:, None, :]   # (B,1,St)

    # encoder
    x = embed(src, params["enc"]["emb"], d_model)
    for lp in params["enc"]["layers"]:
        x = encoder_layer(x, src_qv, src_kv, lp, n_heads, d_model)
    context = x

    # decoder
    y = embed(trg, params["dec"]["emb"], d_model)
    for lp in params["dec"]["layers"]:
        y = decoder_layer(y, context, trg_qv, trg_kv, src_kv, lp,
                          n_heads, d_model)

    logits = linear(y, params["dec"]["out_w"], params["dec"]["out_b"],
                    out_dtype=jnp.float32)
    return logits[..., :n_trg_tokens]


# --------------------------- parameter creation ------------------------------

def _dense(key, fan_in, fan_out):
    return jax.random.normal(key, (fan_in, fan_out), jnp.float32) * 0.02


def _attn_params(key, d):
    ks = jax.random.split(key, 4)
    z = jnp.zeros((d,), jnp.float32)
    return {"wq": _dense(ks[0], d, d), "bq": z,
            "wk": _dense(ks[1], d, d), "bk": z,
            "wv": _dense(ks[2], d, d), "bv": z,
            "wo": _dense(ks[3], d, d), "bo": z}


def _ffn_params(key, d, d_ff):
    k1, k2 = jax.random.split(key)
    return {"w1": _dense(k1, d, d_ff), "b1": jnp.zeros((d_ff,), jnp.float32),
            "w2": _dense(k2, d_ff, d), "b2": jnp.zeros((d,), jnp.float32)}


def init_params(key, n_src_tokens, n_trg_tokens, n_layers, d_model):
    d_ff = 4 * d_model
    keys = jax.random.split(key, 4 + 2 * n_layers)
    ones = jnp.ones((d_model,), jnp.float32)
    zeros = jnp.zeros((d_model,), jnp.float32)

    enc_layers = []
    for li in range(n_layers):
        ka, kf = jax.random.split(keys[4 + li])
        enc_layers.append({"attn": _attn_params(ka, d_model),
                           "ffn": _ffn_params(kf, d_model, d_ff),
                           "ln1_g": ones, "ln1_b": zeros,
                           "ln2_g": ones, "ln2_b": zeros})
    dec_layers = []
    for li in range(n_layers):
        ka, kc, kf = jax.random.split(keys[4 + n_layers + li], 3)
        dec_layers.append({"self_attn": _attn_params(ka, d_model),
                           "cross_attn": _attn_params(kc, d_model),
                           "ffn": _ffn_params(kf, d_model, d_ff),
                           "ln1_g": ones, "ln1_b": zeros,
                           "ln2_g": ones, "ln2_b": zeros,
                           "ln3_g": ones, "ln3_b": zeros})
    return {
        "enc": {"emb": _dense(keys[0], n_src_tokens, d_model),
                "layers": enc_layers},
        "dec": {"emb": _dense(keys[1], n_trg_tokens, d_model),
                "layers": dec_layers,
                "out_w": _dense(keys[2], d_model, n_trg_tokens),
                "out_b": jnp.zeros((n_trg_tokens,), jnp.float32)},
    }


# ----------------- one-time weight padding + bf16 cast -----------------------

def _prep_w(w):
    K, N = w.shape
    Kp, Np = _round_up(K, 128), _round_up(N, 128)
    if (Kp, Np) != (K, N):
        w = jnp.pad(w, ((0, Kp - K), (0, Np - N)))
    return w.astype(jnp.bfloat16)


def _prep_b(b):
    N = b.shape[0]
    Np = _round_up(N, 128)
    if Np != N:
        b = jnp.pad(b, ((0, Np - N),))
    return b.reshape(1, Np).astype(jnp.float32)


def _prep_vec(v, Dp):
    D = v.shape[0]
    if Dp != D:
        v = jnp.pad(v, ((0, Dp - D),))     # pad with 0 so padded cols stay 0
    return v.reshape(1, Dp).astype(jnp.float32)


def prepare_params(params, d_model):
    """Pad + cast all weights ONCE outside the jitted forward pass."""
    Dp = _round_up(d_model, 128)

    def prep_self(a):
        return {"w_qkv": jnp.concatenate(
                    [_prep_w(a["wq"]), _prep_w(a["wk"]), _prep_w(a["wv"])], 1),
                "b_qkv": jnp.concatenate(
                    [_prep_b(a["bq"]), _prep_b(a["bk"]), _prep_b(a["bv"])], 1),
                "wo": _prep_w(a["wo"]), "bo": _prep_b(a["bo"])}

    def prep_cross(a):
        return {"wq": _prep_w(a["wq"]), "bq": _prep_b(a["bq"]),
                "w_kv": jnp.concatenate([_prep_w(a["wk"]), _prep_w(a["wv"])], 1),
                "b_kv": jnp.concatenate([_prep_b(a["bk"]), _prep_b(a["bv"])], 1),
                "wo": _prep_w(a["wo"]), "bo": _prep_b(a["bo"])}

    def prep_ffn(f):
        return {"w1": _prep_w(f["w1"]), "b1": _prep_b(f["b1"]),
                "w2": _prep_w(f["w2"]), "b2": _prep_b(f["b2"])}

    def prep_emb(e):
        D = e.shape[1]
        if Dp != D:
            e = jnp.pad(e, ((0, 0), (0, Dp - D)))
        return e.astype(jnp.float32)

    def prep_ln(lp, name):
        return {name + "_g": _prep_vec(lp[name + "_g"], Dp),
                name + "_b": _prep_vec(lp[name + "_b"], Dp)}

    enc_layers = []
    for lp in params["enc"]["layers"]:
        d = {"attn": prep_self(lp["attn"]), "ffn": prep_ffn(lp["ffn"])}
        d.update(prep_ln(lp, "ln1")); d.update(prep_ln(lp, "ln2"))
        enc_layers.append(d)
    dec_layers = []
    for lp in params["dec"]["layers"]:
        d = {"self_attn": prep_self(lp["self_attn"]),
             "cross_attn": prep_cross(lp["cross_attn"]),
             "ffn": prep_ffn(lp["ffn"])}
        d.update(prep_ln(lp, "ln1")); d.update(prep_ln(lp, "ln2"))
        d.update(prep_ln(lp, "ln3"))
        dec_layers.append(d)
    return {"enc": {"emb": prep_emb(params["enc"]["emb"]), "layers": enc_layers},
            "dec": {"emb": prep_emb(params["dec"]["emb"]), "layers": dec_layers,
                    "out_w": _prep_w(params["dec"]["out_w"]),
                    "out_b": _prep_b(params["dec"]["out_b"])}}


# ---------------------------------- main -------------------------------------

if __name__ == "__main__":
    n_src_tokens = 16
    n_trg_tokens = 16
    n_layers = 2
    n_heads = 4
    d_model = 32
    src_pad_idx = 0
    trg_pad_idx = 0

    B, S_src, S_trg = 2, 8, 8

    root = jax.random.PRNGKey(0)
    kp, ks, kt = jax.random.split(root, 3)
    params = init_params(kp, n_src_tokens, n_trg_tokens, n_layers, d_model)
    dev_params = prepare_params(params, d_model)   # pad + bf16 cast ONCE

    src = jax.random.randint(ks, (B, S_src), 1, n_src_tokens, dtype=jnp.int32)
    trg = jax.random.randint(kt, (B, S_trg), 1, n_trg_tokens, dtype=jnp.int32)
    # introduce some padding to exercise the masks
    src = src.at[1, 6:].set(src_pad_idx)
    trg = trg.at[0, 5:].set(trg_pad_idx)

    fwd = jax.jit(transformer_forward,
                  static_argnames=("n_heads", "d_model", "n_trg_tokens",
                                   "src_pad_idx", "trg_pad_idx"))
    out = fwd(dev_params, src, trg, n_heads=n_heads, d_model=d_model,
              n_trg_tokens=n_trg_tokens,
              src_pad_idx=src_pad_idx, trg_pad_idx=trg_pad_idx)
    out = jax.block_until_ready(out)

    assert out.shape == (B, S_trg, n_trg_tokens), out.shape
    assert bool(jnp.all(jnp.isfinite(out)))
    print("KERNEL_OK")
</pallas_src>

<mosaic_0001>
module attributes {stable_mosaic.version = 11 : i64} {
  func.func @_linear_single_kernel(%arg0: i32, %arg1: i32, %arg2: memref<16x128xbf16, #tpu.memory_space<vmem>>, %arg3: memref<128x128xbf16, #tpu.memory_space<vmem>>, %arg4: memref<1x128xf32, #tpu.memory_space<vmem>>, %arg5: memref<16x128xbf16, #tpu.memory_space<vmem>>) attributes {dimension_semantics = [#tpu.dimension_semantics<parallel>, #tpu.dimension_semantics<parallel>], iteration_bounds = array<i64: 1, 1>, scalar_prefetch = 0 : i64, scratch_operands = 0 : i64, tpu.core_type = #tpu.core_type<tc>, window_params = [{transform_indices = @transform_0, window_bounds = array<i64: 16, 128>}, {transform_indices = @transform_1, window_bounds = array<i64: 128, 128>}, {transform_indices = @transform_2, window_bounds = array<i64: 1, 128>}, {transform_indices = @transform_3, window_bounds = array<i64: 16, 128>}]} {
    %c0 = arith.constant 0 : index
    %c0_0 = arith.constant 0 : index
    %0 = vector.load %arg2[%c0, %c0_0] : memref<16x128xbf16, #tpu.memory_space<vmem>>, vector<16x128xbf16>
    %c0_1 = arith.constant 0 : index
    %c0_2 = arith.constant 0 : index
    %1 = vector.load %arg3[%c0_1, %c0_2] : memref<128x128xbf16, #tpu.memory_space<vmem>>, vector<128x128xbf16>
    %cst = arith.constant dense<0.000000e+00> : vector<16x128xf32>
    %2 = tpu.matmul %0, %1, %cst {dimension_numbers = #tpu.dot_dimension_numbers<[1], [0], [0], [1], [0, 0, 1, 1], [], []>} : vector<16x128xbf16>, vector<128x128xbf16>, vector<16x128xf32> -> vector<16x128xf32>
    %c0_3 = arith.constant 0 : index
    %c0_4 = arith.constant 0 : index
    %3 = vector.load %arg4[%c0_3, %c0_4] : memref<1x128xf32, #tpu.memory_space<vmem>>, vector<1x128xf32>
    %4 = vector.broadcast %3 : vector<1x128xf32> to vector<16x128xf32>
    %5 = arith.addf %2, %4 : vector<16x128xf32>
    %6 = arith.truncf %5 : vector<16x128xf32> to vector<16x128xbf16>
    %c0_5 = arith.constant 0 : index
    %c0_6 = arith.constant 0 : index
    %7 = vector.load %arg5[%c0_5, %c0_6] : memref<16x128xbf16, #tpu.memory_space<vmem>>, vector<16x128xbf16>
    tpu.vector_store %arg5[%c0_5, %c0_6], %6 {strides = array<i32>} : memref<16x128xbf16, #tpu.memory_space<vmem>>, vector<16x128xbf16>,
    return
  }
  func.func @transform_0(%arg0: i32, %arg1: i32) -> (i32, i32) {
    %c0_i32 = arith.constant 0 : i32
    %c0_i32_0 = arith.constant 0 : i32
    return %arg0, %c0_i32 : i32, i32
  }
  func.func @transform_1(%arg0: i32, %arg1: i32) -> (i32, i32) {
    %c0_i32 = arith.constant 0 : i32
    %c0_i32_0 = arith.constant 0 : i32
    return %c0_i32, %arg1 : i32, i32
  }
  func.func @transform_2(%arg0: i32, %arg1: i32) -> (i32, i32) {
    %c0_i32 = arith.constant 0 : i32
    %c0_i32_0 = arith.constant 0 : i32
    return %c0_i32, %arg1 : i32, i32
  }
  func.func @transform_3(%arg0: i32, %arg1: i32) -> (i32, i32) {
    %c0_i32 = arith.constant 0 : i32
    return %arg0, %arg1 : i32, i32
  }
}

module attributes {stable_mosaic.version = 11 : i64} {
  func.func @_linear_single_kernel(%arg0: i32, %arg1: i32, %arg2: memref<16x128xbf16, #tpu.memory_space<vmem>>, %arg3: memref<128x384xbf16, #tpu.memory_space<vmem>>, %arg4: memref<1x384xf32, #tpu.memory_space<vmem>>, %arg5: memref<16x384xbf16, #tpu.memory_space<vmem>>) attributes {dimension_semantics = [#tpu.dimension_semantics<parallel>, #tpu.dimension_semantics<parallel>], iteration_bounds = array<i64: 1, 1>, scalar_prefetch = 0 : i64, scratch_operands = 0 : i64, tpu.core_type = #tpu.core_type<tc>, window_params = [{transform_indices = @transform_0, window_bounds = array<i64: 16, 128>}, {transform_indices = @transform_1, window_bounds = array<i64: 128, 384>}, {transform_indices = @transform_2, window_bounds = array<i64: 1, 384>}, {transform_indices = @transform_3, window_bounds = array<i64: 16, 384>}]} {
    %c0 = arith.constant 0 : index
    %c0_0 = arith.constant 0 : index
    %0 = vector.load %arg2[%c0, %c0_0] : memref<16x128xbf16, #tpu.memory_space<vmem>>, vector<16x128xbf16>
    %c0_1 = arith.constant 0 : index
    %c0_2 = arith.constant 0 : index
    %1 = vector.load %arg3[%c0_1, %c0_2] : memref<128x384xbf16, #tpu.memory_space<vmem>>, vector<128x384xbf16>
    %cst = arith.constant dense<0.000000e+00> : vector<16x384xf32>
    %2 = tpu.matmul %0, %1, %cst {dimension_numbers = #tpu.dot_dimension_numbers<[1], [0], [0], [1], [0, 0, 1, 1], [], []>} : vector<16x128xbf16>, vector<128x384xbf16>, vector<16x384xf32> -> vector<16x384xf32>
    %c0_3 = arith.constant 0 : index
    %c0_4 = arith.constant 0 : index
    %3 = vector.load %arg4[%c0_3, %c0_4] : memref<1x384xf32, #tpu.memory_space<vmem>>, vector<1x384xf32>
    %4 = vector.broadcast %3 : vector<1x384xf32> to vector<16x384xf32>
    %5 = arith.addf %2, %4 : vector<16x384xf32>
    %6 = arith.truncf %5 : vector<16x384xf32> to vector<16x384xbf16>
    %c0_5 = arith.constant 0 : index
    %c0_6 = arith.constant 0 : index
    %7 = vector.load %arg5[%c0_5, %c0_6] : memref<16x384xbf16, #tpu.memory_space<vmem>>, vector<16x384xbf16>
    tpu.vector_store %arg5[%c0_5, %c0_6], %6 {strides = array<i32>} : memref<16x384xbf16, #tpu.memory_space<vmem>>, vector<16x384xbf16>,
    return
  }
  func.func @transform_0(%arg0: i32, %arg1: i32) -> (i32, i32) {
    %c0_i32 = arith.constant 0 : i32
    %c0_i32_0 = arith.constant 0 : i32
    return %arg0, %c0_i32 : i32, i32
  }
  func.func @transform_1(%arg0: i32, %arg1: i32) -> (i32, i32) {
    %c0_i32 = arith.constant 0 : i32
    %c0_i32_0 = arith.constant 0 : i32
    return %c0_i32, %arg1 : i32, i32
  }
  func.func @transform_2(%arg0: i32, %arg1: i32) -> (i32, i32) {
    %c0_i32 = arith.constant 0 : i32
    %c0_i32_0 = arith.constant 0 : i32
    return %c0_i32, %arg1 : i32, i32
  }
  func.func @transform_3(%arg0: i32, %arg1: i32) -> (i32, i32) {
    %c0_i32 = arith.constant 0 : i32
    return %arg0, %arg1 : i32, i32
  }
}

module attributes {stable_mosaic.version = 11 : i64} {
  func.func @_mha_kernel(%arg0: i32, %arg1: i32, %arg2: i32, %arg3: memref<1x8x1xf32, #tpu.memory_space<vmem>>, %arg4: memref<1x1x8xf32, #tpu.memory_space<vmem>>, %arg5: memref<1x8x128xbf16, #tpu.memory_space<vmem>>, %arg6: memref<1x8x128xbf16, #tpu.memory_space<vmem>>, %arg7: memref<1x8x128xbf16, #tpu.memory_space<vmem>>, %arg8: memref<1x8x128xbf16, #tpu.memory_space<vmem>>, %arg9: memref<4x8x1xf32, #tpu.memory_space<vmem>>, %arg10: memref<4x8x1xf32, #tpu.memory_space<vmem>>, %arg11: memref<4x8x8xf32, #tpu.memory_space<vmem>>) attributes {dimension_semantics = [#tpu.dimension_semantics<parallel>, #tpu.dimension_semantics<parallel>, #tpu.dimension_semantics<arbitrary>], iteration_bounds = array<i64: 2, 1, 1>, scalar_prefetch = 0 : i64, scratch_operands = 3 : i64, tpu.core_type = #tpu.core_type<tc>, window_params = [{transform_indices = @transform_0, window_bounds = array<i64: 1, 8, 1>}, {transform_indices = @transform_1, window_bounds = array<i64: 1, 1, 8>}, {transform_indices = @transform_2, window_bounds = array<i64: 1, 8, 128>}, {transform_indices = @transform_3, window_bounds = array<i64: 1, 8, 128>}, {transform_indices = @transform_4, window_bounds = array<i64: 1, 8, 128>}, {transform_indices = @transform_5, window_bounds = array<i64: 1, 8, 128>}]} {
    %c0_i32 = arith.constant 0 : i32
    %0 = arith.cmpi eq, %arg2, %c0_i32 : i32
    %1 = arith.extui %0 : i1 to i32
    %c0_i32_0 = arith.constant 0 : i32
    %2 = arith.cmpi ne, %1, %c0_i32_0 : i32
    scf.if %2 {
      %cst_107 = arith.constant 0xFF800000 : f32
      %179 = vector.broadcast %cst_107 : f32 to vector<4x8x1xf32>
      %c0_108 = arith.constant 0 : index
      %c0_109 = arith.constant 0 : index
      %c0_110 = arith.constant 0 : index
      %180 = vector.load %arg9[%c0_108, %c0_109, %c0_110] : memref<4x8x1xf32, #tpu.memory_space<vmem>>, vector<4x8x1xf32>
      tpu.vector_store %arg9[%c0_108, %c0_109, %c0_110], %179 {strides = array<i32>} : memref<4x8x1xf32, #tpu.memory_space<vmem>>, vector<4x8x1xf32>,
      %cst_111 = arith.constant 0.000000e+00 : f32
      %181 = vector.broadcast %cst_111 : f32 to vector<4x8x1xf32>
      %c0_112 = arith.constant 0 : index
      %c0_113 = arith.constant 0 : index
      %c0_114 = arith.constant 0 : index
      %182 = vector.load %arg10[%c0_112, %c0_113, %c0_114] : memref<4x8x1xf32, #tpu.memory_space<vmem>>, vector<4x8x1xf32>
      tpu.vector_store %arg10[%c0_112, %c0_113, %c0_114], %181 {strides = array<i32>} : memref<4x8x1xf32, #tpu.memory_space<vmem>>, vector<4x8x1xf32>,
      %cst_115 = arith.constant 0.000000e+00 : f32
      %183 = vector.broadcast %cst_115 : f32 to vector<4x8x8xf32>
      %c0_116 = arith.constant 0 : index
      %c0_117 = arith.constant 0 : index
      %c0_118 = arith.constant 0 : index
      %184 = vector.load %arg11[%c0_116, %c0_117, %c0_118] : memref<4x8x8xf32, #tpu.memory_space<vmem>>, vector<4x8x8xf32>
      tpu.vector_store %arg11[%c0_116, %c0_117, %c0_118], %183 {strides = array<i32>} : memref<4x8x8xf32, #tpu.memory_space<vmem>>, vector<4x8x8xf32>,
    } else {
    }
    %c0 = arith.constant 0 : index
    %c0_1 = arith.constant 0 : index
    %c0_2 = arith.constant 0 : index
    %3 = vector.load %arg3[%c0, %c0_1, %c0_2] : memref<1x8x1xf32, #tpu.memory_space<vmem>>, vector<1x8x1xf32>
    %4 = vector.shape_cast %3 : vector<1x8x1xf32> to vector<8x1xf32>
    %c0_3 = arith.constant 0 : index
    %c0_4 = arith.constant 0 : index
    %c0_5 = arith.constant 0 : index
    %5 = vector.load %arg4[%c0_3, %c0_4, %c0_5] : memref<1x1x8xf32, #tpu.memory_space<vmem>>, vector<1x1x8xf32>
    %6 = vector.shape_cast %5 : vector<1x1x8xf32> to vector<1x8xf32>
    %7 = vector.broadcast %4 : vector<8x1xf32> to vector<8x8xf32>
    %8 = vector.broadcast %6 : vector<1x8xf32> to vector<8x8xf32>
    %9 = arith.mulf %7, %8 : vector<8x8xf32>
    %cst = arith.constant 1.000000e+00 : f32
    %10 = vector.broadcast %cst : f32 to vector<8x8xf32>
    %11 = arith.subf %9, %10 : vector<8x8xf32>
    %cst_6 = arith.constant 1.000000e+09 : f32
    %12 = vector.broadcast %cst_6 : f32 to vector<8x8xf32>
    %13 = arith.mulf %11, %12 : vector<8x8xf32>
    %c0_7 = arith.constant 0 : index
    %c0_8 = arith.constant 0 : index
    %c0_9 = arith.constant 0 : index
    %14 = vector.load %arg5[%c0_7, %c0_8, %c0_9] : memref<1x8x128xbf16, #tpu.memory_space<vmem>>, vector<1x8x128xbf16>
    %15 = vector.shape_cast %14 : vector<1x8x128xbf16> to vector<8x128xbf16>
    %c0_10 = arith.constant 0 : index
    %c0_11 = arith.constant 0 : index
    %c0_12 = arith.constant 0 : index
    %16 = vector.load %arg6[%c0_10, %c0_11, %c0_12] : memref<1x8x128xbf16, #tpu.memory_space<vmem>>, vector<1x8x128xbf16>
    %17 = vector.shape_cast %16 : vector<1x8x128xbf16> to vector<8x128xbf16>
    %c0_13 = arith.constant 0 : index
    %c0_14 = arith.constant 0 : index
    %c0_15 = arith.constant 0 : index
    %18 = vector.load %arg7[%c0_13, %c0_14, %c0_15] : memref<1x8x128xbf16, #tpu.memory_space<vmem>>, vector<1x8x128xbf16>
    %19 = vector.shape_cast %18 : vector<1x8x128xbf16> to vector<8x128xbf16>
    %20 = vector.extract_strided_slice %15 {offsets = [0, 0], sizes = [8, 8], strides = [1, 1]} : vector<8x128xbf16> to vector<8x8xbf16>
    %21 = vector.extract_strided_slice %17 {offsets = [0, 0], sizes = [8, 8], strides = [1, 1]} : vector<8x128xbf16> to vector<8x8xbf16>
    %cst_16 = arith.constant dense<0.000000e+00> : vector<8x8xf32>
    %22 = tpu.matmul %20, %21, %cst_16 {dimension_numbers = #tpu.dot_dimension_numbers<[1], [1], [0], [0], [0, 0, 1, 0], [], []>} : vector<8x8xbf16>, vector<8x8xbf16>, vector<8x8xf32> -> vector<8x8xf32>
    %cst_17 = arith.constant 0.353553385 : f32
    %23 = vector.broadcast %cst_17 : f32 to vector<8x8xf32>
    %24 = arith.mulf %22, %23 : vector<8x8xf32>
    %25 = arith.addf %24, %13 : vector<8x8xf32>
    %c0_18 = arith.constant 0 : index
    %c0_19 = arith.constant 0 : index
    %c0_20 = arith.constant 0 : index
    %26 = vector.load %arg9[%c0_18, %c0_19, %c0_20] : memref<4x8x1xf32, #tpu.memory_space<vmem>>, vector<1x8x1xf32>
    %27 = vector.shape_cast %26 : vector<1x8x1xf32> to vector<8x1xf32>
    %cst_21 = arith.constant dense<0xFF800000> : vector<8xf32>
    %28 = vector.multi_reduction <maximumf>, %25, %cst_21 [1] : vector<8x8xf32> to vector<8xf32>
    %29 = vector.shape_cast %28 : vector<8xf32> to vector<8x1xf32>
    %30 = arith.maximumf %27, %29 : vector<8x1xf32>
    %31 = arith.subf %27, %30 : vector<8x1xf32>
    %32 = math.exp %31 : vector<8x1xf32>
    %33 = vector.broadcast %30 : vector<8x1xf32> to vector<8x8xf32>
    %34 = arith.subf %25, %33 : vector<8x8xf32>
    %35 = math.exp %34 : vector<8x8xf32>
    %c0_22 = arith.constant 0 : index
    %c0_23 = arith.constant 0 : index
    %c0_24 = arith.constant 0 : index
    %36 = vector.load %arg10[%c0_22, %c0_23, %c0_24] : memref<4x8x1xf32, #tpu.memory_space<vmem>>, vector<1x8x1xf32>
    %37 = vector.shape_cast %36 : vector<1x8x1xf32> to vector<8x1xf32>
    %38 = arith.mulf %32, %37 : vector<8x1xf32>
    %cst_25 = arith.constant dense<0.000000e+00> : vector<8xf32>
    %39 = vector.multi_reduction <add>, %35, %cst_25 [1] : vector<8x8xf32> to vector<8xf32>
    %40 = vector.shape_cast %39 : vector<8xf32> to vector<8x1xf32>
    %41 = arith.addf %38, %40 : vector<8x1xf32>
    %c0_26 = arith.constant 0 : index
    %c0_27 = arith.constant 0 : index
    %c0_28 = arith.constant 0 : index
    %42 = vector.load %arg10[%c0_26, %c0_27, %c0_28] : memref<4x8x1xf32, #tpu.memory_space<vmem>>, vector<1x8x1xf32>
    %43 = vector.shape_cast %42 : vector<1x8x1xf32> to vector<8x1xf32>
    %44 = vector.shape_cast %41 : vector<8x1xf32> to vector<1x8x1xf32>
    tpu.vector_store %arg10[%c0_26, %c0_27, %c0_28], %44 {strides = array<i32>} : memref<4x8x1xf32, #tpu.memory_space<vmem>>, vector<1x8x1xf32>,
    %c0_29 = arith.constant 0 : index
    %c0_30 = arith.constant 0 : index
    %c0_31 = arith.constant 0 : index
    %45 = vector.load %arg11[%c0_29, %c0_30, %c0_31] : memref<4x8x8xf32, #tpu.memory_space<vmem>>, vector<1x8x8xf32>
    %46 = vector.shape_cast %45 : vector<1x8x8xf32> to vector<8x8xf32>
    %47 = vector.broadcast %32 : vector<8x1xf32> to vector<8x8xf32>
    %48 = arith.mulf %47, %46 : vector<8x8xf32>
    %49 = arith.truncf %35 : vector<8x8xf32> to vector<8x8xbf16>
    %50 = vector.extract_strided_slice %19 {offsets = [0, 0], sizes = [8, 8], strides = [1, 1]} : vector<8x128xbf16> to vector<8x8xbf16>
    %cst_32 = arith.constant dense<0.000000e+00> : vector<8x8xf32>
    %51 = tpu.matmul %49, %50, %cst_32 {dimension_numbers = #tpu.dot_dimension_numbers<[1], [0], [0], [1], [0, 0, 1, 1], [], []>} : vector<8x8xbf16>, vector<8x8xbf16>, vector<8x8xf32> -> vector<8x8xf32>
    %52 = arith.addf %48, %51 : vector<8x8xf32>
    %c0_33 = arith.constant 0 : index
    %c0_34 = arith.constant 0 : index
    %c0_35 = arith.constant 0 : index
    %53 = vector.load %arg11[%c0_33, %c0_34, %c0_35] : memref<4x8x8xf32, #tpu.memory_space<vmem>>, vector<1x8x8xf32>
    %54 = vector.shape_cast %53 : vector<1x8x8xf32> to vector<8x8xf32>
    %55 = vector.shape_cast %52 : vector<8x8xf32> to vector<1x8x8xf32>
    tpu.vector_store %arg11[%c0_33, %c0_34, %c0_35], %55 {strides = array<i32>} : memref<4x8x8xf32, #tpu.memory_space<vmem>>, vector<1x8x8xf32>,
    %c0_36 = arith.constant 0 : index
    %c0_37 = arith.constant 0 : index
    %c0_38 = arith.constant 0 : index
    %56 = vector.load %arg9[%c0_36, %c0_37, %c0_38] : memref<4x8x1xf32, #tpu.memory_space<vmem>>, vector<1x8x1xf32>
    %57 = vector.shape_cast %56 : vector<1x8x1xf32> to vector<8x1xf32>
    %58 = vector.shape_cast %30 : vector<8x1xf32> to vector<1x8x1xf32>
    tpu.vector_store %arg9[%c0_36, %c0_37, %c0_38], %58 {strides = array<i32>} : memref<4x8x1xf32, #tpu.memory_space<vmem>>, vector<1x8x1xf32>,
    %59 = vector.extract_strided_slice %15 {offsets = [0, 8], sizes = [8, 8], strides = [1, 1]} : vector<8x128xbf16> to vector<8x8xbf16>
    %60 = vector.extract_strided_slice %17 {offsets = [0, 8], sizes = [8, 8], strides = [1, 1]} : vector<8x128xbf16> to vector<8x8xbf16>
    %cst_39 = arith.constant dense<0.000000e+00> : vector<8x8xf32>
    %61 = tpu.matmul %59, %60, %cst_39 {dimension_numbers = #tpu.dot_dimension_numbers<[1], [1], [0], [0], [0, 0, 1, 0], [], []>} : vector<8x8xbf16>, vector<8x8xbf16>, vector<8x8xf32> -> vector<8x8xf32>
    %cst_40 = arith.constant 0.353553385 : f32
    %62 = vector.broadcast %cst_40 : f32 to vector<8x8xf32>
    %63 = arith.mulf %61, %62 : vector<8x8xf32>
    %64 = arith.addf %63, %13 : vector<8x8xf32>
    %c1 = arith.constant 1 : index
    %c0_41 = arith.constant 0 : index
    %c0_42 = arith.constant 0 : index
    %65 = vector.load %arg9[%c1, %c0_41, %c0_42] : memref<4x8x1xf32, #tpu.memory_space<vmem>>, vector<1x8x1xf32>
    %66 = vector.shape_cast %65 : vector<1x8x1xf32> to vector<8x1xf32>
    %cst_43 = arith.constant dense<0xFF800000> : vector<8xf32>
    %67 = vector.multi_reduction <maximumf>, %64, %cst_43 [1] : vector<8x8xf32> to vector<8xf32>
    %68 = vector.shape_cast %67 : vector<8xf32> to vector<8x1xf32>
    %69 = arith.maximumf %66, %68 : vector<8x1xf32>
    %70 = arith.subf %66, %69 : vector<8x1xf32>
    %71 = math.exp %70 : vector<8x1xf32>
    %72 = vector.broadcast %69 : vector<8x1xf32> to vector<8x8xf32>
    %73 = arith.subf %64, %72 : vector<8x8xf32>
    %74 = math.exp %73 : vector<8x8xf32>
    %c1_44 = arith.constant 1 : index
    %c0_45 = arith.constant 0 : index
    %c0_46 = arith.constant 0 : index
    %75 = vector.load %arg10[%c1_44, %c0_45, %c0_46] : memref<4x8x1xf32, #tpu.memory_space<vmem>>, vector<1x8x1xf32>
    %76 = vector.shape_cast %75 : vector<1x8x1xf32> to vector<8x1xf32>
    %77 = arith.mulf %71, %76 : vector<8x1xf32>
    %cst_47 = arith.constant dense<0.000000e+00> : vector<8xf32>
    %78 = vector.multi_reduction <add>, %74, %cst_47 [1] : vector<8x8xf32> to vector<8xf32>
    %79 = vector.shape_cast %78 : vector<8xf32> to vector<8x1xf32>
    %80 = arith.addf %77, %79 : vector<8x1xf32>
    %c1_48 = arith.constant 1 : index
    %c0_49 = arith.constant 0 : index
    %c0_50 = arith.constant 0 : index
    %81 = vector.load %arg10[%c1_48, %c0_49, %c0_50] : memref<4x8x1xf32, #tpu.memory_space<vmem>>, vector<1x8x1xf32>
    %82 = vector.shape_cast %81 : vector<1x8x1xf32> to vector<8x1xf32>
    %83 = vector.shape_cast %80 : vector<8x1xf32> to vector<1x8x1xf32>
    tpu.vector_store %arg10[%c1_48, %c0_49, %c0_50], %83 {strides = array<i32>} : memref<4x8x1xf32, #tpu.memory_space<vmem>>, vector<1x8x1xf32>,
    %c1_51 = arith.constant 1 : index
    %c0_52 = arith.constant 0 : index
    %c0_53 = arith.constant 0 : index
    %84 = vector.load %arg11[%c1_51, %c0_52, %c0_53] : memref<4x8x8xf32, #tpu.memory_space<vmem>>, vector<1x8x8xf32>
    %85 = vector.shape_cast %84 : vector<1x8x8xf32> to vector<8x8xf32>
    %86 = vector.broadcast %71 : vector<8x1xf32> to vector<8x8xf32>
    %87 = arith.mulf %86, %85 : vector<8x8xf32>
    %88 = arith.truncf %74 : vector<8x8xf32> to vector<8x8xbf16>
    %89 = vector.extract_strided_slice %19 {offsets = [0, 8], sizes = [8, 8], strides = [1, 1]} : vector<8x128xbf16> to vector<8x8xbf16>
    %cst_54 = arith.constant dense<0.000000e+00> : vector<8x8xf32>
    %90 = tpu.matmul %88, %89, %cst_54 {dimension_numbers = #tpu.dot_dimension_numbers<[1], [0], [0], [1], [0, 0, 1, 1], [], []>} : vector<8x8xbf16>, vector<8x8xbf16>, vector<8x8xf32> -> vector<8x8xf32>
    %91 = arith.addf %87, %90 : vector<8x8xf32>
    %c1_55 = arith.constant 1 : index
    %c0_56 = arith.constant 0 : index
    %c0_57 = arith.constant 0 : index
    %92 = vector.load %arg11[%c1_55, %c0_56, %c0_57] : memref<4x8x8xf32, #tpu.memory_space<vmem>>, vector<1x8x8xf32>
    %93 = vector.shape_cast %92 : vector<1x8x8xf32> to vector<8x8xf32>
    %94 = vector.shape_cast %91 : vector<8x8xf32> to vector<1x8x8xf32>
    tpu.vector_store %arg11[%c1_55, %c0_56, %c0_57], %94 {strides = array<i32>} : memref<4x8x8xf32, #tpu.memory_space<vmem>>, vector<1x8x8xf32>,
    %c1_58 = arith.constant 1 : index
    %c0_59 = arith.constant 0 : index
    %c0_60 = arith.constant 0 : index
    %95 = vector.load %arg9[%c1_58, %c0_59, %c0_60] : memref<4x8x1xf32, #tpu.memory_space<vmem>>, vector<1x8x1xf32>
    %96 = vector.shape_cast %95 : vector<1x8x1xf32> to vector<8x1xf32>
    %97 = vector.shape_cast %69 : vector<8x1xf32> to vector<1x8x1xf32>
    tpu.vector_store %arg9[%c1_58, %c0_59, %c0_60], %97 {strides = array<i32>} : memref<4x8x1xf32, #tpu.memory_space<vmem>>, vector<1x8x1xf32>,
    %98 = vector.extract_strided_slice %15 {offsets = [0, 16], sizes = [8, 8], strides = [1, 1]} : vector<8x128xbf16> to vector<8x8xbf16>
    %99 = vector.extract_strided_slice %17 {offsets = [0, 16], sizes = [8, 8], strides = [1, 1]} : vector<8x128xbf16> to vector<8x8xbf16>
    %cst_61 = arith.constant dense<0.000000e+00> : vector<8x8xf32>
    %100 = tpu.matmul %98, %99, %cst_61 {dimension_numbers = #tpu.dot_dimension_numbers<[1], [1], [0], [0], [0, 0, 1, 0], [], []>} : vector<8x8xbf16>, vector<8x8xbf16>, vector<8x8xf32> -> vector<8x8xf32>
    %cst_62 = arith.constant 0.353553385 : f32
    %101 = vector.broadcast %cst_62 : f32 to vector<8x8xf32>
    %102 = arith.mulf %100, %101 : vector<8x8xf32>
    %103 = arith.addf %102, %13 : vector<8x8xf32>
    %c2 = arith.constant 2 : index
    %c0_63 = arith.constant 0 : index
    %c0_64 = arith.constant 0 : index
    %104 = vector.load %arg9[%c2, %c0_63, %c0_64] : memref<4x8x1xf32, #tpu.memory_space<vmem>>, vector<1x8x1xf32>
    %105 = vector.shape_cast %104 : vector<1x8x1xf32> to vector<8x1xf32>
    %cst_65 = arith.constant dense<0xFF800000> : vector<8xf32>
    %106 = vector.multi_reduction <maximumf>, %103, %cst_65 [1] : vector<8x8xf32> to vector<8xf32>
    %107 = vector.shape_cast %106 : vector<8xf32> to vector<8x1xf32>
    %108 = arith.maximumf %105, %107 : vector<8x1xf32>
    %109 = arith.subf %105, %108 : vector<8x1xf32>
    %110 = math.exp %109 : vector<8x1xf32>
    %111 = vector.broadcast %108 : vector<8x1xf32> to vector<8x8xf32>
    %112 = arith.subf %103, %111 : vector<8x8xf32>
    %113 = math.exp %112 : vector<8x8xf32>
    %c2_66 = arith.constant 2 : index
    %c0_67 = arith.constant 0 : index
    %c0_68 = arith.constant 0 : index
    %114 = vector.load %arg10[%c2_66, %c0_67, %c0_68] : memref<4x8x1xf32, #tpu.memory_space<vmem>>, vector<1x8x1xf32>
    %115 = vector.shape_cast %114 : vector<1x8x1xf32> to vector<8x1xf32>
    %116 = arith.mulf %110, %115 : vector<8x1xf32>
    %cst_69 = arith.constant dense<0.000000e+00> : vector<8xf32>
    %117 = vector.multi_reduction <add>, %113, %cst_69 [1] : vector<8x8xf32> to vector<8xf32>
    %118 = vector.shape_cast %117 : vector<8xf32> to vector<8x1xf32>
    %119 = arith.addf %116, %118 : vector<8x1xf32>
    %c2_70 = arith.constant 2 : index
    %c0_71 = arith.constant 0 : index
    %c0_72 = arith.constant 0 : index
    %120 = vector.load %arg10[%c2_70, %c0_71, %c0_72] : memref<4x8x1xf32, #tpu.memory_space<vmem>>, vector<1x8x1xf32>
    %121 = vector.shape_cast %120 : vector<1x8x1xf32> to vector<8x1xf32>
    %122 = vector.shape_cast %119 : vector<8x1xf32> to vector<1x8x1xf32>
    tpu.vector_store %arg10[%c2_70, %c0_71, %c0_72], %122 {strides = array<i32>} : memref<4x8x1xf32, #tpu.memory_space<vmem>>, vector<1x8x1xf32>,
    %c2_73 = arith.constant 2 : index
    %c0_74 = arith.constant 0 : index
    %c0_75 = arith.constant 0 : index
    %123 = vector.load %arg11[%c2_73, %c0_74, %c0_75] : memref<4x8x8xf32, #tpu.memory_space<vmem>>, vector<1x8x8xf32>
    %124 = vector.shape_cast %123 : vector<1x8x8xf32> to vector<8x8xf32>
    %125 = vector.broadcast %110 : vector<8x1xf32> to vector<8x8xf32>
    %126 = arith.mulf %125, %124 : vector<8x8xf32>
    %127 = arith.truncf %113 : vector<8x8xf32> to vector<8x8xbf16>
    %128 = vector.extract_strided_slice %19 {offsets = [0, 16], sizes = [8, 8], strides = [1, 1]} : vector<8x128xbf16> to vector<8x8xbf16>
    %cst_76 = arith.constant dense<0.000000e+00> : vector<8x8xf32>
    %129 = tpu.matmul %127, %128, %cst_76 {dimension_numbers = #tpu.dot_dimension_numbers<[1], [0], [0], [1], [0, 0, 1, 1], [], []>} : vector<8x8xbf16>, vector<8x8xbf16>, vector<8x8xf32> -> vector<8x8xf32>
    %130 = arith.addf %126, %129 : vector<8x8xf32>
    %c2_77 = arith.constant 2 : index
    %c0_78 = arith.constant 0 : index
    %c0_79 = arith.constant 0 : index
    %131 = vector.load %arg11[%c2_77, %c0_78, %c0_79] : memref<4x8x8xf32, #tpu.memory_space<vmem>>, vector<1x8x8xf32>
    %132 = vector.shape_cast %131 : vector<1x8x8xf32> to vector<8x8xf32>
    %133 = vector.shape_cast %130 : vector<8x8xf32> to vector<1x8x8xf32>
    tpu.vector_store %arg11[%c2_77, %c0_78, %c0_79], %133 {strides = array<i32>} : memref<4x8x8xf32, #tpu.memory_space<vmem>>, vector<1x8x8xf32>,
    %c2_80 = arith.constant 2 : index
    %c0_81 = arith.constant 0 : index
    %c0_82 = arith.constant 0 : index
    %134 = vector.load %arg9[%c2_80, %c0_81, %c0_82] : memref<4x8x1xf32, #tpu.memory_space<vmem>>, vector<1x8x1xf32>
    %135 = vector.shape_cast %134 : vector<1x8x1xf32> to vector<8x1xf32>
    %136 = vector.shape_cast %108 : vector<8x1xf32> to vector<1x8x1xf32>
    tpu.vector_store %arg9[%c2_80, %c0_81, %c0_82], %136 {strides = array<i32>} : memref<4x8x1xf32, #tpu.memory_space<vmem>>, vector<1x8x1xf32>,
    %137 = vector.extract_strided_slice %15 {offsets = [0, 24], sizes = [8, 8], strides = [1, 1]} : vector<8x128xbf16> to vector<8x8xbf16>
    %138 = vector.extract_strided_slice %17 {offsets = [0, 24], sizes = [8, 8], strides = [1, 1]} : vector<8x128xbf16> to vector<8x8xbf16>
    %cst_83 = arith.constant dense<0.000000e+00> : vector<8x8xf32>
    %139 = tpu.matmul %137, %138, %cst_83 {dimension_numbers = #tpu.dot_dimension_numbers<[1], [1], [0], [0], [0, 0, 1, 0], [], []>} : vector<8x8xbf16>, vector<8x8xbf16>, vector<8x8xf32> -> vector<8x8xf32>
    %cst_84 = arith.constant 0.353553385 : f32
    %140 = vector.broadcast %cst_84 : f32 to vector<8x8xf32>
    %141 = arith.mulf %139, %140 : vector<8x8xf32>
    %142 = arith.addf %141, %13 : vector<8x8xf32>
    %c3 = arith.constant 3 : index
    %c0_85 = arith.constant 0 : index
    %c0_86 = arith.constant 0 : index
    %143 = vector.load %arg9[%c3, %c0_85, %c0_86] : memref<4x8x1xf32, #tpu.memory_space<vmem>>, vector<1x8x1xf32>
    %144 = vector.shape_cast %143 : vector<1x8x1xf32> to vector<8x1xf32>
    %cst_87 = arith.constant dense<0xFF800000> : vector<8xf32>
    %145 = vector.multi_reduction <maximumf>, %142, %cst_87 [1] : vector<8x8xf32> to vector<8xf32>
    %146 = vector.shape_cast %145 : vector<8xf32> to vector<8x1xf32>
    %147 = arith.maximumf %144, %146 : vector<8x1xf32>
    %148 = arith.subf %144, %147 : vector<8x1xf32>
    %149 = math.exp %148 : vector<8x1xf32>
    %150 = vector.broadcast %147 : vector<8x1xf32> to vector<8x8xf32>
    %151 = arith.subf %142, %150 : vector<8x8xf32>
    %152 = math.exp %151 : vector<8x8xf32>
    %c3_88 = arith.constant 3 : index
    %c0_89 = arith.constant 0 : index
    %c0_90 = arith.constant 0 : index
    %153 = vector.load %arg10[%c3_88, %c0_89, %c0_90] : memref<4x8x1xf32, #tpu.memory_space<vmem>>, vector<1x8x1xf32>
    %154 = vector.shape_cast %153 : vector<1x8x1xf32> to vector<8x1xf32>
    %155 = arith.mulf %149, %154 : vector<8x1xf32>
    %cst_91 = arith.constant dense<0.000000e+00> : vector<8xf32>
    %156 = vector.multi_reduction <add>, %152, %cst_91 [1] : vector<8x8xf32> to vector<8xf32>
    %157 = vector.shape_cast %156 : vector<8xf32> to vector<8x1xf32>
    %158 = arith.addf %155, %157 : vector<8x1xf32>
    %c3_92 = arith.constant 3 : index
    %c0_93 = arith.constant 0 : index
    %c0_94 = arith.constant 0 : index
    %159 = vector.load %arg10[%c3_92, %c0_93, %c0_94] : memref<4x8x1xf32, #tpu.memory_space<vmem>>, vector<1x8x1xf32>
    %160 = vector.shape_cast %159 : vector<1x8x1xf32> to vector<8x1xf32>
    %161 = vector.shape_cast %158 : vector<8x1xf32> to vector<1x8x1xf32>
    tpu.vector_store %arg10[%c3_92, %c0_93, %c0_94], %161 {strides = array<i32>} : memref<4x8x1xf32, #tpu.memory_space<vmem>>, vector<1x8x1xf32>,
    %c3_95 = arith.constant 3 : index
    %c0_96 = arith.constant 0 : index
    %c0_97 = arith.constant 0 : index
    %162 = vector.load %arg11[%c3_95, %c0_96, %c0_97] : memref<4x8x8xf32, #tpu.memory_space<vmem>>, vector<1x8x8xf32>
    %163 = vector.shape_cast %162 : vector<1x8x8xf32> to vector<8x8xf32>
    %164 = vector.broadcast %149 : vector<8x1xf32> to vector<8x8xf32>
    %165 = arith.mulf %164, %163 : vector<8x8xf32>
    %166 = arith.truncf %152 : vector<8x8xf32> to vector<8x8xbf16>
    %167 = vector.extract_strided_slice %19 {offsets = [0, 24], sizes = [8, 8], strides = [1, 1]} : vector<8x128xbf16> to vector<8x8xbf16>
    %cst_98 = arith.constant dense<0.000000e+00> : vector<8x8xf32>
    %168 = tpu.matmul %166, %167, %cst_98 {dimension_numbers = #tpu.dot_dimension_numbers<[1], [0], [0], [1], [0, 0, 1, 1], [], []>} : vector<8x8xbf16>, vector<8x8xbf16>, vector<8x8xf32> -> vector<8x8xf32>
    %169 = arith.addf %165, %168 : vector<8x8xf32>
    %c3_99 = arith.constant 3 : index
    %c0_100 = arith.constant 0 : index
    %c0_101 = arith.constant 0 : index
    %170 = vector.load %arg11[%c3_99, %c0_100, %c0_101] : memref<4x8x8xf32, #tpu.memory_space<vmem>>, vector<1x8x8xf32>
    %171 = vector.shape_cast %170 : vector<1x8x8xf32> to vector<8x8xf32>
    %172 = vector.shape_cast %169 : vector<8x8xf32> to vector<1x8x8xf32>
    tpu.vector_store %arg11[%c3_99, %c0_100, %c0_101], %172 {strides = array<i32>} : memref<4x8x8xf32, #tpu.memory_space<vmem>>, vector<1x8x8xf32>,
    %c3_102 = arith.constant 3 : index
    %c0_103 = arith.constant 0 : index
    %c0_104 = arith.constant 0 : index
    %173 = vector.load %arg9[%c3_102, %c0_103, %c0_104] : memref<4x8x1xf32, #tpu.memory_space<vmem>>, vector<1x8x1xf32>
    %174 = vector.shape_cast %173 : vector<1x8x1xf32> to vector<8x1xf32>
    %175 = vector.shape_cast %147 : vector<8x1xf32> to vector<1x8x1xf32>
    tpu.vector_store %arg9[%c3_102, %c0_103, %c0_104], %175 {strides = array<i32>} : memref<4x8x1xf32, #tpu.memory_space<vmem>>, vector<1x8x1xf32>,
    %c0_i32_105 = arith.constant 0 : i32
    %176 = arith.cmpi eq, %arg2, %c0_i32_105 : i32
    %177 = arith.extui %176 : i1 to i32
    %c0_i32_106 = arith.constant 0 : i32
    %178 = arith.cmpi ne, %177, %c0_i32_106 : i32
    scf.if %178 {
      %c0_107 = arith.constant 0 : index
      %c0_108 = arith.constant 0 : index
      %c0_109 = arith.constant 0 : index
      %179 = vector.load %arg11[%c0_107, %c0_108, %c0_109] : memref<4x8x8xf32, #tpu.memory_space<vmem>>, vector<1x8x8xf32>
      %180 = vector.shape_cast %179 : vector<1x8x8xf32> to vector<8x8xf32>
      %c0_110 = arith.constant 0 : index
      %c0_111 = arith.constant 0 : index
      %c0_112 = arith.constant 0 : index
      %181 = vector.load %arg10[%c0_110, %c0_111, %c0_112] : memref<4x8x1xf32, #tpu.memory_space<vmem>>, vector<1x8x1xf32>
      %182 = vector.shape_cast %181 : vector<1x8x1xf32> to vector<8x1xf32>
      %183 = tpu.reciprocal %182 {approx = true} : vector<8x1xf32> -> vector<8x1xf32>
      %184 = vector.broadcast %183 : vector<8x1xf32> to vector<8x8xf32>
      %185 = arith.mulf %180, %184 : vector<8x8xf32>
      %c1_113 = arith.constant 1 : index
      %c0_114 = arith.constant 0 : index
      %c0_115 = arith.constant 0 : index
      %186 = vector.load %arg11[%c1_113, %c0_114, %c0_115] : memref<4x8x8xf32, #tpu.memory_space<vmem>>, vector<1x8x8xf32>
      %187 = vector.shape_cast %186 : vector<1x8x8xf32> to vector<8x8xf32>
      %c1_116 = arith.constant 1 : index
      %c0_117 = arith.constant 0 : index
      %c0_118 = arith.constant 0 : index
      %188 = vector.load %arg10[%c1_116, %c0_117, %c0_118] : memref<4x8x1xf32, #tpu.memory_space<vmem>>, vector<1x8x1xf32>
      %189 = vector.shape_cast %188 : vector<1x8x1xf32> to vector<8x1xf32>
      %190 = tpu.reciprocal %189 {approx = true} : vector<8x1xf32> -> vector<8x1xf32>
      %191 = vector.broadcast %190 : vector<8x1xf32> to vector<8x8xf32>
      %192 = arith.mulf %187, %191 : vector<8x8xf32>
      %c2_119 = arith.constant 2 : index
      %c0_120 = arith.constant 0 : index
      %c0_121 = arith.constant 0 : index
      %193 = vector.load %arg11[%c2_119, %c0_120, %c0_121] : memref<4x8x8xf32, #tpu.memory_space<vmem>>, vector<1x8x8xf32>
      %194 = vector.shape_cast %193 : vector<1x8x8xf32> to vector<8x8xf32>
      %c2_122 = arith.constant 2 : index
      %c0_123 = arith.constant 0 : index
      %c0_124 = arith.constant 0 : index
      %195 = vector.load %arg10[%c2_122, %c0_123, %c0_124] : memref<4x8x1xf32, #tpu.memory_space<vmem>>, vector<1x8x1xf32>
      %196 = vector.shape_cast %195 : vector<1x8x1xf32> to vector<8x1xf32>
      %197 = tpu.reciprocal %196 {approx = true} : vector<8x1xf32> -> vector<8x1xf32>
      %198 = vector.broadcast %197 : vector<8x1xf32> to vector<8x8xf32>
      %199 = arith.mulf %194, %198 : vector<8x8xf32>
      %c3_125 = arith.constant 3 : index
      %c0_126 = arith.constant 0 : index
      %c0_127 = arith.constant 0 : index
      %200 = vector.load %arg11[%c3_125, %c0_126, %c0_127] : memref<4x8x8xf32, #tpu.memory_space<vmem>>, vector<1x8x8xf32>
      %201 = vector.shape_cast %200 : vector<1x8x8xf32> to vector<8x8xf32>
      %c3_128 = arith.constant 3 : index
      %c0_129 = arith.constant 0 : index
      %c0_130 = arith.constant 0 : index
      %202 = vector.load %arg10[%c3_128, %c0_129, %c0_130] : memref<4x8x1xf32, #tpu.memory_space<vmem>>, vector<1x8x1xf32>
      %203 = vector.shape_cast %202 : vector<1x8x1xf32> to vector<8x1xf32>
      %204 = tpu.reciprocal %203 {approx = true} : vector<8x1xf32> -> vector<8x1xf32>
      %205 = vector.broadcast %204 : vector<8x1xf32> to vector<8x8xf32>
      %206 = arith.mulf %201, %205 : vector<8x8xf32>
      %cst_131 = arith.constant 0.000000e+00 : f32
      %207 = vector.broadcast %cst_131 : f32 to vector<8x96xf32>
      %208 = tpu.concatenate %185, %192, %199, %206, %207 in 1 : vector<8x8xf32>, vector<8x8xf32>, vector<8x8xf32>, vector<8x8xf32>, vector<8x96xf32> -> vector<8x128xf32>
      %209 = arith.truncf %208 : vector<8x128xf32> to vector<8x128xbf16>
      %c0_132 = arith.constant 0 : index
      %c0_133 = arith.constant 0 : index
      %c0_134 = arith.constant 0 : index
      %210 = vector.load %arg8[%c0_132, %c0_133, %c0_134] : memref<1x8x128xbf16, #tpu.memory_space<vmem>>, vector<1x8x128xbf16>
      %211 = vector.shape_cast %210 : vector<1x8x128xbf16> to vector<8x128xbf16>
      %212 = vector.shape_cast %209 : vector<8x128xbf16> to vector<1x8x128xbf16>
      tpu.vector_store %arg8[%c0_132, %c0_133, %c0_134], %212 {strides = array<i32>} : memref<1x8x128xbf16, #tpu.memory_space<vmem>>, vector<1x8x128xbf16>,
    } else {
    }
    return
  }
  func.func @transform_0(%arg0: i32, %arg1: i32, %arg2: i32) -> (i32, i32, i32) {
    %c0_i32 = arith.constant 0 : i32
    %c0_i32_0 = arith.constant 0 : i32
    return %arg0, %arg1, %c0_i32 : i32, i32, i32
  }
  func.func @transform_1(%arg0: i32, %arg1: i32, %arg2: i32) -> (i32, i32, i32) {
    %c0_i32 = arith.constant 0 : i32
    %c0_i32_0 = arith.constant 0 : i32
    return %arg0, %c0_i32, %arg2 : i32, i32, i32
  }
  func.func @transform_2(%arg0: i32, %arg1: i32, %arg2: i32) -> (i32, i32, i32) {
    %c0_i32 = arith.constant 0 : i32
    %c0_i32_0 = arith.constant 0 : i32
    return %arg0, %arg1, %c0_i32 : i32, i32, i32
  }
  func.func @transform_3(%arg0: i32, %arg1: i32, %arg2: i32) -> (i32, i32, i32) {
    %c1_i32 = arith.constant 1 : i32
    %c0_i32 = arith.constant 0 : i32
    return %arg0, %arg2, %c1_i32 : i32, i32, i32
  }
  func.func @transform_4(%arg0: i32, %arg1: i32, %arg2: i32) -> (i32, i32, i32) {
    %c2_i32 = arith.constant 2 : i32
    %c0_i32 = arith.constant 0 : i32
    return %arg0, %arg2, %c2_i32 : i32, i32, i32
  }
  func.func @transform_5(%arg0: i32, %arg1: i32, %arg2: i32) -> (i32, i32, i32) {
    %c0_i32 = arith.constant 0 : i32
    %c0_i32_0 = arith.constant 0 : i32
    return %arg0, %arg1, %c0_i32 : i32, i32, i32
  }
}

module attributes {stable_mosaic.version = 11 : i64} {
  func.func @_add_ln_kernel(%arg0: i32, %arg1: memref<16x128xbf16, #tpu.memory_space<vmem>>, %arg2: memref<16x128xbf16, #tpu.memory_space<vmem>>, %arg3: memref<1x128xf32, #tpu.memory_space<vmem>>, %arg4: memref<1x128xf32, #tpu.memory_space<vmem>>, %arg5: memref<16x128xbf16, #tpu.memory_space<vmem>>) attributes {dimension_semantics = [#tpu.dimension_semantics<parallel>], iteration_bounds = array<i64: 1>, scalar_prefetch = 0 : i64, scratch_operands = 0 : i64, tpu.core_type = #tpu.core_type<tc>, window_params = [{transform_indices = @transform_0, window_bounds = array<i64: 16, 128>}, {transform_indices = @transform_1, window_bounds = array<i64: 16, 128>}, {pipeline_mode = #tpu.pipeline_mode<synchronous>, transform_indices = @transform_2, window_bounds = array<i64: 1, 128>}, {pipeline_mode = #tpu.pipeline_mode<synchronous>, transform_indices = @transform_3, window_bounds = array<i64: 1, 128>}, {transform_indices = @transform_4, window_bounds = array<i64: 16, 128>}]} {
    %c0 = arith.constant 0 : index
    %c0_0 = arith.constant 0 : index
    %0 = vector.load %arg1[%c0, %c0_0] : memref<16x128xbf16, #tpu.memory_space<vmem>>, vector<16x128xbf16>
    %1 = arith.extf %0 : vector<16x128xbf16> to vector<16x128xf32>
    %c0_1 = arith.constant 0 : index
    %c0_2 = arith.constant 0 : index
    %2 = vector.load %arg2[%c0_1, %c0_2] : memref<16x128xbf16, #tpu.memory_space<vmem>>, vector<16x128xbf16>
    %3 = arith.extf %2 : vector<16x128xbf16> to vector<16x128xf32>
    %4 = arith.addf %1, %3 : vector<16x128xf32>
    %cst = arith.constant dense<0.000000e+00> : vector<16xf32>
    %5 = vector.multi_reduction <add>, %4, %cst [1] : vector<16x128xf32> to vector<16xf32>
    %6 = vector.shape_cast %5 : vector<16xf32> to vector<16x1xf32>
    %cst_3 = arith.constant 3.125000e-02 : f32
    %7 = vector.broadcast %cst_3 : f32 to vector<16x1xf32>
    %8 = arith.mulf %6, %7 : vector<16x1xf32>
    %9 = arith.mulf %4, %4 : vector<16x128xf32>
    %cst_4 = arith.constant dense<0.000000e+00> : vector<16xf32>
    %10 = vector.multi_reduction <add>, %9, %cst_4 [1] : vector<16x128xf32> to vector<16xf32>
    %11 = vector.shape_cast %10 : vector<16xf32> to vector<16x1xf32>
    %cst_5 = arith.constant 3.125000e-02 : f32
    %12 = vector.broadcast %cst_5 : f32 to vector<16x1xf32>
    %13 = arith.mulf %11, %12 : vector<16x1xf32>
    %14 = arith.mulf %8, %8 : vector<16x1xf32>
    %15 = arith.subf %13, %14 : vector<16x1xf32>
    %cst_6 = arith.constant 0.000000e+00 : f32
    %16 = vector.broadcast %cst_6 : f32 to vector<16x1xf32>
    %17 = arith.maximumf %15, %16 : vector<16x1xf32>
    %cst_7 = arith.constant 9.99999974E-6 : f32
    %18 = vector.broadcast %cst_7 : f32 to vector<16x1xf32>
    %19 = arith.addf %17, %18 : vector<16x1xf32>
    %20 = math.rsqrt %19 : vector<16x1xf32>
    %21 = vector.broadcast %8 : vector<16x1xf32> to vector<16x128xf32>
    %22 = arith.subf %4, %21 : vector<16x128xf32>
    %23 = vector.broadcast %20 : vector<16x1xf32> to vector<16x128xf32>
    %24 = arith.mulf %22, %23 : vector<16x128xf32>
    %c0_8 = arith.constant 0 : index
    %c0_9 = arith.constant 0 : index
    %25 = vector.load %arg3[%c0_8, %c0_9] : memref<1x128xf32, #tpu.memory_space<vmem>>, vector<1x128xf32>
    %26 = vector.broadcast %25 : vector<1x128xf32> to vector<16x128xf32>
    %27 = arith.mulf %24, %26 : vector<16x128xf32>
    %c0_10 = arith.constant 0 : index
    %c0_11 = arith.constant 0 : index
    %28 = vector.load %arg4[%c0_10, %c0_11] : memref<1x128xf32, #tpu.memory_space<vmem>>, vector<1x128xf32>
    %29 = vector.broadcast %28 : vector<1x128xf32> to vector<16x128xf32>
    %30 = arith.addf %27, %29 : vector<16x128xf32>
    %31 = arith.truncf %30 : vector<16x128xf32> to vector<16x128xbf16>
    %c0_12 = arith.constant 0 : index
    %c0_13 = arith.constant 0 : index
    %32 = vector.load %arg5[%c0_12, %c0_13] : memref<16x128xbf16, #tpu.memory_space<vmem>>, vector<16x128xbf16>
    tpu.vector_store %arg5[%c0_12, %c0_13], %31 {strides = array<i32>} : memref<16x128xbf16, #tpu.memory_space<vmem>>, vector<16x128xbf16>,
    return
  }
  func.func @transform_0(%arg0: i32) -> (i32, i32) {
    %c0_i32 = arith.constant 0 : i32
    %c0_i32_0 = arith.constant 0 : i32
    return %arg0, %c0_i32 : i32, i32
  }
  func.func @transform_1(%arg0: i32) -> (i32, i32) {
    %c0_i32 = arith.constant 0 : i32
    %c0_i32_0 = arith.constant 0 : i32
    return %arg0, %c0_i32 : i32, i32
  }
  func.func @transform_2(%arg0: i32) -> (i32, i32) {
    %c0_i32 = arith.constant 0 : i32
    %c0_i32_0 = arith.constant 0 : i32
    %c0_i32_1 = arith.constant 0 : i32
    return %c0_i32, %c0_i32_0 : i32, i32
  }
  func.func @transform_3(%arg0: i32) -> (i32, i32) {
    %c0_i32 = arith.constant 0 : i32
    %c0_i32_0 = arith.constant 0 : i32
    %c0_i32_1 = arith.constant 0 : i32
    return %c0_i32, %c0_i32_0 : i32, i32
  }
  func.func @transform_4(%arg0: i32) -> (i32, i32) {
    %c0_i32 = arith.constant 0 : i32
    %c0_i32_0 = arith.constant 0 : i32
    return %arg0, %c0_i32 : i32, i32
  }
}

module attributes {stable_mosaic.version = 11 : i64} {
  func.func @_linear_single_kernel(%arg0: i32, %arg1: i32, %arg2: memref<16x128xbf16, #tpu.memory_space<vmem>>, %arg3: memref<128x256xbf16, #tpu.memory_space<vmem>>, %arg4: memref<1x256xf32, #tpu.memory_space<vmem>>, %arg5: memref<16x256xbf16, #tpu.memory_space<vmem>>) attributes {dimension_semantics = [#tpu.dimension_semantics<parallel>, #tpu.dimension_semantics<parallel>], iteration_bounds = array<i64: 1, 1>, scalar_prefetch = 0 : i64, scratch_operands = 0 : i64, tpu.core_type = #tpu.core_type<tc>, window_params = [{transform_indices = @transform_0, window_bounds = array<i64: 16, 128>}, {transform_indices = @transform_1, window_bounds = array<i64: 128, 256>}, {transform_indices = @transform_2, window_bounds = array<i64: 1, 256>}, {transform_indices = @transform_3, window_bounds = array<i64: 16, 256>}]} {
    %c0 = arith.constant 0 : index
    %c0_0 = arith.constant 0 : index
    %0 = vector.load %arg2[%c0, %c0_0] : memref<16x128xbf16, #tpu.memory_space<vmem>>, vector<16x128xbf16>
    %c0_1 = arith.constant 0 : index
    %c0_2 = arith.constant 0 : index
    %1 = vector.load %arg3[%c0_1, %c0_2] : memref<128x256xbf16, #tpu.memory_space<vmem>>, vector<128x256xbf16>
    %cst = arith.constant dense<0.000000e+00> : vector<16x256xf32>
    %2 = tpu.matmul %0, %1, %cst {dimension_numbers = #tpu.dot_dimension_numbers<[1], [0], [0], [1], [0, 0, 1, 1], [], []>} : vector<16x128xbf16>, vector<128x256xbf16>, vector<16x256xf32> -> vector<16x256xf32>
    %c0_3 = arith.constant 0 : index
    %c0_4 = arith.constant 0 : index
    %3 = vector.load %arg4[%c0_3, %c0_4] : memref<1x256xf32, #tpu.memory_space<vmem>>, vector<1x256xf32>
    %4 = vector.broadcast %3 : vector<1x256xf32> to vector<16x256xf32>
    %5 = arith.addf %2, %4 : vector<16x256xf32>
    %6 = arith.truncf %5 : vector<16x256xf32> to vector<16x256xbf16>
    %c0_5 = arith.constant 0 : index
    %c0_6 = arith.constant 0 : index
    %7 = vector.load %arg5[%c0_5, %c0_6] : memref<16x256xbf16, #tpu.memory_space<vmem>>, vector<16x256xbf16>
    tpu.vector_store %arg5[%c0_5, %c0_6], %6 {strides = array<i32>} : memref<16x256xbf16, #tpu.memory_space<vmem>>, vector<16x256xbf16>,
    return
  }
  func.func @transform_0(%arg0: i32, %arg1: i32) -> (i32, i32) {
    %c0_i32 = arith.constant 0 : i32
    %c0_i32_0 = arith.constant 0 : i32
    return %arg0, %c0_i32 : i32, i32
  }
  func.func @transform_1(%arg0: i32, %arg1: i32) -> (i32, i32) {
    %c0_i32 = arith.constant 0 : i32
    %c0_i32_0 = arith.constant 0 : i32
    return %c0_i32, %arg1 : i32, i32
  }
  func.func @transform_2(%arg0: i32, %arg1: i32) -> (i32, i32) {
    %c0_i32 = arith.constant 0 : i32
    %c0_i32_0 = arith.constant 0 : i32
    return %c0_i32, %arg1 : i32, i32
  }
  func.func @transform_3(%arg0: i32, %arg1: i32) -> (i32, i32) {
    %c0_i32 = arith.constant 0 : i32
    return %arg0, %arg1 : i32, i32
  }
}

module attributes {stable_mosaic.version = 11 : i64} {
  func.func @_linear_single_kernel(%arg0: i32, %arg1: i32, %arg2: memref<16x128xbf16, #tpu.memory_space<vmem>>, %arg3: memref<128x128xbf16, #tpu.memory_space<vmem>>, %arg4: memref<1x128xf32, #tpu.memory_space<vmem>>, %arg5: memref<16x128xbf16, #tpu.memory_space<vmem>>) attributes {dimension_semantics = [#tpu.dimension_semantics<parallel>, #tpu.dimension_semantics<parallel>], iteration_bounds = array<i64: 1, 1>, scalar_prefetch = 0 : i64, scratch_operands = 0 : i64, tpu.core_type = #tpu.core_type<tc>, window_params = [{transform_indices = @transform_0, window_bounds = array<i64: 16, 128>}, {transform_indices = @transform_1, window_bounds = array<i64: 128, 128>}, {transform_indices = @transform_2, window_bounds = array<i64: 1, 128>}, {transform_indices = @transform_3, window_bounds = array<i64: 16, 128>}]} {
    %c0 = arith.constant 0 : index
    %c0_0 = arith.constant 0 : index
    %0 = vector.load %arg2[%c0, %c0_0] : memref<16x128xbf16, #tpu.memory_space<vmem>>, vector<16x128xbf16>
    %c0_1 = arith.constant 0 : index
    %c0_2 = arith.constant 0 : index
    %1 = vector.load %arg3[%c0_1, %c0_2] : memref<128x128xbf16, #tpu.memory_space<vmem>>, vector<128x128xbf16>
    %cst = arith.constant dense<0.000000e+00> : vector<16x128xf32>
    %2 = tpu.matmul %0, %1, %cst {dimension_numbers = #tpu.dot_dimension_numbers<[1], [0], [0], [1], [0, 0, 1, 1], [], []>} : vector<16x128xbf16>, vector<128x128xbf16>, vector<16x128xf32> -> vector<16x128xf32>
    %c0_3 = arith.constant 0 : index
    %c0_4 = arith.constant 0 : index
    %3 = vector.load %arg4[%c0_3, %c0_4] : memref<1x128xf32, #tpu.memory_space<vmem>>, vector<1x128xf32>
    %4 = vector.broadcast %3 : vector<1x128xf32> to vector<16x128xf32>
    %5 = arith.addf %2, %4 : vector<16x128xf32>
    %cst_5 = arith.constant 0.000000e+00 : f32
    %6 = vector.broadcast %cst_5 : f32 to vector<16x128xf32>
    %7 = arith.maximumf %5, %6 : vector<16x128xf32>
    %8 = arith.truncf %7 : vector<16x128xf32> to vector<16x128xbf16>
    %c0_6 = arith.constant 0 : index
    %c0_7 = arith.constant 0 : index
    %9 = vector.load %arg5[%c0_6, %c0_7] : memref<16x128xbf16, #tpu.memory_space<vmem>>, vector<16x128xbf16>
    tpu.vector_store %arg5[%c0_6, %c0_7], %8 {strides = array<i32>} : memref<16x128xbf16, #tpu.memory_space<vmem>>, vector<16x128xbf16>,
    return
  }
  func.func @transform_0(%arg0: i32, %arg1: i32) -> (i32, i32) {
    %c0_i32 = arith.constant 0 : i32
    %c0_i32_0 = arith.constant 0 : i32
    return %arg0, %c0_i32 : i32, i32
  }
  func.func @transform_1(%arg0: i32, %arg1: i32) -> (i32, i32) {
    %c0_i32 = arith.constant 0 : i32
    %c0_i32_0 = arith.constant 0 : i32
    return %c0_i32, %arg1 : i32, i32
  }
  func.func @transform_2(%arg0: i32, %arg1: i32) -> (i32, i32) {
    %c0_i32 = arith.constant 0 : i32
    %c0_i32_0 = arith.constant 0 : i32
    return %c0_i32, %arg1 : i32, i32
  }
  func.func @transform_3(%arg0: i32, %arg1: i32) -> (i32, i32) {
    %c0_i32 = arith.constant 0 : i32
    return %arg0, %arg1 : i32, i32
  }
}

module attributes {stable_mosaic.version = 11 : i64} {
  func.func @_mha_kernel(%arg0: i32, %arg1: i32, %arg2: i32, %arg3: memref<1x8x1xf32, #tpu.memory_space<vmem>>, %arg4: memref<1x1x8xf32, #tpu.memory_space<vmem>>, %arg5: memref<1x8x128xbf16, #tpu.memory_space<vmem>>, %arg6: memref<1x8x128xbf16, #tpu.memory_space<vmem>>, %arg7: memref<1x8x128xbf16, #tpu.memory_space<vmem>>, %arg8: memref<1x8x128xbf16, #tpu.memory_space<vmem>>, %arg9: memref<4x8x1xf32, #tpu.memory_space<vmem>>, %arg10: memref<4x8x1xf32, #tpu.memory_space<vmem>>, %arg11: memref<4x8x8xf32, #tpu.memory_space<vmem>>) attributes {dimension_semantics = [#tpu.dimension_semantics<parallel>, #tpu.dimension_semantics<parallel>, #tpu.dimension_semantics<arbitrary>], iteration_bounds = array<i64: 2, 1, 1>, scalar_prefetch = 0 : i64, scratch_operands = 3 : i64, tpu.core_type = #tpu.core_type<tc>, window_params = [{transform_indices = @transform_0, window_bounds = array<i64: 1, 8, 1>}, {transform_indices = @transform_1, window_bounds = array<i64: 1, 1, 8>}, {transform_indices = @transform_2, window_bounds = array<i64: 1, 8, 128>}, {transform_indices = @transform_3, window_bounds = array<i64: 1, 8, 128>}, {transform_indices = @transform_4, window_bounds = array<i64: 1, 8, 128>}, {transform_indices = @transform_5, window_bounds = array<i64: 1, 8, 128>}]} {
    %c0_i32 = arith.constant 0 : i32
    %0 = arith.cmpi eq, %arg2, %c0_i32 : i32
    %1 = arith.extui %0 : i1 to i32
    %c0_i32_0 = arith.constant 0 : i32
    %2 = arith.cmpi ne, %1, %c0_i32_0 : i32
    scf.if %2 {
      %cst_109 = arith.constant 0xFF800000 : f32
      %190 = vector.broadcast %cst_109 : f32 to vector<4x8x1xf32>
      %c0_110 = arith.constant 0 : index
      %c0_111 = arith.constant 0 : index
      %c0_112 = arith.constant 0 : index
      %191 = vector.load %arg9[%c0_110, %c0_111, %c0_112] : memref<4x8x1xf32, #tpu.memory_space<vmem>>, vector<4x8x1xf32>
      tpu.vector_store %arg9[%c0_110, %c0_111, %c0_112], %190 {strides = array<i32>} : memref<4x8x1xf32, #tpu.memory_space<vmem>>, vector<4x8x1xf32>,
      %cst_113 = arith.constant 0.000000e+00 : f32
      %192 = vector.broadcast %cst_113 : f32 to vector<4x8x1xf32>
      %c0_114 = arith.constant 0 : index
      %c0_115 = arith.constant 0 : index
      %c0_116 = arith.constant 0 : index
      %193 = vector.load %arg10[%c0_114, %c0_115, %c0_116] : memref<4x8x1xf32, #tpu.memory_space<vmem>>, vector<4x8x1xf32>
      tpu.vector_store %arg10[%c0_114, %c0_115, %c0_116], %192 {strides = array<i32>} : memref<4x8x1xf32, #tpu.memory_space<vmem>>, vector<4x8x1xf32>,
      %cst_117 = arith.constant 0.000000e+00 : f32
      %194 = vector.broadcast %cst_117 : f32 to vector<4x8x8xf32>
      %c0_118 = arith.constant 0 : index
      %c0_119 = arith.constant 0 : index
      %c0_120 = arith.constant 0 : index
      %195 = vector.load %arg11[%c0_118, %c0_119, %c0_120] : memref<4x8x8xf32, #tpu.memory_space<vmem>>, vector<4x8x8xf32>
      tpu.vector_store %arg11[%c0_118, %c0_119, %c0_120], %194 {strides = array<i32>} : memref<4x8x8xf32, #tpu.memory_space<vmem>>, vector<4x8x8xf32>,
    } else {
    }
    %c0 = arith.constant 0 : index
    %c0_1 = arith.constant 0 : index
    %c0_2 = arith.constant 0 : index
    %3 = vector.load %arg3[%c0, %c0_1, %c0_2] : memref<1x8x1xf32, #tpu.memory_space<vmem>>, vector<1x8x1xf32>
    %4 = vector.shape_cast %3 : vector<1x8x1xf32> to vector<8x1xf32>
    %c0_3 = arith.constant 0 : index
    %c0_4 = arith.constant 0 : index
    %c0_5 = arith.constant 0 : index
    %5 = vector.load %arg4[%c0_3, %c0_4, %c0_5] : memref<1x1x8xf32, #tpu.memory_space<vmem>>, vector<1x1x8xf32>
    %6 = vector.shape_cast %5 : vector<1x1x8xf32> to vector<1x8xf32>
    %7 = vector.broadcast %4 : vector<8x1xf32> to vector<8x8xf32>
    %8 = vector.broadcast %6 : vector<1x8xf32> to vector<8x8xf32>
    %9 = arith.mulf %7, %8 : vector<8x8xf32>
    %cst = arith.constant 1.000000e+00 : f32
    %10 = vector.broadcast %cst : f32 to vector<8x8xf32>
    %11 = arith.subf %9, %10 : vector<8x8xf32>
    %cst_6 = arith.constant 1.000000e+09 : f32
    %12 = vector.broadcast %cst_6 : f32 to vector<8x8xf32>
    %13 = arith.mulf %11, %12 : vector<8x8xf32>
    %c8_i32 = arith.constant 8 : i32
    %14 = arith.muli %arg1, %c8_i32 : i32
    %15 = tpu.iota {dimensions = array<i32: 0>} : vector<8x8xi32>
    %16 = vector.broadcast %14 : i32 to vector<8x8xi32>
    %17 = arith.addi %16, %15 : vector<8x8xi32>
    %c8_i32_7 = arith.constant 8 : i32
    %18 = arith.muli %arg2, %c8_i32_7 : i32
    %19 = tpu.iota {dimensions = array<i32: 1>} : vector<8x8xi32>
    %20 = vector.broadcast %18 : i32 to vector<8x8xi32>
    %21 = arith.addi %20, %19 : vector<8x8xi32>
    %22 = arith.cmpi sle, %21, %17 : vector<8x8xi32>
    %cst_8 = arith.constant -1.000000e+09 : f32
    %23 = vector.broadcast %cst_8 : f32 to vector<8x8xf32>
    %24 = arith.select %22, %13, %23 : vector<8x8xi1>, vector<8x8xf32>
    %c0_9 = arith.constant 0 : index
    %c0_10 = arith.constant 0 : index
    %c0_11 = arith.constant 0 : index
    %25 = vector.load %arg5[%c0_9, %c0_10, %c0_11] : memref<1x8x128xbf16, #tpu.memory_space<vmem>>, vector<1x8x128xbf16>
    %26 = vector.shape_cast %25 : vector<1x8x128xbf16> to vector<8x128xbf16>
    %c0_12 = arith.constant 0 : index
    %c0_13 = arith.constant 0 : index
    %c0_14 = arith.constant 0 : index
    %27 = vector.load %arg6[%c0_12, %c0_13, %c0_14] : memref<1x8x128xbf16, #tpu.memory_space<vmem>>, vector<1x8x128xbf16>
    %28 = vector.shape_cast %27 : vector<1x8x128xbf16> to vector<8x128xbf16>
    %c0_15 = arith.constant 0 : index
    %c0_16 = arith.constant 0 : index
    %c0_17 = arith.constant 0 : index
    %29 = vector.load %arg7[%c0_15, %c0_16, %c0_17] : memref<1x8x128xbf16, #tpu.memory_space<vmem>>, vector<1x8x128xbf16>
    %30 = vector.shape_cast %29 : vector<1x8x128xbf16> to vector<8x128xbf16>
    %31 = vector.extract_strided_slice %26 {offsets = [0, 0], sizes = [8, 8], strides = [1, 1]} : vector<8x128xbf16> to vector<8x8xbf16>
    %32 = vector.extract_strided_slice %28 {offsets = [0, 0], sizes = [8, 8], strides = [1, 1]} : vector<8x128xbf16> to vector<8x8xbf16>
    %cst_18 = arith.constant dense<0.000000e+00> : vector<8x8xf32>
    %33 = tpu.matmul %31, %32, %cst_18 {dimension_numbers = #tpu.dot_dimension_numbers<[1], [1], [0], [0], [0, 0, 1, 0], [], []>} : vector<8x8xbf16>, vector<8x8xbf16>, vector<8x8xf32> -> vector<8x8xf32>
    %cst_19 = arith.constant 0.353553385 : f32
    %34 = vector.broadcast %cst_19 : f32 to vector<8x8xf32>
    %35 = arith.mulf %33, %34 : vector<8x8xf32>
    %36 = arith.addf %35, %24 : vector<8x8xf32>
    %c0_20 = arith.constant 0 : index
    %c0_21 = arith.constant 0 : index
    %c0_22 = arith.constant 0 : index
    %37 = vector.load %arg9[%c0_20, %c0_21, %c0_22] : memref<4x8x1xf32, #tpu.memory_space<vmem>>, vector<1x8x1xf32>
    %38 = vector.shape_cast %37 : vector<1x8x1xf32> to vector<8x1xf32>
    %cst_23 = arith.constant dense<0xFF800000> : vector<8xf32>
    %39 = vector.multi_reduction <maximumf>, %36, %cst_23 [1] : vector<8x8xf32> to vector<8xf32>
    %40 = vector.shape_cast %39 : vector<8xf32> to vector<8x1xf32>
    %41 = arith.maximumf %38, %40 : vector<8x1xf32>
    %42 = arith.subf %38, %41 : vector<8x1xf32>
    %43 = math.exp %42 : vector<8x1xf32>
    %44 = vector.broadcast %41 : vector<8x1xf32> to vector<8x8xf32>
    %45 = arith.subf %36, %44 : vector<8x8xf32>
    %46 = math.exp %45 : vector<8x8xf32>
    %c0_24 = arith.constant 0 : index
    %c0_25 = arith.constant 0 : index
    %c0_26 = arith.constant 0 : index
    %47 = vector.load %arg10[%c0_24, %c0_25, %c0_26] : memref<4x8x1xf32, #tpu.memory_space<vmem>>, vector<1x8x1xf32>
    %48 = vector.shape_cast %47 : vector<1x8x1xf32> to vector<8x1xf32>
    %49 = arith.mulf %43, %48 : vector<8x1xf32>
    %cst_27 = arith.constant dense<0.000000e+00> : vector<8xf32>
    %50 = vector.multi_reduction <add>, %46, %cst_27 [1] : vector<8x8xf32> to vector<8xf32>
    %51 = vector.shape_cast %50 : vector<8xf32> to vector<8x1xf32>
    %52 = arith.addf %49, %51 : vector<8x1xf32>
    %c0_28 = arith.constant 0 : index
    %c0_29 = arith.constant 0 : index
    %c0_30 = arith.constant 0 : index
    %53 = vector.load %arg10[%c0_28, %c0_29, %c0_30] : memref<4x8x1xf32, #tpu.memory_space<vmem>>, vector<1x8x1xf32>
    %54 = vector.shape_cast %53 : vector<1x8x1xf32> to vector<8x1xf32>
    %55 = vector.shape_cast %52 : vector<8x1xf32> to vector<1x8x1xf32>
    tpu.vector_store %arg10[%c0_28, %c0_29, %c0_30], %55 {strides = array<i32>} : memref<4x8x1xf32, #tpu.memory_space<vmem>>, vector<1x8x1xf32>,
    %c0_31 = arith.constant 0 : index
    %c0_32 = arith.constant 0 : index
    %c0_33 = arith.constant 0 : index
    %56 = vector.load %arg11[%c0_31, %c0_32, %c0_33] : memref<4x8x8xf32, #tpu.memory_space<vmem>>, vector<1x8x8xf32>
    %57 = vector.shape_cast %56 : vector<1x8x8xf32> to vector<8x8xf32>
    %58 = vector.broadcast %43 : vector<8x1xf32> to vector<8x8xf32>
    %59 = arith.mulf %58, %57 : vector<8x8xf32>
    %60 = arith.truncf %46 : vector<8x8xf32> to vector<8x8xbf16>
    %61 = vector.extract_strided_slice %30 {offsets = [0, 0], sizes = [8, 8], strides = [1, 1]} : vector<8x128xbf16> to vector<8x8xbf16>
    %cst_34 = arith.constant dense<0.000000e+00> : vector<8x8xf32>
    %62 = tpu.matmul %60, %61, %cst_34 {dimension_numbers = #tpu.dot_dimension_numbers<[1], [0], [0], [1], [0, 0, 1, 1], [], []>} : vector<8x8xbf16>, vector<8x8xbf16>, vector<8x8xf32> -> vector<8x8xf32>
    %63 = arith.addf %59, %62 : vector<8x8xf32>
    %c0_35 = arith.constant 0 : index
    %c0_36 = arith.constant 0 : index
    %c0_37 = arith.constant 0 : index
    %64 = vector.load %arg11[%c0_35, %c0_36, %c0_37] : memref<4x8x8xf32, #tpu.memory_space<vmem>>, vector<1x8x8xf32>
    %65 = vector.shape_cast %64 : vector<1x8x8xf32> to vector<8x8xf32>
    %66 = vector.shape_cast %63 : vector<8x8xf32> to vector<1x8x8xf32>
    tpu.vector_store %arg11[%c0_35, %c0_36, %c0_37], %66 {strides = array<i32>} : memref<4x8x8xf32, #tpu.memory_space<vmem>>, vector<1x8x8xf32>,
    %c0_38 = arith.constant 0 : index
    %c0_39 = arith.constant 0 : index
    %c0_40 = arith.constant 0 : index
    %67 = vector.load %arg9[%c0_38, %c0_39, %c0_40] : memref<4x8x1xf32, #tpu.memory_space<vmem>>, vector<1x8x1xf32>
    %68 = vector.shape_cast %67 : vector<1x8x1xf32> to vector<8x1xf32>
    %69 = vector.shape_cast %41 : vector<8x1xf32> to vector<1x8x1xf32>
    tpu.vector_store %arg9[%c0_38, %c0_39, %c0_40], %69 {strides = array<i32>} : memref<4x8x1xf32, #tpu.memory_space<vmem>>, vector<1x8x1xf32>,
    %70 = vector.extract_strided_slice %26 {offsets = [0, 8], sizes = [8, 8], strides = [1, 1]} : vector<8x128xbf16> to vector<8x8xbf16>
    %71 = vector.extract_strided_slice %28 {offsets = [0, 8], sizes = [8, 8], strides = [1, 1]} : vector<8x128xbf16> to vector<8x8xbf16>
    %cst_41 = arith.constant dense<0.000000e+00> : vector<8x8xf32>
    %72 = tpu.matmul %70, %71, %cst_41 {dimension_numbers = #tpu.dot_dimension_numbers<[1], [1], [0], [0], [0, 0, 1, 0], [], []>} : vector<8x8xbf16>, vector<8x8xbf16>, vector<8x8xf32> -> vector<8x8xf32>
    %cst_42 = arith.constant 0.353553385 : f32
    %73 = vector.broadcast %cst_42 : f32 to vector<8x8xf32>
    %74 = arith.mulf %72, %73 : vector<8x8xf32>
    %75 = arith.addf %74, %24 : vector<8x8xf32>
    %c1 = arith.constant 1 : index
    %c0_43 = arith.constant 0 : index
    %c0_44 = arith.constant 0 : index
    %76 = vector.load %arg9[%c1, %c0_43, %c0_44] : memref<4x8x1xf32, #tpu.memory_space<vmem>>, vector<1x8x1xf32>
    %77 = vector.shape_cast %76 : vector<1x8x1xf32> to vector<8x1xf32>
    %cst_45 = arith.constant dense<0xFF800000> : vector<8xf32>
    %78 = vector.multi_reduction <maximumf>, %75, %cst_45 [1] : vector<8x8xf32> to vector<8xf32>
    %79 = vector.shape_cast %78 : vector<8xf32> to vector<8x1xf32>
    %80 = arith.maximumf %77, %79 : vector<8x1xf32>
    %81 = arith.subf %77, %80 : vector<8x1xf32>
    %82 = math.exp %81 : vector<8x1xf32>
    %83 = vector.broadcast %80 : vector<8x1xf32> to vector<8x8xf32>
    %84 = arith.subf %75, %83 : vector<8x8xf32>
    %85 = math.exp %84 : vector<8x8xf32>
    %c1_46 = arith.constant 1 : index
    %c0_47 = arith.constant 0 : index
    %c0_48 = arith.constant 0 : index
    %86 = vector.load %arg10[%c1_46, %c0_47, %c0_48] : memref<4x8x1xf32, #tpu.memory_space<vmem>>, vector<1x8x1xf32>
    %87 = vector.shape_cast %86 : vector<1x8x1xf32> to vector<8x1xf32>
    %88 = arith.mulf %82, %87 : vector<8x1xf32>
    %cst_49 = arith.constant dense<0.000000e+00> : vector<8xf32>
    %89 = vector.multi_reduction <add>, %85, %cst_49 [1] : vector<8x8xf32> to vector<8xf32>
    %90 = vector.shape_cast %89 : vector<8xf32> to vector<8x1xf32>
    %91 = arith.addf %88, %90 : vector<8x1xf32>
    %c1_50 = arith.constant 1 : index
    %c0_51 = arith.constant 0 : index
    %c0_52 = arith.constant 0 : index
    %92 = vector.load %arg10[%c1_50, %c0_51, %c0_52] : memref<4x8x1xf32, #tpu.memory_space<vmem>>, vector<1x8x1xf32>
    %93 = vector.shape_cast %92 : vector<1x8x1xf32> to vector<8x1xf32>
    %94 = vector.shape_cast %91 : vector<8x1xf32> to vector<1x8x1xf32>
    tpu.vector_store %arg10[%c1_50, %c0_51, %c0_52], %94 {strides = array<i32>} : memref<4x8x1xf32, #tpu.memory_space<vmem>>, vector<1x8x1xf32>,
    %c1_53 = arith.constant 1 : index
    %c0_54 = arith.constant 0 : index
    %c0_55 = arith.constant 0 : index
    %95 = vector.load %arg11[%c1_53, %c0_54, %c0_55] : memref<4x8x8xf32, #tpu.memory_space<vmem>>, vector<1x8x8xf32>
    %96 = vector.shape_cast %95 : vector<1x8x8xf32> to vector<8x8xf32>
    %97 = vector.broadcast %82 : vector<8x1xf32> to vector<8x8xf32>
    %98 = arith.mulf %97, %96 : vector<8x8xf32>
    %99 = arith.truncf %85 : vector<8x8xf32> to vector<8x8xbf16>
    %100 = vector.extract_strided_slice %30 {offsets = [0, 8], sizes = [8, 8], strides = [1, 1]} : vector<8x128xbf16> to vector<8x8xbf16>
    %cst_56 = arith.constant dense<0.000000e+00> : vector<8x8xf32>
    %101 = tpu.matmul %99, %100, %cst_56 {dimension_numbers = #tpu.dot_dimension_numbers<[1], [0], [0], [1], [0, 0, 1, 1], [], []>} : vector<8x8xbf16>, vector<8x8xbf16>, vector<8x8xf32> -> vector<8x8xf32>
    %102 = arith.addf %98, %101 : vector<8x8xf32>
    %c1_57 = arith.constant 1 : index
    %c0_58 = arith.constant 0 : index
    %c0_59 = arith.constant 0 : index
    %103 = vector.load %arg11[%c1_57, %c0_58, %c0_59] : memref<4x8x8xf32, #tpu.memory_space<vmem>>, vector<1x8x8xf32>
    %104 = vector.shape_cast %103 : vector<1x8x8xf32> to vector<8x8xf32>
    %105 = vector.shape_cast %102 : vector<8x8xf32> to vector<1x8x8xf32>
    tpu.vector_store %arg11[%c1_57, %c0_58, %c0_59], %105 {strides = array<i32>} : memref<4x8x8xf32, #tpu.memory_space<vmem>>, vector<1x8x8xf32>,
    %c1_60 = arith.constant 1 : index
    %c0_61 = arith.constant 0 : index
    %c0_62 = arith.constant 0 : index
    %106 = vector.load %arg9[%c1_60, %c0_61, %c0_62] : memref<4x8x1xf32, #tpu.memory_space<vmem>>, vector<1x8x1xf32>
    %107 = vector.shape_cast %106 : vector<1x8x1xf32> to vector<8x1xf32>
    %108 = vector.shape_cast %80 : vector<8x1xf32> to vector<1x8x1xf32>
    tpu.vector_store %arg9[%c1_60, %c0_61, %c0_62], %108 {strides = array<i32>} : memref<4x8x1xf32, #tpu.memory_space<vmem>>, vector<1x8x1xf32>,
    %109 = vector.extract_strided_slice %26 {offsets = [0, 16], sizes = [8, 8], strides = [1, 1]} : vector<8x128xbf16> to vector<8x8xbf16>
    %110 = vector.extract_strided_slice %28 {offsets = [0, 16], sizes = [8, 8], strides = [1, 1]} : vector<8x128xbf16> to vector<8x8xbf16>
    %cst_63 = arith.constant dense<0.000000e+00> : vector<8x8xf32>
    %111 = tpu.matmul %109, %110, %cst_63 {dimension_numbers = #tpu.dot_dimension_numbers<[1], [1], [0], [0], [0, 0, 1, 0], [], []>} : vector<8x8xbf16>, vector<8x8xbf16>, vector<8x8xf32> -> vector<8x8xf32>
    %cst_64 = arith.constant 0.353553385 : f32
    %112 = vector.broadcast %cst_64 : f32 to vector<8x8xf32>
    %113 = arith.mulf %111, %112 : vector<8x8xf32>
    %114 = arith.addf %113, %24 : vector<8x8xf32>
    %c2 = arith.constant 2 : index
    %c0_65 = arith.constant 0 : index
    %c0_66 = arith.constant 0 : index
    %115 = vector.load %arg9[%c2, %c0_65, %c0_66] : memref<4x8x1xf32, #tpu.memory_space<vmem>>, vector<1x8x1xf32>
    %116 = vector.shape_cast %115 : vector<1x8x1xf32> to vector<8x1xf32>
    %cst_67 = arith.constant dense<0xFF800000> : vector<8xf32>
    %117 = vector.multi_reduction <maximumf>, %114, %cst_67 [1] : vector<8x8xf32> to vector<8xf32>
    %118 = vector.shape_cast %117 : vector<8xf32> to vector<8x1xf32>
    %119 = arith.maximumf %116, %118 : vector<8x1xf32>
    %120 = arith.subf %116, %119 : vector<8x1xf32>
    %121 = math.exp %120 : vector<8x1xf32>
    %122 = vector.broadcast %119 : vector<8x1xf32> to vector<8x8xf32>
    %123 = arith.subf %114, %122 : vector<8x8xf32>
    %124 = math.exp %123 : vector<8x8xf32>
    %c2_68 = arith.constant 2 : index
    %c0_69 = arith.constant 0 : index
    %c0_70 = arith.constant 0 : index
    %125 = vector.load %arg10[%c2_68, %c0_69, %c0_70] : memref<4x8x1xf32, #tpu.memory_space<vmem>>, vector<1x8x1xf32>
    %126 = vector.shape_cast %125 : vector<1x8x1xf32> to vector<8x1xf32>
    %127 = arith.mulf %121, %126 : vector<8x1xf32>
    %cst_71 = arith.constant dense<0.000000e+00> : vector<8xf32>
    %128 = vector.multi_reduction <add>, %124, %cst_71 [1] : vector<8x8xf32> to vector<8xf32>
    %129 = vector.shape_cast %128 : vector<8xf32> to vector<8x1xf32>
    %130 = arith.addf %127, %129 : vector<8x1xf32>
    %c2_72 = arith.constant 2 : index
    %c0_73 = arith.constant 0 : index
    %c0_74 = arith.constant 0 : index
    %131 = vector.load %arg10[%c2_72, %c0_73, %c0_74] : memref<4x8x1xf32, #tpu.memory_space<vmem>>, vector<1x8x1xf32>
    %132 = vector.shape_cast %131 : vector<1x8x1xf32> to vector<8x1xf32>
    %133 = vector.shape_cast %130 : vector<8x1xf32> to vector<1x8x1xf32>
    tpu.vector_store %arg10[%c2_72, %c0_73, %c0_74], %133 {strides = array<i32>} : memref<4x8x1xf32, #tpu.memory_space<vmem>>, vector<1x8x1xf32>,
    %c2_75 = arith.constant 2 : index
    %c0_76 = arith.constant 0 : index
    %c0_77 = arith.constant 0 : index
    %134 = vector.load %arg11[%c2_75, %c0_76, %c0_77] : memref<4x8x8xf32, #tpu.memory_space<vmem>>, vector<1x8x8xf32>
    %135 = vector.shape_cast %134 : vector<1x8x8xf32> to vector<8x8xf32>
    %136 = vector.broadcast %121 : vector<8x1xf32> to vector<8x8xf32>
    %137 = arith.mulf %136, %135 : vector<8x8xf32>
    %138 = arith.truncf %124 : vector<8x8xf32> to vector<8x8xbf16>
    %139 = vector.extract_strided_slice %30 {offsets = [0, 16], sizes = [8, 8], strides = [1, 1]} : vector<8x128xbf16> to vector<8x8xbf16>
    %cst_78 = arith.constant dense<0.000000e+00> : vector<8x8xf32>
    %140 = tpu.matmul %138, %139, %cst_78 {dimension_numbers = #tpu.dot_dimension_numbers<[1], [0], [0], [1], [0, 0, 1, 1], [], []>} : vector<8x8xbf16>, vector<8x8xbf16>, vector<8x8xf32> -> vector<8x8xf32>
    %141 = arith.addf %137, %140 : vector<8x8xf32>
    %c2_79 = arith.constant 2 : index
    %c0_80 = arith.constant 0 : index
    %c0_81 = arith.constant 0 : index
    %142 = vector.load %arg11[%c2_79, %c0_80, %c0_81] : memref<4x8x8xf32, #tpu.memory_space<vmem>>, vector<1x8x8xf32>
    %143 = vector.shape_cast %142 : vector<1x8x8xf32> to vector<8x8xf32>
    %144 = vector.shape_cast %141 : vector<8x8xf32> to vector<1x8x8xf32>
    tpu.vector_store %arg11[%c2_79, %c0_80, %c0_81], %144 {strides = array<i32>} : memref<4x8x8xf32, #tpu.memory_space<vmem>>, vector<1x8x8xf32>,
    %c2_82 = arith.constant 2 : index
    %c0_83 = arith.constant 0 : index
    %c0_84 = arith.constant 0 : index
    %145 = vector.load %arg9[%c2_82, %c0_83, %c0_84] : memref<4x8x1xf32, #tpu.memory_space<vmem>>, vector<1x8x1xf32>
    %146 = vector.shape_cast %145 : vector<1x8x1xf32> to vector<8x1xf32>
    %147 = vector.shape_cast %119 : vector<8x1xf32> to vector<1x8x1xf32>
    tpu.vector_store %arg9[%c2_82, %c0_83, %c0_84], %147 {strides = array<i32>} : memref<4x8x1xf32, #tpu.memory_space<vmem>>, vector<1x8x1xf32>,
    %148 = vector.extract_strided_slice %26 {offsets = [0, 24], sizes = [8, 8], strides = [1, 1]} : vector<8x128xbf16> to vector<8x8xbf16>
    %149 = vector.extract_strided_slice %28 {offsets = [0, 24], sizes = [8, 8], strides = [1, 1]} : vector<8x128xbf16> to vector<8x8xbf16>
    %cst_85 = arith.constant dense<0.000000e+00> : vector<8x8xf32>
    %150 = tpu.matmul %148, %149, %cst_85 {dimension_numbers = #tpu.dot_dimension_numbers<[1], [1], [0], [0], [0, 0, 1, 0], [], []>} : vector<8x8xbf16>, vector<8x8xbf16>, vector<8x8xf32> -> vector<8x8xf32>
    %cst_86 = arith.constant 0.353553385 : f32
    %151 = vector.broadcast %cst_86 : f32 to vector<8x8xf32>
    %152 = arith.mulf %150, %151 : vector<8x8xf32>
    %153 = arith.addf %152, %24 : vector<8x8xf32>
    %c3 = arith.constant 3 : index
    %c0_87 = arith.constant 0 : index
    %c0_88 = arith.constant 0 : index
    %154 = vector.load %arg9[%c3, %c0_87, %c0_88] : memref<4x8x1xf32, #tpu.memory_space<vmem>>, vector<1x8x1xf32>
    %155 = vector.shape_cast %154 : vector<1x8x1xf32> to vector<8x1xf32>
    %cst_89 = arith.constant dense<0xFF800000> : vector<8xf32>
    %156 = vector.multi_reduction <maximumf>, %153, %cst_89 [1] : vector<8x8xf32> to vector<8xf32>
    %157 = vector.shape_cast %156 : vector<8xf32> to vector<8x1xf32>
    %158 = arith.maximumf %155, %157 : vector<8x1xf32>
    %159 = arith.subf %155, %158 : vector<8x1xf32>
    %160 = math.exp %159 : vector<8x1xf32>
    %161 = vector.broadcast %158 : vector<8x1xf32> to vector<8x8xf32>
    %162 = arith.subf %153, %161 : vector<8x8xf32>
    %163 = math.exp %162 : vector<8x8xf32>
    %c3_90 = arith.constant 3 : index
    %c0_91 = arith.constant 0 : index
    %c0_92 = arith.constant 0 : index
    %164 = vector.load %arg10[%c3_90, %c0_91, %c0_92] : memref<4x8x1xf32, #tpu.memory_space<vmem>>, vector<1x8x1xf32>
    %165 = vector.shape_cast %164 : vector<1x8x1xf32> to vector<8x1xf32>
    %166 = arith.mulf %160, %165 : vector<8x1xf32>
    %cst_93 = arith.constant dense<0.000000e+00> : vector<8xf32>
    %167 = vector.multi_reduction <add>, %163, %cst_93 [1] : vector<8x8xf32> to vector<8xf32>
    %168 = vector.shape_cast %167 : vector<8xf32> to vector<8x1xf32>
    %169 = arith.addf %166, %168 : vector<8x1xf32>
    %c3_94 = arith.constant 3 : index
    %c0_95 = arith.constant 0 : index
    %c0_96 = arith.constant 0 : index
    %170 = vector.load %arg10[%c3_94, %c0_95, %c0_96] : memref<4x8x1xf32, #tpu.memory_space<vmem>>, vector<1x8x1xf32>
    %171 = vector.shape_cast %170 : vector<1x8x1xf32> to vector<8x1xf32>
    %172 = vector.shape_cast %169 : vector<8x1xf32> to vector<1x8x1xf32>
    tpu.vector_store %arg10[%c3_94, %c0_95, %c0_96], %172 {strides = array<i32>} : memref<4x8x1xf32, #tpu.memory_space<vmem>>, vector<1x8x1xf32>,
    %c3_97 = arith.constant 3 : index
    %c0_98 = arith.constant 0 : index
    %c0_99 = arith.constant 0 : index
    %173 = vector.load %arg11[%c3_97, %c0_98, %c0_99] : memref<4x8x8xf32, #tpu.memory_space<vmem>>, vector<1x8x8xf32>
    %174 = vector.shape_cast %173 : vector<1x8x8xf32> to vector<8x8xf32>
    %175 = vector.broadcast %160 : vector<8x1xf32> to vector<8x8xf32>
    %176 = arith.mulf %175, %174 : vector<8x8xf32>
    %177 = arith.truncf %163 : vector<8x8xf32> to vector<8x8xbf16>
    %178 = vector.extract_strided_slice %30 {offsets = [0, 24], sizes = [8, 8], strides = [1, 1]} : vector<8x128xbf16> to vector<8x8xbf16>
    %cst_100 = arith.constant dense<0.000000e+00> : vector<8x8xf32>
    %179 = tpu.matmul %177, %178, %cst_100 {dimension_numbers = #tpu.dot_dimension_numbers<[1], [0], [0], [1], [0, 0, 1, 1], [], []>} : vector<8x8xbf16>, vector<8x8xbf16>, vector<8x8xf32> -> vector<8x8xf32>
    %180 = arith.addf %176, %179 : vector<8x8xf32>
    %c3_101 = arith.constant 3 : index
    %c0_102 = arith.constant 0 : index
    %c0_103 = arith.constant 0 : index
    %181 = vector.load %arg11[%c3_101, %c0_102, %c0_103] : memref<4x8x8xf32, #tpu.memory_space<vmem>>, vector<1x8x8xf32>
    %182 = vector.shape_cast %181 : vector<1x8x8xf32> to vector<8x8xf32>
    %183 = vector.shape_cast %180 : vector<8x8xf32> to vector<1x8x8xf32>
    tpu.vector_store %arg11[%c3_101, %c0_102, %c0_103], %183 {strides = array<i32>} : memref<4x8x8xf32, #tpu.memory_space<vmem>>, vector<1x8x8xf32>,
    %c3_104 = arith.constant 3 : index
    %c0_105 = arith.constant 0 : index
    %c0_106 = arith.constant 0 : index
    %184 = vector.load %arg9[%c3_104, %c0_105, %c0_106] : memref<4x8x1xf32, #tpu.memory_space<vmem>>, vector<1x8x1xf32>
    %185 = vector.shape_cast %184 : vector<1x8x1xf32> to vector<8x1xf32>
    %186 = vector.shape_cast %158 : vector<8x1xf32> to vector<1x8x1xf32>
    tpu.vector_store %arg9[%c3_104, %c0_105, %c0_106], %186 {strides = array<i32>} : memref<4x8x1xf32, #tpu.memory_space<vmem>>, vector<1x8x1xf32>,
    %c0_i32_107 = arith.constant 0 : i32
    %187 = arith.cmpi eq, %arg2, %c0_i32_107 : i32
    %188 = arith.extui %187 : i1 to i32
    %c0_i32_108 = arith.constant 0 : i32
    %189 = arith.cmpi ne, %188, %c0_i32_108 : i32
    scf.if %189 {
      %c0_109 = arith.constant 0 : index
      %c0_110 = arith.constant 0 : index
      %c0_111 = arith.constant 0 : index
      %190 = vector.load %arg11[%c0_109, %c0_110, %c0_111] : memref<4x8x8xf32, #tpu.memory_space<vmem>>, vector<1x8x8xf32>
      %191 = vector.shape_cast %190 : vector<1x8x8xf32> to vector<8x8xf32>
      %c0_112 = arith.constant 0 : index
      %c0_113 = arith.constant 0 : index
      %c0_114 = arith.constant 0 : index
      %192 = vector.load %arg10[%c0_112, %c0_113, %c0_114] : memref<4x8x1xf32, #tpu.memory_space<vmem>>, vector<1x8x1xf32>
      %193 = vector.shape_cast %192 : vector<1x8x1xf32> to vector<8x1xf32>
      %194 = tpu.reciprocal %193 {approx = true} : vector<8x1xf32> -> vector<8x1xf32>
      %195 = vector.broadcast %194 : vector<8x1xf32> to vector<8x8xf32>
      %196 = arith.mulf %191, %195 : vector<8x8xf32>
      %c1_115 = arith.constant 1 : index
      %c0_116 = arith.constant 0 : index
      %c0_117 = arith.constant 0 : index
      %197 = vector.load %arg11[%c1_115, %c0_116, %c0_117] : memref<4x8x8xf32, #tpu.memory_space<vmem>>, vector<1x8x8xf32>
      %198 = vector.shape_cast %197 : vector<1x8x8xf32> to vector<8x8xf32>
      %c1_118 = arith.constant 1 : index
      %c0_119 = arith.constant 0 : index
      %c0_120 = arith.constant 0 : index
      %199 = vector.load %arg10[%c1_118, %c0_119, %c0_120] : memref<4x8x1xf32, #tpu.memory_space<vmem>>, vector<1x8x1xf32>
      %200 = vector.shape_cast %199 : vector<1x8x1xf32> to vector<8x1xf32>
      %201 = tpu.reciprocal %200 {approx = true} : vector<8x1xf32> -> vector<8x1xf32>
      %202 = vector.broadcast %201 : vector<8x1xf32> to vector<8x8xf32>
      %203 = arith.mulf %198, %202 : vector<8x8xf32>
      %c2_121 = arith.constant 2 : index
      %c0_122 = arith.constant 0 : index
      %c0_123 = arith.constant 0 : index
      %204 = vector.load %arg11[%c2_121, %c0_122, %c0_123] : memref<4x8x8xf32, #tpu.memory_space<vmem>>, vector<1x8x8xf32>
      %205 = vector.shape_cast %204 : vector<1x8x8xf32> to vector<8x8xf32>
      %c2_124 = arith.constant 2 : index
      %c0_125 = arith.constant 0 : index
      %c0_126 = arith.constant 0 : index
      %206 = vector.load %arg10[%c2_124, %c0_125, %c0_126] : memref<4x8x1xf32, #tpu.memory_space<vmem>>, vector<1x8x1xf32>
      %207 = vector.shape_cast %206 : vector<1x8x1xf32> to vector<8x1xf32>
      %208 = tpu.reciprocal %207 {approx = true} : vector<8x1xf32> -> vector<8x1xf32>
      %209 = vector.broadcast %208 : vector<8x1xf32> to vector<8x8xf32>
      %210 = arith.mulf %205, %209 : vector<8x8xf32>
      %c3_127 = arith.constant 3 : index
      %c0_128 = arith.constant 0 : index
      %c0_129 = arith.constant 0 : index
      %211 = vector.load %arg11[%c3_127, %c0_128, %c0_129] : memref<4x8x8xf32, #tpu.memory_space<vmem>>, vector<1x8x8xf32>
      %212 = vector.shape_cast %211 : vector<1x8x8xf32> to vector<8x8xf32>
      %c3_130 = arith.constant 3 : index
      %c0_131 = arith.constant 0 : index
      %c0_132 = arith.constant 0 : index
      %213 = vector.load %arg10[%c3_130, %c0_131, %c0_132] : memref<4x8x1xf32, #tpu.memory_space<vmem>>, vector<1x8x1xf32>
      %214 = vector.shape_cast %213 : vector<1x8x1xf32> to vector<8x1xf32>
      %215 = tpu.reciprocal %214 {approx = true} : vector<8x1xf32> -> vector<8x1xf32>
      %216 = vector.broadcast %215 : vector<8x1xf32> to vector<8x8xf32>
      %217 = arith.mulf %212, %216 : vector<8x8xf32>
      %cst_133 = arith.constant 0.000000e+00 : f32
      %218 = vector.broadcast %cst_133 : f32 to vector<8x96xf32>
      %219 = tpu.concatenate %196, %203, %210, %217, %218 in 1 : vector<8x8xf32>, vector<8x8xf32>, vector<8x8xf32>, vector<8x8xf32>, vector<8x96xf32> -> vector<8x128xf32>
      %220 = arith.truncf %219 : vector<8x128xf32> to vector<8x128xbf16>
      %c0_134 = arith.constant 0 : index
      %c0_135 = arith.constant 0 : index
      %c0_136 = arith.constant 0 : index
      %221 = vector.load %arg8[%c0_134, %c0_135, %c0_136] : memref<1x8x128xbf16, #tpu.memory_space<vmem>>, vector<1x8x128xbf16>
      %222 = vector.shape_cast %221 : vector<1x8x128xbf16> to vector<8x128xbf16>
      %223 = vector.shape_cast %220 : vector<8x128xbf16> to vector<1x8x128xbf16>
      tpu.vector_store %arg8[%c0_134, %c0_135, %c0_136], %223 {strides = array<i32>} : memref<1x8x128xbf16, #tpu.memory_space<vmem>>, vector<1x8x128xbf16>,
    } else {
    }
    return
  }
  func.func @transform_0(%arg0: i32, %arg1: i32, %arg2: i32) -> (i32, i32, i32) {
    %c0_i32 = arith.constant 0 : i32
    %c0_i32_0 = arith.constant 0 : i32
    return %arg0, %arg1, %c0_i32 : i32, i32, i32
  }
  func.func @transform_1(%arg0: i32, %arg1: i32, %arg2: i32) -> (i32, i32, i32) {
    %c0_i32 = arith.constant 0 : i32
    %c0_i32_0 = arith.constant 0 : i32
    return %arg0, %c0_i32, %arg2 : i32, i32, i32
  }
  func.func @transform_2(%arg0: i32, %arg1: i32, %arg2: i32) -> (i32, i32, i32) {
    %c0_i32 = arith.constant 0 : i32
    %c0_i32_0 = arith.constant 0 : i32
    return %arg0, %arg1, %c0_i32 : i32, i32, i32
  }
  func.func @transform_3(%arg0: i32, %arg1: i32, %arg2: i32) -> (i32, i32, i32) {
    %c1_i32 = arith.constant 1 : i32
    %c0_i32 = arith.constant 0 : i32
    return %arg0, %arg2, %c1_i32 : i32, i32, i32
  }
  func.func @transform_4(%arg0: i32, %arg1: i32, %arg2: i32) -> (i32, i32, i32) {
    %c2_i32 = arith.constant 2 : i32
    %c0_i32 = arith.constant 0 : i32
    return %arg0, %arg2, %c2_i32 : i32, i32, i32
  }
  func.func @transform_5(%arg0: i32, %arg1: i32, %arg2: i32) -> (i32, i32, i32) {
    %c0_i32 = arith.constant 0 : i32
    %c0_i32_0 = arith.constant 0 : i32
    return %arg0, %arg1, %c0_i32 : i32, i32, i32
  }
}

module attributes {stable_mosaic.version = 11 : i64} {
  func.func @_linear_single_kernel(%arg0: i32, %arg1: i32, %arg2: memref<16x128xbf16, #tpu.memory_space<vmem>>, %arg3: memref<128x128xbf16, #tpu.memory_space<vmem>>, %arg4: memref<1x128xf32, #tpu.memory_space<vmem>>, %arg5: memref<16x128xf32, #tpu.memory_space<vmem>>) attributes {dimension_semantics = [#tpu.dimension_semantics<parallel>, #tpu.dimension_semantics<parallel>], iteration_bounds = array<i64: 1, 1>, scalar_prefetch = 0 : i64, scratch_operands = 0 : i64, tpu.core_type = #tpu.core_type<tc>, window_params = [{transform_indices = @transform_0, window_bounds = array<i64: 16, 128>}, {transform_indices = @transform_1, window_bounds = array<i64: 128, 128>}, {transform_indices = @transform_2, window_bounds = array<i64: 1, 128>}, {transform_indices = @transform_3, window_bounds = array<i64: 16, 128>}]} {
    %c0 = arith.constant 0 : index
    %c0_0 = arith.constant 0 : index
    %0 = vector.load %arg2[%c0, %c0_0] : memref<16x128xbf16, #tpu.memory_space<vmem>>, vector<16x128xbf16>
    %c0_1 = arith.constant 0 : index
    %c0_2 = arith.constant 0 : index
    %1 = vector.load %arg3[%c0_1, %c0_2] : memref<128x128xbf16, #tpu.memory_space<vmem>>, vector<128x128xbf16>
    %cst = arith.constant dense<0.000000e+00> : vector<16x128xf32>
    %2 = tpu.matmul %0, %1, %cst {dimension_numbers = #tpu.dot_dimension_numbers<[1], [0], [0], [1], [0, 0, 1, 1], [], []>} : vector<16x128xbf16>, vector<128x128xbf16>, vector<16x128xf32> -> vector<16x128xf32>
    %c0_3 = arith.constant 0 : index
    %c0_4 = arith.constant 0 : index
    %3 = vector.load %arg4[%c0_3, %c0_4] : memref<1x128xf32, #tpu.memory_space<vmem>>, vector<1x128xf32>
    %4 = vector.broadcast %3 : vector<1x128xf32> to vector<16x128xf32>
    %5 = arith.addf %2, %4 : vector<16x128xf32>
    %c0_5 = arith.constant 0 : index
    %c0_6 = arith.constant 0 : index
    %6 = vector.load %arg5[%c0_5, %c0_6] : memref<16x128xf32, #tpu.memory_space<vmem>>, vector<16x128xf32>
    tpu.vector_store %arg5[%c0_5, %c0_6], %5 {strides = array<i32>} : memref<16x128xf32, #tpu.memory_space<vmem>>, vector<16x128xf32>,
    return
  }
  func.func @transform_0(%arg0: i32, %arg1: i32) -> (i32, i32) {
    %c0_i32 = arith.constant 0 : i32
    %c0_i32_0 = arith.constant 0 : i32
    return %arg0, %c0_i32 : i32, i32
  }
  func.func @transform_1(%arg0: i32, %arg1: i32) -> (i32, i32) {
    %c0_i32 = arith.constant 0 : i32
    %c0_i32_0 = arith.constant 0 : i32
    return %c0_i32, %arg1 : i32, i32
  }
  func.func @transform_2(%arg0: i32, %arg1: i32) -> (i32, i32) {
    %c0_i32 = arith.constant 0 : i32
    %c0_i32_0 = arith.constant 0 : i32
    return %c0_i32, %arg1 : i32, i32
  }
  func.func @transform_3(%arg0: i32, %arg1: i32) -> (i32, i32) {
    %c0_i32 = arith.constant 0 : i32
    return %arg0, %arg1 : i32, i32
  }
}

module attributes {stable_mosaic.version = 11 : i64} {
  func.func @_mha_kernel(%arg0: i32, %arg1: i32, %arg2: i32, %arg3: memref<1x8x1xf32, #tpu.memory_space<vmem>>, %arg4: memref<1x1x8xf32, #tpu.memory_space<vmem>>, %arg5: memref<1x8x128xbf16, #tpu.memory_space<vmem>>, %arg6: memref<1x8x128xbf16, #tpu.memory_space<vmem>>, %arg7: memref<1x8x128xbf16, #tpu.memory_space<vmem>>, %arg8: memref<1x8x128xbf16, #tpu.memory_space<vmem>>, %arg9: memref<4x8x1xf32, #tpu.memory_space<vmem>>, %arg10: memref<4x8x1xf32, #tpu.memory_space<vmem>>, %arg11: memref<4x8x8xf32, #tpu.memory_space<vmem>>) attributes {dimension_semantics = [#tpu.dimension_semantics<parallel>, #tpu.dimension_semantics<parallel>, #tpu.dimension_semantics<arbitrary>], iteration_bounds = array<i64: 2, 1, 1>, scalar_prefetch = 0 : i64, scratch_operands = 3 : i64, tpu.core_type = #tpu.core_type<tc>, window_params = [{transform_indices = @transform_0, window_bounds = array<i64: 1, 8, 1>}, {transform_indices = @transform_1, window_bounds = array<i64: 1, 1, 8>}, {transform_indices = @transform_2, window_bounds = array<i64: 1, 8, 128>}, {transform_indices = @transform_3, window_bounds = array<i64: 1, 8, 128>}, {transform_indices = @transform_4, window_bounds = array<i64: 1, 8, 128>}, {transform_indices = @transform_5, window_bounds = array<i64: 1, 8, 128>}]} {
    %c0_i32 = arith.constant 0 : i32
    %0 = arith.cmpi eq, %arg2, %c0_i32 : i32
    %1 = arith.extui %0 : i1 to i32
    %c0_i32_0 = arith.constant 0 : i32
    %2 = arith.cmpi ne, %1, %c0_i32_0 : i32
    scf.if %2 {
      %cst_107 = arith.constant 0xFF800000 : f32
      %179 = vector.broadcast %cst_107 : f32 to vector<4x8x1xf32>
      %c0_108 = arith.constant 0 : index
      %c0_109 = arith.constant 0 : index
      %c0_110 = arith.constant 0 : index
      %180 = vector.load %arg9[%c0_108, %c0_109, %c0_110] : memref<4x8x1xf32, #tpu.memory_space<vmem>>, vector<4x8x1xf32>
      tpu.vector_store %arg9[%c0_108, %c0_109, %c0_110], %179 {strides = array<i32>} : memref<4x8x1xf32, #tpu.memory_space<vmem>>, vector<4x8x1xf32>,
      %cst_111 = arith.constant 0.000000e+00 : f32
      %181 = vector.broadcast %cst_111 : f32 to vector<4x8x1xf32>
      %c0_112 = arith.constant 0 : index
      %c0_113 = arith.constant 0 : index
      %c0_114 = arith.constant 0 : index
      %182 = vector.load %arg10[%c0_112, %c0_113, %c0_114] : memref<4x8x1xf32, #tpu.memory_space<vmem>>, vector<4x8x1xf32>
      tpu.vector_store %arg10[%c0_112, %c0_113, %c0_114], %181 {strides = array<i32>} : memref<4x8x1xf32, #tpu.memory_space<vmem>>, vector<4x8x1xf32>,
      %cst_115 = arith.constant 0.000000e+00 : f32
      %183 = vector.broadcast %cst_115 : f32 to vector<4x8x8xf32>
      %c0_116 = arith.constant 0 : index
      %c0_117 = arith.constant 0 : index
      %c0_118 = arith.constant 0 : index
      %184 = vector.load %arg11[%c0_116, %c0_117, %c0_118] : memref<4x8x8xf32, #tpu.memory_space<vmem>>, vector<4x8x8xf32>
      tpu.vector_store %arg11[%c0_116, %c0_117, %c0_118], %183 {strides = array<i32>} : memref<4x8x8xf32, #tpu.memory_space<vmem>>, vector<4x8x8xf32>,
    } else {
    }
    %c0 = arith.constant 0 : index
    %c0_1 = arith.constant 0 : index
    %c0_2 = arith.constant 0 : index
    %3 = vector.load %arg3[%c0, %c0_1, %c0_2] : memref<1x8x1xf32, #tpu.memory_space<vmem>>, vector<1x8x1xf32>
    %4 = vector.shape_cast %3 : vector<1x8x1xf32> to vector<8x1xf32>
    %c0_3 = arith.constant 0 : index
    %c0_4 = arith.constant 0 : index
    %c0_5 = arith.constant 0 : index
    %5 = vector.load %arg4[%c0_3, %c0_4, %c0_5] : memref<1x1x8xf32, #tpu.memory_space<vmem>>, vector<1x1x8xf32>
    %6 = vector.shape_cast %5 : vector<1x1x8xf32> to vector<1x8xf32>
    %7 = vector.broadcast %4 : vector<8x1xf32> to vector<8x8xf32>
    %8 = vector.broadcast %6 : vector<1x8xf32> to vector<8x8xf32>
    %9 = arith.mulf %7, %8 : vector<8x8xf32>
    %cst = arith.constant 1.000000e+00 : f32
    %10 = vector.broadcast %cst : f32 to vector<8x8xf32>
    %11 = arith.subf %9, %10 : vector<8x8xf32>
    %cst_6 = arith.constant 1.000000e+09 : f32
    %12 = vector.broadcast %cst_6 : f32 to vector<8x8xf32>
    %13 = arith.mulf %11, %12 : vector<8x8xf32>
    %c0_7 = arith.constant 0 : index
    %c0_8 = arith.constant 0 : index
    %c0_9 = arith.constant 0 : index
    %14 = vector.load %arg5[%c0_7, %c0_8, %c0_9] : memref<1x8x128xbf16, #tpu.memory_space<vmem>>, vector<1x8x128xbf16>
    %15 = vector.shape_cast %14 : vector<1x8x128xbf16> to vector<8x128xbf16>
    %c0_10 = arith.constant 0 : index
    %c0_11 = arith.constant 0 : index
    %c0_12 = arith.constant 0 : index
    %16 = vector.load %arg6[%c0_10, %c0_11, %c0_12] : memref<1x8x128xbf16, #tpu.memory_space<vmem>>, vector<1x8x128xbf16>
    %17 = vector.shape_cast %16 : vector<1x8x128xbf16> to vector<8x128xbf16>
    %c0_13 = arith.constant 0 : index
    %c0_14 = arith.constant 0 : index
    %c0_15 = arith.constant 0 : index
    %18 = vector.load %arg7[%c0_13, %c0_14, %c0_15] : memref<1x8x128xbf16, #tpu.memory_space<vmem>>, vector<1x8x128xbf16>
    %19 = vector.shape_cast %18 : vector<1x8x128xbf16> to vector<8x128xbf16>
    %20 = vector.extract_strided_slice %15 {offsets = [0, 0], sizes = [8, 8], strides = [1, 1]} : vector<8x128xbf16> to vector<8x8xbf16>
    %21 = vector.extract_strided_slice %17 {offsets = [0, 0], sizes = [8, 8], strides = [1, 1]} : vector<8x128xbf16> to vector<8x8xbf16>
    %cst_16 = arith.constant dense<0.000000e+00> : vector<8x8xf32>
    %22 = tpu.matmul %20, %21, %cst_16 {dimension_numbers = #tpu.dot_dimension_numbers<[1], [1], [0], [0], [0, 0, 1, 0], [], []>} : vector<8x8xbf16>, vector<8x8xbf16>, vector<8x8xf32> -> vector<8x8xf32>
    %cst_17 = arith.constant 0.353553385 : f32
    %23 = vector.broadcast %cst_17 : f32 to vector<8x8xf32>
    %24 = arith.mulf %22, %23 : vector<8x8xf32>
    %25 = arith.addf %24, %13 : vector<8x8xf32>
    %c0_18 = arith.constant 0 : index
    %c0_19 = arith.constant 0 : index
    %c0_20 = arith.constant 0 : index
    %26 = vector.load %arg9[%c0_18, %c0_19, %c0_20] : memref<4x8x1xf32, #tpu.memory_space<vmem>>, vector<1x8x1xf32>
    %27 = vector.shape_cast %26 : vector<1x8x1xf32> to vector<8x1xf32>
    %cst_21 = arith.constant dense<0xFF800000> : vector<8xf32>
    %28 = vector.multi_reduction <maximumf>, %25, %cst_21 [1] : vector<8x8xf32> to vector<8xf32>
    %29 = vector.shape_cast %28 : vector<8xf32> to vector<8x1xf32>
    %30 = arith.maximumf %27, %29 : vector<8x1xf32>
    %31 = arith.subf %27, %30 : vector<8x1xf32>
    %32 = math.exp %31 : vector<8x1xf32>
    %33 = vector.broadcast %30 : vector<8x1xf32> to vector<8x8xf32>
    %34 = arith.subf %25, %33 : vector<8x8xf32>
    %35 = math.exp %34 : vector<8x8xf32>
    %c0_22 = arith.constant 0 : index
    %c0_23 = arith.constant 0 : index
    %c0_24 = arith.constant 0 : index
    %36 = vector.load %arg10[%c0_22, %c0_23, %c0_24] : memref<4x8x1xf32, #tpu.memory_space<vmem>>, vector<1x8x1xf32>
    %37 = vector.shape_cast %36 : vector<1x8x1xf32> to vector<8x1xf32>
    %38 = arith.mulf %32, %37 : vector<8x1xf32>
    %cst_25 = arith.constant dense<0.000000e+00> : vector<8xf32>
    %39 = vector.multi_reduction <add>, %35, %cst_25 [1] : vector<8x8xf32> to vector<8xf32>
    %40 = vector.shape_cast %39 : vector<8xf32> to vector<8x1xf32>
    %41 = arith.addf %38, %40 : vector<8x1xf32>
    %c0_26 = arith.constant 0 : index
    %c0_27 = arith.constant 0 : index
    %c0_28 = arith.constant 0 : index
    %42 = vector.load %arg10[%c0_26, %c0_27, %c0_28] : memref<4x8x1xf32, #tpu.memory_space<vmem>>, vector<1x8x1xf32>
    %43 = vector.shape_cast %42 : vector<1x8x1xf32> to vector<8x1xf32>
    %44 = vector.shape_cast %41 : vector<8x1xf32> to vector<1x8x1xf32>
    tpu.vector_store %arg10[%c0_26, %c0_27, %c0_28], %44 {strides = array<i32>} : memref<4x8x1xf32, #tpu.memory_space<vmem>>, vector<1x8x1xf32>,
    %c0_29 = arith.constant 0 : index
    %c0_30 = arith.constant 0 : index
    %c0_31 = arith.constant 0 : index
    %45 = vector.load %arg11[%c0_29, %c0_30, %c0_31] : memref<4x8x8xf32, #tpu.memory_space<vmem>>, vector<1x8x8xf32>
    %46 = vector.shape_cast %45 : vector<1x8x8xf32> to vector<8x8xf32>
    %47 = vector.broadcast %32 : vector<8x1xf32> to vector<8x8xf32>
    %48 = arith.mulf %47, %46 : vector<8x8xf32>
    %49 = arith.truncf %35 : vector<8x8xf32> to vector<8x8xbf16>
    %50 = vector.extract_strided_slice %19 {offsets = [0, 0], sizes = [8, 8], strides = [1, 1]} : vector<8x128xbf16> to vector<8x8xbf16>
    %cst_32 = arith.constant dense<0.000000e+00> : vector<8x8xf32>
    %51 = tpu.matmul %49, %50, %cst_32 {dimension_numbers = #tpu.dot_dimension_numbers<[1], [0], [0], [1], [0, 0, 1, 1], [], []>} : vector<8x8xbf16>, vector<8x8xbf16>, vector<8x8xf32> -> vector<8x8xf32>
    %52 = arith.addf %48, %51 : vector<8x8xf32>
    %c0_33 = arith.constant 0 : index
    %c0_34 = arith.constant 0 : index
    %c0_35 = arith.constant 0 : index
    %53 = vector.load %arg11[%c0_33, %c0_34, %c0_35] : memref<4x8x8xf32, #tpu.memory_space<vmem>>, vector<1x8x8xf32>
    %54 = vector.shape_cast %53 : vector<1x8x8xf32> to vector<8x8xf32>
    %55 = vector.shape_cast %52 : vector<8x8xf32> to vector<1x8x8xf32>
    tpu.vector_store %arg11[%c0_33, %c0_34, %c0_35], %55 {strides = array<i32>} : memref<4x8x8xf32, #tpu.memory_space<vmem>>, vector<1x8x8xf32>,
    %c0_36 = arith.constant 0 : index
    %c0_37 = arith.constant 0 : index
    %c0_38 = arith.constant 0 : index
    %56 = vector.load %arg9[%c0_36, %c0_37, %c0_38] : memref<4x8x1xf32, #tpu.memory_space<vmem>>, vector<1x8x1xf32>
    %57 = vector.shape_cast %56 : vector<1x8x1xf32> to vector<8x1xf32>
    %58 = vector.shape_cast %30 : vector<8x1xf32> to vector<1x8x1xf32>
    tpu.vector_store %arg9[%c0_36, %c0_37, %c0_38], %58 {strides = array<i32>} : memref<4x8x1xf32, #tpu.memory_space<vmem>>, vector<1x8x1xf32>,
    %59 = vector.extract_strided_slice %15 {offsets = [0, 8], sizes = [8, 8], strides = [1, 1]} : vector<8x128xbf16> to vector<8x8xbf16>
    %60 = vector.extract_strided_slice %17 {offsets = [0, 8], sizes = [8, 8], strides = [1, 1]} : vector<8x128xbf16> to vector<8x8xbf16>
    %cst_39 = arith.constant dense<0.000000e+00> : vector<8x8xf32>
    %61 = tpu.matmul %59, %60, %cst_39 {dimension_numbers = #tpu.dot_dimension_numbers<[1], [1], [0], [0], [0, 0, 1, 0], [], []>} : vector<8x8xbf16>, vector<8x8xbf16>, vector<8x8xf32> -> vector<8x8xf32>
    %cst_40 = arith.constant 0.353553385 : f32
    %62 = vector.broadcast %cst_40 : f32 to vector<8x8xf32>
    %63 = arith.mulf %61, %62 : vector<8x8xf32>
    %64 = arith.addf %63, %13 : vector<8x8xf32>
    %c1 = arith.constant 1 : index
    %c0_41 = arith.constant 0 : index
    %c0_42 = arith.constant 0 : index
    %65 = vector.load %arg9[%c1, %c0_41, %c0_42] : memref<4x8x1xf32, #tpu.memory_space<vmem>>, vector<1x8x1xf32>
    %66 = vector.shape_cast %65 : vector<1x8x1xf32> to vector<8x1xf32>
    %cst_43 = arith.constant dense<0xFF800000> : vector<8xf32>
    %67 = vector.multi_reduction <maximumf>, %64, %cst_43 [1] : vector<8x8xf32> to vector<8xf32>
    %68 = vector.shape_cast %67 : vector<8xf32> to vector<8x1xf32>
    %69 = arith.maximumf %66, %68 : vector<8x1xf32>
    %70 = arith.subf %66, %69 : vector<8x1xf32>
    %71 = math.exp %70 : vector<8x1xf32>
    %72 = vector.broadcast %69 : vector<8x1xf32> to vector<8x8xf32>
    %73 = arith.subf %64, %72 : vector<8x8xf32>
    %74 = math.exp %73 : vector<8x8xf32>
    %c1_44 = arith.constant 1 : index
    %c0_45 = arith.constant 0 : index
    %c0_46 = arith.constant 0 : index
    %75 = vector.load %arg10[%c1_44, %c0_45, %c0_46] : memref<4x8x1xf32, #tpu.memory_space<vmem>>, vector<1x8x1xf32>
    %76 = vector.shape_cast %75 : vector<1x8x1xf32> to vector<8x1xf32>
    %77 = arith.mulf %71, %76 : vector<8x1xf32>
    %cst_47 = arith.constant dense<0.000000e+00> : vector<8xf32>
    %78 = vector.multi_reduction <add>, %74, %cst_47 [1] : vector<8x8xf32> to vector<8xf32>
    %79 = vector.shape_cast %78 : vector<8xf32> to vector<8x1xf32>
    %80 = arith.addf %77, %79 : vector<8x1xf32>
    %c1_48 = arith.constant 1 : index
    %c0_49 = arith.constant 0 : index
    %c0_50 = arith.constant 0 : index
    %81 = vector.load %arg10[%c1_48, %c0_49, %c0_50] : memref<4x8x1xf32, #tpu.memory_space<vmem>>, vector<1x8x1xf32>
    %82 = vector.shape_cast %81 : vector<1x8x1xf32> to vector<8x1xf32>
    %83 = vector.shape_cast %80 : vector<8x1xf32> to vector<1x8x1xf32>
    tpu.vector_store %arg10[%c1_48, %c0_49, %c0_50], %83 {strides = array<i32>} : memref<4x8x1xf32, #tpu.memory_space<vmem>>, vector<1x8x1xf32>,
    %c1_51 = arith.constant 1 : index
    %c0_52 = arith.constant 0 : index
    %c0_53 = arith.constant 0 : index
    %84 = vector.load %arg11[%c1_51, %c0_52, %c0_53] : memref<4x8x8xf32, #tpu.memory_space<vmem>>, vector<1x8x8xf32>
    %85 = vector.shape_cast %84 : vector<1x8x8xf32> to vector<8x8xf32>
    %86 = vector.broadcast %71 : vector<8x1xf32> to vector<8x8xf32>
    %87 = arith.mulf %86, %85 : vector<8x8xf32>
    %88 = arith.truncf %74 : vector<8x8xf32> to vector<8x8xbf16>
    %89 = vector.extract_strided_slice %19 {offsets = [0, 8], sizes = [8, 8], strides = [1, 1]} : vector<8x128xbf16> to vector<8x8xbf16>
    %cst_54 = arith.constant dense<0.000000e+00> : vector<8x8xf32>
    %90 = tpu.matmul %88, %89, %cst_54 {dimension_numbers = #tpu.dot_dimension_numbers<[1], [0], [0], [1], [0, 0, 1, 1], [], []>} : vector<8x8xbf16>, vector<8x8xbf16>, vector<8x8xf32> -> vector<8x8xf32>
    %91 = arith.addf %87, %90 : vector<8x8xf32>
    %c1_55 = arith.constant 1 : index
    %c0_56 = arith.constant 0 : index
    %c0_57 = arith.constant 0 : index
    %92 = vector.load %arg11[%c1_55, %c0_56, %c0_57] : memref<4x8x8xf32, #tpu.memory_space<vmem>>, vector<1x8x8xf32>
    %93 = vector.shape_cast %92 : vector<1x8x8xf32> to vector<8x8xf32>
    %94 = vector.shape_cast %91 : vector<8x8xf32> to vector<1x8x8xf32>
    tpu.vector_store %arg11[%c1_55, %c0_56, %c0_57], %94 {strides = array<i32>} : memref<4x8x8xf32, #tpu.memory_space<vmem>>, vector<1x8x8xf32>,
    %c1_58 = arith.constant 1 : index
    %c0_59 = arith.constant 0 : index
    %c0_60 = arith.constant 0 : index
    %95 = vector.load %arg9[%c1_58, %c0_59, %c0_60] : memref<4x8x1xf32, #tpu.memory_space<vmem>>, vector<1x8x1xf32>
    %96 = vector.shape_cast %95 : vector<1x8x1xf32> to vector<8x1xf32>
    %97 = vector.shape_cast %69 : vector<8x1xf32> to vector<1x8x1xf32>
    tpu.vector_store %arg9[%c1_58, %c0_59, %c0_60], %97 {strides = array<i32>} : memref<4x8x1xf32, #tpu.memory_space<vmem>>, vector<1x8x1xf32>,
    %98 = vector.extract_strided_slice %15 {offsets = [0, 16], sizes = [8, 8], strides = [1, 1]} : vector<8x128xbf16> to vector<8x8xbf16>
    %99 = vector.extract_strided_slice %17 {offsets = [0, 16], sizes = [8, 8], strides = [1, 1]} : vector<8x128xbf16> to vector<8x8xbf16>
    %cst_61 = arith.constant dense<0.000000e+00> : vector<8x8xf32>
    %100 = tpu.matmul %98, %99, %cst_61 {dimension_numbers = #tpu.dot_dimension_numbers<[1], [1], [0], [0], [0, 0, 1, 0], [], []>} : vector<8x8xbf16>, vector<8x8xbf16>, vector<8x8xf32> -> vector<8x8xf32>
    %cst_62 = arith.constant 0.353553385 : f32
    %101 = vector.broadcast %cst_62 : f32 to vector<8x8xf32>
    %102 = arith.mulf %100, %101 : vector<8x8xf32>
    %103 = arith.addf %102, %13 : vector<8x8xf32>
    %c2 = arith.constant 2 : index
    %c0_63 = arith.constant 0 : index
    %c0_64 = arith.constant 0 : index
    %104 = vector.load %arg9[%c2, %c0_63, %c0_64] : memref<4x8x1xf32, #tpu.memory_space<vmem>>, vector<1x8x1xf32>
    %105 = vector.shape_cast %104 : vector<1x8x1xf32> to vector<8x1xf32>
    %cst_65 = arith.constant dense<0xFF800000> : vector<8xf32>
    %106 = vector.multi_reduction <maximumf>, %103, %cst_65 [1] : vector<8x8xf32> to vector<8xf32>
    %107 = vector.shape_cast %106 : vector<8xf32> to vector<8x1xf32>
    %108 = arith.maximumf %105, %107 : vector<8x1xf32>
    %109 = arith.subf %105, %108 : vector<8x1xf32>
    %110 = math.exp %109 : vector<8x1xf32>
    %111 = vector.broadcast %108 : vector<8x1xf32> to vector<8x8xf32>
    %112 = arith.subf %103, %111 : vector<8x8xf32>
    %113 = math.exp %112 : vector<8x8xf32>
    %c2_66 = arith.constant 2 : index
    %c0_67 = arith.constant 0 : index
    %c0_68 = arith.constant 0 : index
    %114 = vector.load %arg10[%c2_66, %c0_67, %c0_68] : memref<4x8x1xf32, #tpu.memory_space<vmem>>, vector<1x8x1xf32>
    %115 = vector.shape_cast %114 : vector<1x8x1xf32> to vector<8x1xf32>
    %116 = arith.mulf %110, %115 : vector<8x1xf32>
    %cst_69 = arith.constant dense<0.000000e+00> : vector<8xf32>
    %117 = vector.multi_reduction <add>, %113, %cst_69 [1] : vector<8x8xf32> to vector<8xf32>
    %118 = vector.shape_cast %117 : vector<8xf32> to vector<8x1xf32>
    %119 = arith.addf %116, %118 : vector<8x1xf32>
    %c2_70 = arith.constant 2 : index
    %c0_71 = arith.constant 0 : index
    %c0_72 = arith.constant 0 : index
    %120 = vector.load %arg10[%c2_70, %c0_71, %c0_72] : memref<4x8x1xf32, #tpu.memory_space<vmem>>, vector<1x8x1xf32>
    %121 = vector.shape_cast %120 : vector<1x8x1xf32> to vector<8x1xf32>
    %122 = vector.shape_cast %119 : vector<8x1xf32> to vector<1x8x1xf32>
    tpu.vector_store %arg10[%c2_70, %c0_71, %c0_72], %122 {strides = array<i32>} : memref<4x8x1xf32, #tpu.memory_space<vmem>>, vector<1x8x1xf32>,
    %c2_73 = arith.constant 2 : index
    %c0_74 = arith.constant 0 : index
    %c0_75 = arith.constant 0 : index
    %123 = vector.load %arg11[%c2_73, %c0_74, %c0_75] : memref<4x8x8xf32, #tpu.memory_space<vmem>>, vector<1x8x8xf32>
    %124 = vector.shape_cast %123 : vector<1x8x8xf32> to vector<8x8xf32>
    %125 = vector.broadcast %110 : vector<8x1xf32> to vector<8x8xf32>
    %126 = arith.mulf %125, %124 : vector<8x8xf32>
    %127 = arith.truncf %113 : vector<8x8xf32> to vector<8x8xbf16>
    %128 = vector.extract_strided_slice %19 {offsets = [0, 16], sizes = [8, 8], strides = [1, 1]} : vector<8x128xbf16> to vector<8x8xbf16>
    %cst_76 = arith.constant dense<0.000000e+00> : vector<8x8xf32>
    %129 = tpu.matmul %127, %128, %cst_76 {dimension_numbers = #tpu.dot_dimension_numbers<[1], [0], [0], [1], [0, 0, 1, 1], [], []>} : vector<8x8xbf16>, vector<8x8xbf16>, vector<8x8xf32> -> vector<8x8xf32>
    %130 = arith.addf %126, %129 : vector<8x8xf32>
    %c2_77 = arith.constant 2 : index
    %c0_78 = arith.constant 0 : index
    %c0_79 = arith.constant 0 : index
    %131 = vector.load %arg11[%c2_77, %c0_78, %c0_79] : memref<4x8x8xf32, #tpu.memory_space<vmem>>, vector<1x8x8xf32>
    %132 = vector.shape_cast %131 : vector<1x8x8xf32> to vector<8x8xf32>
    %133 = vector.shape_cast %130 : vector<8x8xf32> to vector<1x8x8xf32>
    tpu.vector_store %arg11[%c2_77, %c0_78, %c0_79], %133 {strides = array<i32>} : memref<4x8x8xf32, #tpu.memory_space<vmem>>, vector<1x8x8xf32>,
    %c2_80 = arith.constant 2 : index
    %c0_81 = arith.constant 0 : index
    %c0_82 = arith.constant 0 : index
    %134 = vector.load %arg9[%c2_80, %c0_81, %c0_82] : memref<4x8x1xf32, #tpu.memory_space<vmem>>, vector<1x8x1xf32>
    %135 = vector.shape_cast %134 : vector<1x8x1xf32> to vector<8x1xf32>
    %136 = vector.shape_cast %108 : vector<8x1xf32> to vector<1x8x1xf32>
    tpu.vector_store %arg9[%c2_80, %c0_81, %c0_82], %136 {strides = array<i32>} : memref<4x8x1xf32, #tpu.memory_space<vmem>>, vector<1x8x1xf32>,
    %137 = vector.extract_strided_slice %15 {offsets = [0, 24], sizes = [8, 8], strides = [1, 1]} : vector<8x128xbf16> to vector<8x8xbf16>
    %138 = vector.extract_strided_slice %17 {offsets = [0, 24], sizes = [8, 8], strides = [1, 1]} : vector<8x128xbf16> to vector<8x8xbf16>
    %cst_83 = arith.constant dense<0.000000e+00> : vector<8x8xf32>
    %139 = tpu.matmul %137, %138, %cst_83 {dimension_numbers = #tpu.dot_dimension_numbers<[1], [1], [0], [0], [0, 0, 1, 0], [], []>} : vector<8x8xbf16>, vector<8x8xbf16>, vector<8x8xf32> -> vector<8x8xf32>
    %cst_84 = arith.constant 0.353553385 : f32
    %140 = vector.broadcast %cst_84 : f32 to vector<8x8xf32>
    %141 = arith.mulf %139, %140 : vector<8x8xf32>
    %142 = arith.addf %141, %13 : vector<8x8xf32>
    %c3 = arith.constant 3 : index
    %c0_85 = arith.constant 0 : index
    %c0_86 = arith.constant 0 : index
    %143 = vector.load %arg9[%c3, %c0_85, %c0_86] : memref<4x8x1xf32, #tpu.memory_space<vmem>>, vector<1x8x1xf32>
    %144 = vector.shape_cast %143 : vector<1x8x1xf32> to vector<8x1xf32>
    %cst_87 = arith.constant dense<0xFF800000> : vector<8xf32>
    %145 = vector.multi_reduction <maximumf>, %142, %cst_87 [1] : vector<8x8xf32> to vector<8xf32>
    %146 = vector.shape_cast %145 : vector<8xf32> to vector<8x1xf32>
    %147 = arith.maximumf %144, %146 : vector<8x1xf32>
    %148 = arith.subf %144, %147 : vector<8x1xf32>
    %149 = math.exp %148 : vector<8x1xf32>
    %150 = vector.broadcast %147 : vector<8x1xf32> to vector<8x8xf32>
    %151 = arith.subf %142, %150 : vector<8x8xf32>
    %152 = math.exp %151 : vector<8x8xf32>
    %c3_88 = arith.constant 3 : index
    %c0_89 = arith.constant 0 : index
    %c0_90 = arith.constant 0 : index
    %153 = vector.load %arg10[%c3_88, %c0_89, %c0_90] : memref<4x8x1xf32, #tpu.memory_space<vmem>>, vector<1x8x1xf32>
    %154 = vector.shape_cast %153 : vector<1x8x1xf32> to vector<8x1xf32>
    %155 = arith.mulf %149, %154 : vector<8x1xf32>
    %cst_91 = arith.constant dense<0.000000e+00> : vector<8xf32>
    %156 = vector.multi_reduction <add>, %152, %cst_91 [1] : vector<8x8xf32> to vector<8xf32>
    %157 = vector.shape_cast %156 : vector<8xf32> to vector<8x1xf32>
    %158 = arith.addf %155, %157 : vector<8x1xf32>
    %c3_92 = arith.constant 3 : index
    %c0_93 = arith.constant 0 : index
    %c0_94 = arith.constant 0 : index
    %159 = vector.load %arg10[%c3_92, %c0_93, %c0_94] : memref<4x8x1xf32, #tpu.memory_space<vmem>>, vector<1x8x1xf32>
    %160 = vector.shape_cast %159 : vector<1x8x1xf32> to vector<8x1xf32>
    %161 = vector.shape_cast %158 : vector<8x1xf32> to vector<1x8x1xf32>
    tpu.vector_store %arg10[%c3_92, %c0_93, %c0_94], %161 {strides = array<i32>} : memref<4x8x1xf32, #tpu.memory_space<vmem>>, vector<1x8x1xf32>,
    %c3_95 = arith.constant 3 : index
    %c0_96 = arith.constant 0 : index
    %c0_97 = arith.constant 0 : index
    %162 = vector.load %arg11[%c3_95, %c0_96, %c0_97] : memref<4x8x8xf32, #tpu.memory_space<vmem>>, vector<1x8x8xf32>
    %163 = vector.shape_cast %162 : vector<1x8x8xf32> to vector<8x8xf32>
    %164 = vector.broadcast %149 : vector<8x1xf32> to vector<8x8xf32>
    %165 = arith.mulf %164, %163 : vector<8x8xf32>
    %166 = arith.truncf %152 : vector<8x8xf32> to vector<8x8xbf16>
    %167 = vector.extract_strided_slice %19 {offsets = [0, 24], sizes = [8, 8], strides = [1, 1]} : vector<8x128xbf16> to vector<8x8xbf16>
    %cst_98 = arith.constant dense<0.000000e+00> : vector<8x8xf32>
    %168 = tpu.matmul %166, %167, %cst_98 {dimension_numbers = #tpu.dot_dimension_numbers<[1], [0], [0], [1], [0, 0, 1, 1], [], []>} : vector<8x8xbf16>, vector<8x8xbf16>, vector<8x8xf32> -> vector<8x8xf32>
    %169 = arith.addf %165, %168 : vector<8x8xf32>
    %c3_99 = arith.constant 3 : index
    %c0_100 = arith.constant 0 : index
    %c0_101 = arith.constant 0 : index
    %170 = vector.load %arg11[%c3_99, %c0_100, %c0_101] : memref<4x8x8xf32, #tpu.memory_space<vmem>>, vector<1x8x8xf32>
    %171 = vector.shape_cast %170 : vector<1x8x8xf32> to vector<8x8xf32>
    %172 = vector.shape_cast %169 : vector<8x8xf32> to vector<1x8x8xf32>
    tpu.vector_store %arg11[%c3_99, %c0_100, %c0_101], %172 {strides = array<i32>} : memref<4x8x8xf32, #tpu.memory_space<vmem>>, vector<1x8x8xf32>,
    %c3_102 = arith.constant 3 : index
    %c0_103 = arith.constant 0 : index
    %c0_104 = arith.constant 0 : index
    %173 = vector.load %arg9[%c3_102, %c0_103, %c0_104] : memref<4x8x1xf32, #tpu.memory_space<vmem>>, vector<1x8x1xf32>
    %174 = vector.shape_cast %173 : vector<1x8x1xf32> to vector<8x1xf32>
    %175 = vector.shape_cast %147 : vector<8x1xf32> to vector<1x8x1xf32>
    tpu.vector_store %arg9[%c3_102, %c0_103, %c0_104], %175 {strides = array<i32>} : memref<4x8x1xf32, #tpu.memory_space<vmem>>, vector<1x8x1xf32>,
    %c0_i32_105 = arith.constant 0 : i32
    %176 = arith.cmpi eq, %arg2, %c0_i32_105 : i32
    %177 = arith.extui %176 : i1 to i32
    %c0_i32_106 = arith.constant 0 : i32
    %178 = arith.cmpi ne, %177, %c0_i32_106 : i32
    scf.if %178 {
      %c0_107 = arith.constant 0 : index
      %c0_108 = arith.constant 0 : index
      %c0_109 = arith.constant 0 : index
      %179 = vector.load %arg11[%c0_107, %c0_108, %c0_109] : memref<4x8x8xf32, #tpu.memory_space<vmem>>, vector<1x8x8xf32>
      %180 = vector.shape_cast %179 : vector<1x8x8xf32> to vector<8x8xf32>
      %c0_110 = arith.constant 0 : index
      %c0_111 = arith.constant 0 : index
      %c0_112 = arith.constant 0 : index
      %181 = vector.load %arg10[%c0_110, %c0_111, %c0_112] : memref<4x8x1xf32, #tpu.memory_space<vmem>>, vector<1x8x1xf32>
      %182 = vector.shape_cast %181 : vector<1x8x1xf32> to vector<8x1xf32>
      %183 = tpu.reciprocal %182 {approx = true} : vector<8x1xf32> -> vector<8x1xf32>
      %184 = vector.broadcast %183 : vector<8x1xf32> to vector<8x8xf32>
      %185 = arith.mulf %180, %184 : vector<8x8xf32>
      %c1_113 = arith.constant 1 : index
      %c0_114 = arith.constant 0 : index
      %c0_115 = arith.constant 0 : index
      %186 = vector.load %arg11[%c1_113, %c0_114, %c0_115] : memref<4x8x8xf32, #tpu.memory_space<vmem>>, vector<1x8x8xf32>
      %187 = vector.shape_cast %186 : vector<1x8x8xf32> to vector<8x8xf32>
      %c1_116 = arith.constant 1 : index
      %c0_117 = arith.constant 0 : index
      %c0_118 = arith.constant 0 : index
      %188 = vector.load %arg10[%c1_116, %c0_117, %c0_118] : memref<4x8x1xf32, #tpu.memory_space<vmem>>, vector<1x8x1xf32>
      %189 = vector.shape_cast %188 : vector<1x8x1xf32> to vector<8x1xf32>
      %190 = tpu.reciprocal %189 {approx = true} : vector<8x1xf32> -> vector<8x1xf32>
      %191 = vector.broadcast %190 : vector<8x1xf32> to vector<8x8xf32>
      %192 = arith.mulf %187, %191 : vector<8x8xf32>
      %c2_119 = arith.constant 2 : index
      %c0_120 = arith.constant 0 : index
      %c0_121 = arith.constant 0 : index
      %193 = vector.load %arg11[%c2_119, %c0_120, %c0_121] : memref<4x8x8xf32, #tpu.memory_space<vmem>>, vector<1x8x8xf32>
      %194 = vector.shape_cast %193 : vector<1x8x8xf32> to vector<8x8xf32>
      %c2_122 = arith.constant 2 : index
      %c0_123 = arith.constant 0 : index
      %c0_124 = arith.constant 0 : index
      %195 = vector.load %arg10[%c2_122, %c0_123, %c0_124] : memref<4x8x1xf32, #tpu.memory_space<vmem>>, vector<1x8x1xf32>
      %196 = vector.shape_cast %195 : vector<1x8x1xf32> to vector<8x1xf32>
      %197 = tpu.reciprocal %196 {approx = true} : vector<8x1xf32> -> vector<8x1xf32>
      %198 = vector.broadcast %197 : vector<8x1xf32> to vector<8x8xf32>
      %199 = arith.mulf %194, %198 : vector<8x8xf32>
      %c3_125 = arith.constant 3 : index
      %c0_126 = arith.constant 0 : index
      %c0_127 = arith.constant 0 : index
      %200 = vector.load %arg11[%c3_125, %c0_126, %c0_127] : memref<4x8x8xf32, #tpu.memory_space<vmem>>, vector<1x8x8xf32>
      %201 = vector.shape_cast %200 : vector<1x8x8xf32> to vector<8x8xf32>
      %c3_128 = arith.constant 3 : index
      %c0_129 = arith.constant 0 : index
      %c0_130 = arith.constant 0 : index
      %202 = vector.load %arg10[%c3_128, %c0_129, %c0_130] : memref<4x8x1xf32, #tpu.memory_space<vmem>>, vector<1x8x1xf32>
      %203 = vector.shape_cast %202 : vector<1x8x1xf32> to vector<8x1xf32>
      %204 = tpu.reciprocal %203 {approx = true} : vector<8x1xf32> -> vector<8x1xf32>
      %205 = vector.broadcast %204 : vector<8x1xf32> to vector<8x8xf32>
      %206 = arith.mulf %201, %205 : vector<8x8xf32>
      %cst_131 = arith.constant 0.000000e+00 : f32
      %207 = vector.broadcast %cst_131 : f32 to vector<8x96xf32>
      %208 = tpu.concatenate %185, %192, %199, %206, %207 in 1 : vector<8x8xf32>, vector<8x8xf32>, vector<8x8xf32>, vector<8x8xf32>, vector<8x96xf32> -> vector<8x128xf32>
      %209 = arith.truncf %208 : vector<8x128xf32> to vector<8x128xbf16>
      %c0_132 = arith.constant 0 : index
      %c0_133 = arith.constant 0 : index
      %c0_134 = arith.constant 0 : index
      %210 = vector.load %arg8[%c0_132, %c0_133, %c0_134] : memref<1x8x128xbf16, #tpu.memory_space<vmem>>, vector<1x8x128xbf16>
      %211 = vector.shape_cast %210 : vector<1x8x128xbf16> to vector<8x128xbf16>
      %212 = vector.shape_cast %209 : vector<8x128xbf16> to vector<1x8x128xbf16>
      tpu.vector_store %arg8[%c0_132, %c0_133, %c0_134], %212 {strides = array<i32>} : memref<1x8x128xbf16, #tpu.memory_space<vmem>>, vector<1x8x128xbf16>,
    } else {
    }
    return
  }
  func.func @transform_0(%arg0: i32, %arg1: i32, %arg2: i32) -> (i32, i32, i32) {
    %c0_i32 = arith.constant 0 : i32
    %c0_i32_0 = arith.constant 0 : i32
    return %arg0, %arg1, %c0_i32 : i32, i32, i32
  }
  func.func @transform_1(%arg0: i32, %arg1: i32, %arg2: i32) -> (i32, i32, i32) {
    %c0_i32 = arith.constant 0 : i32
    %c0_i32_0 = arith.constant 0 : i32
    return %arg0, %c0_i32, %arg2 : i32, i32, i32
  }
  func.func @transform_2(%arg0: i32, %arg1: i32, %arg2: i32) -> (i32, i32, i32) {
    %c0_i32 = arith.constant 0 : i32
    %c0_i32_0 = arith.constant 0 : i32
    return %arg0, %arg1, %c0_i32 : i32, i32, i32
  }
  func.func @transform_3(%arg0: i32, %arg1: i32, %arg2: i32) -> (i32, i32, i32) {
    %c0_i32 = arith.constant 0 : i32
    %c0_i32_0 = arith.constant 0 : i32
    return %arg0, %arg2, %c0_i32 : i32, i32, i32
  }
  func.func @transform_4(%arg0: i32, %arg1: i32, %arg2: i32) -> (i32, i32, i32) {
    %c1_i32 = arith.constant 1 : i32
    %c0_i32 = arith.constant 0 : i32
    return %arg0, %arg2, %c1_i32 : i32, i32, i32
  }
  func.func @transform_5(%arg0: i32, %arg1: i32, %arg2: i32) -> (i32, i32, i32) {
    %c0_i32 = arith.constant 0 : i32
    %c0_i32_0 = arith.constant 0 : i32
    return %arg0, %arg1, %c0_i32 : i32, i32, i32
  }
}

</mosaic_0001>

<llo_original>
// kernel: transformer_forward.41
$region0: #{transformer_forward.41}
  #allocation0 [shape = 'u32[]', space=smem, size = 0x4, offset = 0x4, fixed_abs, tag = 'smem constant byte address 0x4 - core index']
  #allocation1 [shape = 'u32[144,128]{1,0:T(1,128)}', space=vmem, size = 0x12000, scoped, tag = 'internal scratch']
  %s0 = inlined_call_operand.vmem [shape: bf16[16,128], index: 0, kind: input, shape index: {}]
  %s1 = inlined_call_operand.vmem [shape: bf16[128,128], index: 1, kind: input, shape index: {}]
  %s2 = inlined_call_operand.vmem [shape: f32[1,128], index: 2, kind: input, shape index: {}]
  %s3 = inlined_call_operand.vmem [shape: bf16[16,128], index: 3, kind: output, shape index: {}]
  %s4 = sld [smem:[#allocation0]]
  $region22: #{transformer_forward.41} parent=0
    _
  %s6 = ssub.s32 1, %s4
  %s7 = scalar_select 0, %s6, %s4
  // Predicated region
  $region2: #{transformer_forward.41} parent=0 // pred_check
    _
  $region3: #{transformer_forward.41} parent=0 // pred_check_branch
    %9 = sbr.rel (0) target = $region5
  $region4: #{transformer_forward.41} parent=0 // pred_region
    _
  $region5: #{transformer_forward.41} parent=0 // pred_fallthru
    _
  // Predicated region
  $region6: #{transformer_forward.41} parent=0 // pred_check
    _
  $region7: #{transformer_forward.41} parent=0 // pred_check_branch
    %11 = sbr.rel (0) target = $region9
  $region8: #{transformer_forward.41} parent=0 // pred_region
    _
  $region9: #{transformer_forward.41} parent=0 // pred_fallthru
    _
  // Predicated region
  $region10: #{transformer_forward.41} parent=0 // pred_check
    _
  $region11: #{transformer_forward.41} parent=0 // pred_check_branch
    %13 = sbr.rel (0) target = $region13
  $region12: #{transformer_forward.41} parent=0 // pred_region
    _
  $region13: #{transformer_forward.41} parent=0 // pred_fallthru
    _
  %v15 = vld [vmem:[%s0] sm:$0xf]
  %v16 = vld [vmem:[%s0 + $0x4] sm:$0xf]
  %v17 = vld [vmem:[%s1] sm:$0xf]
  %v18 = vld [vmem:[%s1 + $0x4] sm:$0xf]
  %v19 = vld [vmem:[%s1 + $0x8] sm:$0xf]
  %v20 = vld [vmem:[%s1 + $0xc] sm:$0xf]
  %v21 = vld [vmem:[%s1 + $0x10] sm:$0xf]
  %v22 = vld [vmem:[%s1 + $0x14] sm:$0xf]
  %v23 = vld [vmem:[%s1 + $0x18] sm:$0xf]
  %v24 = vld [vmem:[%s1 + $0x1c] sm:$0xf]
  %v25 = vld [vmem:[%s1 + $0x20] sm:$0xf]
  %v26 = vld [vmem:[%s1 + $0x24] sm:$0xf]
  %v27 = vld [vmem:[%s1 + $0x28] sm:$0xf]
  %v28 = vld [vmem:[%s1 + $0x2c] sm:$0xf]
  %v29 = vld [vmem:[%s1 + $0x30] sm:$0xf]
  %v30 = vld [vmem:[%s1 + $0x34] sm:$0xf]
  %v31 = vld [vmem:[%s1 + $0x38] sm:$0xf]
  %v32 = vld [vmem:[%s1 + $0x3c] sm:$0xf]
  %v33 = vld [vmem:[%s2] sm:$0x1]
  %v35 = vlaneseq
  %v36 = vshrl.u32 %v35, 7
  %v37 = vsub.s32 0, %v36
  %v38 = vrot.slane %v33, %v37
  %v42 = vunpack.c.l.b16 %v15
  %v43 = vunpack.c.l.b16 %v16
  %v44 = vpack.c.b16 %v43, %v42
  %v62 = vunpack.c.l.b16 %v17
  %v63 = vunpack.c.l.b16 %v18
  %v64 = vunpack.c.l.b16 %v19
  %v65 = vunpack.c.l.b16 %v20
  %v66 = vunpack.c.l.b16 %v21
  %v67 = vunpack.c.l.b16 %v22
  %v68 = vunpack.c.l.b16 %v23
  %v69 = vunpack.c.l.b16 %v24
  %v70 = vunpack.c.l.b16 %v25
  %v71 = vunpack.c.l.b16 %v26
  %v72 = vunpack.c.l.b16 %v27
  %v73 = vunpack.c.l.b16 %v28
  %v74 = vunpack.c.l.b16 %v29
  %v75 = vunpack.c.l.b16 %v30
  %v76 = vunpack.c.l.b16 %v31
  %v77 = vunpack.c.l.b16 %v32
  %v78 = vpack.c.b16 %v63, %v62
  %v79 = vpack.c.b16 %v65, %v64
  %v80 = vpack.c.b16 %v67, %v66
  %v81 = vpack.c.b16 %v69, %v68
  %v82 = vpack.c.b16 %v71, %v70
  %v83 = vpack.c.b16 %v73, %v72
  %v84 = vpack.c.b16 %v75, %v74
  %v85 = vpack.c.b16 %v77, %v76
  %94 = vmatprep.subr.bf16.mxu0 0
  %95 = vmatpush1.bf16.msra.mxu0 %v78
  %96 = vmatprep.subr.bf16.mxu0 0
  %97 = vmatpush1.bf16.msra.mxu0 %v79
  %98 = vmatprep.subr.bf16.mxu0 0
  %99 = vmatpush1.bf16.msra.mxu0 %v80
  %100 = vmatprep.subr.bf16.mxu0 0
  %101 = vmatpush1.bf16.msra.mxu0 %v81
  %102 = vmatprep.subr.bf16.mxu0 0
  %103 = vmatpush1.bf16.msra.mxu0 %v82
  %104 = vmatprep.subr.bf16.mxu0 0
  %105 = vmatpush1.bf16.msra.mxu0 %v83
  %106 = vmatprep.subr.bf16.mxu0 0
  %107 = vmatpush1.bf16.msra.mxu0 %v84
  %108 = vmatprep.subr.bf16.mxu0 0
  %109 = vmatpush1.bf16.msra.mxu0 %v85
  %110 = vmatprep.subr.bf16.mxu0 0
  %111 = vmatpush1.bf16.msra.mxu0 0
  %112 = vmatprep.subr.bf16.mxu0 0
  %113 = vmatpush1.bf16.msra.mxu0 0
  %114 = vmatprep.subr.bf16.mxu0 0
  %115 = vmatpush1.bf16.msra.mxu0 0
  %116 = vmatprep.subr.bf16.mxu0 0
  %117 = vmatpush1.bf16.msra.mxu0 0
  %118 = vmatprep.subr.bf16.mxu0 0
  %119 = vmatpush1.bf16.msra.mxu0 0
  %120 = vmatprep.subr.bf16.mxu0 0
  %121 = vmatpush1.bf16.msra.mxu0 0
  %122 = vmatprep.subr.bf16.mxu0 0
  %123 = vmatpush1.bf16.msra.mxu0 0
  %124 = vmatprep.subr.bf16.mxu0 0
  %125 = vmatpush1.bf16.msra.mxu0 0
  %126 = vmatprep.mubr.bf16.mxu0 0
  %127 = vmatmul.mubr.bf16.gmra.mrb[0].mxu0 %v44
  %v128 = vpop.f32.mrb[0].mxu0
  %v129 = vadd.f32 %v38, %v128
  %v130 = vpop.f32.mrb[0].mxu0
  %v131 = vpop.f32.mrb[0].mxu0
  %v132 = vadd.f32 %v38, %v131
  %v133 = vpop.f32.mrb[0].mxu0
  %134 = vdwg.mxu0
  %v135 = vpack.c.bf16 %v132, %v129
  %v137 = vunpack.c.l.b16 %v135
  %v138 = vunpack.c.h.b16 %v135
  %v139 = vpack.c.b16 %v137, %v137
  %v140 = vpack.c.b16 %v138, %v138
  %143 = vst [vmem:[%s3] sm:$0xf] %v139
  %144 = vst [vmem:[%s3 + $0x4] sm:$0xf] %v140
  // Predicated region
  $region14: #{transformer_forward.41} parent=0 // pred_check
    _
  $region15: #{transformer_forward.41} parent=0 // pred_check_branch
    %146 = sbr.rel (0) target = $region17
  $region16: #{transformer_forward.41} parent=0 // pred_region
    _
  $region17: #{transformer_forward.41} parent=0 // pred_fallthru
    _
  // Predicated region
  $region18: #{transformer_forward.41} parent=0 // pred_check
    _
  $region19: #{transformer_forward.41} parent=0 // pred_check_branch
    %148 = sbr.rel (0) target = $region21
  $region20: #{transformer_forward.41} parent=0 // pred_region
    _
  $region21: #{transformer_forward.41} parent=0 // pred_fallthru
    _

// kernel: transformer_forward.42
$region0: #{transformer_forward.42}
  #allocation0 [shape = 'u32[]', space=smem, size = 0x4, offset = 0x4, fixed_abs, tag = 'smem constant byte address 0x4 - core index']
  #allocation1 [shape = 'u32[144,128]{1,0:T(1,128)}', space=vmem, size = 0x12000, scoped, tag = 'internal scratch']
  %s0 = inlined_call_operand.vmem [shape: bf16[16,128], index: 0, kind: input, shape index: {}]
  %s1 = inlined_call_operand.vmem [shape: bf16[16,128], index: 1, kind: input, shape index: {}]
  %s2 = inlined_call_operand.vmem [shape: f32[1,128], index: 2, kind: input, shape index: {}]
  %s3 = inlined_call_operand.vmem [shape: f32[1,128], index: 3, kind: input, shape index: {}]
  %s4 = inlined_call_operand.vmem [shape: bf16[16,128], index: 4, kind: output, shape index: {}]
  %s5 = sld [smem:[#allocation0]]
  $region26: #{transformer_forward.42} parent=0
    _
  %s7 = ssub.s32 1, %s5
  %s8 = scalar_select 0, %s7, %s5
  // Predicated region
  $region2: #{transformer_forward.42} parent=0 // pred_check
    _
  $region3: #{transformer_forward.42} parent=0 // pred_check_branch
    %10 = sbr.rel (0) target = $region5
  $region4: #{transformer_forward.42} parent=0 // pred_region
    _
  $region5: #{transformer_forward.42} parent=0 // pred_fallthru
    _
  // Predicated region
  $region6: #{transformer_forward.42} parent=0 // pred_check
    _
  $region7: #{transformer_forward.42} parent=0 // pred_check_branch
    %12 = sbr.rel (0) target = $region9
  $region8: #{transformer_forward.42} parent=0 // pred_region
    _
  $region9: #{transformer_forward.42} parent=0 // pred_fallthru
    _
  // Predicated region
  $region10: #{transformer_forward.42} parent=0 // pred_check
    _
  $region11: #{transformer_forward.42} parent=0 // pred_check_branch
    %14 = sbr.rel (0) target = $region13
  $region12: #{transformer_forward.42} parent=0 // pred_region
    _
  $region13: #{transformer_forward.42} parent=0 // pred_fallthru
    _
  // Predicated region
  $region14: #{transformer_forward.42} parent=0 // pred_check
    _
  $region15: #{transformer_forward.42} parent=0 // pred_check_branch
    %16 = sbr.rel (0) target = $region17
  $region16: #{transformer_forward.42} parent=0 // pred_region
    _
  $region17: #{transformer_forward.42} parent=0 // pred_fallthru
    _
  %v17 = vld [vmem:[%s0] sm:$0xf]
  %v18 = vld [vmem:[%s0 + $0x4] sm:$0xf]
  %v19 = vunpack.c.l.bf16 %v17
  %v20 = vunpack.c.l.bf16 %v18
  %v21 = vld [vmem:[%s1] sm:$0xf]
  %v22 = vld [vmem:[%s1 + $0x4] sm:$0xf]
  %v23 = vunpack.c.l.bf16 %v21
  %v24 = vunpack.c.l.bf16 %v22
  %v25 = vadd.f32 %v19, %v23
  %v26 = vadd.f32 %v20, %v24
  %27 = vadd.xlane.f32.xlu0 %v25
  %v28 = vpop.xlane.xlu0 %27
  %29 = vadd.xlane.f32.xlu0 %v26
  %v30 = vpop.xlane.xlu0 %29
  %v31 = vmul.f32 %v28, 0.03125
  %v32 = vmul.f32 %v30, 0.03125
  %v33 = vmul.f32 %v25, %v25
  %v34 = vmul.f32 %v26, %v26
  %35 = vadd.xlane.f32.xlu0 %v33
  %v36 = vpop.xlane.xlu0 %35
  %37 = vadd.xlane.f32.xlu0 %v34
  %v38 = vpop.xlane.xlu0 %37
  %v39 = vmul.f32 %v36, 0.03125
  %v40 = vmul.f32 %v38, 0.03125
  %v41 = vmul.f32 %v31, %v31
  %v42 = vmul.f32 %v32, %v32
  %v43 = vsub.f32 %v39, %v41
  %v44 = vsub.f32 %v40, %v42
  %v45 = vmax.f32 %v43, 0.0
  %v46 = vmax.f32 %v44, 0.0
  %v47 = vadd.f32 %v45, 1e-05
  %v48 = vadd.f32 %v46, 1e-05
  %v49 = vrsqrt.pop %v47
  %v50 = vrsqrt.pop %v48
  %v51 = vsub.f32 %v25, %v31
  %v52 = vsub.f32 %v26, %v32
  %v53 = vmul.f32 %v51, %v49
  %v54 = vmul.f32 %v52, %v50
  %v55 = vld [vmem:[%s2] sm:$0x1]
  %v57 = vlaneseq
  %v58 = vshrl.u32 %v57, 7
  %v59 = vsub.s32 0, %v58
  %v60 = vrot.slane %v55, %v59
  %v62 = vmul.f32 %v53, %v60
  %v63 = vmul.f32 %v54, %v60
  %v64 = vld [vmem:[%s3] sm:$0x1]
  %v66 = vlaneseq
  %v67 = vshrl.u32 %v66, 7
  %v68 = vsub.s32 0, %v67
  %v69 = vrot.slane %v64, %v68
  %v71 = vadd.f32 %v62, %v69
  %v72 = vadd.f32 %v63, %v69
  %v73 = vpack.c.bf16 %v72, %v71
  %v75 = vunpack.c.l.b16 %v73
  %v76 = vunpack.c.h.b16 %v73
  %v77 = vpack.c.b16 %v75, %v75
  %v78 = vpack.c.b16 %v76, %v76
  %81 = vst [vmem:[%s4] sm:$0xf] %v77
  %82 = vst [vmem:[%s4 + $0x4] sm:$0xf] %v78
  // Predicated region
  $region18: #{transformer_forward.42} parent=0 // pred_check
    _
  $region19: #{transformer_forward.42} parent=0 // pred_check_branch
    %84 = sbr.rel (0) target = $region21
  $region20: #{transformer_forward.42} parent=0 // pred_region
    _
  $region21: #{transformer_forward.42} parent=0 // pred_fallthru
    _
  // Predicated region
  $region22: #{transformer_forward.42} parent=0 // pred_check
    _
  $region23: #{transformer_forward.42} parent=0 // pred_check_branch
    %86 = sbr.rel (0) target = $region25
  $region24: #{transformer_forward.42} parent=0 // pred_region
    _
  $region25: #{transformer_forward.42} parent=0 // pred_fallthru
    _

// kernel: transformer_forward.39
$region0: #{transformer_forward.39}
  #allocation0 [shape = 'u32[]', space=smem, size = 0x4, offset = 0x4, fixed_abs, tag = 'smem constant byte address 0x4 - core index']
  #allocation1 [shape = 'u32[144,128]{1,0:T(1,128)}', space=vmem, size = 0x12000, scoped, tag = 'internal scratch']
  %s0 = inlined_call_operand.vmem [shape: bf16[16,128], index: 0, kind: input, shape index: {}]
  %s1 = inlined_call_operand.vmem [shape: bf16[128,384], index: 1, kind: input, shape index: {}]
  %s2 = inlined_call_operand.vmem [shape: f32[1,384], index: 2, kind: input, shape index: {}]
  %s3 = inlined_call_operand.vmem [shape: bf16[16,384], index: 3, kind: output, shape index: {}]
  %s4 = sld [smem:[#allocation0]]
  $region22: #{transformer_forward.39} parent=0
    _
  %s6 = ssub.s32 1, %s4
  %s7 = scalar_select 0, %s6, %s4
  // Predicated region
  $region2: #{transformer_forward.39} parent=0 // pred_check
    _
  $region3: #{transformer_forward.39} parent=0 // pred_check_branch
    %9 = sbr.rel (0) target = $region5
  $region4: #{transformer_forward.39} parent=0 // pred_region
    _
  $region5: #{transformer_forward.39} parent=0 // pred_fallthru
    _
  // Predicated region
  $region6: #{transformer_forward.39} parent=0 // pred_check
    _
  $region7: #{transformer_forward.39} parent=0 // pred_check_branch
    %11 = sbr.rel (0) target = $region9
  $region8: #{transformer_forward.39} parent=0 // pred_region
    _
  $region9: #{transformer_forward.39} parent=0 // pred_fallthru
    _
  // Predicated region
  $region10: #{transformer_forward.39} parent=0 // pred_check
    _
  $region11: #{transformer_forward.39} parent=0 // pred_check_branch
    %13 = sbr.rel (0) target = $region13
  $region12: #{transformer_forward.39} parent=0 // pred_region
    _
  $region13: #{transformer_forward.39} parent=0 // pred_fallthru
    _
  %v15 = vld [vmem:[%s0] sm:$0xf]
  %v16 = vld [vmem:[%s0 + $0x4] sm:$0xf]
  %v17 = vld [vmem:[%s1] sm:$0xff]
  %v18 = vld [vmem:[%s1 + $0x8] sm:$0xf]
  %v19 = vld [vmem:[%s1 + $0xc] sm:$0xff]
  %v20 = vld [vmem:[%s1 + $0x14] sm:$0xf]
  %v21 = vld [vmem:[%s1 + $0x18] sm:$0xff]
  %v22 = vld [vmem:[%s1 + $0x20] sm:$0xf]
  %v23 = vld [vmem:[%s1 + $0x24] sm:$0xff]
  %v24 = vld [vmem:[%s1 + $0x2c] sm:$0xf]
  %v25 = vld [vmem:[%s1 + $0x30] sm:$0xff]
  %v26 = vld [vmem:[%s1 + $0x38] sm:$0xf]
  %v27 = vld [vmem:[%s1 + $0x3c] sm:$0xff]
  %v28 = vld [vmem:[%s1 + $0x44] sm:$0xf]
  %v29 = vld [vmem:[%s1 + $0x48] sm:$0xff]
  %v30 = vld [vmem:[%s1 + $0x50] sm:$0xf]
  %v31 = vld [vmem:[%s1 + $0x54] sm:$0xff]
  %v32 = vld [vmem:[%s1 + $0x5c] sm:$0xf]
  %v33 = vld [vmem:[%s1 + $0x60] sm:$0xff]
  %v34 = vld [vmem:[%s1 + $0x68] sm:$0xf]
  %v35 = vld [vmem:[%s1 + $0x6c] sm:$0xff]
  %v36 = vld [vmem:[%s1 + $0x74] sm:$0xf]
  %v37 = vld [vmem:[%s1 + $0x78] sm:$0xff]
  %v38 = vld [vmem:[%s1 + $0x80] sm:$0xf]
  %v39 = vld [vmem:[%s1 + $0x84] sm:$0xff]
  %v40 = vld [vmem:[%s1 + $0x8c] sm:$0xf]
  %v41 = vld [vmem:[%s1 + $0x90] sm:$0xff]
  %v42 = vld [vmem:[%s1 + $0x98] sm:$0xf]
  %v43 = vld [vmem:[%s1 + $0x9c] sm:$0xff]
  %v44 = vld [vmem:[%s1 + $0xa4] sm:$0xf]
  %v45 = vld [vmem:[%s1 + $0xa8] sm:$0xff]
  %v46 = vld [vmem:[%s1 + $0xb0] sm:$0xf]
  %v47 = vld [vmem:[%s1 + $0xb4] sm:$0xff]
  %v48 = vld [vmem:[%s1 + $0xbc] sm:$0xf]
  %v49 = vld [vmem:[%s2] sm:$0x7]
  %v51 = vlaneseq
  %v52 = vshrl.u32 %v51, 7
  %v53 = vsub.s32 0, %v52
  %v54 = vrot.slane %v49, %v53
  %v55 = vlaneseq
  %v56 = vshrl.u32 %v55, 7
  %v57 = vsub.s32 1, %v56
  %v58 = vrot.slane %v49, %v57
  %v59 = vlaneseq
  %v60 = vshrl.u32 %v59, 7
  %v61 = vsub.s32 2, %v60
  %v62 = vrot.slane %v49, %v61
  %v68 = vunpack.c.l.b16 %v15
  %v69 = vunpack.c.l.b16 %v16
  %v70 = vpack.c.b16 %v69, %v68
  %v104 = vunpack.c.l.b16 %v17
  %v105 = vunpack.c.h.b16 %v17
  %v106 = vunpack.c.l.b16 %v18
  %v107 = vunpack.c.l.b16 %v19
  %v108 = vunpack.c.h.b16 %v19
  %v109 = vunpack.c.l.b16 %v20
  %v110 = vunpack.c.l.b16 %v21
  %v111 = vunpack.c.h.b16 %v21
  %v112 = vunpack.c.l.b16 %v22
  %v113 = vunpack.c.l.b16 %v23
  %v114 = vunpack.c.h.b16 %v23
  %v115 = vunpack.c.l.b16 %v24
  %v116 = vunpack.c.l.b16 %v25
  %v117 = vunpack.c.h.b16 %v25
  %v118 = vunpack.c.l.b16 %v26
  %v119 = vunpack.c.l.b16 %v27
  %v120 = vunpack.c.h.b16 %v27
  %v121 = vunpack.c.l.b16 %v28
  %v122 = vunpack.c.l.b16 %v29
  %v123 = vunpack.c.h.b16 %v29
  %v124 = vunpack.c.l.b16 %v30
  %v125 = vunpack.c.l.b16 %v31
  %v126 = vunpack.c.h.b16 %v31
  %v127 = vunpack.c.l.b16 %v32
  %v128 = vunpack.c.l.b16 %v33
  %v129 = vunpack.c.h.b16 %v33
  %v130 = vunpack.c.l.b16 %v34
  %v131 = vunpack.c.l.b16 %v35
  %v132 = vunpack.c.h.b16 %v35
  %v133 = vunpack.c.l.b16 %v36
  %v134 = vunpack.c.l.b16 %v37
  %v135 = vunpack.c.h.b16 %v37
  %v136 = vunpack.c.l.b16 %v38
  %v137 = vunpack.c.l.b16 %v39
  %v138 = vunpack.c.h.b16 %v39
  %v139 = vunpack.c.l.b16 %v40
  %v140 = vunpack.c.l.b16 %v41
  %v141 = vunpack.c.h.b16 %v41
  %v142 = vunpack.c.l.b16 %v42
  %v143 = vunpack.c.l.b16 %v43
  %v144 = vunpack.c.h.b16 %v43
  %v145 = vunpack.c.l.b16 %v44
  %v146 = vunpack.c.l.b16 %v45
  %v147 = vunpack.c.h.b16 %v45
  %v148 = vunpack.c.l.b16 %v46
  %v149 = vunpack.c.l.b16 %v47
  %v150 = vunpack.c.h.b16 %v47
  %v151 = vunpack.c.l.b16 %v48
  %v152 = vpack.c.b16 %v107, %v104
  %v153 = vpack.c.b16 %v108, %v105
  %v154 = vpack.c.b16 %v109, %v106
  %v155 = vpack.c.b16 %v113, %v110
  %v156 = vpack.c.b16 %v114, %v111
  %v157 = vpack.c.b16 %v115, %v112
  %v158 = vpack.c.b16 %v119, %v116
  %v159 = vpack.c.b16 %v120, %v117
  %v160 = vpack.c.b16 %v121, %v118
  %v161 = vpack.c.b16 %v125, %v122
  %v162 = vpack.c.b16 %v126, %v123
  %v163 = vpack.c.b16 %v127, %v124
  %v164 = vpack.c.b16 %v131, %v128
  %v165 = vpack.c.b16 %v132, %v129
  %v166 = vpack.c.b16 %v133, %v130
  %v167 = vpack.c.b16 %v137, %v134
  %v168 = vpack.c.b16 %v138, %v135
  %v169 = vpack.c.b16 %v139, %v136
  %v170 = vpack.c.b16 %v143, %v140
  %v171 = vpack.c.b16 %v144, %v141
  %v172 = vpack.c.b16 %v145, %v142
  %v173 = vpack.c.b16 %v149, %v146
  %v174 = vpack.c.b16 %v150, %v147
  %v175 = vpack.c.b16 %v151, %v148
  %200 = vmatprep.subr.bf16.mxu0 %v153
  %201 = vmatpush1.bf16.msra.mxu0 %v152
  %202 = vmatprep.subr.bf16.mxu0 %v156
  %203 = vmatpush1.bf16.msra.mxu0 %v155
  %204 = vmatprep.subr.bf16.mxu0 %v159
  %205 = vmatpush1.bf16.msra.mxu0 %v158
  %206 = vmatprep.subr.bf16.mxu0 %v162
  %207 = vmatpush1.bf16.msra.mxu0 %v161
  %208 = vmatprep.subr.bf16.mxu0 %v165
  %209 = vmatpush1.bf16.msra.mxu0 %v164
  %210 = vmatprep.subr.bf16.mxu0 %v168
  %211 = vmatpush1.bf16.msra.mxu0 %v167
  %212 = vmatprep.subr.bf16.mxu0 %v171
  %213 = vmatpush1.bf16.msra.mxu0 %v170
  %214 = vmatprep.subr.bf16.mxu0 %v174
  %215 = vmatpush1.bf16.msra.mxu0 %v173
  %216 = vmatprep.subr.bf16.mxu0 0
  %217 = vmatpush1.bf16.msra.mxu0 0
  %218 = vmatprep.subr.bf16.mxu0 0
  %219 = vmatpush1.bf16.msra.mxu0 0
  %220 = vmatprep.subr.bf16.mxu0 0
  %221 = vmatpush1.bf16.msra.mxu0 0
  %222 = vmatprep.subr.bf16.mxu0 0
  %223 = vmatpush1.bf16.msra.mxu0 0
  %224 = vmatprep.subr.bf16.mxu0 0
  %225 = vmatpush1.bf16.msra.mxu0 0
  %226 = vmatprep.subr.bf16.mxu0 0
  %227 = vmatpush1.bf16.msra.mxu0 0
  %228 = vmatprep.subr.bf16.mxu0 0
  %229 = vmatpush1.bf16.msra.mxu0 0
  %230 = vmatprep.subr.bf16.mxu0 0
  %231 = vmatpush1.bf16.msra.mxu0 0
  %232 = vmatprep.mubr.bf16.mxu0 0
  %233 = vmatmul.mubr.bf16.gmra.mrb[0].mxu0 %v70
  %v234 = vpop.f32.mrb[0].mxu0
  %v235 = vadd.f32 %v54, %v234
  %v236 = vpop.f32.mrb[0].mxu0
  %v237 = vadd.f32 %v58, %v236
  %v238 = vpop.f32.mrb[0].mxu0
  %v239 = vadd.f32 %v54, %v238
  %v240 = vpop.f32.mrb[0].mxu0
  %v241 = vadd.f32 %v58, %v240
  %242 = vdwg.mxu0
  %243 = vmatprep.subr.bf16.mxu0 0
  %244 = vmatpush1.bf16.msra.mxu0 %v154
  %245 = vmatprep.subr.bf16.mxu0 0
  %246 = vmatpush1.bf16.msra.mxu0 %v157
  %247 = vmatprep.subr.bf16.mxu0 0
  %248 = vmatpush1.bf16.msra.mxu0 %v160
  %249 = vmatprep.subr.bf16.mxu0 0
  %250 = vmatpush1.bf16.msra.mxu0 %v163
  %251 = vmatprep.subr.bf16.mxu0 0
  %252 = vmatpush1.bf16.msra.mxu0 %v166
  %253 = vmatprep.subr.bf16.mxu0 0
  %254 = vmatpush1.bf16.msra.mxu0 %v169
  %255 = vmatprep.subr.bf16.mxu0 0
  %256 = vmatpush1.bf16.msra.mxu0 %v172
  %257 = vmatprep.subr.bf16.mxu0 0
  %258 = vmatpush1.bf16.msra.mxu0 %v175
  %259 = vmatprep.subr.bf16.mxu0 0
  %260 = vmatpush1.bf16.msra.mxu0 0
  %261 = vmatprep.subr.bf16.mxu0 0
  %262 = vmatpush1.bf16.msra.mxu0 0
  %263 = vmatprep.subr.bf16.mxu0 0
  %264 = vmatpush1.bf16.msra.mxu0 0
  %265 = vmatprep.subr.bf16.mxu0 0
  %266 = vmatpush1.bf16.msra.mxu0 0
  %267 = vmatprep.subr.bf16.mxu0 0
  %268 = vmatpush1.bf16.msra.mxu0 0
  %269 = vmatprep.subr.bf16.mxu0 0
  %270 = vmatpush1.bf16.msra.mxu0 0
  %271 = vmatprep.subr.bf16.mxu0 0
  %272 = vmatpush1.bf16.msra.mxu0 0
  %273 = vmatprep.subr.bf16.mxu0 0
  %274 = vmatpush1.bf16.msra.mxu0 0
  %275 = vmatprep.mubr.bf16.mxu0 0
  %276 = vmatmul.mubr.bf16.gmra.mrb[0].mxu0 %v70
  %v277 = vpop.f32.mrb[0].mxu0
  %v278 = vadd.f32 %v62, %v277
  %v279 = vpop.f32.mrb[0].mxu0
  %v280 = vpop.f32.mrb[0].mxu0
  %v281 = vadd.f32 %v62, %v280
  %v282 = vpop.f32.mrb[0].mxu0
  %283 = vdwg.mxu0
  %v284 = vpack.c.bf16 %v239, %v235
  %v285 = vpack.c.bf16 %v241, %v237
  %v286 = vpack.c.bf16 %v281, %v278
  %v290 = vunpack.c.l.b16 %v284
  %v291 = vunpack.c.l.b16 %v285
  %v292 = vunpack.c.l.b16 %v286
  %v293 = vunpack.c.h.b16 %v284
  %v294 = vunpack.c.h.b16 %v285
  %v295 = vunpack.c.h.b16 %v286
  %v296 = vpack.c.b16 %v291, %v290
  %v297 = vpack.c.b16 %v292, %v292
  %v298 = vpack.c.b16 %v294, %v293
  %v299 = vpack.c.b16 %v295, %v295
  %304 = vst [vmem:[%s3] sm:$0xff] %v296
  %305 = vst [vmem:[%s3 + $0x8] sm:$0xf] %v297
  %306 = vst [vmem:[%s3 + $0xc] sm:$0xff] %v298
  %307 = vst [vmem:[%s3 + $0x14] sm:$0xf] %v299
  // Predicated region
  $region14: #{transformer_forward.39} parent=0 // pred_check
    _
  $region15: #{transformer_forward.39} parent=0 // pred_check_branch
    %309 = sbr.rel (0) target = $region17
  $region16: #{transformer_forward.39} parent=0 // pred_region
    _
  $region17: #{transformer_forward.39} parent=0 // pred_fallthru
    _
  // Predicated region
  $region18: #{transformer_forward.39} parent=0 // pred_check
    _
  $region19: #{transformer_forward.39} parent=0 // pred_check_branch
    %311 = sbr.rel (0) target = $region21
  $region20: #{transformer_forward.39} parent=0 // pred_region
    _
  $region21: #{transformer_forward.39} parent=0 // pred_fallthru
    _

// kernel: transformer_forward.40
$region0: #{transformer_forward.40}
  #allocation0 [shape = 'u32[]', space=smem, size = 0x4, offset = 0x4, fixed_abs, tag = 'smem constant byte address 0x4 - core index']
  #allocation1 [shape = 'u32[144,128]{1,0:T(1,128)}', space=vmem, size = 0x12000, scoped, tag = 'internal scratch']
  #allocation2 [shape = 'f32[4,8,1]{2,1,0:T(8,128)}', space=vmem, size = 0x4000, scoped, tag = 'scratch operand']
  #allocation3 [shape = 'f32[4,8,1]{2,1,0:T(8,128)}', space=vmem, size = 0x4000, scoped, tag = 'scratch operand']
  #allocation4 [shape = 'f32[4,8,8]{2,1,0:T(8,128)}', space=vmem, size = 0x4000, scoped, tag = 'scratch operand']
  %s0 = inlined_call_operand.vmem [shape: f32[2,8,1], index: 0, kind: input, shape index: {}]
  %s1 = inlined_call_operand.vmem [shape: f32[2,1,8], index: 1, kind: input, shape index: {}]
  %s2 = inlined_call_operand.vmem [shape: bf16[2,8,384], index: 2, kind: input, shape index: {}, may-alias: {2,3,4}]
  %s3 = inlined_call_operand.vmem [shape: bf16[2,8,384], index: 3, kind: input, shape index: {}, may-alias: {2,3,4}]
  %s4 = inlined_call_operand.vmem [shape: bf16[2,8,384], index: 4, kind: input, shape index: {}, may-alias: {2,3,4}]
  %s5 = inlined_call_operand.vmem [shape: bf16[2,8,128], index: 5, kind: output, shape index: {}]
  %s6 = sld [smem:[#allocation0]]
  $region61: #{transformer_forward.40} parent=0
    _
  %s8 = ssub.s32 1, %s6
  %s9 = scalar_select 0, %s8, %s6
  loop: start=0, step=1, limit=4
  $region2: #{transformer_forward.40} parent=0 // loop_pre_header
    _
  $region3: #{transformer_forward.40} parent=0 // loop_header
    %s11 = sphi 0, %s15
    %p12 = scmp.ge.s32.totalorder %s11, 4
    %s18 = sphi 0, %s37
    %s19 = sphi 0, %s33
    %s20 = sphi 0, %s29
    %s21 = sphi 0, %s18
    %s22 = sphi 0, %s19
    %s23 = sphi 0, %s20
    %s24 = sphi 0, %s21
    %s25 = sphi 0, %s22
    %s26 = sphi 0, %s23
    %s42 = sphi 0, %s44
    %s45 = sphi 0, %s42
    %s46 = sphi 0, %s45
    %s62 = sphi 0, %s46
    %s70 = sphi 0, %s72
    %s73 = sphi 0, %s70
    %s74 = sphi 0, %s73
    %s90 = sphi 0, %s74
    %s98 = sphi 0, %s100
    %s101 = sphi 0, %s98
    %s102 = sphi 0, %s101
    %s118 = sphi 0, %s102
    %s126 = sphi 0, %s128
    %s129 = sphi 0, %s126
    %s130 = sphi 0, %s129
    %s146 = sphi 0, %s130
    %s154 = sphi 0, %s156
    %s157 = sphi 0, %s154
    %s158 = sphi 0, %s157
    %s174 = sphi 0, %s158
    %s182 = sphi 0, %s184
    %s185 = sphi 0, %s182
    %s186 = sphi 0, %s185
    %s202 = sphi 0, %s186
  $region4: #{transformer_forward.40} parent=0 // loop_header_branch
    %14 = sbr.rel (%p12) target = $region8
  $region5: #{transformer_forward.40} parent=0 // loop_body
    %s16 = ssub.s32 %s11, 1
    %s17 = ssub.s32 %s11, 2
    %s27 = sadd.s32 1, %s20
    %p28 = scmp.ge.s32.totalorder %s27, 1
    %s29 = scalar_select %p28, 0, %s27
    %s30 = sadd.s32 1, %s19
    %s31 = scalar_select %p28, %s30, %s19
    %p32 = scmp.ge.s32.totalorder %s31, 1
    %s33 = scalar_select %p32, 0, %s31
    %s34 = sadd.s32 1, %s18
    %s35 = scalar_select %p32, %s34, %s18
    %p36 = scmp.ge.s32.totalorder %s35, 2
    %s37 = scalar_select %p36, 0, %s35
    %s38 = ssub.s32 %s18, %s37
    %s39 = ssub.s32 %s19, %s33
    %s40 = sor.u32 %s38, %s39
    %p41 = scmp.eq.s32.totalorder %s40, 0
    %s43 = sadd.s32 %s42, 1
    %s44 = scalar_select %p41, %s42, %s43
    %p47 = pneg %p41
    %p48 = scmp.eq.s32.totalorder %s11, 1
    %p49 = por %p47, %p48
    %p50 = scmp.ne.s32.totalorder %s42, %s45
    %p51 = scmp.eq.s32.totalorder %s11, 0
    %p52 = por %p50, %p51
    %p53 = scmp.ne.s32.totalorder %s42, %s45
    %p54 = scmp.eq.s32.totalorder %s16, 1
    %p55 = por %p53, %p54
    %p56 = scmp.ne.s32.totalorder %s45, %s46
    %p57 = scmp.eq.s32.totalorder %s16, 0
    %p58 = por %p56, %p57
    %p59 = scmp.ne.s32.totalorder %s45, %s46
    %p60 = scmp.eq.s32.totalorder %s17, 1
    %p61 = por %p59, %p60
    %p63 = scmp.ne.s32.totalorder %s46, %s62
    %p64 = scmp.eq.s32.totalorder %s17, 0
    %p65 = por %p63, %p64
    %s66 = ssub.s32 %s18, %s37
    %s67 = ssub.s32 %s20, %s29
    %s68 = sor.u32 %s66, %s67
    %p69 = scmp.eq.s32.totalorder %s68, 0
    %s71 = sadd.s32 %s70, 1
    %s72 = scalar_select %p69, %s70, %s71
    %p75 = pneg %p69
    %p76 = scmp.eq.s32.totalorder %s11, 1
    %p77 = por %p75, %p76
    %p78 = scmp.ne.s32.totalorder %s70, %s73
    %p79 = scmp.eq.s32.totalorder %s11, 0
    %p80 = por %p78, %p79
    %p81 = scmp.ne.s32.totalorder %s70, %s73
    %p82 = scmp.eq.s32.totalorder %s16, 1
    %p83 = por %p81, %p82
    %p84 = scmp.ne.s32.totalorder %s73, %s74
    %p85 = scmp.eq.s32.totalorder %s16, 0
    %p86 = por %p84, %p85
    %p87 = scmp.ne.s32.totalorder %s73, %s74
    %p88 = scmp.eq.s32.totalorder %s17, 1
    %p89 = por %p87, %p88
    %p91 = scmp.ne.s32.totalorder %s74, %s90
    %p92 = scmp.eq.s32.totalorder %s17, 0
    %p93 = por %p91, %p92
    %s94 = ssub.s32 %s18, %s37
    %s95 = ssub.s32 %s19, %s33
    %s96 = sor.u32 %s94, %s95
    %p97 = scmp.eq.s32.totalorder %s96, 0
    %s99 = sadd.s32 %s98, 1
    %s100 = scalar_select %p97, %s98, %s99
    %p103 = pneg %p97
    %p104 = scmp.eq.s32.totalorder %s11, 1
    %p105 = por %p103, %p104
    %p106 = scmp.ne.s32.totalorder %s98, %s101
    %p107 = scmp.eq.s32.totalorder %s11, 0
    %p108 = por %p106, %p107
    %p109 = scmp.ne.s32.totalorder %s98, %s101
    %p110 = scmp.eq.s32.totalorder %s16, 1
    %p111 = por %p109, %p110
    %p112 = scmp.ne.s32.totalorder %s101, %s102
    %p113 = scmp.eq.s32.totalorder %s16, 0
    %p114 = por %p112, %p113
    %p115 = scmp.ne.s32.totalorder %s101, %s102
    %p116 = scmp.eq.s32.totalorder %s17, 1
    %p117 = por %p115, %p116
    %p119 = scmp.ne.s32.totalorder %s102, %s118
    %p120 = scmp.eq.s32.totalorder %s17, 0
    %p121 = por %p119, %p120
    %s122 = ssub.s32 %s18, %s37
    %s123 = ssub.s32 %s20, %s29
    %s124 = sor.u32 %s122, %s123
    %p125 = scmp.eq.s32.totalorder %s124, 0
    %s127 = sadd.s32 %s126, 1
    %s128 = scalar_select %p125, %s126, %s127
    %p131 = pneg %p125
    %p132 = scmp.eq.s32.totalorder %s11, 1
    %p133 = por %p131, %p132
    %p134 = scmp.ne.s32.totalorder %s126, %s129
    %p135 = scmp.eq.s32.totalorder %s11, 0
    %p136 = por %p134, %p135
    %p137 = scmp.ne.s32.totalorder %s126, %s129
    %p138 = scmp.eq.s32.totalorder %s16, 1
    %p139 = por %p137, %p138
    %p140 = scmp.ne.s32.totalorder %s129, %s130
    %p141 = scmp.eq.s32.totalorder %s16, 0
    %p142 = por %p140, %p141
    %p143 = scmp.ne.s32.totalorder %s129, %s130
    %p144 = scmp.eq.s32.totalorder %s17, 1
    %p145 = por %p143, %p144
    %p147 = scmp.ne.s32.totalorder %s130, %s146
    %p148 = scmp.eq.s32.totalorder %s17, 0
    %p149 = por %p147, %p148
    %s150 = ssub.s32 %s18, %s37
    %s151 = ssub.s32 %s20, %s29
    %s152 = sor.u32 %s150, %s151
    %p153 = scmp.eq.s32.totalorder %s152, 0
    %s155 = sadd.s32 %s154, 1
    %s156 = scalar_select %p153, %s154, %s155
    %p159 = pneg %p153
    %p160 = scmp.eq.s32.totalorder %s11, 1
    %p161 = por %p159, %p160
    %p162 = scmp.ne.s32.totalorder %s154, %s157
    %p163 = scmp.eq.s32.totalorder %s11, 0
    %p164 = por %p162, %p163
    %p165 = scmp.ne.s32.totalorder %s154, %s157
    %p166 = scmp.eq.s32.totalorder %s16, 1
    %p167 = por %p165, %p166
    %p168 = scmp.ne.s32.totalorder %s157, %s158
    %p169 = scmp.eq.s32.totalorder %s16, 0
    %p170 = por %p168, %p169
    %p171 = scmp.ne.s32.totalorder %s157, %s158
    %p172 = scmp.eq.s32.totalorder %s17, 1
    %p173 = por %p171, %p172
    %p175 = scmp.ne.s32.totalorder %s158, %s174
    %p176 = scmp.eq.s32.totalorder %s17, 0
    %p177 = por %p175, %p176
    %s178 = ssub.s32 %s18, %s37
    %s179 = ssub.s32 %s19, %s33
    %s180 = sor.u32 %s178, %s179
    %p181 = scmp.eq.s32.totalorder %s180, 0
    %s183 = sadd.s32 %s182, 1
    %s184 = scalar_select %p181, %s182, %s183
    %p187 = pneg %p181
    %p188 = scmp.eq.s32.totalorder %s11, 1
    %p189 = por %p187, %p188
    %p190 = scmp.ne.s32.totalorder %s182, %s185
    %p191 = scmp.eq.s32.totalorder %s11, 0
    %p192 = por %p190, %p191
    %p193 = scmp.ne.s32.totalorder %s182, %s185
    %p194 = scmp.eq.s32.totalorder %s16, 1
    %p195 = por %p193, %p194
    %p196 = scmp.ne.s32.totalorder %s185, %s186
    %p197 = scmp.eq.s32.totalorder %s16, 0
    %p198 = por %p196, %p197
    %p199 = scmp.ne.s32.totalorder %s185, %s186
    %p200 = scmp.eq.s32.totalorder %s17, 1
    %p201 = por %p199, %p200
    %p203 = scmp.ne.s32.totalorder %s186, %s202
    %p204 = scmp.eq.s32.totalorder %s17, 0
    %p205 = por %p203, %p204
    %p206 = scmp.le.s32.totalorder 1, %s11
    %p207 = scmp.lt.s32.totalorder %s11, 3
    %p208 = pnand %p206, %p207
    %p209 = pneg %p208
    // Predicated region
    $region9: #{transformer_forward.40} parent=5 // pred_check
      _
    $region10: #{transformer_forward.40} parent=5 // pred_check_branch
      %211 = sbr.rel (%p208) target = $region12
    $region11: #{transformer_forward.40} parent=5 // pred_region
      %s212 = ssub.s32 %s11, 1
    $region12: #{transformer_forward.40} parent=5 // pred_fallthru
      _
    %p213 = scmp.lt.s32.totalorder %s11, 2
    // Predicated region
    $region13: #{transformer_forward.40} parent=5 // pred_check
      %p214 = pneg %p213
    $region14: #{transformer_forward.40} parent=5 // pred_check_branch
      %216 = sbr.rel (%p214) target = $region16
    $region15: #{transformer_forward.40} parent=5 // pred_region
      // Predicated region
      $region17: #{transformer_forward.40} parent=15 // pred_check
        %p217 = pneg %p52
      $region18: #{transformer_forward.40} parent=15 // pred_check_branch
        %219 = sbr.rel (%p217) target = $region20
      $region19: #{transformer_forward.40} parent=15 // pred_region
        %p220 = scmp.lt.s32.totalorder %s18, 1
        %s221 = scalar_select %p220, %s18, 1
        %p222 = scmp.lt.s32.totalorder %s19, 0
        %s223 = scalar_select %p222, %s19, 0
        %s224 = sadd.s32 %s223, %s221
        %s225 = smul.addr %s224, 8
        %s226 = scalar_lea.vmem %s0, %s225
      $region20: #{transformer_forward.40} parent=15 // pred_fallthru
        _
      // Predicated region
      $region21: #{transformer_forward.40} parent=15 // pred_check
        %p227 = pneg %p80
      $region22: #{transformer_forward.40} parent=15 // pred_check_branch
        %229 = sbr.rel (%p227) target = $region24
      $region23: #{transformer_forward.40} parent=15 // pred_region
        %p230 = scmp.lt.s32.totalorder %s18, 1
        %s231 = scalar_select %p230, %s18, 1
        %p232 = scmp.lt.s32.totalorder %s20, 0
        %s233 = scalar_select %p232, %s20, 0
        %s234 = sadd.s32 %s233, %s231
        %s235 = scalar_lea.vmem %s1, %s234
      $region24: #{transformer_forward.40} parent=15 // pred_fallthru
        _
      // Predicated region
      $region25: #{transformer_forward.40} parent=15 // pred_check
        %p236 = pneg %p108
      $region26: #{transformer_forward.40} parent=15 // pred_check_branch
        %238 = sbr.rel (%p236) target = $region28
      $region27: #{transformer_forward.40} parent=15 // pred_region
        %p239 = scmp.lt.s32.totalorder %s18, 1
        %s240 = scalar_select %p239, %s18, 1
        %p241 = scmp.lt.s32.totalorder %s19, 0
        %s242 = scalar_select %p241, %s19, 0
        %s243 = smul.addr %s242, 3
        %s244 = smul.addr %s240, 3
        %s245 = sadd.s32 %s243, %s244
        %s246 = smul.addr %s245, 4
        %s247 = scalar_lea.vmem %s2, %s246
      $region28: #{transformer_forward.40} parent=15 // pred_fallthru
        _
      // Predicated region
      $region29: #{transformer_forward.40} parent=15 // pred_check
        %p248 = pneg %p136
      $region30: #{transformer_forward.40} parent=15 // pred_check_branch
        %250 = sbr.rel (%p248) target = $region32
      $region31: #{transformer_forward.40} parent=15 // pred_region
        %p251 = scmp.lt.s32.totalorder %s18, 1
        %s252 = scalar_select %p251, %s18, 1
        %p253 = scmp.lt.s32.totalorder %s20, 0
        %s254 = scalar_select %p253, %s20, 0
        %s255 = smul.addr %s254, 3
        %s256 = sadd.s32 1, %s255
        %s257 = smul.addr %s252, 3
        %s258 = sadd.s32 %s256, %s257
        %s259 = smul.addr %s258, 4
        %s260 = scalar_lea.vmem %s3, %s259
      $region32: #{transformer_forward.40} parent=15 // pred_fallthru
        _
      // Predicated region
      $region33: #{transformer_forward.40} parent=15 // pred_check
        %p261 = pneg %p164
      $region34: #{transformer_forward.40} parent=15 // pred_check_branch
        %263 = sbr.rel (%p261) target = $region36
      $region35: #{transformer_forward.40} parent=15 // pred_region
        %p264 = scmp.lt.s32.totalorder %s18, 1
        %s265 = scalar_select %p264, %s18, 1
        %p266 = scmp.lt.s32.totalorder %s20, 0
        %s267 = scalar_select %p266, %s20, 0
        %s268 = smul.addr %s267, 3
        %s269 = sadd.s32 2, %s268
        %s270 = smul.addr %s265, 3
        %s271 = sadd.s32 %s269, %s270
        %s272 = smul.addr %s271, 4
        %s273 = scalar_lea.vmem %s4, %s272
      $region36: #{transformer_forward.40} parent=15 // pred_fallthru
        _
    $region16: #{transformer_forward.40} parent=5 // pred_fallthru
      _
    %p274 = scmp.le.s32.totalorder 1, %s11
    %p275 = scmp.lt.s32.totalorder %s11, 3
    %p276 = pnand %p274, %p275
    %p277 = pneg %p276
    // Predicated region
    $region37: #{transformer_forward.40} parent=5 // pred_check
      _
    $region38: #{transformer_forward.40} parent=5 // pred_check_branch
      %279 = sbr.rel (%p276) target = $region40
    $region39: #{transformer_forward.40} parent=5 // pred_region
      %s280 = ssub.s32 %s11, 1
      %p281 = scmp.lt.s32.totalorder %s21, 1
      %s282 = scalar_select %p281, %s21, 1
      %p283 = scmp.lt.s32.totalorder %s22, 0
      %s284 = scalar_select %p283, %s22, 0
      %s285 = sadd.s32 %s284, %s282
      %s286 = smul.addr %s285, 8
      %s287 = scalar_lea.vmem %s0, %s286
      %p288 = pneg %p58
      %p289 = pneg %p55
      %p290 = scmp.lt.s32.totalorder %s21, 1
      %s291 = scalar_select %p290, %s21, 1
      %p292 = scmp.lt.s32.totalorder %s23, 0
      %s293 = scalar_select %p292, %s23, 0
      %s294 = sadd.s32 %s293, %s291
      %s295 = scalar_lea.vmem %s1, %s294
      %p296 = pneg %p86
      %p297 = pneg %p83
      %p298 = scmp.lt.s32.totalorder %s21, 1
      %s299 = scalar_select %p298, %s21, 1
      %p300 = scmp.lt.s32.totalorder %s22, 0
      %s301 = scalar_select %p300, %s22, 0
      %s302 = smul.addr %s301, 3
      %s303 = smul.addr %s299, 3
      %s304 = sadd.s32 %s302, %s303
      %s305 = smul.addr %s304, 4
      %s306 = scalar_lea.vmem %s2, %s305
      %p307 = pneg %p114
      %p308 = pneg %p111
      %p309 = scmp.lt.s32.totalorder %s21, 1
      %s310 = scalar_select %p309, %s21, 1
      %p311 = scmp.lt.s32.totalorder %s23, 0
      %s312 = scalar_select %p311, %s23, 0
      %s313 = smul.addr %s312, 3
      %s314 = sadd.s32 1, %s313
      %s315 = smul.addr %s310, 3
      %s316 = sadd.s32 %s314, %s315
      %s317 = smul.addr %s316, 4
      %s318 = scalar_lea.vmem %s3, %s317
      %p319 = pneg %p142
      %p320 = pneg %p139
      %p321 = scmp.lt.s32.totalorder %s21, 1
      %s322 = scalar_select %p321, %s21, 1
      %p323 = scmp.lt.s32.totalorder %s23, 0
      %s324 = scalar_select %p323, %s23, 0
      %s325 = smul.addr %s324, 3
      %s326 = sadd.s32 2, %s325
      %s327 = smul.addr %s322, 3
      %s328 = sadd.s32 %s326, %s327
      %s329 = smul.addr %s328, 4
      %s330 = scalar_lea.vmem %s4, %s329
      %p331 = pneg %p170
      %p332 = pneg %p167
      %p333 = pneg %p198
      %p334 = pneg %p195
      %p335 = scmp.lt.s32.totalorder %s21, 1
      %s336 = scalar_select %p335, %s21, 1
      %p337 = scmp.lt.s32.totalorder %s22, 0
      %s338 = scalar_select %p337, %s22, 0
      %s339 = sadd.s32 %s338, %s336
      %s340 = smul.addr %s339, 4
      %s341 = scalar_lea.vmem %s5, %s340
      %p342 = scmp.lt.s32.totalorder %s21, 1
      %s343 = scalar_select %p342, %s21, 1
      %p344 = scmp.lt.s32.totalorder %s22, 0
      %s345 = scalar_select %p344, %s22, 0
      %s346 = sadd.s32 %s345, %s343
      %s347 = smul.addr %s346, 8
      %s348 = scalar_lea.vmem %s0, %s347
      %p349 = scmp.lt.s32.totalorder %s21, 1
      %s350 = scalar_select %p349, %s21, 1
      %p351 = scmp.lt.s32.totalorder %s23, 0
      %s352 = scalar_select %p351, %s23, 0
      %s353 = sadd.s32 %s352, %s350
      %s354 = scalar_lea.vmem %s1, %s353
      %p355 = scmp.lt.s32.totalorder %s21, 1
      %s356 = scalar_select %p355, %s21, 1
      %p357 = scmp.lt.s32.totalorder %s22, 0
      %s358 = scalar_select %p357, %s22, 0
      %s359 = smul.addr %s358, 3
      %s360 = smul.addr %s356, 3
      %s361 = sadd.s32 %s359, %s360
      %s362 = smul.addr %s361, 4
      %s363 = scalar_lea.vmem %s2, %s362
      %p364 = scmp.lt.s32.totalorder %s21, 1
      %s365 = scalar_select %p364, %s21, 1
      %p366 = scmp.lt.s32.totalorder %s23, 0
      %s367 = scalar_select %p366, %s23, 0
      %s368 = smul.addr %s367, 3
      %s369 = sadd.s32 1, %s368
      %s370 = smul.addr %s365, 3
      %s371 = sadd.s32 %s369, %s370
      %s372 = smul.addr %s371, 4
      %s373 = scalar_lea.vmem %s3, %s372
      %p374 = scmp.lt.s32.totalorder %s21, 1
      %s375 = scalar_select %p374, %s21, 1
      %p376 = scmp.lt.s32.totalorder %s23, 0
      %s377 = scalar_select %p376, %s23, 0
      %s378 = smul.addr %s377, 3
      %s379 = sadd.s32 2, %s378
      %s380 = smul.addr %s375, 3
      %s381 = sadd.s32 %s379, %s380
      %s382 = smul.addr %s381, 4
      %s383 = scalar_lea.vmem %s4, %s382
      %p384 = scmp.lt.s32.totalorder %s21, 1
      %s385 = scalar_select %p384, %s21, 1
      %p386 = scmp.lt.s32.totalorder %s22, 0
      %s387 = scalar_select %p386, %s22, 0
      %s388 = sadd.s32 %s387, %s385
      %s389 = smul.addr %s388, 4
      %s390 = scalar_lea.vmem %s5, %s389
      %p392 = scmp.eq.s32.totalorder %s23, 0
      // Predicated region
      $region41: #{transformer_forward.40} parent=39 // pred_check
        %p393 = pneg %p392
      $region42: #{transformer_forward.40} parent=39 // pred_check_branch
        %395 = sbr.rel (%p393) target = $region44
      $region43: #{transformer_forward.40} parent=39 // pred_region
        %vm396 = vcmask 7168
        %397 = vst.msk [vmem:[#allocation2] sm:$0xff] %vm396, -inf
        %398 = vst.msk [vmem:[#allocation2 + $0x8] sm:$0xff] %vm396, -inf
        %399 = vst.msk [vmem:[#allocation2 + $0x10] sm:$0xff] %vm396, -inf
        %400 = vst.msk [vmem:[#allocation2 + $0x18] sm:$0xff] %vm396, -inf
        %401 = vst.msk [vmem:[#allocation3] sm:$0xff] %vm396, 0.0
        %402 = vst.msk [vmem:[#allocation3 + $0x8] sm:$0xff] %vm396, 0.0
        %403 = vst.msk [vmem:[#allocation3 + $0x10] sm:$0xff] %vm396, 0.0
        %404 = vst.msk [vmem:[#allocation3 + $0x18] sm:$0xff] %vm396, 0.0
        %vm405 = vcmask 64512
        %406 = vst.msk [vmem:[#allocation4] sm:$0xff] %vm405, 0.0
        %407 = vst.msk [vmem:[#allocation4 + $0x8] sm:$0xff] %vm405, 0.0
        %408 = vst.msk [vmem:[#allocation4 + $0x10] sm:$0xff] %vm405, 0.0
        %409 = vst.msk [vmem:[#allocation4 + $0x18] sm:$0xff] %vm405, 0.0
      $region44: #{transformer_forward.40} parent=39 // pred_fallthru
        _
      %v410 = vld [vmem:[%s348] sm:$0xff]
      %v411 = vld [vmem:[%s354] sm:$0x1]
      %413 = vset.pattern.permute.xlu0 0
      %414 = vperm.xlu0 %413, %v410
      %v415 = vpop.permute.xlu0 %414
      %v418 = vlaneseq
      %v419 = vshrl.u32 %v418, 7
      %v420 = vsub.s32 0, %v419
      %v421 = vrot.slane %v411, %v420
      %v423 = vmul.f32 %v415, %v421
      %v424 = vsub.f32 %v423, 1.0
      %v425 = vmul.f32 %v424, 1e+09
      %v426 = vld [vmem:[%s363] sm:$0xf]
      %v427 = vld [vmem:[%s373] sm:$0xf]
      %v428 = vld [vmem:[%s383] sm:$0xf]
      %vm429 = vcmask 64512
      %v431 = vsel %vm429, %v426, 0
      %v434 = vsel %vm429, %v427, 0
      %436 = vmatprep.subr.bf16.mxu0 0
      %437 = vmatpush1.bf16.xpose.msra.mxu0 %v434
      %438 = vmatprep.subr.bf16.mxu0 0
      %439 = vmatpush1.bf16.xpose.msra.mxu0 0
      %440 = vmatprep.subr.bf16.mxu0 0
      %441 = vmatpush1.bf16.xpose.msra.mxu0 0
      %442 = vmatprep.subr.bf16.mxu0 0
      %443 = vmatpush1.bf16.xpose.msra.mxu0 0
      %444 = vmatprep.subr.bf16.mxu0 0
      %445 = vmatpush1.bf16.xpose.msra.mxu0 0
      %446 = vmatprep.subr.bf16.mxu0 0
      %447 = vmatpush1.bf16.xpose.msra.mxu0 0
      %448 = vmatprep.subr.bf16.mxu0 0
      %449 = vmatpush1.bf16.xpose.msra.mxu0 0
      %450 = vmatprep.subr.bf16.mxu0 0
      %451 = vmatpush1.bf16.xpose.msra.mxu0 0
      %452 = vmatprep.subr.bf16.mxu0 0
      %453 = vmatpush1.bf16.xpose.msra.mxu0 0
      %454 = vmatprep.subr.bf16.mxu0 0
      %455 = vmatpush1.bf16.xpose.msra.mxu0 0
      %456 = vmatprep.subr.bf16.mxu0 0
      %457 = vmatpush1.bf16.xpose.msra.mxu0 0
      %458 = vmatprep.subr.bf16.mxu0 0
      %459 = vmatpush1.bf16.xpose.msra.mxu0 0
      %460 = vmatprep.subr.bf16.mxu0 0
      %461 = vmatpush1.bf16.xpose.msra.mxu0 0
      %462 = vmatprep.subr.bf16.mxu0 0
      %463 = vmatpush1.bf16.xpose.msra.mxu0 0
      %464 = vmatprep.subr.bf16.mxu0 0
      %465 = vmatpush1.bf16.xpose.msra.mxu0 0
      %466 = vmatprep.subr.bf16.mxu0 0
      %467 = vmatpush1.bf16.xpose.msra.mxu0 0
      %468 = vmatprep.mubr.bf16.mxu0 0
      %469 = vmatmul.mubr.bf16.gmra.mrb[0].mxu0 %v431
      %v470 = vpop.f32.mrb[0].mxu0
      %v471 = vadd.f32 0.0, %v470
      %v472 = vpop.f32.mrb[0].mxu0
      %v473 = vpop.f32.mrb[0].mxu0
      %v474 = vpop.f32.mrb[0].mxu0
      %475 = vdwg.mxu0
      %v476 = vmul.f32 %v471, 0.35355338
      %v477 = vadd.f32 %v476, %v425
      %v478 = vld [vmem:[#allocation2] sm:$0xff]
      %v479 = vsel %vm429, %v477, -inf
      %480 = vmax.xlane.f32.xlu0 %v479
      %v481 = vpop.xlane.xlu0 %480
      %v482 = vmax.f32 %v478, %v481
      %v483 = vsub.f32 %v478, %v482
      %v484 = vmul.f32 %v483, 1.442695
      %v485 = vpow.pop %v484
      %487 = vset.pattern.permute.xlu0 0
      %488 = vperm.xlu0 %487, %v482
      %v489 = vpop.permute.xlu0 %488
      %v491 = vsub.f32 %v477, %v489
      %v492 = vmul.f32 %v491, 1.442695
      %v493 = vpow.pop %v492
      %v494 = vld [vmem:[#allocation3] sm:$0xff]
      %v495 = vmul.f32 %v485, %v494
      %v496 = vsel %vm429, %v493, 0.0
      %497 = vadd.xlane.f32.xlu0 %v496
      %v498 = vpop.xlane.xlu0 %497
      %v499 = vadd.f32 %v495, %v498
      %vm500 = vcmask 7168
      %501 = vst.msk [vmem:[#allocation3] sm:$0xff] %vm500, %v499
      %v502 = vld [vmem:[#allocation4] sm:$0xff]
      %504 = vset.pattern.permute.xlu0 0
      %505 = vperm.xlu0 %504, %v485
      %v506 = vpop.permute.xlu0 %505
      %v508 = vmul.f32 %v506, %v502
      %v509 = vpack.c.bf16 %v493, %v493
      %v511 = vsel %vm429, %v509, 0
      %vm513 = vcmask 1043456
      %v515 = vsel %vm513, %v428, 0
      %517 = vmatprep.subr.bf16.mxu0 0
      %518 = vmatpush1.bf16.msra.mxu0 %v515
      %519 = vmatprep.subr.bf16.mxu0 0
      %520 = vmatpush1.bf16.msra.mxu0 0
      %521 = vmatprep.subr.bf16.mxu0 0
      %522 = vmatpush1.bf16.msra.mxu0 0
      %523 = vmatprep.subr.bf16.mxu0 0
      %524 = vmatpush1.bf16.msra.mxu0 0
      %525 = vmatprep.subr.bf16.mxu0 0
      %526 = vmatpush1.bf16.msra.mxu0 0
      %527 = vmatprep.subr.bf16.mxu0 0
      %528 = vmatpush1.bf16.msra.mxu0 0
      %529 = vmatprep.subr.bf16.mxu0 0
      %530 = vmatpush1.bf16.msra.mxu0 0
      %531 = vmatprep.subr.bf16.mxu0 0
      %532 = vmatpush1.bf16.msra.mxu0 0
      %533 = vmatprep.subr.bf16.mxu0 0
      %534 = vmatpush1.bf16.msra.mxu0 0
      %535 = vmatprep.subr.bf16.mxu0 0
      %536 = vmatpush1.bf16.msra.mxu0 0
      %537 = vmatprep.subr.bf16.mxu0 0
      %538 = vmatpush1.bf16.msra.mxu0 0
      %539 = vmatprep.subr.bf16.mxu0 0
      %540 = vmatpush1.bf16.msra.mxu0 0
      %541 = vmatprep.subr.bf16.mxu0 0
      %542 = vmatpush1.bf16.msra.mxu0 0
      %543 = vmatprep.subr.bf16.mxu0 0
      %544 = vmatpush1.bf16.msra.mxu0 0
      %545 = vmatprep.subr.bf16.mxu0 0
      %546 = vmatpush1.bf16.msra.mxu0 0
      %547 = vmatprep.subr.bf16.mxu0 0
      %548 = vmatpush1.bf16.msra.mxu0 0
      %549 = vmatprep.mubr.bf16.mxu0 0
      %550 = vmatmul.mubr.bf16.gmra.mrb[0].mxu0 %v511
      %v551 = vpop.f32.mrb[0].mxu0
      %v552 = vadd.f32 0.0, %v551
      %v553 = vpop.f32.mrb[0].mxu0
      %v554 = vpop.f32.mrb[0].mxu0
      %v555 = vpop.f32.mrb[0].mxu0
      %556 = vdwg.mxu0
      %v557 = vadd.f32 %v508, %v552
      %558 = vst.msk [vmem:[#allocation4] sm:$0xff] %vm429, %v557
      %559 = vst.msk [vmem:[#allocation2] sm:$0xff] %vm500, %v482
      %v561 = vunpack.c.l.b16 %v426
      %v562 = vpack.c.b16 %v561, %v561
      %563 = vrot.lane.b32.xlu0 %v562, 120
      %v564 = vpop.permute.xlu0 %563
      %v566 = vunpack.c.l.b16 %v427
      %v567 = vpack.c.b16 %v566, %v566
      %568 = vrot.lane.b32.xlu0 %v567, 120
      %v569 = vpop.permute.xlu0 %568
      %v571 = vsel %vm429, %v564, 0
      %v574 = vsel %vm429, %v569, 0
      %576 = vmatprep.subr.bf16.mxu0 0
      %577 = vmatpush1.bf16.xpose.msra.mxu0 %v574
      %578 = vmatprep.subr.bf16.mxu0 0
      %579 = vmatpush1.bf16.xpose.msra.mxu0 0
      %580 = vmatprep.subr.bf16.mxu0 0
      %581 = vmatpush1.bf16.xpose.msra.mxu0 0
      %582 = vmatprep.subr.bf16.mxu0 0
      %583 = vmatpush1.bf16.xpose.msra.mxu0 0
      %584 = vmatprep.subr.bf16.mxu0 0
      %585 = vmatpush1.bf16.xpose.msra.mxu0 0
      %586 = vmatprep.subr.bf16.mxu0 0
      %587 = vmatpush1.bf16.xpose.msra.mxu0 0
      %588 = vmatprep.subr.bf16.mxu0 0
      %589 = vmatpush1.bf16.xpose.msra.mxu0 0
      %590 = vmatprep.subr.bf16.mxu0 0
      %591 = vmatpush1.bf16.xpose.msra.mxu0 0
      %592 = vmatprep.subr.bf16.mxu0 0
      %593 = vmatpush1.bf16.xpose.msra.mxu0 0
      %594 = vmatprep.subr.bf16.mxu0 0
      %595 = vmatpush1.bf16.xpose.msra.mxu0 0
      %596 = vmatprep.subr.bf16.mxu0 0
      %597 = vmatpush1.bf16.xpose.msra.mxu0 0
      %598 = vmatprep.subr.bf16.mxu0 0
      %599 = vmatpush1.bf16.xpose.msra.mxu0 0
      %600 = vmatprep.subr.bf16.mxu0 0
      %601 = vmatpush1.bf16.xpose.msra.mxu0 0
      %602 = vmatprep.subr.bf16.mxu0 0
      %603 = vmatpush1.bf16.xpose.msra.mxu0 0
      %604 = vmatprep.subr.bf16.mxu0 0
      %605 = vmatpush1.bf16.xpose.msra.mxu0 0
      %606 = vmatprep.subr.bf16.mxu0 0
      %607 = vmatpush1.bf16.xpose.msra.mxu0 0
      %608 = vmatprep.mubr.bf16.mxu0 0
      %609 = vmatmul.mubr.bf16.gmra.mrb[0].mxu0 %v571
      %v610 = vpop.f32.mrb[0].mxu0
      %v611 = vadd.f32 0.0, %v610
      %v612 = vpop.f32.mrb[0].mxu0
      %v613 = vpop.f32.mrb[0].mxu0
      %v614 = vpop.f32.mrb[0].mxu0
      %615 = vdwg.mxu0
      %v616 = vmul.f32 %v611, 0.35355338
      %v617 = vadd.f32 %v616, %v425
      %s618 = scalar_lea.vmem [#allocation2], 8
      %v619 = vld [vmem:[%s618] sm:$0xff]
      %v620 = vsel %vm429, %v617, -inf
      %621 = vmax.xlane.f32.xlu0 %v620
      %v622 = vpop.xlane.xlu0 %621
      %v623 = vmax.f32 %v619, %v622
      %v624 = vsub.f32 %v619, %v623
      %v625 = vmul.f32 %v624, 1.442695
      %v626 = vpow.pop %v625
      %628 = vset.pattern.permute.xlu0 0
      %629 = vperm.xlu0 %628, %v623
      %v630 = vpop.permute.xlu0 %629
      %v632 = vsub.f32 %v617, %v630
      %v633 = vmul.f32 %v632, 1.442695
      %v634 = vpow.pop %v633
      %s635 = scalar_lea.vmem [#allocation3], 8
      %v636 = vld [vmem:[%s635] sm:$0xff]
      %v637 = vmul.f32 %v626, %v636
      %v638 = vsel %vm429, %v634, 0.0
      %639 = vadd.xlane.f32.xlu0 %v638
      %v640 = vpop.xlane.xlu0 %639
      %v641 = vadd.f32 %v637, %v640
      %642 = vst.msk [vmem:[%s635] sm:$0xff] %vm500, %v641
      %s643 = scalar_lea.vmem [#allocation4], 8
      %v644 = vld [vmem:[%s643] sm:$0xff]
      %646 = vset.pattern.permute.xlu0 0
      %647 = vperm.xlu0 %646, %v626
      %v648 = vpop.permute.xlu0 %647
      %v650 = vmul.f32 %v648, %v644
      %v651 = vpack.c.bf16 %v634, %v634
      %v653 = vunpack.c.l.b16 %v428
      %v654 = vpack.c.b16 %v653, %v653
      %655 = vrot.lane.b32.xlu0 %v654, 120
      %v656 = vpop.permute.xlu0 %655
      %v658 = vsel %vm429, %v651, 0
      %v661 = vsel %vm513, %v656, 0
      %663 = vmatprep.subr.bf16.mxu0 0
      %664 = vmatpush1.bf16.msra.mxu0 %v661
      %665 = vmatprep.subr.bf16.mxu0 0
      %666 = vmatpush1.bf16.msra.mxu0 0
      %667 = vmatprep.subr.bf16.mxu0 0
      %668 = vmatpush1.bf16.msra.mxu0 0
      %669 = vmatprep.subr.bf16.mxu0 0
      %670 = vmatpush1.bf16.msra.mxu0 0
      %671 = vmatprep.subr.bf16.mxu0 0
      %672 = vmatpush1.bf16.msra.mxu0 0
      %673 = vmatprep.subr.bf16.mxu0 0
      %674 = vmatpush1.bf16.msra.mxu0 0
      %675 = vmatprep.subr.bf16.mxu0 0
      %676 = vmatpush1.bf16.msra.mxu0 0
      %677 = vmatprep.subr.bf16.mxu0 0
      %678 = vmatpush1.bf16.msra.mxu0 0
      %679 = vmatprep.subr.bf16.mxu0 0
      %680 = vmatpush1.bf16.msra.mxu0 0
      %681 = vmatprep.subr.bf16.mxu0 0
      %682 = vmatpush1.bf16.msra.mxu0 0
      %683 = vmatprep.subr.bf16.mxu0 0
      %684 = vmatpush1.bf16.msra.mxu0 0
      %685 = vmatprep.subr.bf16.mxu0 0
      %686 = vmatpush1.bf16.msra.mxu0 0
      %687 = vmatprep.subr.bf16.mxu0 0
      %688 = vmatpush1.bf16.msra.mxu0 0
      %689 = vmatprep.subr.bf16.mxu0 0
      %690 = vmatpush1.bf16.msra.mxu0 0
      %691 = vmatprep.subr.bf16.mxu0 0
      %692 = vmatpush1.bf16.msra.mxu0 0
      %693 = vmatprep.subr.bf16.mxu0 0
      %694 = vmatpush1.bf16.msra.mxu0 0
      %695 = vmatprep.mubr.bf16.mxu0 0
      %696 = vmatmul.mubr.bf16.gmra.mrb[0].mxu0 %v658
      %v697 = vpop.f32.mrb[0].mxu0
      %v698 = vadd.f32 0.0, %v697
      %v699 = vpop.f32.mrb[0].mxu0
      %v700 = vpop.f32.mrb[0].mxu0
      %v701 = vpop.f32.mrb[0].mxu0
      %702 = vdwg.mxu0
      %v703 = vadd.f32 %v650, %v698
      %704 = vst.msk [vmem:[%s643] sm:$0xff] %vm429, %v703
      %705 = vst.msk [vmem:[%s618] sm:$0xff] %vm500, %v623
      %706 = vrot.lane.b32.xlu0 %v562, 112
      %v707 = vpop.permute.xlu0 %706
      %708 = vrot.lane.b32.xlu0 %v567, 112
      %v709 = vpop.permute.xlu0 %708
      %v711 = vsel %vm429, %v707, 0
      %v714 = vsel %vm429, %v709, 0
      %716 = vmatprep.subr.bf16.mxu0 0
      %717 = vmatpush1.bf16.xpose.msra.mxu0 %v714
      %718 = vmatprep.subr.bf16.mxu0 0
      %719 = vmatpush1.bf16.xpose.msra.mxu0 0
      %720 = vmatprep.subr.bf16.mxu0 0
      %721 = vmatpush1.bf16.xpose.msra.mxu0 0
      %722 = vmatprep.subr.bf16.mxu0 0
      %723 = vmatpush1.bf16.xpose.msra.mxu0 0
      %724 = vmatprep.subr.bf16.mxu0 0
      %725 = vmatpush1.bf16.xpose.msra.mxu0 0
      %726 = vmatprep.subr.bf16.mxu0 0
      %727 = vmatpush1.bf16.xpose.msra.mxu0 0
      %728 = vmatprep.subr.bf16.mxu0 0
      %729 = vmatpush1.bf16.xpose.msra.mxu0 0
      %730 = vmatprep.subr.bf16.mxu0 0
      %731 = vmatpush1.bf16.xpose.msra.mxu0 0
      %732 = vmatprep.subr.bf16.mxu0 0
      %733 = vmatpush1.bf16.xpose.msra.mxu0 0
      %734 = vmatprep.subr.bf16.mxu0 0
      %735 = vmatpush1.bf16.xpose.msra.mxu0 0
      %736 = vmatprep.subr.bf16.mxu0 0
      %737 = vmatpush1.bf16.xpose.msra.mxu0 0
      %738 = vmatprep.subr.bf16.mxu0 0
      %739 = vmatpush1.bf16.xpose.msra.mxu0 0
      %740 = vmatprep.subr.bf16.mxu0 0
      %741 = vmatpush1.bf16.xpose.msra.mxu0 0
      %742 = vmatprep.subr.bf16.mxu0 0
      %743 = vmatpush1.bf16.xpose.msra.mxu0 0
      %744 = vmatprep.subr.bf16.mxu0 0
      %745 = vmatpush1.bf16.xpose.msra.mxu0 0
      %746 = vmatprep.subr.bf16.mxu0 0
      %747 = vmatpush1.bf16.xpose.msra.mxu0 0
      %748 = vmatprep.mubr.bf16.mxu0 0
      %749 = vmatmul.mubr.bf16.gmra.mrb[0].mxu0 %v711
      %v750 = vpop.f32.mrb[0].mxu0
      %v751 = vadd.f32 0.0, %v750
      %v752 = vpop.f32.mrb[0].mxu0
      %v753 = vpop.f32.mrb[0].mxu0
      %v754 = vpop.f32.mrb[0].mxu0
      %755 = vdwg.mxu0
      %v756 = vmul.f32 %v751, 0.35355338
      %v757 = vadd.f32 %v756, %v425
      %s758 = scalar_lea.vmem [#allocation2], 16
      %v759 = vld [vmem:[%s758] sm:$0xff]
      %v760 = vsel %vm429, %v757, -inf
      %761 = vmax.xlane.f32.xlu0 %v760
      %v762 = vpop.xlane.xlu0 %761
      %v763 = vmax.f32 %v759, %v762
      %v764 = vsub.f32 %v759, %v763
      %v765 = vmul.f32 %v764, 1.442695
      %v766 = vpow.pop %v765
      %768 = vset.pattern.permute.xlu0 0
      %769 = vperm.xlu0 %768, %v763
      %v770 = vpop.permute.xlu0 %769
      %v772 = vsub.f32 %v757, %v770
      %v773 = vmul.f32 %v772, 1.442695
      %v774 = vpow.pop %v773
      %s775 = scalar_lea.vmem [#allocation3], 16
      %v776 = vld [vmem:[%s775] sm:$0xff]
      %v777 = vmul.f32 %v766, %v776
      %v778 = vsel %vm429, %v774, 0.0
      %779 = vadd.xlane.f32.xlu0 %v778
      %v780 = vpop.xlane.xlu0 %779
      %v781 = vadd.f32 %v777, %v780
      %782 = vst.msk [vmem:[%s775] sm:$0xff] %vm500, %v781
      %s783 = scalar_lea.vmem [#allocation4], 16
      %v784 = vld [vmem:[%s783] sm:$0xff]
      %786 = vset.pattern.permute.xlu0 0
      %787 = vperm.xlu0 %786, %v766
      %v788 = vpop.permute.xlu0 %787
      %v790 = vmul.f32 %v788, %v784
      %v791 = vpack.c.bf16 %v774, %v774
      %792 = vrot.lane.b32.xlu0 %v654, 112
      %v793 = vpop.permute.xlu0 %792
      %v795 = vsel %vm429, %v791, 0
      %v798 = vsel %vm513, %v793, 0
      %800 = vmatprep.subr.bf16.mxu0 0
      %801 = vmatpush1.bf16.msra.mxu0 %v798
      %802 = vmatprep.subr.bf16.mxu0 0
      %803 = vmatpush1.bf16.msra.mxu0 0
      %804 = vmatprep.subr.bf16.mxu0 0
      %805 = vmatpush1.bf16.msra.mxu0 0
      %806 = vmatprep.subr.bf16.mxu0 0
      %807 = vmatpush1.bf16.msra.mxu0 0
      %808 = vmatprep.subr.bf16.mxu0 0
      %809 = vmatpush1.bf16.msra.mxu0 0
      %810 = vmatprep.subr.bf16.mxu0 0
      %811 = vmatpush1.bf16.msra.mxu0 0
      %812 = vmatprep.subr.bf16.mxu0 0
      %813 = vmatpush1.bf16.msra.mxu0 0
      %814 = vmatprep.subr.bf16.mxu0 0
      %815 = vmatpush1.bf16.msra.mxu0 0
      %816 = vmatprep.subr.bf16.mxu0 0
      %817 = vmatpush1.bf16.msra.mxu0 0
      %818 = vmatprep.subr.bf16.mxu0 0
      %819 = vmatpush1.bf16.msra.mxu0 0
      %820 = vmatprep.subr.bf16.mxu0 0
      %821 = vmatpush1.bf16.msra.mxu0 0
      %822 = vmatprep.subr.bf16.mxu0 0
      %823 = vmatpush1.bf16.msra.mxu0 0
      %824 = vmatprep.subr.bf16.mxu0 0
      %825 = vmatpush1.bf16.msra.mxu0 0
      %826 = vmatprep.subr.bf16.mxu0 0
      %827 = vmatpush1.bf16.msra.mxu0 0
      %828 = vmatprep.subr.bf16.mxu0 0
      %829 = vmatpush1.bf16.msra.mxu0 0
      %830 = vmatprep.subr.bf16.mxu0 0
      %831 = vmatpush1.bf16.msra.mxu0 0
      %832 = vmatprep.mubr.bf16.mxu0 0
      %833 = vmatmul.mubr.bf16.gmra.mrb[0].mxu0 %v795
      %v834 = vpop.f32.mrb[0].mxu0
      %v835 = vadd.f32 0.0, %v834
      %v836 = vpop.f32.mrb[0].mxu0
      %v837 = vpop.f32.mrb[0].mxu0
      %v838 = vpop.f32.mrb[0].mxu0
      %839 = vdwg.mxu0
      %v840 = vadd.f32 %v790, %v835
      %841 = vst.msk [vmem:[%s783] sm:$0xff] %vm429, %v840
      %842 = vst.msk [vmem:[%s758] sm:$0xff] %vm500, %v763
      %843 = vrot.lane.b32.xlu0 %v562, 104
      %v844 = vpop.permute.xlu0 %843
      %845 = vrot.lane.b32.xlu0 %v567, 104
      %v846 = vpop.permute.xlu0 %845
      %v848 = vsel %vm429, %v844, 0
      %v851 = vsel %vm429, %v846, 0
      %853 = vmatprep.subr.bf16.mxu0 0
      %854 = vmatpush1.bf16.xpose.msra.mxu0 %v851
      %855 = vmatprep.subr.bf16.mxu0 0
      %856 = vmatpush1.bf16.xpose.msra.mxu0 0
      %857 = vmatprep.subr.bf16.mxu0 0
      %858 = vmatpush1.bf16.xpose.msra.mxu0 0
      %859 = vmatprep.subr.bf16.mxu0 0
      %860 = vmatpush1.bf16.xpose.msra.mxu0 0
      %861 = vmatprep.subr.bf16.mxu0 0
      %862 = vmatpush1.bf16.xpose.msra.mxu0 0
      %863 = vmatprep.subr.bf16.mxu0 0
      %864 = vmatpush1.bf16.xpose.msra.mxu0 0
      %865 = vmatprep.subr.bf16.mxu0 0
      %866 = vmatpush1.bf16.xpose.msra.mxu0 0
      %867 = vmatprep.subr.bf16.mxu0 0
      %868 = vmatpush1.bf16.xpose.msra.mxu0 0
      %869 = vmatprep.subr.bf16.mxu0 0
      %870 = vmatpush1.bf16.xpose.msra.mxu0 0
      %871 = vmatprep.subr.bf16.mxu0 0
      %872 = vmatpush1.bf16.xpose.msra.mxu0 0
      %873 = vmatprep.subr.bf16.mxu0 0
      %874 = vmatpush1.bf16.xpose.msra.mxu0 0
      %875 = vmatprep.subr.bf16.mxu0 0
      %876 = vmatpush1.bf16.xpose.msra.mxu0 0
      %877 = vmatprep.subr.bf16.mxu0 0
      %878 = vmatpush1.bf16.xpose.msra.mxu0 0
      %879 = vmatprep.subr.bf16.mxu0 0
      %880 = vmatpush1.bf16.xpose.msra.mxu0 0
      %881 = vmatprep.subr.bf16.mxu0 0
      %882 = vmatpush1.bf16.xpose.msra.mxu0 0
      %883 = vmatprep.subr.bf16.mxu0 0
      %884 = vmatpush1.bf16.xpose.msra.mxu0 0
      %885 = vmatprep.mubr.bf16.mxu0 0
      %886 = vmatmul.mubr.bf16.gmra.mrb[0].mxu0 %v848
      %v887 = vpop.f32.mrb[0].mxu0
      %v888 = vadd.f32 0.0, %v887
      %v889 = vpop.f32.mrb[0].mxu0
      %v890 = vpop.f32.mrb[0].mxu0
      %v891 = vpop.f32.mrb[0].mxu0
      %892 = vdwg.mxu0
      %v893 = vmul.f32 %v888, 0.35355338
      %v894 = vadd.f32 %v893, %v425
      %s895 = scalar_lea.vmem [#allocation2], 24
      %v896 = vld [vmem:[%s895] sm:$0xff]
      %v897 = vsel %vm429, %v894, -inf
      %898 = vmax.xlane.f32.xlu0 %v897
      %v899 = vpop.xlane.xlu0 %898
      %v900 = vmax.f32 %v896, %v899
      %v901 = vsub.f32 %v896, %v900
      %v902 = vmul.f32 %v901, 1.442695
      %v903 = vpow.pop %v902
      %905 = vset.pattern.permute.xlu0 0
      %906 = vperm.xlu0 %905, %v900
      %v907 = vpop.permute.xlu0 %906
      %v909 = vsub.f32 %v894, %v907
      %v910 = vmul.f32 %v909, 1.442695
      %v911 = vpow.pop %v910
      %s912 = scalar_lea.vmem [#allocation3], 24
      %v913 = vld [vmem:[%s912] sm:$0xff]
      %v914 = vmul.f32 %v903, %v913
      %v915 = vsel %vm429, %v911, 0.0
      %916 = vadd.xlane.f32.xlu0 %v915
      %v917 = vpop.xlane.xlu0 %916
      %v918 = vadd.f32 %v914, %v917
      %919 = vst.msk [vmem:[%s912] sm:$0xff] %vm500, %v918
      %s920 = scalar_lea.vmem [#allocation4], 24
      %v921 = vld [vmem:[%s920] sm:$0xff]
      %923 = vset.pattern.permute.xlu0 0
      %924 = vperm.xlu0 %923, %v903
      %v925 = vpop.permute.xlu0 %924
      %v927 = vmul.f32 %v925, %v921
      %v928 = vpack.c.bf16 %v911, %v911
      %929 = vrot.lane.b32.xlu0 %v654, 104
      %v930 = vpop.permute.xlu0 %929
      %v932 = vsel %vm429, %v928, 0
      %v935 = vsel %vm513, %v930, 0
      %937 = vmatprep.subr.bf16.mxu0 0
      %938 = vmatpush1.bf16.msra.mxu0 %v935
      %939 = vmatprep.subr.bf16.mxu0 0
      %940 = vmatpush1.bf16.msra.mxu0 0
      %941 = vmatprep.subr.bf16.mxu0 0
      %942 = vmatpush1.bf16.msra.mxu0 0
      %943 = vmatprep.subr.bf16.mxu0 0
      %944 = vmatpush1.bf16.msra.mxu0 0
      %945 = vmatprep.subr.bf16.mxu0 0
      %946 = vmatpush1.bf16.msra.mxu0 0
      %947 = vmatprep.subr.bf16.mxu0 0
      %948 = vmatpush1.bf16.msra.mxu0 0
      %949 = vmatprep.subr.bf16.mxu0 0
      %950 = vmatpush1.bf16.msra.mxu0 0
      %951 = vmatprep.subr.bf16.mxu0 0
      %952 = vmatpush1.bf16.msra.mxu0 0
      %953 = vmatprep.subr.bf16.mxu0 0
      %954 = vmatpush1.bf16.msra.mxu0 0
      %955 = vmatprep.subr.bf16.mxu0 0
      %956 = vmatpush1.bf16.msra.mxu0 0
      %957 = vmatprep.subr.bf16.mxu0 0
      %958 = vmatpush1.bf16.msra.mxu0 0
      %959 = vmatprep.subr.bf16.mxu0 0
      %960 = vmatpush1.bf16.msra.mxu0 0
      %961 = vmatprep.subr.bf16.mxu0 0
      %962 = vmatpush1.bf16.msra.mxu0 0
      %963 = vmatprep.subr.bf16.mxu0 0
      %964 = vmatpush1.bf16.msra.mxu0 0
      %965 = vmatprep.subr.bf16.mxu0 0
      %966 = vmatpush1.bf16.msra.mxu0 0
      %967 = vmatprep.subr.bf16.mxu0 0
      %968 = vmatpush1.bf16.msra.mxu0 0
      %969 = vmatprep.mubr.bf16.mxu0 0
      %970 = vmatmul.mubr.bf16.gmra.mrb[0].mxu0 %v932
      %v971 = vpop.f32.mrb[0].mxu0
      %v972 = vadd.f32 0.0, %v971
      %v973 = vpop.f32.mrb[0].mxu0
      %v974 = vpop.f32.mrb[0].mxu0
      %v975 = vpop.f32.mrb[0].mxu0
      %976 = vdwg.mxu0
      %v977 = vadd.f32 %v927, %v972
      %978 = vst.msk [vmem:[%s920] sm:$0xff] %vm429, %v977
      %979 = vst.msk [vmem:[%s895] sm:$0xff] %vm500, %v900
      // Predicated region
      $region45: #{transformer_forward.40} parent=39 // pred_check
        %p980 = pneg %p392
      $region46: #{transformer_forward.40} parent=39 // pred_check_branch
        %982 = sbr.rel (%p980) target = $region48
      $region47: #{transformer_forward.40} parent=39 // pred_region
        %v983 = vld [vmem:[#allocation4] sm:$0xff]
        %v984 = vld [vmem:[#allocation3] sm:$0xff]
        %v985 = vrcp.pop %v984
        %987 = vset.pattern.permute.xlu0 0
        %988 = vperm.xlu0 %987, %v985
        %v989 = vpop.permute.xlu0 %988
        %v991 = vmul.f32 %v983, %v989
        %v992 = vld [vmem:[%s643] sm:$0xff]
        %v993 = vld [vmem:[%s635] sm:$0xff]
        %v994 = vrcp.pop %v993
        %996 = vset.pattern.permute.xlu0 0
        %997 = vperm.xlu0 %996, %v994
        %v998 = vpop.permute.xlu0 %997
        %v1000 = vmul.f32 %v992, %v998
        %v1001 = vld [vmem:[%s783] sm:$0xff]
        %v1002 = vld [vmem:[%s775] sm:$0xff]
        %v1003 = vrcp.pop %v1002
        %1005 = vset.pattern.permute.xlu0 0
        %1006 = vperm.xlu0 %1005, %v1003
        %v1007 = vpop.permute.xlu0 %1006
        %v1009 = vmul.f32 %v1001, %v1007
        %v1010 = vld [vmem:[%s920] sm:$0xff]
        %v1011 = vld [vmem:[%s912] sm:$0xff]
        %v1012 = vrcp.pop %v1011
        %1014 = vset.pattern.permute.xlu0 0
        %1015 = vperm.xlu0 %1014, %v1012
        %v1016 = vpop.permute.xlu0 %1015
        %v1018 = vmul.f32 %v1010, %v1016
        %1020 = vrot.lane.b32.xlu0 %v1000, 8
        %v1021 = vpop.permute.xlu0 %1020
        %1024 = vrot.lane.b32.xlu0 %v1009, 16
        %v1025 = vpop.permute.xlu0 %1024
        %1028 = vrot.lane.b32.xlu0 %v1018, 24
        %v1029 = vpop.permute.xlu0 %1028
        %v1031 = vsel %vm429, %v991, %v1021
        %vm1032 = vcmask 130048
        %v1033 = vsel %vm1032, %v1031, %v1025
        %vm1034 = vcmask 195584
        %v1035 = vsel %vm1034, %v1033, %v1029
        %vm1036 = vcmask 261120
        %v1037 = vsel %vm1036, %v1035, 0.0
        %v1038 = vpack.c.bf16 %v1037, %v1037
        %1039 = vst [vmem:[%s390] sm:$0xf] %v1038
      $region48: #{transformer_forward.40} parent=39 // pred_fallthru
        _
      %p1040 = scmp.lt.s32.totalorder %s21, 1
      %s1041 = scalar_select %p1040, %s21, 1
      %p1042 = scmp.lt.s32.totalorder %s22, 0
      %s1043 = scalar_select %p1042, %s22, 0
      %s1044 = sadd.s32 %s1043, %s1041
      %s1045 = smul.addr %s1044, 4
      %s1046 = scalar_lea.vmem %s5, %s1045
      // Predicated region
      $region49: #{transformer_forward.40} parent=39 // pred_check
        %p1047 = pneg %p195
      $region50: #{transformer_forward.40} parent=39 // pred_check_branch
        %1049 = sbr.rel (%p1047) target = $region52
      $region51: #{transformer_forward.40} parent=39 // pred_region
        _
      $region52: #{transformer_forward.40} parent=39 // pred_fallthru
        _
    $region40: #{transformer_forward.40} parent=5 // pred_fallthru
      _
    %p1050 = scmp.le.s32.totalorder 2, %s11
    // Predicated region
    $region53: #{transformer_forward.40} parent=5 // pred_check
      %p1051 = pneg %p1050
    $region54: #{transformer_forward.40} parent=5 // pred_check_branch
      %1053 = sbr.rel (%p1051) target = $region56
    $region55: #{transformer_forward.40} parent=5 // pred_region
      %s1054 = ssub.s32 %s11, 2
      // Predicated region
      $region57: #{transformer_forward.40} parent=55 // pred_check
        %p1055 = pneg %p201
      $region58: #{transformer_forward.40} parent=55 // pred_check_branch
        %1057 = sbr.rel (%p1055) target = $region60
      $region59: #{transformer_forward.40} parent=55 // pred_region
        %p1058 = scmp.lt.s32.totalorder %s24, 1
        %s1059 = scalar_select %p1058, %s24, 1
        %p1060 = scmp.lt.s32.totalorder %s25, 0
        %s1061 = scalar_select %p1060, %s25, 0
        %s1062 = sadd.s32 %s1061, %s1059
        %s1063 = smul.addr %s1062, 4
        %s1064 = scalar_lea.vmem %s5, %s1063
      $region60: #{transformer_forward.40} parent=55 // pred_fallthru
        _
    $region56: #{transformer_forward.40} parent=5 // pred_fallthru
      _
  $region6: #{transformer_forward.40} parent=0 // loop_footer
    %s15 = sadd.s32 1, %s11
  $region7: #{transformer_forward.40} parent=0 // loop_footer_branch
    %10 = sbr.rel target = $region3
  $region8: #{transformer_forward.40} parent=0 // loop_exit
    _

// kernel: transformer_forward.58
$region0: #{transformer_forward.58}
  #allocation0 [shape = 'u32[]', space=smem, size = 0x4, offset = 0x4, fixed_abs, tag = 'smem constant byte address 0x4 - core index']
  #allocation1 [shape = 'u32[144,128]{1,0:T(1,128)}', space=vmem, size = 0x12000, scoped, tag = 'internal scratch']
  %s0 = inlined_call_operand.vmem [shape: bf16[16,128], index: 0, kind: input, shape index: {}]
  %s1 = inlined_call_operand.vmem [shape: bf16[128,256], index: 1, kind: input, shape index: {}]
  %s2 = inlined_call_operand.vmem [shape: f32[1,256], index: 2, kind: input, shape index: {}]
  %s3 = inlined_call_operand.vmem [shape: bf16[16,256], index: 3, kind: output, shape index: {}]
  %s4 = sld [smem:[#allocation0]]
  $region22: #{transformer_forward.58} parent=0
    _
  %s6 = ssub.s32 1, %s4
  %s7 = scalar_select 0, %s6, %s4
  // Predicated region
  $region2: #{transformer_forward.58} parent=0 // pred_check
    _
  $region3: #{transformer_forward.58} parent=0 // pred_check_branch
    %9 = sbr.rel (0) target = $region5
  $region4: #{transformer_forward.58} parent=0 // pred_region
    _
  $region5: #{transformer_forward.58} parent=0 // pred_fallthru
    _
  // Predicated region
  $region6: #{transformer_forward.58} parent=0 // pred_check
    _
  $region7: #{transformer_forward.58} parent=0 // pred_check_branch
    %11 = sbr.rel (0) target = $region9
  $region8: #{transformer_forward.58} parent=0 // pred_region
    _
  $region9: #{transformer_forward.58} parent=0 // pred_fallthru
    _
  // Predicated region
  $region10: #{transformer_forward.58} parent=0 // pred_check
    _
  $region11: #{transformer_forward.58} parent=0 // pred_check_branch
    %13 = sbr.rel (0) target = $region13
  $region12: #{transformer_forward.58} parent=0 // pred_region
    _
  $region13: #{transformer_forward.58} parent=0 // pred_fallthru
    _
  %v15 = vld [vmem:[%s0] sm:$0xf]
  %v16 = vld [vmem:[%s0 + $0x4] sm:$0xf]
  %v17 = vld [vmem:[%s1] sm:$0xff]
  %v18 = vld [vmem:[%s1 + $0x8] sm:$0xff]
  %v19 = vld [vmem:[%s1 + $0x10] sm:$0xff]
  %v20 = vld [vmem:[%s1 + $0x18] sm:$0xff]
  %v21 = vld [vmem:[%s1 + $0x20] sm:$0xff]
  %v22 = vld [vmem:[%s1 + $0x28] sm:$0xff]
  %v23 = vld [vmem:[%s1 + $0x30] sm:$0xff]
  %v24 = vld [vmem:[%s1 + $0x38] sm:$0xff]
  %v25 = vld [vmem:[%s1 + $0x40] sm:$0xff]
  %v26 = vld [vmem:[%s1 + $0x48] sm:$0xff]
  %v27 = vld [vmem:[%s1 + $0x50] sm:$0xff]
  %v28 = vld [vmem:[%s1 + $0x58] sm:$0xff]
  %v29 = vld [vmem:[%s1 + $0x60] sm:$0xff]
  %v30 = vld [vmem:[%s1 + $0x68] sm:$0xff]
  %v31 = vld [vmem:[%s1 + $0x70] sm:$0xff]
  %v32 = vld [vmem:[%s1 + $0x78] sm:$0xff]
  %v33 = vld [vmem:[%s2] sm:$0x3]
  %v35 = vlaneseq
  %v36 = vshrl.u32 %v35, 7
  %v37 = vsub.s32 0, %v36
  %v38 = vrot.slane %v33, %v37
  %v39 = vlaneseq
  %v40 = vshrl.u32 %v39, 7
  %v41 = vsub.s32 1, %v40
  %v42 = vrot.slane %v33, %v41
  %v47 = vunpack.c.l.b16 %v15
  %v48 = vunpack.c.l.b16 %v16
  %v49 = vpack.c.b16 %v48, %v47
  %v67 = vunpack.c.l.b16 %v17
  %v68 = vunpack.c.h.b16 %v17
  %v69 = vunpack.c.l.b16 %v18
  %v70 = vunpack.c.h.b16 %v18
  %v71 = vunpack.c.l.b16 %v19
  %v72 = vunpack.c.h.b16 %v19
  %v73 = vunpack.c.l.b16 %v20
  %v74 = vunpack.c.h.b16 %v20
  %v75 = vunpack.c.l.b16 %v21
  %v76 = vunpack.c.h.b16 %v21
  %v77 = vunpack.c.l.b16 %v22
  %v78 = vunpack.c.h.b16 %v22
  %v79 = vunpack.c.l.b16 %v23
  %v80 = vunpack.c.h.b16 %v23
  %v81 = vunpack.c.l.b16 %v24
  %v82 = vunpack.c.h.b16 %v24
  %v83 = vunpack.c.l.b16 %v25
  %v84 = vunpack.c.h.b16 %v25
  %v85 = vunpack.c.l.b16 %v26
  %v86 = vunpack.c.h.b16 %v26
  %v87 = vunpack.c.l.b16 %v27
  %v88 = vunpack.c.h.b16 %v27
  %v89 = vunpack.c.l.b16 %v28
  %v90 = vunpack.c.h.b16 %v28
  %v91 = vunpack.c.l.b16 %v29
  %v92 = vunpack.c.h.b16 %v29
  %v93 = vunpack.c.l.b16 %v30
  %v94 = vunpack.c.h.b16 %v30
  %v95 = vunpack.c.l.b16 %v31
  %v96 = vunpack.c.h.b16 %v31
  %v97 = vunpack.c.l.b16 %v32
  %v98 = vunpack.c.h.b16 %v32
  %v99 = vpack.c.b16 %v69, %v67
  %v100 = vpack.c.b16 %v70, %v68
  %v101 = vpack.c.b16 %v73, %v71
  %v102 = vpack.c.b16 %v74, %v72
  %v103 = vpack.c.b16 %v77, %v75
  %v104 = vpack.c.b16 %v78, %v76
  %v105 = vpack.c.b16 %v81, %v79
  %v106 = vpack.c.b16 %v82, %v80
  %v107 = vpack.c.b16 %v85, %v83
  %v108 = vpack.c.b16 %v86, %v84
  %v109 = vpack.c.b16 %v89, %v87
  %v110 = vpack.c.b16 %v90, %v88
  %v111 = vpack.c.b16 %v93, %v91
  %v112 = vpack.c.b16 %v94, %v92
  %v113 = vpack.c.b16 %v97, %v95
  %v114 = vpack.c.b16 %v98, %v96
  %131 = vmatprep.subr.bf16.mxu0 %v100
  %132 = vmatpush1.bf16.msra.mxu0 %v99
  %133 = vmatprep.subr.bf16.mxu0 %v102
  %134 = vmatpush1.bf16.msra.mxu0 %v101
  %135 = vmatprep.subr.bf16.mxu0 %v104
  %136 = vmatpush1.bf16.msra.mxu0 %v103
  %137 = vmatprep.subr.bf16.mxu0 %v106
  %138 = vmatpush1.bf16.msra.mxu0 %v105
  %139 = vmatprep.subr.bf16.mxu0 %v108
  %140 = vmatpush1.bf16.msra.mxu0 %v107
  %141 = vmatprep.subr.bf16.mxu0 %v110
  %142 = vmatpush1.bf16.msra.mxu0 %v109
  %143 = vmatprep.subr.bf16.mxu0 %v112
  %144 = vmatpush1.bf16.msra.mxu0 %v111
  %145 = vmatprep.subr.bf16.mxu0 %v114
  %146 = vmatpush1.bf16.msra.mxu0 %v113
  %147 = vmatprep.subr.bf16.mxu0 0
  %148 = vmatpush1.bf16.msra.mxu0 0
  %149 = vmatprep.subr.bf16.mxu0 0
  %150 = vmatpush1.bf16.msra.mxu0 0
  %151 = vmatprep.subr.bf16.mxu0 0
  %152 = vmatpush1.bf16.msra.mxu0 0
  %153 = vmatprep.subr.bf16.mxu0 0
  %154 = vmatpush1.bf16.msra.mxu0 0
  %155 = vmatprep.subr.bf16.mxu0 0
  %156 = vmatpush1.bf16.msra.mxu0 0
  %157 = vmatprep.subr.bf16.mxu0 0
  %158 = vmatpush1.bf16.msra.mxu0 0
  %159 = vmatprep.subr.bf16.mxu0 0
  %160 = vmatpush1.bf16.msra.mxu0 0
  %161 = vmatprep.subr.bf16.mxu0 0
  %162 = vmatpush1.bf16.msra.mxu0 0
  %163 = vmatprep.mubr.bf16.mxu0 0
  %164 = vmatmul.mubr.bf16.gmra.mrb[0].mxu0 %v49
  %v165 = vpop.f32.mrb[0].mxu0
  %v166 = vadd.f32 %v38, %v165
  %v167 = vpop.f32.mrb[0].mxu0
  %v168 = vadd.f32 %v42, %v167
  %v169 = vpop.f32.mrb[0].mxu0
  %v170 = vadd.f32 %v38, %v169
  %v171 = vpop.f32.mrb[0].mxu0
  %v172 = vadd.f32 %v42, %v171
  %173 = vdwg.mxu0
  %v174 = vpack.c.bf16 %v170, %v166
  %v175 = vpack.c.bf16 %v172, %v168
  %v178 = vunpack.c.l.b16 %v174
  %v179 = vunpack.c.l.b16 %v175
  %v180 = vunpack.c.h.b16 %v174
  %v181 = vunpack.c.h.b16 %v175
  %v182 = vpack.c.b16 %v179, %v178
  %v183 = vpack.c.b16 %v181, %v180
  %186 = vst [vmem:[%s3] sm:$0xff] %v182
  %187 = vst [vmem:[%s3 + $0x8] sm:$0xff] %v183
  // Predicated region
  $region14: #{transformer_forward.58} parent=0 // pred_check
    _
  $region15: #{transformer_forward.58} parent=0 // pred_check_branch
    %189 = sbr.rel (0) target = $region17
  $region16: #{transformer_forward.58} parent=0 // pred_region
    _
  $region17: #{transformer_forward.58} parent=0 // pred_fallthru
    _
  // Predicated region
  $region18: #{transformer_forward.58} parent=0 // pred_check
    _
  $region19: #{transformer_forward.58} parent=0 // pred_check_branch
    %191 = sbr.rel (0) target = $region21
  $region20: #{transformer_forward.58} parent=0 // pred_region
    _
  $region21: #{transformer_forward.58} parent=0 // pred_fallthru
    _

// kernel: transformer_forward.43
$region0: #{transformer_forward.43}
  #allocation0 [shape = 'u32[]', space=smem, size = 0x4, offset = 0x4, fixed_abs, tag = 'smem constant byte address 0x4 - core index']
  #allocation1 [shape = 'u32[144,128]{1,0:T(1,128)}', space=vmem, size = 0x12000, scoped, tag = 'internal scratch']
  %s0 = inlined_call_operand.vmem [shape: bf16[16,128], index: 0, kind: input, shape index: {}]
  %s1 = inlined_call_operand.vmem [shape: bf16[128,128], index: 1, kind: input, shape index: {}]
  %s2 = inlined_call_operand.vmem [shape: f32[1,128], index: 2, kind: input, shape index: {}]
  %s3 = inlined_call_operand.vmem [shape: bf16[16,128], index: 3, kind: output, shape index: {}]
  %s4 = sld [smem:[#allocation0]]
  $region22: #{transformer_forward.43} parent=0
    _
  %s6 = ssub.s32 1, %s4
  %s7 = scalar_select 0, %s6, %s4
  // Predicated region
  $region2: #{transformer_forward.43} parent=0 // pred_check
    _
  $region3: #{transformer_forward.43} parent=0 // pred_check_branch
    %9 = sbr.rel (0) target = $region5
  $region4: #{transformer_forward.43} parent=0 // pred_region
    _
  $region5: #{transformer_forward.43} parent=0 // pred_fallthru
    _
  // Predicated region
  $region6: #{transformer_forward.43} parent=0 // pred_check
    _
  $region7: #{transformer_forward.43} parent=0 // pred_check_branch
    %11 = sbr.rel (0) target = $region9
  $region8: #{transformer_forward.43} parent=0 // pred_region
    _
  $region9: #{transformer_forward.43} parent=0 // pred_fallthru
    _
  // Predicated region
  $region10: #{transformer_forward.43} parent=0 // pred_check
    _
  $region11: #{transformer_forward.43} parent=0 // pred_check_branch
    %13 = sbr.rel (0) target = $region13
  $region12: #{transformer_forward.43} parent=0 // pred_region
    _
  $region13: #{transformer_forward.43} parent=0 // pred_fallthru
    _
  %v15 = vld [vmem:[%s0] sm:$0xf]
  %v16 = vld [vmem:[%s0 + $0x4] sm:$0xf]
  %v17 = vld [vmem:[%s1] sm:$0xf]
  %v18 = vld [vmem:[%s1 + $0x4] sm:$0xf]
  %v19 = vld [vmem:[%s1 + $0x8] sm:$0xf]
  %v20 = vld [vmem:[%s1 + $0xc] sm:$0xf]
  %v21 = vld [vmem:[%s1 + $0x10] sm:$0xf]
  %v22 = vld [vmem:[%s1 + $0x14] sm:$0xf]
  %v23 = vld [vmem:[%s1 + $0x18] sm:$0xf]
  %v24 = vld [vmem:[%s1 + $0x1c] sm:$0xf]
  %v25 = vld [vmem:[%s1 + $0x20] sm:$0xf]
  %v26 = vld [vmem:[%s1 + $0x24] sm:$0xf]
  %v27 = vld [vmem:[%s1 + $0x28] sm:$0xf]
  %v28 = vld [vmem:[%s1 + $0x2c] sm:$0xf]
  %v29 = vld [vmem:[%s1 + $0x30] sm:$0xf]
  %v30 = vld [vmem:[%s1 + $0x34] sm:$0xf]
  %v31 = vld [vmem:[%s1 + $0x38] sm:$0xf]
  %v32 = vld [vmem:[%s1 + $0x3c] sm:$0xf]
  %v33 = vld [vmem:[%s2] sm:$0x1]
  %v35 = vlaneseq
  %v36 = vshrl.u32 %v35, 7
  %v37 = vsub.s32 0, %v36
  %v38 = vrot.slane %v33, %v37
  %v42 = vunpack.c.l.b16 %v15
  %v43 = vunpack.c.l.b16 %v16
  %v44 = vpack.c.b16 %v43, %v42
  %v62 = vunpack.c.l.b16 %v17
  %v63 = vunpack.c.l.b16 %v18
  %v64 = vunpack.c.l.b16 %v19
  %v65 = vunpack.c.l.b16 %v20
  %v66 = vunpack.c.l.b16 %v21
  %v67 = vunpack.c.l.b16 %v22
  %v68 = vunpack.c.l.b16 %v23
  %v69 = vunpack.c.l.b16 %v24
  %v70 = vunpack.c.l.b16 %v25
  %v71 = vunpack.c.l.b16 %v26
  %v72 = vunpack.c.l.b16 %v27
  %v73 = vunpack.c.l.b16 %v28
  %v74 = vunpack.c.l.b16 %v29
  %v75 = vunpack.c.l.b16 %v30
  %v76 = vunpack.c.l.b16 %v31
  %v77 = vunpack.c.l.b16 %v32
  %v78 = vpack.c.b16 %v63, %v62
  %v79 = vpack.c.b16 %v65, %v64
  %v80 = vpack.c.b16 %v67, %v66
  %v81 = vpack.c.b16 %v69, %v68
  %v82 = vpack.c.b16 %v71, %v70
  %v83 = vpack.c.b16 %v73, %v72
  %v84 = vpack.c.b16 %v75, %v74
  %v85 = vpack.c.b16 %v77, %v76
  %94 = vmatprep.subr.bf16.mxu0 0
  %95 = vmatpush1.bf16.msra.mxu0 %v78
  %96 = vmatprep.subr.bf16.mxu0 0
  %97 = vmatpush1.bf16.msra.mxu0 %v79
  %98 = vmatprep.subr.bf16.mxu0 0
  %99 = vmatpush1.bf16.msra.mxu0 %v80
  %100 = vmatprep.subr.bf16.mxu0 0
  %101 = vmatpush1.bf16.msra.mxu0 %v81
  %102 = vmatprep.subr.bf16.mxu0 0
  %103 = vmatpush1.bf16.msra.mxu0 %v82
  %104 = vmatprep.subr.bf16.mxu0 0
  %105 = vmatpush1.bf16.msra.mxu0 %v83
  %106 = vmatprep.subr.bf16.mxu0 0
  %107 = vmatpush1.bf16.msra.mxu0 %v84
  %108 = vmatprep.subr.bf16.mxu0 0
  %109 = vmatpush1.bf16.msra.mxu0 %v85
  %110 = vmatprep.subr.bf16.mxu0 0
  %111 = vmatpush1.bf16.msra.mxu0 0
  %112 = vmatprep.subr.bf16.mxu0 0
  %113 = vmatpush1.bf16.msra.mxu0 0
  %114 = vmatprep.subr.bf16.mxu0 0
  %115 = vmatpush1.bf16.msra.mxu0 0
  %116 = vmatprep.subr.bf16.mxu0 0
  %117 = vmatpush1.bf16.msra.mxu0 0
  %118 = vmatprep.subr.bf16.mxu0 0
  %119 = vmatpush1.bf16.msra.mxu0 0
  %120 = vmatprep.subr.bf16.mxu0 0
  %121 = vmatpush1.bf16.msra.mxu0 0
  %122 = vmatprep.subr.bf16.mxu0 0
  %123 = vmatpush1.bf16.msra.mxu0 0
  %124 = vmatprep.subr.bf16.mxu0 0
  %125 = vmatpush1.bf16.msra.mxu0 0
  %126 = vmatprep.mubr.bf16.mxu0 0
  %127 = vmatmul.mubr.bf16.gmra.mrb[0].mxu0 %v44
  %v128 = vpop.f32.mrb[0].mxu0
  %v129 = vadd.f32 %v38, %v128
  %v130 = vpop.f32.mrb[0].mxu0
  %v131 = vpop.f32.mrb[0].mxu0
  %v132 = vadd.f32 %v38, %v131
  %v133 = vpop.f32.mrb[0].mxu0
  %134 = vdwg.mxu0
  %v135 = vmax.f32 %v129, 0.0
  %v136 = vmax.f32 %v132, 0.0
  %v137 = vpack.c.bf16 %v136, %v135
  %v139 = vunpack.c.l.b16 %v137
  %v140 = vunpack.c.h.b16 %v137
  %v141 = vpack.c.b16 %v139, %v139
  %v142 = vpack.c.b16 %v140, %v140
  %145 = vst [vmem:[%s3] sm:$0xf] %v141
  %146 = vst [vmem:[%s3 + $0x4] sm:$0xf] %v142
  // Predicated region
  $region14: #{transformer_forward.43} parent=0 // pred_check
    _
  $region15: #{transformer_forward.43} parent=0 // pred_check_branch
    %148 = sbr.rel (0) target = $region17
  $region16: #{transformer_forward.43} parent=0 // pred_region
    _
  $region17: #{transformer_forward.43} parent=0 // pred_fallthru
    _
  // Predicated region
  $region18: #{transformer_forward.43} parent=0 // pred_check
    _
  $region19: #{transformer_forward.43} parent=0 // pred_check_branch
    %150 = sbr.rel (0) target = $region21
  $region20: #{transformer_forward.43} parent=0 // pred_region
    _
  $region21: #{transformer_forward.43} parent=0 // pred_fallthru
    _

// kernel: transformer_forward.77
$region0: #{transformer_forward.77}
  #allocation0 [shape = 'u32[]', space=smem, size = 0x4, offset = 0x4, fixed_abs, tag = 'smem constant byte address 0x4 - core index']
  #allocation1 [shape = 'u32[144,128]{1,0:T(1,128)}', space=vmem, size = 0x12000, scoped, tag = 'internal scratch']
  %s0 = inlined_call_operand.vmem [shape: bf16[16,128], index: 0, kind: input, shape index: {}]
  %s1 = inlined_call_operand.vmem [shape: bf16[128,128], index: 1, kind: input, shape index: {}]
  %s2 = inlined_call_operand.vmem [shape: f32[1,128], index: 2, kind: input, shape index: {}]
  %s3 = inlined_call_operand.hbm [shape: f32[16,128], index: 3, kind: output, shape index: {}]
  %s4 = sld [smem:[#allocation0]]
  $region22: #{transformer_forward.77} parent=0
    _
  %s6 = ssub.s32 1, %s4
  %s7 = scalar_select 0, %s6, %s4
  $region1: #{transformer_forward.77} parent=0
    #allocation2 [shape = 'u8[8192]{0}', space=vmem, size = 0x2000, scoped, tag = 'output window, operand 0, single buffered']
    #allocation3 [shape = 's32[1]{0}', space=sflag, size = 0x4, scoped, tag = 'scoped memory for transformer_forward.77']
    %8 = vsyncpa [#allocation3], 0
    // Predicated region
    $region2: #{transformer_forward.77} parent=1 // pred_check
      _
    $region3: #{transformer_forward.77} parent=1 // pred_check_branch
      %10 = sbr.rel (0) target = $region5
    $region4: #{transformer_forward.77} parent=1 // pred_region
      _
    $region5: #{transformer_forward.77} parent=1 // pred_fallthru
      _
    // Predicated region
    $region6: #{transformer_forward.77} parent=1 // pred_check
      _
    $region7: #{transformer_forward.77} parent=1 // pred_check_branch
      %12 = sbr.rel (0) target = $region9
    $region8: #{transformer_forward.77} parent=1 // pred_region
      _
    $region9: #{transformer_forward.77} parent=1 // pred_fallthru
      _
    // Predicated region
    $region10: #{transformer_forward.77} parent=1 // pred_check
      _
    $region11: #{transformer_forward.77} parent=1 // pred_check_branch
      %14 = sbr.rel (0) target = $region13
    $region12: #{transformer_forward.77} parent=1 // pred_region
      _
    $region13: #{transformer_forward.77} parent=1 // pred_fallthru
      _
    %v16 = vld [vmem:[%s0] sm:$0xf]
    %v17 = vld [vmem:[%s0 + $0x4] sm:$0xf]
    %v18 = vld [vmem:[%s1] sm:$0xf]
    %v19 = vld [vmem:[%s1 + $0x4] sm:$0xf]
    %v20 = vld [vmem:[%s1 + $0x8] sm:$0xf]
    %v21 = vld [vmem:[%s1 + $0xc] sm:$0xf]
    %v22 = vld [vmem:[%s1 + $0x10] sm:$0xf]
    %v23 = vld [vmem:[%s1 + $0x14] sm:$0xf]
    %v24 = vld [vmem:[%s1 + $0x18] sm:$0xf]
    %v25 = vld [vmem:[%s1 + $0x1c] sm:$0xf]
    %v26 = vld [vmem:[%s1 + $0x20] sm:$0xf]
    %v27 = vld [vmem:[%s1 + $0x24] sm:$0xf]
    %v28 = vld [vmem:[%s1 + $0x28] sm:$0xf]
    %v29 = vld [vmem:[%s1 + $0x2c] sm:$0xf]
    %v30 = vld [vmem:[%s1 + $0x30] sm:$0xf]
    %v31 = vld [vmem:[%s1 + $0x34] sm:$0xf]
    %v32 = vld [vmem:[%s1 + $0x38] sm:$0xf]
    %v33 = vld [vmem:[%s1 + $0x3c] sm:$0xf]
    %v34 = vld [vmem:[%s2] sm:$0x1]
    %v36 = vlaneseq
    %v37 = vshrl.u32 %v36, 7
    %v38 = vsub.s32 0, %v37
    %v39 = vrot.slane %v34, %v38
    %v43 = vunpack.c.l.b16 %v16
    %v44 = vunpack.c.l.b16 %v17
    %v45 = vpack.c.b16 %v44, %v43
    %v63 = vunpack.c.l.b16 %v18
    %v64 = vunpack.c.l.b16 %v19
    %v65 = vunpack.c.l.b16 %v20
    %v66 = vunpack.c.l.b16 %v21
    %v67 = vunpack.c.l.b16 %v22
    %v68 = vunpack.c.l.b16 %v23
    %v69 = vunpack.c.l.b16 %v24
    %v70 = vunpack.c.l.b16 %v25
    %v71 = vunpack.c.l.b16 %v26
    %v72 = vunpack.c.l.b16 %v27
    %v73 = vunpack.c.l.b16 %v28
    %v74 = vunpack.c.l.b16 %v29
    %v75 = vunpack.c.l.b16 %v30
    %v76 = vunpack.c.l.b16 %v31
    %v77 = vunpack.c.l.b16 %v32
    %v78 = vunpack.c.l.b16 %v33
    %v79 = vpack.c.b16 %v64, %v63
    %v80 = vpack.c.b16 %v66, %v65
    %v81 = vpack.c.b16 %v68, %v67
    %v82 = vpack.c.b16 %v70, %v69
    %v83 = vpack.c.b16 %v72, %v71
    %v84 = vpack.c.b16 %v74, %v73
    %v85 = vpack.c.b16 %v76, %v75
    %v86 = vpack.c.b16 %v78, %v77
    %95 = vmatprep.subr.bf16.mxu0 0
    %96 = vmatpush1.bf16.msra.mxu0 %v79
    %97 = vmatprep.subr.bf16.mxu0 0
    %98 = vmatpush1.bf16.msra.mxu0 %v80
    %99 = vmatprep.subr.bf16.mxu0 0
    %100 = vmatpush1.bf16.msra.mxu0 %v81
    %101 = vmatprep.subr.bf16.mxu0 0
    %102 = vmatpush1.bf16.msra.mxu0 %v82
    %103 = vmatprep.subr.bf16.mxu0 0
    %104 = vmatpush1.bf16.msra.mxu0 %v83
    %105 = vmatprep.subr.bf16.mxu0 0
    %106 = vmatpush1.bf16.msra.mxu0 %v84
    %107 = vmatprep.subr.bf16.mxu0 0
    %108 = vmatpush1.bf16.msra.mxu0 %v85
    %109 = vmatprep.subr.bf16.mxu0 0
    %110 = vmatpush1.bf16.msra.mxu0 %v86
    %111 = vmatprep.subr.bf16.mxu0 0
    %112 = vmatpush1.bf16.msra.mxu0 0
    %113 = vmatprep.subr.bf16.mxu0 0
    %114 = vmatpush1.bf16.msra.mxu0 0
    %115 = vmatprep.subr.bf16.mxu0 0
    %116 = vmatpush1.bf16.msra.mxu0 0
    %117 = vmatprep.subr.bf16.mxu0 0
    %118 = vmatpush1.bf16.msra.mxu0 0
    %119 = vmatprep.subr.bf16.mxu0 0
    %120 = vmatpush1.bf16.msra.mxu0 0
    %121 = vmatprep.subr.bf16.mxu0 0
    %122 = vmatpush1.bf16.msra.mxu0 0
    %123 = vmatprep.subr.bf16.mxu0 0
    %124 = vmatpush1.bf16.msra.mxu0 0
    %125 = vmatprep.subr.bf16.mxu0 0
    %126 = vmatpush1.bf16.msra.mxu0 0
    %127 = vmatprep.mubr.bf16.mxu0 0
    %128 = vmatmul.mubr.bf16.gmra.mrb[0].mxu0 %v45
    %v129 = vpop.f32.mrb[0].mxu0
    %v130 = vadd.f32 %v39, %v129
    %v131 = vpop.f32.mrb[0].mxu0
    %v132 = vpop.f32.mrb[0].mxu0
    %v133 = vadd.f32 %v39, %v132
    %v134 = vpop.f32.mrb[0].mxu0
    %135 = vdwg.mxu0
    %136 = vst [vmem:[#allocation2] sm:$0xff] %v130
    %137 = vst [vmem:[#allocation2 + $0x8] sm:$0xff] %v133
    // Predicated region
    $region14: #{transformer_forward.77} parent=1 // pred_check
      _
    $region15: #{transformer_forward.77} parent=1 // pred_check_branch
      %139 = sbr.rel (0) target = $region17
    $region16: #{transformer_forward.77} parent=1 // pred_region
      %s141 = ssub.s32 256, 256
      %142 = vsyncadd [#allocation3], %s141
      %s143 = sshll.u32 [#allocation2], 4
      %s144 = int_to_ptr.vmem [resolvable:$true] %s143
      %149 = dma.vmem_to_hbm [thread:$0]  %s144, 256, %s3, [#allocation3], 128, 128, 8
    $region17: #{transformer_forward.77} parent=1 // pred_fallthru
      _
    // Predicated region
    $region18: #{transformer_forward.77} parent=1 // pred_check
      _
    $region19: #{transformer_forward.77} parent=1 // pred_check_branch
      %151 = sbr.rel (0) target = $region21
    $region20: #{transformer_forward.77} parent=1 // pred_region
      %152 = dma.done [#allocation3], 256
    $region21: #{transformer_forward.77} parent=1 // pred_fallthru
      _
    %153 = vsyncpa [#allocation3], 1

// kernel: transformer_forward.54
$region0: #{transformer_forward.54}
  #allocation0 [shape = 'u32[]', space=smem, size = 0x4, offset = 0x4, fixed_abs, tag = 'smem constant byte address 0x4 - core index']
  #allocation1 [shape = 'u32[144,128]{1,0:T(1,128)}', space=vmem, size = 0x12000, scoped, tag = 'internal scratch']
  #allocation2 [shape = 'f32[4,8,1]{2,1,0:T(8,128)}', space=vmem, size = 0x4000, scoped, tag = 'scratch operand']
  #allocation3 [shape = 'f32[4,8,1]{2,1,0:T(8,128)}', space=vmem, size = 0x4000, scoped, tag = 'scratch operand']
  #allocation4 [shape = 'f32[4,8,8]{2,1,0:T(8,128)}', space=vmem, size = 0x4000, scoped, tag = 'scratch operand']
  %s0 = inlined_call_operand.vmem [shape: f32[2,8,1], index: 0, kind: input, shape index: {}]
  %s1 = inlined_call_operand.vmem [shape: f32[2,1,8], index: 1, kind: input, shape index: {}]
  %s2 = inlined_call_operand.vmem [shape: bf16[2,8,384], index: 2, kind: input, shape index: {}, may-alias: {2,3,4}]
  %s3 = inlined_call_operand.vmem [shape: bf16[2,8,384], index: 3, kind: input, shape index: {}, may-alias: {2,3,4}]
  %s4 = inlined_call_operand.vmem [shape: bf16[2,8,384], index: 4, kind: input, shape index: {}, may-alias: {2,3,4}]
  %s5 = inlined_call_operand.vmem [shape: bf16[2,8,128], index: 5, kind: output, shape index: {}]
  %s6 = sld [smem:[#allocation0]]
  $region61: #{transformer_forward.54} parent=0
    _
  %s8 = ssub.s32 1, %s6
  %s9 = scalar_select 0, %s8, %s6
  loop: start=0, step=1, limit=4
  $region2: #{transformer_forward.54} parent=0 // loop_pre_header
    _
  $region3: #{transformer_forward.54} parent=0 // loop_header
    %s11 = sphi 0, %s15
    %p12 = scmp.ge.s32.totalorder %s11, 4
    %s18 = sphi 0, %s37
    %s19 = sphi 0, %s33
    %s20 = sphi 0, %s29
    %s21 = sphi 0, %s18
    %s22 = sphi 0, %s19
    %s23 = sphi 0, %s20
    %s24 = sphi 0, %s21
    %s25 = sphi 0, %s22
    %s26 = sphi 0, %s23
    %s42 = sphi 0, %s44
    %s45 = sphi 0, %s42
    %s46 = sphi 0, %s45
    %s62 = sphi 0, %s46
    %s70 = sphi 0, %s72
    %s73 = sphi 0, %s70
    %s74 = sphi 0, %s73
    %s90 = sphi 0, %s74
    %s98 = sphi 0, %s100
    %s101 = sphi 0, %s98
    %s102 = sphi 0, %s101
    %s118 = sphi 0, %s102
    %s126 = sphi 0, %s128
    %s129 = sphi 0, %s126
    %s130 = sphi 0, %s129
    %s146 = sphi 0, %s130
    %s154 = sphi 0, %s156
    %s157 = sphi 0, %s154
    %s158 = sphi 0, %s157
    %s174 = sphi 0, %s158
    %s182 = sphi 0, %s184
    %s185 = sphi 0, %s182
    %s186 = sphi 0, %s185
    %s202 = sphi 0, %s186
  $region4: #{transformer_forward.54} parent=0 // loop_header_branch
    %14 = sbr.rel (%p12) target = $region8
  $region5: #{transformer_forward.54} parent=0 // loop_body
    %s16 = ssub.s32 %s11, 1
    %s17 = ssub.s32 %s11, 2
    %s27 = sadd.s32 1, %s20
    %p28 = scmp.ge.s32.totalorder %s27, 1
    %s29 = scalar_select %p28, 0, %s27
    %s30 = sadd.s32 1, %s19
    %s31 = scalar_select %p28, %s30, %s19
    %p32 = scmp.ge.s32.totalorder %s31, 1
    %s33 = scalar_select %p32, 0, %s31
    %s34 = sadd.s32 1, %s18
    %s35 = scalar_select %p32, %s34, %s18
    %p36 = scmp.ge.s32.totalorder %s35, 2
    %s37 = scalar_select %p36, 0, %s35
    %s38 = ssub.s32 %s18, %s37
    %s39 = ssub.s32 %s19, %s33
    %s40 = sor.u32 %s38, %s39
    %p41 = scmp.eq.s32.totalorder %s40, 0
    %s43 = sadd.s32 %s42, 1
    %s44 = scalar_select %p41, %s42, %s43
    %p47 = pneg %p41
    %p48 = scmp.eq.s32.totalorder %s11, 1
    %p49 = por %p47, %p48
    %p50 = scmp.ne.s32.totalorder %s42, %s45
    %p51 = scmp.eq.s32.totalorder %s11, 0
    %p52 = por %p50, %p51
    %p53 = scmp.ne.s32.totalorder %s42, %s45
    %p54 = scmp.eq.s32.totalorder %s16, 1
    %p55 = por %p53, %p54
    %p56 = scmp.ne.s32.totalorder %s45, %s46
    %p57 = scmp.eq.s32.totalorder %s16, 0
    %p58 = por %p56, %p57
    %p59 = scmp.ne.s32.totalorder %s45, %s46
    %p60 = scmp.eq.s32.totalorder %s17, 1
    %p61 = por %p59, %p60
    %p63 = scmp.ne.s32.totalorder %s46, %s62
    %p64 = scmp.eq.s32.totalorder %s17, 0
    %p65 = por %p63, %p64
    %s66 = ssub.s32 %s18, %s37
    %s67 = ssub.s32 %s20, %s29
    %s68 = sor.u32 %s66, %s67
    %p69 = scmp.eq.s32.totalorder %s68, 0
    %s71 = sadd.s32 %s70, 1
    %s72 = scalar_select %p69, %s70, %s71
    %p75 = pneg %p69
    %p76 = scmp.eq.s32.totalorder %s11, 1
    %p77 = por %p75, %p76
    %p78 = scmp.ne.s32.totalorder %s70, %s73
    %p79 = scmp.eq.s32.totalorder %s11, 0
    %p80 = por %p78, %p79
    %p81 = scmp.ne.s32.totalorder %s70, %s73
    %p82 = scmp.eq.s32.totalorder %s16, 1
    %p83 = por %p81, %p82
    %p84 = scmp.ne.s32.totalorder %s73, %s74
    %p85 = scmp.eq.s32.totalorder %s16, 0
    %p86 = por %p84, %p85
    %p87 = scmp.ne.s32.totalorder %s73, %s74
    %p88 = scmp.eq.s32.totalorder %s17, 1
    %p89 = por %p87, %p88
    %p91 = scmp.ne.s32.totalorder %s74, %s90
    %p92 = scmp.eq.s32.totalorder %s17, 0
    %p93 = por %p91, %p92
    %s94 = ssub.s32 %s18, %s37
    %s95 = ssub.s32 %s19, %s33
    %s96 = sor.u32 %s94, %s95
    %p97 = scmp.eq.s32.totalorder %s96, 0
    %s99 = sadd.s32 %s98, 1
    %s100 = scalar_select %p97, %s98, %s99
    %p103 = pneg %p97
    %p104 = scmp.eq.s32.totalorder %s11, 1
    %p105 = por %p103, %p104
    %p106 = scmp.ne.s32.totalorder %s98, %s101
    %p107 = scmp.eq.s32.totalorder %s11, 0
    %p108 = por %p106, %p107
    %p109 = scmp.ne.s32.totalorder %s98, %s101
    %p110 = scmp.eq.s32.totalorder %s16, 1
    %p111 = por %p109, %p110
    %p112 = scmp.ne.s32.totalorder %s101, %s102
    %p113 = scmp.eq.s32.totalorder %s16, 0
    %p114 = por %p112, %p113
    %p115 = scmp.ne.s32.totalorder %s101, %s102
    %p116 = scmp.eq.s32.totalorder %s17, 1
    %p117 = por %p115, %p116
    %p119 = scmp.ne.s32.totalorder %s102, %s118
    %p120 = scmp.eq.s32.totalorder %s17, 0
    %p121 = por %p119, %p120
    %s122 = ssub.s32 %s18, %s37
    %s123 = ssub.s32 %s20, %s29
    %s124 = sor.u32 %s122, %s123
    %p125 = scmp.eq.s32.totalorder %s124, 0
    %s127 = sadd.s32 %s126, 1
    %s128 = scalar_select %p125, %s126, %s127
    %p131 = pneg %p125
    %p132 = scmp.eq.s32.totalorder %s11, 1
    %p133 = por %p131, %p132
    %p134 = scmp.ne.s32.totalorder %s126, %s129
    %p135 = scmp.eq.s32.totalorder %s11, 0
    %p136 = por %p134, %p135
    %p137 = scmp.ne.s32.totalorder %s126, %s129
    %p138 = scmp.eq.s32.totalorder %s16, 1
    %p139 = por %p137, %p138
    %p140 = scmp.ne.s32.totalorder %s129, %s130
    %p141 = scmp.eq.s32.totalorder %s16, 0
    %p142 = por %p140, %p141
    %p143 = scmp.ne.s32.totalorder %s129, %s130
    %p144 = scmp.eq.s32.totalorder %s17, 1
    %p145 = por %p143, %p144
    %p147 = scmp.ne.s32.totalorder %s130, %s146
    %p148 = scmp.eq.s32.totalorder %s17, 0
    %p149 = por %p147, %p148
    %s150 = ssub.s32 %s18, %s37
    %s151 = ssub.s32 %s20, %s29
    %s152 = sor.u32 %s150, %s151
    %p153 = scmp.eq.s32.totalorder %s152, 0
    %s155 = sadd.s32 %s154, 1
    %s156 = scalar_select %p153, %s154, %s155
    %p159 = pneg %p153
    %p160 = scmp.eq.s32.totalorder %s11, 1
    %p161 = por %p159, %p160
    %p162 = scmp.ne.s32.totalorder %s154, %s157
    %p163 = scmp.eq.s32.totalorder %s11, 0
    %p164 = por %p162, %p163
    %p165 = scmp.ne.s32.totalorder %s154, %s157
    %p166 = scmp.eq.s32.totalorder %s16, 1
    %p167 = por %p165, %p166
    %p168 = scmp.ne.s32.totalorder %s157, %s158
    %p169 = scmp.eq.s32.totalorder %s16, 0
    %p170 = por %p168, %p169
    %p171 = scmp.ne.s32.totalorder %s157, %s158
    %p172 = scmp.eq.s32.totalorder %s17, 1
    %p173 = por %p171, %p172
    %p175 = scmp.ne.s32.totalorder %s158, %s174
    %p176 = scmp.eq.s32.totalorder %s17, 0
    %p177 = por %p175, %p176
    %s178 = ssub.s32 %s18, %s37
    %s179 = ssub.s32 %s19, %s33
    %s180 = sor.u32 %s178, %s179
    %p181 = scmp.eq.s32.totalorder %s180, 0
    %s183 = sadd.s32 %s182, 1
    %s184 = scalar_select %p181, %s182, %s183
    %p187 = pneg %p181
    %p188 = scmp.eq.s32.totalorder %s11, 1
    %p189 = por %p187, %p188
    %p190 = scmp.ne.s32.totalorder %s182, %s185
    %p191 = scmp.eq.s32.totalorder %s11, 0
    %p192 = por %p190, %p191
    %p193 = scmp.ne.s32.totalorder %s182, %s185
    %p194 = scmp.eq.s32.totalorder %s16, 1
    %p195 = por %p193, %p194
    %p196 = scmp.ne.s32.totalorder %s185, %s186
    %p197 = scmp.eq.s32.totalorder %s16, 0
    %p198 = por %p196, %p197
    %p199 = scmp.ne.s32.totalorder %s185, %s186
    %p200 = scmp.eq.s32.totalorder %s17, 1
    %p201 = por %p199, %p200
    %p203 = scmp.ne.s32.totalorder %s186, %s202
    %p204 = scmp.eq.s32.totalorder %s17, 0
    %p205 = por %p203, %p204
    %p206 = scmp.le.s32.totalorder 1, %s11
    %p207 = scmp.lt.s32.totalorder %s11, 3
    %p208 = pnand %p206, %p207
    %p209 = pneg %p208
    // Predicated region
    $region9: #{transformer_forward.54} parent=5 // pred_check
      _
    $region10: #{transformer_forward.54} parent=5 // pred_check_branch
      %211 = sbr.rel (%p208) target = $region12
    $region11: #{transformer_forward.54} parent=5 // pred_region
      %s212 = ssub.s32 %s11, 1
    $region12: #{transformer_forward.54} parent=5 // pred_fallthru
      _
    %p213 = scmp.lt.s32.totalorder %s11, 2
    // Predicated region
    $region13: #{transformer_forward.54} parent=5 // pred_check
      %p214 = pneg %p213
    $region14: #{transformer_forward.54} parent=5 // pred_check_branch
      %216 = sbr.rel (%p214) target = $region16
    $region15: #{transformer_forward.54} parent=5 // pred_region
      // Predicated region
      $region17: #{transformer_forward.54} parent=15 // pred_check
        %p217 = pneg %p52
      $region18: #{transformer_forward.54} parent=15 // pred_check_branch
        %219 = sbr.rel (%p217) target = $region20
      $region19: #{transformer_forward.54} parent=15 // pred_region
        %p220 = scmp.lt.s32.totalorder %s18, 1
        %s221 = scalar_select %p220, %s18, 1
        %p222 = scmp.lt.s32.totalorder %s19, 0
        %s223 = scalar_select %p222, %s19, 0
        %s224 = sadd.s32 %s223, %s221
        %s225 = smul.addr %s224, 8
        %s226 = scalar_lea.vmem %s0, %s225
      $region20: #{transformer_forward.54} parent=15 // pred_fallthru
        _
      // Predicated region
      $region21: #{transformer_forward.54} parent=15 // pred_check
        %p227 = pneg %p80
      $region22: #{transformer_forward.54} parent=15 // pred_check_branch
        %229 = sbr.rel (%p227) target = $region24
      $region23: #{transformer_forward.54} parent=15 // pred_region
        %p230 = scmp.lt.s32.totalorder %s18, 1
        %s231 = scalar_select %p230, %s18, 1
        %p232 = scmp.lt.s32.totalorder %s20, 0
        %s233 = scalar_select %p232, %s20, 0
        %s234 = sadd.s32 %s233, %s231
        %s235 = scalar_lea.vmem %s1, %s234
      $region24: #{transformer_forward.54} parent=15 // pred_fallthru
        _
      // Predicated region
      $region25: #{transformer_forward.54} parent=15 // pred_check
        %p236 = pneg %p108
      $region26: #{transformer_forward.54} parent=15 // pred_check_branch
        %238 = sbr.rel (%p236) target = $region28
      $region27: #{transformer_forward.54} parent=15 // pred_region
        %p239 = scmp.lt.s32.totalorder %s18, 1
        %s240 = scalar_select %p239, %s18, 1
        %p241 = scmp.lt.s32.totalorder %s19, 0
        %s242 = scalar_select %p241, %s19, 0
        %s243 = smul.addr %s242, 3
        %s244 = smul.addr %s240, 3
        %s245 = sadd.s32 %s243, %s244
        %s246 = smul.addr %s245, 4
        %s247 = scalar_lea.vmem %s2, %s246
      $region28: #{transformer_forward.54} parent=15 // pred_fallthru
        _
      // Predicated region
      $region29: #{transformer_forward.54} parent=15 // pred_check
        %p248 = pneg %p136
      $region30: #{transformer_forward.54} parent=15 // pred_check_branch
        %250 = sbr.rel (%p248) target = $region32
      $region31: #{transformer_forward.54} parent=15 // pred_region
        %p251 = scmp.lt.s32.totalorder %s18, 1
        %s252 = scalar_select %p251, %s18, 1
        %p253 = scmp.lt.s32.totalorder %s20, 0
        %s254 = scalar_select %p253, %s20, 0
        %s255 = smul.addr %s254, 3
        %s256 = sadd.s32 1, %s255
        %s257 = smul.addr %s252, 3
        %s258 = sadd.s32 %s256, %s257
        %s259 = smul.addr %s258, 4
        %s260 = scalar_lea.vmem %s3, %s259
      $region32: #{transformer_forward.54} parent=15 // pred_fallthru
        _
      // Predicated region
      $region33: #{transformer_forward.54} parent=15 // pred_check
        %p261 = pneg %p164
      $region34: #{transformer_forward.54} parent=15 // pred_check_branch
        %263 = sbr.rel (%p261) target = $region36
      $region35: #{transformer_forward.54} parent=15 // pred_region
        %p264 = scmp.lt.s32.totalorder %s18, 1
        %s265 = scalar_select %p264, %s18, 1
        %p266 = scmp.lt.s32.totalorder %s20, 0
        %s267 = scalar_select %p266, %s20, 0
        %s268 = smul.addr %s267, 3
        %s269 = sadd.s32 2, %s268
        %s270 = smul.addr %s265, 3
        %s271 = sadd.s32 %s269, %s270
        %s272 = smul.addr %s271, 4
        %s273 = scalar_lea.vmem %s4, %s272
      $region36: #{transformer_forward.54} parent=15 // pred_fallthru
        _
    $region16: #{transformer_forward.54} parent=5 // pred_fallthru
      _
    %p274 = scmp.le.s32.totalorder 1, %s11
    %p275 = scmp.lt.s32.totalorder %s11, 3
    %p276 = pnand %p274, %p275
    %p277 = pneg %p276
    // Predicated region
    $region37: #{transformer_forward.54} parent=5 // pred_check
      _
    $region38: #{transformer_forward.54} parent=5 // pred_check_branch
      %279 = sbr.rel (%p276) target = $region40
    $region39: #{transformer_forward.54} parent=5 // pred_region
      %s280 = ssub.s32 %s11, 1
      %p281 = scmp.lt.s32.totalorder %s21, 1
      %s282 = scalar_select %p281, %s21, 1
      %p283 = scmp.lt.s32.totalorder %s22, 0
      %s284 = scalar_select %p283, %s22, 0
      %s285 = sadd.s32 %s284, %s282
      %s286 = smul.addr %s285, 8
      %s287 = scalar_lea.vmem %s0, %s286
      %p288 = pneg %p58
      %p289 = pneg %p55
      %p290 = scmp.lt.s32.totalorder %s21, 1
      %s291 = scalar_select %p290, %s21, 1
      %p292 = scmp.lt.s32.totalorder %s23, 0
      %s293 = scalar_select %p292, %s23, 0
      %s294 = sadd.s32 %s293, %s291
      %s295 = scalar_lea.vmem %s1, %s294
      %p296 = pneg %p86
      %p297 = pneg %p83
      %p298 = scmp.lt.s32.totalorder %s21, 1
      %s299 = scalar_select %p298, %s21, 1
      %p300 = scmp.lt.s32.totalorder %s22, 0
      %s301 = scalar_select %p300, %s22, 0
      %s302 = smul.addr %s301, 3
      %s303 = smul.addr %s299, 3
      %s304 = sadd.s32 %s302, %s303
      %s305 = smul.addr %s304, 4
      %s306 = scalar_lea.vmem %s2, %s305
      %p307 = pneg %p114
      %p308 = pneg %p111
      %p309 = scmp.lt.s32.totalorder %s21, 1
      %s310 = scalar_select %p309, %s21, 1
      %p311 = scmp.lt.s32.totalorder %s23, 0
      %s312 = scalar_select %p311, %s23, 0
      %s313 = smul.addr %s312, 3
      %s314 = sadd.s32 1, %s313
      %s315 = smul.addr %s310, 3
      %s316 = sadd.s32 %s314, %s315
      %s317 = smul.addr %s316, 4
      %s318 = scalar_lea.vmem %s3, %s317
      %p319 = pneg %p142
      %p320 = pneg %p139
      %p321 = scmp.lt.s32.totalorder %s21, 1
      %s322 = scalar_select %p321, %s21, 1
      %p323 = scmp.lt.s32.totalorder %s23, 0
      %s324 = scalar_select %p323, %s23, 0
      %s325 = smul.addr %s324, 3
      %s326 = sadd.s32 2, %s325
      %s327 = smul.addr %s322, 3
      %s328 = sadd.s32 %s326, %s327
      %s329 = smul.addr %s328, 4
      %s330 = scalar_lea.vmem %s4, %s329
      %p331 = pneg %p170
      %p332 = pneg %p167
      %p333 = pneg %p198
      %p334 = pneg %p195
      %p335 = scmp.lt.s32.totalorder %s21, 1
      %s336 = scalar_select %p335, %s21, 1
      %p337 = scmp.lt.s32.totalorder %s22, 0
      %s338 = scalar_select %p337, %s22, 0
      %s339 = sadd.s32 %s338, %s336
      %s340 = smul.addr %s339, 4
      %s341 = scalar_lea.vmem %s5, %s340
      %p342 = scmp.lt.s32.totalorder %s21, 1
      %s343 = scalar_select %p342, %s21, 1
      %p344 = scmp.lt.s32.totalorder %s22, 0
      %s345 = scalar_select %p344, %s22, 0
      %s346 = sadd.s32 %s345, %s343
      %s347 = smul.addr %s346, 8
      %s348 = scalar_lea.vmem %s0, %s347
      %p349 = scmp.lt.s32.totalorder %s21, 1
      %s350 = scalar_select %p349, %s21, 1
      %p351 = scmp.lt.s32.totalorder %s23, 0
      %s352 = scalar_select %p351, %s23, 0
      %s353 = sadd.s32 %s352, %s350
      %s354 = scalar_lea.vmem %s1, %s353
      %p355 = scmp.lt.s32.totalorder %s21, 1
      %s356 = scalar_select %p355, %s21, 1
      %p357 = scmp.lt.s32.totalorder %s22, 0
      %s358 = scalar_select %p357, %s22, 0
      %s359 = smul.addr %s358, 3
      %s360 = smul.addr %s356, 3
      %s361 = sadd.s32 %s359, %s360
      %s362 = smul.addr %s361, 4
      %s363 = scalar_lea.vmem %s2, %s362
      %p364 = scmp.lt.s32.totalorder %s21, 1
      %s365 = scalar_select %p364, %s21, 1
      %p366 = scmp.lt.s32.totalorder %s23, 0
      %s367 = scalar_select %p366, %s23, 0
      %s368 = smul.addr %s367, 3
      %s369 = sadd.s32 1, %s368
      %s370 = smul.addr %s365, 3
      %s371 = sadd.s32 %s369, %s370
      %s372 = smul.addr %s371, 4
      %s373 = scalar_lea.vmem %s3, %s372
      %p374 = scmp.lt.s32.totalorder %s21, 1
      %s375 = scalar_select %p374, %s21, 1
      %p376 = scmp.lt.s32.totalorder %s23, 0
      %s377 = scalar_select %p376, %s23, 0
      %s378 = smul.addr %s377, 3
      %s379 = sadd.s32 2, %s378
      %s380 = smul.addr %s375, 3
      %s381 = sadd.s32 %s379, %s380
      %s382 = smul.addr %s381, 4
      %s383 = scalar_lea.vmem %s4, %s382
      %p384 = scmp.lt.s32.totalorder %s21, 1
      %s385 = scalar_select %p384, %s21, 1
      %p386 = scmp.lt.s32.totalorder %s22, 0
      %s387 = scalar_select %p386, %s22, 0
      %s388 = sadd.s32 %s387, %s385
      %s389 = smul.addr %s388, 4
      %s390 = scalar_lea.vmem %s5, %s389
      %p392 = scmp.eq.s32.totalorder %s23, 0
      // Predicated region
      $region41: #{transformer_forward.54} parent=39 // pred_check
        %p393 = pneg %p392
      $region42: #{transformer_forward.54} parent=39 // pred_check_branch
        %395 = sbr.rel (%p393) target = $region44
      $region43: #{transformer_forward.54} parent=39 // pred_region
        %vm396 = vcmask 7168
        %397 = vst.msk [vmem:[#allocation2] sm:$0xff] %vm396, -inf
        %398 = vst.msk [vmem:[#allocation2 + $0x8] sm:$0xff] %vm396, -inf
        %399 = vst.msk [vmem:[#allocation2 + $0x10] sm:$0xff] %vm396, -inf
        %400 = vst.msk [vmem:[#allocation2 + $0x18] sm:$0xff] %vm396, -inf
        %401 = vst.msk [vmem:[#allocation3] sm:$0xff] %vm396, 0.0
        %402 = vst.msk [vmem:[#allocation3 + $0x8] sm:$0xff] %vm396, 0.0
        %403 = vst.msk [vmem:[#allocation3 + $0x10] sm:$0xff] %vm396, 0.0
        %404 = vst.msk [vmem:[#allocation3 + $0x18] sm:$0xff] %vm396, 0.0
        %vm405 = vcmask 64512
        %406 = vst.msk [vmem:[#allocation4] sm:$0xff] %vm405, 0.0
        %407 = vst.msk [vmem:[#allocation4 + $0x8] sm:$0xff] %vm405, 0.0
        %408 = vst.msk [vmem:[#allocation4 + $0x10] sm:$0xff] %vm405, 0.0
        %409 = vst.msk [vmem:[#allocation4 + $0x18] sm:$0xff] %vm405, 0.0
      $region44: #{transformer_forward.54} parent=39 // pred_fallthru
        _
      %v410 = vld [vmem:[%s348] sm:$0xff]
      %v411 = vld [vmem:[%s354] sm:$0x1]
      %413 = vset.pattern.permute.xlu0 0
      %414 = vperm.xlu0 %413, %v410
      %v415 = vpop.permute.xlu0 %414
      %v418 = vlaneseq
      %v419 = vshrl.u32 %v418, 7
      %v420 = vsub.s32 0, %v419
      %v421 = vrot.slane %v411, %v420
      %v423 = vmul.f32 %v415, %v421
      %v424 = vsub.f32 %v423, 1.0
      %v425 = vmul.f32 %v424, 1e+09
      %s426 = smul.u32 %s22, 8
      %v427 = vlaneseq
      %v428 = vshrl.u32 %v427, 7
      %v429 = vstv %s426
      %v430 = vadd.s32 %v429, %v428
      %s431 = smul.u32 %s23, 8
      %v432 = vlaneseq
      %v433 = vand.u32 %v432, 127
      %v434 = vstv %s431
      %v435 = vadd.s32 %v434, %v433
      %vm436 = vcmp.le.s32.totalorder %v435, %v430
      %v437 = vsel %vm436, %v425, -1e+09
      %v438 = vld [vmem:[%s363] sm:$0xf]
      %v439 = vld [vmem:[%s373] sm:$0xf]
      %v440 = vld [vmem:[%s383] sm:$0xf]
      %vm441 = vcmask 64512
      %v443 = vsel %vm441, %v438, 0
      %v446 = vsel %vm441, %v439, 0
      %448 = vmatprep.subr.bf16.mxu0 0
      %449 = vmatpush1.bf16.xpose.msra.mxu0 %v446
      %450 = vmatprep.subr.bf16.mxu0 0
      %451 = vmatpush1.bf16.xpose.msra.mxu0 0
      %452 = vmatprep.subr.bf16.mxu0 0
      %453 = vmatpush1.bf16.xpose.msra.mxu0 0
      %454 = vmatprep.subr.bf16.mxu0 0
      %455 = vmatpush1.bf16.xpose.msra.mxu0 0
      %456 = vmatprep.subr.bf16.mxu0 0
      %457 = vmatpush1.bf16.xpose.msra.mxu0 0
      %458 = vmatprep.subr.bf16.mxu0 0
      %459 = vmatpush1.bf16.xpose.msra.mxu0 0
      %460 = vmatprep.subr.bf16.mxu0 0
      %461 = vmatpush1.bf16.xpose.msra.mxu0 0
      %462 = vmatprep.subr.bf16.mxu0 0
      %463 = vmatpush1.bf16.xpose.msra.mxu0 0
      %464 = vmatprep.subr.bf16.mxu0 0
      %465 = vmatpush1.bf16.xpose.msra.mxu0 0
      %466 = vmatprep.subr.bf16.mxu0 0
      %467 = vmatpush1.bf16.xpose.msra.mxu0 0
      %468 = vmatprep.subr.bf16.mxu0 0
      %469 = vmatpush1.bf16.xpose.msra.mxu0 0
      %470 = vmatprep.subr.bf16.mxu0 0
      %471 = vmatpush1.bf16.xpose.msra.mxu0 0
      %472 = vmatprep.subr.bf16.mxu0 0
      %473 = vmatpush1.bf16.xpose.msra.mxu0 0
      %474 = vmatprep.subr.bf16.mxu0 0
      %475 = vmatpush1.bf16.xpose.msra.mxu0 0
      %476 = vmatprep.subr.bf16.mxu0 0
      %477 = vmatpush1.bf16.xpose.msra.mxu0 0
      %478 = vmatprep.subr.bf16.mxu0 0
      %479 = vmatpush1.bf16.xpose.msra.mxu0 0
      %480 = vmatprep.mubr.bf16.mxu0 0
      %481 = vmatmul.mubr.bf16.gmra.mrb[0].mxu0 %v443
      %v482 = vpop.f32.mrb[0].mxu0
      %v483 = vadd.f32 0.0, %v482
      %v484 = vpop.f32.mrb[0].mxu0
      %v485 = vpop.f32.mrb[0].mxu0
      %v486 = vpop.f32.mrb[0].mxu0
      %487 = vdwg.mxu0
      %v488 = vmul.f32 %v483, 0.35355338
      %v489 = vadd.f32 %v488, %v437
      %v490 = vld [vmem:[#allocation2] sm:$0xff]
      %v491 = vsel %vm441, %v489, -inf
      %492 = vmax.xlane.f32.xlu0 %v491
      %v493 = vpop.xlane.xlu0 %492
      %v494 = vmax.f32 %v490, %v493
      %v495 = vsub.f32 %v490, %v494
      %v496 = vmul.f32 %v495, 1.442695
      %v497 = vpow.pop %v496
      %499 = vset.pattern.permute.xlu0 0
      %500 = vperm.xlu0 %499, %v494
      %v501 = vpop.permute.xlu0 %500
      %v503 = vsub.f32 %v489, %v501
      %v504 = vmul.f32 %v503, 1.442695
      %v505 = vpow.pop %v504
      %v506 = vld [vmem:[#allocation3] sm:$0xff]
      %v507 = vmul.f32 %v497, %v506
      %v508 = vsel %vm441, %v505, 0.0
      %509 = vadd.xlane.f32.xlu0 %v508
      %v510 = vpop.xlane.xlu0 %509
      %v511 = vadd.f32 %v507, %v510
      %vm512 = vcmask 7168
      %513 = vst.msk [vmem:[#allocation3] sm:$0xff] %vm512, %v511
      %v514 = vld [vmem:[#allocation4] sm:$0xff]
      %516 = vset.pattern.permute.xlu0 0
      %517 = vperm.xlu0 %516, %v497
      %v518 = vpop.permute.xlu0 %517
      %v520 = vmul.f32 %v518, %v514
      %v521 = vpack.c.bf16 %v505, %v505
      %v523 = vsel %vm441, %v521, 0
      %vm525 = vcmask 1043456
      %v527 = vsel %vm525, %v440, 0
      %529 = vmatprep.subr.bf16.mxu0 0
      %530 = vmatpush1.bf16.msra.mxu0 %v527
      %531 = vmatprep.subr.bf16.mxu0 0
      %532 = vmatpush1.bf16.msra.mxu0 0
      %533 = vmatprep.subr.bf16.mxu0 0
      %534 = vmatpush1.bf16.msra.mxu0 0
      %535 = vmatprep.subr.bf16.mxu0 0
      %536 = vmatpush1.bf16.msra.mxu0 0
      %537 = vmatprep.subr.bf16.mxu0 0
      %538 = vmatpush1.bf16.msra.mxu0 0
      %539 = vmatprep.subr.bf16.mxu0 0
      %540 = vmatpush1.bf16.msra.mxu0 0
      %541 = vmatprep.subr.bf16.mxu0 0
      %542 = vmatpush1.bf16.msra.mxu0 0
      %543 = vmatprep.subr.bf16.mxu0 0
      %544 = vmatpush1.bf16.msra.mxu0 0
      %545 = vmatprep.subr.bf16.mxu0 0
      %546 = vmatpush1.bf16.msra.mxu0 0
      %547 = vmatprep.subr.bf16.mxu0 0
      %548 = vmatpush1.bf16.msra.mxu0 0
      %549 = vmatprep.subr.bf16.mxu0 0
      %550 = vmatpush1.bf16.msra.mxu0 0
      %551 = vmatprep.subr.bf16.mxu0 0
      %552 = vmatpush1.bf16.msra.mxu0 0
      %553 = vmatprep.subr.bf16.mxu0 0
      %554 = vmatpush1.bf16.msra.mxu0 0
      %555 = vmatprep.subr.bf16.mxu0 0
      %556 = vmatpush1.bf16.msra.mxu0 0
      %557 = vmatprep.subr.bf16.mxu0 0
      %558 = vmatpush1.bf16.msra.mxu0 0
      %559 = vmatprep.subr.bf16.mxu0 0
      %560 = vmatpush1.bf16.msra.mxu0 0
      %561 = vmatprep.mubr.bf16.mxu0 0
      %562 = vmatmul.mubr.bf16.gmra.mrb[0].mxu0 %v523
      %v563 = vpop.f32.mrb[0].mxu0
      %v564 = vadd.f32 0.0, %v563
      %v565 = vpop.f32.mrb[0].mxu0
      %v566 = vpop.f32.mrb[0].mxu0
      %v567 = vpop.f32.mrb[0].mxu0
      %568 = vdwg.mxu0
      %v569 = vadd.f32 %v520, %v564
      %570 = vst.msk [vmem:[#allocation4] sm:$0xff] %vm441, %v569
      %571 = vst.msk [vmem:[#allocation2] sm:$0xff] %vm512, %v494
      %v573 = vunpack.c.l.b16 %v438
      %v574 = vpack.c.b16 %v573, %v573
      %575 = vrot.lane.b32.xlu0 %v574, 120
      %v576 = vpop.permute.xlu0 %575
      %v578 = vunpack.c.l.b16 %v439
      %v579 = vpack.c.b16 %v578, %v578
      %580 = vrot.lane.b32.xlu0 %v579, 120
      %v581 = vpop.permute.xlu0 %580
      %v583 = vsel %vm441, %v576, 0
      %v586 = vsel %vm441, %v581, 0
      %588 = vmatprep.subr.bf16.mxu0 0
      %589 = vmatpush1.bf16.xpose.msra.mxu0 %v586
      %590 = vmatprep.subr.bf16.mxu0 0
      %591 = vmatpush1.bf16.xpose.msra.mxu0 0
      %592 = vmatprep.subr.bf16.mxu0 0
      %593 = vmatpush1.bf16.xpose.msra.mxu0 0
      %594 = vmatprep.subr.bf16.mxu0 0
      %595 = vmatpush1.bf16.xpose.msra.mxu0 0
      %596 = vmatprep.subr.bf16.mxu0 0
      %597 = vmatpush1.bf16.xpose.msra.mxu0 0
      %598 = vmatprep.subr.bf16.mxu0 0
      %599 = vmatpush1.bf16.xpose.msra.mxu0 0
      %600 = vmatprep.subr.bf16.mxu0 0
      %601 = vmatpush1.bf16.xpose.msra.mxu0 0
      %602 = vmatprep.subr.bf16.mxu0 0
      %603 = vmatpush1.bf16.xpose.msra.mxu0 0
      %604 = vmatprep.subr.bf16.mxu0 0
      %605 = vmatpush1.bf16.xpose.msra.mxu0 0
      %606 = vmatprep.subr.bf16.mxu0 0
      %607 = vmatpush1.bf16.xpose.msra.mxu0 0
      %608 = vmatprep.subr.bf16.mxu0 0
      %609 = vmatpush1.bf16.xpose.msra.mxu0 0
      %610 = vmatprep.subr.bf16.mxu0 0
      %611 = vmatpush1.bf16.xpose.msra.mxu0 0
      %612 = vmatprep.subr.bf16.mxu0 0
      %613 = vmatpush1.bf16.xpose.msra.mxu0 0
      %614 = vmatprep.subr.bf16.mxu0 0
      %615 = vmatpush1.bf16.xpose.msra.mxu0 0
      %616 = vmatprep.subr.bf16.mxu0 0
      %617 = vmatpush1.bf16.xpose.msra.mxu0 0
      %618 = vmatprep.subr.bf16.mxu0 0
      %619 = vmatpush1.bf16.xpose.msra.mxu0 0
      %620 = vmatprep.mubr.bf16.mxu0 0
      %621 = vmatmul.mubr.bf16.gmra.mrb[0].mxu0 %v583
      %v622 = vpop.f32.mrb[0].mxu0
      %v623 = vadd.f32 0.0, %v622
      %v624 = vpop.f32.mrb[0].mxu0
      %v625 = vpop.f32.mrb[0].mxu0
      %v626 = vpop.f32.mrb[0].mxu0
      %627 = vdwg.mxu0
      %v628 = vmul.f32 %v623, 0.35355338
      %v629 = vadd.f32 %v628, %v437
      %s630 = scalar_lea.vmem [#allocation2], 8
      %v631 = vld [vmem:[%s630] sm:$0xff]
      %v632 = vsel %vm441, %v629, -inf
      %633 = vmax.xlane.f32.xlu0 %v632
      %v634 = vpop.xlane.xlu0 %633
      %v635 = vmax.f32 %v631, %v634
      %v636 = vsub.f32 %v631, %v635
      %v637 = vmul.f32 %v636, 1.442695
      %v638 = vpow.pop %v637
      %640 = vset.pattern.permute.xlu0 0
      %641 = vperm.xlu0 %640, %v635
      %v642 = vpop.permute.xlu0 %641
      %v644 = vsub.f32 %v629, %v642
      %v645 = vmul.f32 %v644, 1.442695
      %v646 = vpow.pop %v645
      %s647 = scalar_lea.vmem [#allocation3], 8
      %v648 = vld [vmem:[%s647] sm:$0xff]
      %v649 = vmul.f32 %v638, %v648
      %v650 = vsel %vm441, %v646, 0.0
      %651 = vadd.xlane.f32.xlu0 %v650
      %v652 = vpop.xlane.xlu0 %651
      %v653 = vadd.f32 %v649, %v652
      %654 = vst.msk [vmem:[%s647] sm:$0xff] %vm512, %v653
      %s655 = scalar_lea.vmem [#allocation4], 8
      %v656 = vld [vmem:[%s655] sm:$0xff]
      %658 = vset.pattern.permute.xlu0 0
      %659 = vperm.xlu0 %658, %v638
      %v660 = vpop.permute.xlu0 %659
      %v662 = vmul.f32 %v660, %v656
      %v663 = vpack.c.bf16 %v646, %v646
      %v665 = vunpack.c.l.b16 %v440
      %v666 = vpack.c.b16 %v665, %v665
      %667 = vrot.lane.b32.xlu0 %v666, 120
      %v668 = vpop.permute.xlu0 %667
      %v670 = vsel %vm441, %v663, 0
      %v673 = vsel %vm525, %v668, 0
      %675 = vmatprep.subr.bf16.mxu0 0
      %676 = vmatpush1.bf16.msra.mxu0 %v673
      %677 = vmatprep.subr.bf16.mxu0 0
      %678 = vmatpush1.bf16.msra.mxu0 0
      %679 = vmatprep.subr.bf16.mxu0 0
      %680 = vmatpush1.bf16.msra.mxu0 0
      %681 = vmatprep.subr.bf16.mxu0 0
      %682 = vmatpush1.bf16.msra.mxu0 0
      %683 = vmatprep.subr.bf16.mxu0 0
      %684 = vmatpush1.bf16.msra.mxu0 0
      %685 = vmatprep.subr.bf16.mxu0 0
      %686 = vmatpush1.bf16.msra.mxu0 0
      %687 = vmatprep.subr.bf16.mxu0 0
      %688 = vmatpush1.bf16.msra.mxu0 0
      %689 = vmatprep.subr.bf16.mxu0 0
      %690 = vmatpush1.bf16.msra.mxu0 0
      %691 = vmatprep.subr.bf16.mxu0 0
      %692 = vmatpush1.bf16.msra.mxu0 0
      %693 = vmatprep.subr.bf16.mxu0 0
      %694 = vmatpush1.bf16.msra.mxu0 0
      %695 = vmatprep.subr.bf16.mxu0 0
      %696 = vmatpush1.bf16.msra.mxu0 0
      %697 = vmatprep.subr.bf16.mxu0 0
      %698 = vmatpush1.bf16.msra.mxu0 0
      %699 = vmatprep.subr.bf16.mxu0 0
      %700 = vmatpush1.bf16.msra.mxu0 0
      %701 = vmatprep.subr.bf16.mxu0 0
      %702 = vmatpush1.bf16.msra.mxu0 0
      %703 = vmatprep.subr.bf16.mxu0 0
      %704 = vmatpush1.bf16.msra.mxu0 0
      %705 = vmatprep.subr.bf16.mxu0 0
      %706 = vmatpush1.bf16.msra.mxu0 0
      %707 = vmatprep.mubr.bf16.mxu0 0
      %708 = vmatmul.mubr.bf16.gmra.mrb[0].mxu0 %v670
      %v709 = vpop.f32.mrb[0].mxu0
      %v710 = vadd.f32 0.0, %v709
      %v711 = vpop.f32.mrb[0].mxu0
      %v712 = vpop.f32.mrb[0].mxu0
      %v713 = vpop.f32.mrb[0].mxu0
      %714 = vdwg.mxu0
      %v715 = vadd.f32 %v662, %v710
      %716 = vst.msk [vmem:[%s655] sm:$0xff] %vm441, %v715
      %717 = vst.msk [vmem:[%s630] sm:$0xff] %vm512, %v635
      %718 = vrot.lane.b32.xlu0 %v574, 112
      %v719 = vpop.permute.xlu0 %718
      %720 = vrot.lane.b32.xlu0 %v579, 112
      %v721 = vpop.permute.xlu0 %720
      %v723 = vsel %vm441, %v719, 0
      %v726 = vsel %vm441, %v721, 0
      %728 = vmatprep.subr.bf16.mxu0 0
      %729 = vmatpush1.bf16.xpose.msra.mxu0 %v726
      %730 = vmatprep.subr.bf16.mxu0 0
      %731 = vmatpush1.bf16.xpose.msra.mxu0 0
      %732 = vmatprep.subr.bf16.mxu0 0
      %733 = vmatpush1.bf16.xpose.msra.mxu0 0
      %734 = vmatprep.subr.bf16.mxu0 0
      %735 = vmatpush1.bf16.xpose.msra.mxu0 0
      %736 = vmatprep.subr.bf16.mxu0 0
      %737 = vmatpush1.bf16.xpose.msra.mxu0 0
      %738 = vmatprep.subr.bf16.mxu0 0
      %739 = vmatpush1.bf16.xpose.msra.mxu0 0
      %740 = vmatprep.subr.bf16.mxu0 0
      %741 = vmatpush1.bf16.xpose.msra.mxu0 0
      %742 = vmatprep.subr.bf16.mxu0 0
      %743 = vmatpush1.bf16.xpose.msra.mxu0 0
      %744 = vmatprep.subr.bf16.mxu0 0
      %745 = vmatpush1.bf16.xpose.msra.mxu0 0
      %746 = vmatprep.subr.bf16.mxu0 0
      %747 = vmatpush1.bf16.xpose.msra.mxu0 0
      %748 = vmatprep.subr.bf16.mxu0 0
      %749 = vmatpush1.bf16.xpose.msra.mxu0 0
      %750 = vmatprep.subr.bf16.mxu0 0
      %751 = vmatpush1.bf16.xpose.msra.mxu0 0
      %752 = vmatprep.subr.bf16.mxu0 0
      %753 = vmatpush1.bf16.xpose.msra.mxu0 0
      %754 = vmatprep.subr.bf16.mxu0 0
      %755 = vmatpush1.bf16.xpose.msra.mxu0 0
      %756 = vmatprep.subr.bf16.mxu0 0
      %757 = vmatpush1.bf16.xpose.msra.mxu0 0
      %758 = vmatprep.subr.bf16.mxu0 0
      %759 = vmatpush1.bf16.xpose.msra.mxu0 0
      %760 = vmatprep.mubr.bf16.mxu0 0
      %761 = vmatmul.mubr.bf16.gmra.mrb[0].mxu0 %v723
      %v762 = vpop.f32.mrb[0].mxu0
      %v763 = vadd.f32 0.0, %v762
      %v764 = vpop.f32.mrb[0].mxu0
      %v765 = vpop.f32.mrb[0].mxu0
      %v766 = vpop.f32.mrb[0].mxu0
      %767 = vdwg.mxu0
      %v768 = vmul.f32 %v763, 0.35355338
      %v769 = vadd.f32 %v768, %v437
      %s770 = scalar_lea.vmem [#allocation2], 16
      %v771 = vld [vmem:[%s770] sm:$0xff]
      %v772 = vsel %vm441, %v769, -inf
      %773 = vmax.xlane.f32.xlu0 %v772
      %v774 = vpop.xlane.xlu0 %773
      %v775 = vmax.f32 %v771, %v774
      %v776 = vsub.f32 %v771, %v775
      %v777 = vmul.f32 %v776, 1.442695
      %v778 = vpow.pop %v777
      %780 = vset.pattern.permute.xlu0 0
      %781 = vperm.xlu0 %780, %v775
      %v782 = vpop.permute.xlu0 %781
      %v784 = vsub.f32 %v769, %v782
      %v785 = vmul.f32 %v784, 1.442695
      %v786 = vpow.pop %v785
      %s787 = scalar_lea.vmem [#allocation3], 16
      %v788 = vld [vmem:[%s787] sm:$0xff]
      %v789 = vmul.f32 %v778, %v788
      %v790 = vsel %vm441, %v786, 0.0
      %791 = vadd.xlane.f32.xlu0 %v790
      %v792 = vpop.xlane.xlu0 %791
      %v793 = vadd.f32 %v789, %v792
      %794 = vst.msk [vmem:[%s787] sm:$0xff] %vm512, %v793
      %s795 = scalar_lea.vmem [#allocation4], 16
      %v796 = vld [vmem:[%s795] sm:$0xff]
      %798 = vset.pattern.permute.xlu0 0
      %799 = vperm.xlu0 %798, %v778
      %v800 = vpop.permute.xlu0 %799
      %v802 = vmul.f32 %v800, %v796
      %v803 = vpack.c.bf16 %v786, %v786
      %804 = vrot.lane.b32.xlu0 %v666, 112
      %v805 = vpop.permute.xlu0 %804
      %v807 = vsel %vm441, %v803, 0
      %v810 = vsel %vm525, %v805, 0
      %812 = vmatprep.subr.bf16.mxu0 0
      %813 = vmatpush1.bf16.msra.mxu0 %v810
      %814 = vmatprep.subr.bf16.mxu0 0
      %815 = vmatpush1.bf16.msra.mxu0 0
      %816 = vmatprep.subr.bf16.mxu0 0
      %817 = vmatpush1.bf16.msra.mxu0 0
      %818 = vmatprep.subr.bf16.mxu0 0
      %819 = vmatpush1.bf16.msra.mxu0 0
      %820 = vmatprep.subr.bf16.mxu0 0
      %821 = vmatpush1.bf16.msra.mxu0 0
      %822 = vmatprep.subr.bf16.mxu0 0
      %823 = vmatpush1.bf16.msra.mxu0 0
      %824 = vmatprep.subr.bf16.mxu0 0
      %825 = vmatpush1.bf16.msra.mxu0 0
      %826 = vmatprep.subr.bf16.mxu0 0
      %827 = vmatpush1.bf16.msra.mxu0 0
      %828 = vmatprep.subr.bf16.mxu0 0
      %829 = vmatpush1.bf16.msra.mxu0 0
      %830 = vmatprep.subr.bf16.mxu0 0
      %831 = vmatpush1.bf16.msra.mxu0 0
      %832 = vmatprep.subr.bf16.mxu0 0
      %833 = vmatpush1.bf16.msra.mxu0 0
      %834 = vmatprep.subr.bf16.mxu0 0
      %835 = vmatpush1.bf16.msra.mxu0 0
      %836 = vmatprep.subr.bf16.mxu0 0
      %837 = vmatpush1.bf16.msra.mxu0 0
      %838 = vmatprep.subr.bf16.mxu0 0
      %839 = vmatpush1.bf16.msra.mxu0 0
      %840 = vmatprep.subr.bf16.mxu0 0
      %841 = vmatpush1.bf16.msra.mxu0 0
      %842 = vmatprep.subr.bf16.mxu0 0
      %843 = vmatpush1.bf16.msra.mxu0 0
      %844 = vmatprep.mubr.bf16.mxu0 0
      %845 = vmatmul.mubr.bf16.gmra.mrb[0].mxu0 %v807
      %v846 = vpop.f32.mrb[0].mxu0
      %v847 = vadd.f32 0.0, %v846
      %v848 = vpop.f32.mrb[0].mxu0
      %v849 = vpop.f32.mrb[0].mxu0
      %v850 = vpop.f32.mrb[0].mxu0
      %851 = vdwg.mxu0
      %v852 = vadd.f32 %v802, %v847
      %853 = vst.msk [vmem:[%s795] sm:$0xff] %vm441, %v852
      %854 = vst.msk [vmem:[%s770] sm:$0xff] %vm512, %v775
      %855 = vrot.lane.b32.xlu0 %v574, 104
      %v856 = vpop.permute.xlu0 %855
      %857 = vrot.lane.b32.xlu0 %v579, 104
      %v858 = vpop.permute.xlu0 %857
      %v860 = vsel %vm441, %v856, 0
      %v863 = vsel %vm441, %v858, 0
      %865 = vmatprep.subr.bf16.mxu0 0
      %866 = vmatpush1.bf16.xpose.msra.mxu0 %v863
      %867 = vmatprep.subr.bf16.mxu0 0
      %868 = vmatpush1.bf16.xpose.msra.mxu0 0
      %869 = vmatprep.subr.bf16.mxu0 0
      %870 = vmatpush1.bf16.xpose.msra.mxu0 0
      %871 = vmatprep.subr.bf16.mxu0 0
      %872 = vmatpush1.bf16.xpose.msra.mxu0 0
      %873 = vmatprep.subr.bf16.mxu0 0
      %874 = vmatpush1.bf16.xpose.msra.mxu0 0
      %875 = vmatprep.subr.bf16.mxu0 0
      %876 = vmatpush1.bf16.xpose.msra.mxu0 0
      %877 = vmatprep.subr.bf16.mxu0 0
      %878 = vmatpush1.bf16.xpose.msra.mxu0 0
      %879 = vmatprep.subr.bf16.mxu0 0
      %880 = vmatpush1.bf16.xpose.msra.mxu0 0
      %881 = vmatprep.subr.bf16.mxu0 0
      %882 = vmatpush1.bf16.xpose.msra.mxu0 0
      %883 = vmatprep.subr.bf16.mxu0 0
      %884 = vmatpush1.bf16.xpose.msra.mxu0 0
      %885 = vmatprep.subr.bf16.mxu0 0
      %886 = vmatpush1.bf16.xpose.msra.mxu0 0
      %887 = vmatprep.subr.bf16.mxu0 0
      %888 = vmatpush1.bf16.xpose.msra.mxu0 0
      %889 = vmatprep.subr.bf16.mxu0 0
      %890 = vmatpush1.bf16.xpose.msra.mxu0 0
      %891 = vmatprep.subr.bf16.mxu0 0
      %892 = vmatpush1.bf16.xpose.msra.mxu0 0
      %893 = vmatprep.subr.bf16.mxu0 0
      %894 = vmatpush1.bf16.xpose.msra.mxu0 0
      %895 = vmatprep.subr.bf16.mxu0 0
      %896 = vmatpush1.bf16.xpose.msra.mxu0 0
      %897 = vmatprep.mubr.bf16.mxu0 0
      %898 = vmatmul.mubr.bf16.gmra.mrb[0].mxu0 %v860
      %v899 = vpop.f32.mrb[0].mxu0
      %v900 = vadd.f32 0.0, %v899
      %v901 = vpop.f32.mrb[0].mxu0
      %v902 = vpop.f32.mrb[0].mxu0
      %v903 = vpop.f32.mrb[0].mxu0
      %904 = vdwg.mxu0
      %v905 = vmul.f32 %v900, 0.35355338
      %v906 = vadd.f32 %v905, %v437
      %s907 = scalar_lea.vmem [#allocation2], 24
      %v908 = vld [vmem:[%s907] sm:$0xff]
      %v909 = vsel %vm441, %v906, -inf
      %910 = vmax.xlane.f32.xlu0 %v909
      %v911 = vpop.xlane.xlu0 %910
      %v912 = vmax.f32 %v908, %v911
      %v913 = vsub.f32 %v908, %v912
      %v914 = vmul.f32 %v913, 1.442695
      %v915 = vpow.pop %v914
      %917 = vset.pattern.permute.xlu0 0
      %918 = vperm.xlu0 %917, %v912
      %v919 = vpop.permute.xlu0 %918
      %v921 = vsub.f32 %v906, %v919
      %v922 = vmul.f32 %v921, 1.442695
      %v923 = vpow.pop %v922
      %s924 = scalar_lea.vmem [#allocation3], 24
      %v925 = vld [vmem:[%s924] sm:$0xff]
      %v926 = vmul.f32 %v915, %v925
      %v927 = vsel %vm441, %v923, 0.0
      %928 = vadd.xlane.f32.xlu0 %v927
      %v929 = vpop.xlane.xlu0 %928
      %v930 = vadd.f32 %v926, %v929
      %931 = vst.msk [vmem:[%s924] sm:$0xff] %vm512, %v930
      %s932 = scalar_lea.vmem [#allocation4], 24
      %v933 = vld [vmem:[%s932] sm:$0xff]
      %935 = vset.pattern.permute.xlu0 0
      %936 = vperm.xlu0 %935, %v915
      %v937 = vpop.permute.xlu0 %936
      %v939 = vmul.f32 %v937, %v933
      %v940 = vpack.c.bf16 %v923, %v923
      %941 = vrot.lane.b32.xlu0 %v666, 104
      %v942 = vpop.permute.xlu0 %941
      %v944 = vsel %vm441, %v940, 0
      %v947 = vsel %vm525, %v942, 0
      %949 = vmatprep.subr.bf16.mxu0 0
      %950 = vmatpush1.bf16.msra.mxu0 %v947
      %951 = vmatprep.subr.bf16.mxu0 0
      %952 = vmatpush1.bf16.msra.mxu0 0
      %953 = vmatprep.subr.bf16.mxu0 0
      %954 = vmatpush1.bf16.msra.mxu0 0
      %955 = vmatprep.subr.bf16.mxu0 0
      %956 = vmatpush1.bf16.msra.mxu0 0
      %957 = vmatprep.subr.bf16.mxu0 0
      %958 = vmatpush1.bf16.msra.mxu0 0
      %959 = vmatprep.subr.bf16.mxu0 0
      %960 = vmatpush1.bf16.msra.mxu0 0
      %961 = vmatprep.subr.bf16.mxu0 0
      %962 = vmatpush1.bf16.msra.mxu0 0
      %963 = vmatprep.subr.bf16.mxu0 0
      %964 = vmatpush1.bf16.msra.mxu0 0
      %965 = vmatprep.subr.bf16.mxu0 0
      %966 = vmatpush1.bf16.msra.mxu0 0
      %967 = vmatprep.subr.bf16.mxu0 0
      %968 = vmatpush1.bf16.msra.mxu0 0
      %969 = vmatprep.subr.bf16.mxu0 0
      %970 = vmatpush1.bf16.msra.mxu0 0
      %971 = vmatprep.subr.bf16.mxu0 0
      %972 = vmatpush1.bf16.msra.mxu0 0
      %973 = vmatprep.subr.bf16.mxu0 0
      %974 = vmatpush1.bf16.msra.mxu0 0
      %975 = vmatprep.subr.bf16.mxu0 0
      %976 = vmatpush1.bf16.msra.mxu0 0
      %977 = vmatprep.subr.bf16.mxu0 0
      %978 = vmatpush1.bf16.msra.mxu0 0
      %979 = vmatprep.subr.bf16.mxu0 0
      %980 = vmatpush1.bf16.msra.mxu0 0
      %981 = vmatprep.mubr.bf16.mxu0 0
      %982 = vmatmul.mubr.bf16.gmra.mrb[0].mxu0 %v944
      %v983 = vpop.f32.mrb[0].mxu0
      %v984 = vadd.f32 0.0, %v983
      %v985 = vpop.f32.mrb[0].mxu0
      %v986 = vpop.f32.mrb[0].mxu0
      %v987 = vpop.f32.mrb[0].mxu0
      %988 = vdwg.mxu0
      %v989 = vadd.f32 %v939, %v984
      %990 = vst.msk [vmem:[%s932] sm:$0xff] %vm441, %v989
      %991 = vst.msk [vmem:[%s907] sm:$0xff] %vm512, %v912
      // Predicated region
      $region45: #{transformer_forward.54} parent=39 // pred_check
        %p992 = pneg %p392
      $region46: #{transformer_forward.54} parent=39 // pred_check_branch
        %994 = sbr.rel (%p992) target = $region48
      $region47: #{transformer_forward.54} parent=39 // pred_region
        %v995 = vld [vmem:[#allocation4] sm:$0xff]
        %v996 = vld [vmem:[#allocation3] sm:$0xff]
        %v997 = vrcp.pop %v996
        %999 = vset.pattern.permute.xlu0 0
        %1000 = vperm.xlu0 %999, %v997
        %v1001 = vpop.permute.xlu0 %1000
        %v1003 = vmul.f32 %v995, %v1001
        %v1004 = vld [vmem:[%s655] sm:$0xff]
        %v1005 = vld [vmem:[%s647] sm:$0xff]
        %v1006 = vrcp.pop %v1005
        %1008 = vset.pattern.permute.xlu0 0
        %1009 = vperm.xlu0 %1008, %v1006
        %v1010 = vpop.permute.xlu0 %1009
        %v1012 = vmul.f32 %v1004, %v1010
        %v1013 = vld [vmem:[%s795] sm:$0xff]
        %v1014 = vld [vmem:[%s787] sm:$0xff]
        %v1015 = vrcp.pop %v1014
        %1017 = vset.pattern.permute.xlu0 0
        %1018 = vperm.xlu0 %1017, %v1015
        %v1019 = vpop.permute.xlu0 %1018
        %v1021 = vmul.f32 %v1013, %v1019
        %v1022 = vld [vmem:[%s932] sm:$0xff]
        %v1023 = vld [vmem:[%s924] sm:$0xff]
        %v1024 = vrcp.pop %v1023
        %1026 = vset.pattern.permute.xlu0 0
        %1027 = vperm.xlu0 %1026, %v1024
        %v1028 = vpop.permute.xlu0 %1027
        %v1030 = vmul.f32 %v1022, %v1028
        %1032 = vrot.lane.b32.xlu0 %v1012, 8
        %v1033 = vpop.permute.xlu0 %1032
        %1036 = vrot.lane.b32.xlu0 %v1021, 16
        %v1037 = vpop.permute.xlu0 %1036
        %1040 = vrot.lane.b32.xlu0 %v1030, 24
        %v1041 = vpop.permute.xlu0 %1040
        %v1043 = vsel %vm441, %v1003, %v1033
        %vm1044 = vcmask 130048
        %v1045 = vsel %vm1044, %v1043, %v1037
        %vm1046 = vcmask 195584
        %v1047 = vsel %vm1046, %v1045, %v1041
        %vm1048 = vcmask 261120
        %v1049 = vsel %vm1048, %v1047, 0.0
        %v1050 = vpack.c.bf16 %v1049, %v1049
        %1051 = vst [vmem:[%s390] sm:$0xf] %v1050
      $region48: #{transformer_forward.54} parent=39 // pred_fallthru
        _
      %p1052 = scmp.lt.s32.totalorder %s21, 1
      %s1053 = scalar_select %p1052, %s21, 1
      %p1054 = scmp.lt.s32.totalorder %s22, 0
      %s1055 = scalar_select %p1054, %s22, 0
      %s1056 = sadd.s32 %s1055, %s1053
      %s1057 = smul.addr %s1056, 4
      %s1058 = scalar_lea.vmem %s5, %s1057
      // Predicated region
      $region49: #{transformer_forward.54} parent=39 // pred_check
        %p1059 = pneg %p195
      $region50: #{transformer_forward.54} parent=39 // pred_check_branch
        %1061 = sbr.rel (%p1059) target = $region52
      $region51: #{transformer_forward.54} parent=39 // pred_region
        _
      $region52: #{transformer_forward.54} parent=39 // pred_fallthru
        _
    $region40: #{transformer_forward.54} parent=5 // pred_fallthru
      _
    %p1062 = scmp.le.s32.totalorder 2, %s11
    // Predicated region
    $region53: #{transformer_forward.54} parent=5 // pred_check
      %p1063 = pneg %p1062
    $region54: #{transformer_forward.54} parent=5 // pred_check_branch
      %1065 = sbr.rel (%p1063) target = $region56
    $region55: #{transformer_forward.54} parent=5 // pred_region
      %s1066 = ssub.s32 %s11, 2
      // Predicated region
      $region57: #{transformer_forward.54} parent=55 // pred_check
        %p1067 = pneg %p201
      $region58: #{transformer_forward.54} parent=55 // pred_check_branch
        %1069 = sbr.rel (%p1067) target = $region60
      $region59: #{transformer_forward.54} parent=55 // pred_region
        %p1070 = scmp.lt.s32.totalorder %s24, 1
        %s1071 = scalar_select %p1070, %s24, 1
        %p1072 = scmp.lt.s32.totalorder %s25, 0
        %s1073 = scalar_select %p1072, %s25, 0
        %s1074 = sadd.s32 %s1073, %s1071
        %s1075 = smul.addr %s1074, 4
        %s1076 = scalar_lea.vmem %s5, %s1075
      $region60: #{transformer_forward.54} parent=55 // pred_fallthru
        _
    $region56: #{transformer_forward.54} parent=5 // pred_fallthru
      _
  $region6: #{transformer_forward.54} parent=0 // loop_footer
    %s15 = sadd.s32 1, %s11
  $region7: #{transformer_forward.54} parent=0 // loop_footer_branch
    %10 = sbr.rel target = $region3
  $region8: #{transformer_forward.54} parent=0 // loop_exit
    _

// kernel: transformer_forward.59
$region0: #{transformer_forward.59}
  #allocation0 [shape = 'u32[]', space=smem, size = 0x4, offset = 0x4, fixed_abs, tag = 'smem constant byte address 0x4 - core index']
  #allocation1 [shape = 'u32[144,128]{1,0:T(1,128)}', space=vmem, size = 0x12000, scoped, tag = 'internal scratch']
  #allocation2 [shape = 'f32[4,8,1]{2,1,0:T(8,128)}', space=vmem, size = 0x4000, scoped, tag = 'scratch operand']
  #allocation3 [shape = 'f32[4,8,1]{2,1,0:T(8,128)}', space=vmem, size = 0x4000, scoped, tag = 'scratch operand']
  #allocation4 [shape = 'f32[4,8,8]{2,1,0:T(8,128)}', space=vmem, size = 0x4000, scoped, tag = 'scratch operand']
  %s0 = inlined_call_operand.vmem [shape: f32[2,8,1], index: 0, kind: input, shape index: {}]
  %s1 = inlined_call_operand.vmem [shape: f32[2,1,8], index: 1, kind: input, shape index: {}]
  %s2 = inlined_call_operand.vmem [shape: bf16[2,8,128], index: 2, kind: input, shape index: {}]
  %s3 = inlined_call_operand.vmem [shape: bf16[2,8,256], index: 3, kind: input, shape index: {}, may-alias: {3,4}]
  %s4 = inlined_call_operand.vmem [shape: bf16[2,8,256], index: 4, kind: input, shape index: {}, may-alias: {3,4}]
  %s5 = inlined_call_operand.vmem [shape: bf16[2,8,128], index: 5, kind: output, shape index: {}]
  %s6 = sld [smem:[#allocation0]]
  $region61: #{transformer_forward.59} parent=0
    _
  %s8 = ssub.s32 1, %s6
  %s9 = scalar_select 0, %s8, %s6
  loop: start=0, step=1, limit=4
  $region2: #{transformer_forward.59} parent=0 // loop_pre_header
    _
  $region3: #{transformer_forward.59} parent=0 // loop_header
    %s11 = sphi 0, %s15
    %p12 = scmp.ge.s32.totalorder %s11, 4
    %s18 = sphi 0, %s37
    %s19 = sphi 0, %s33
    %s20 = sphi 0, %s29
    %s21 = sphi 0, %s18
    %s22 = sphi 0, %s19
    %s23 = sphi 0, %s20
    %s24 = sphi 0, %s21
    %s25 = sphi 0, %s22
    %s26 = sphi 0, %s23
    %s42 = sphi 0, %s44
    %s45 = sphi 0, %s42
    %s46 = sphi 0, %s45
    %s62 = sphi 0, %s46
    %s70 = sphi 0, %s72
    %s73 = sphi 0, %s70
    %s74 = sphi 0, %s73
    %s90 = sphi 0, %s74
    %s98 = sphi 0, %s100
    %s101 = sphi 0, %s98
    %s102 = sphi 0, %s101
    %s118 = sphi 0, %s102
    %s126 = sphi 0, %s128
    %s129 = sphi 0, %s126
    %s130 = sphi 0, %s129
    %s146 = sphi 0, %s130
    %s154 = sphi 0, %s156
    %s157 = sphi 0, %s154
    %s158 = sphi 0, %s157
    %s174 = sphi 0, %s158
    %s182 = sphi 0, %s184
    %s185 = sphi 0, %s182
    %s186 = sphi 0, %s185
    %s202 = sphi 0, %s186
  $region4: #{transformer_forward.59} parent=0 // loop_header_branch
    %14 = sbr.rel (%p12) target = $region8
  $region5: #{transformer_forward.59} parent=0 // loop_body
    %s16 = ssub.s32 %s11, 1
    %s17 = ssub.s32 %s11, 2
    %s27 = sadd.s32 1, %s20
    %p28 = scmp.ge.s32.totalorder %s27, 1
    %s29 = scalar_select %p28, 0, %s27
    %s30 = sadd.s32 1, %s19
    %s31 = scalar_select %p28, %s30, %s19
    %p32 = scmp.ge.s32.totalorder %s31, 1
    %s33 = scalar_select %p32, 0, %s31
    %s34 = sadd.s32 1, %s18
    %s35 = scalar_select %p32, %s34, %s18
    %p36 = scmp.ge.s32.totalorder %s35, 2
    %s37 = scalar_select %p36, 0, %s35
    %s38 = ssub.s32 %s18, %s37
    %s39 = ssub.s32 %s19, %s33
    %s40 = sor.u32 %s38, %s39
    %p41 = scmp.eq.s32.totalorder %s40, 0
    %s43 = sadd.s32 %s42, 1
    %s44 = scalar_select %p41, %s42, %s43
    %p47 = pneg %p41
    %p48 = scmp.eq.s32.totalorder %s11, 1
    %p49 = por %p47, %p48
    %p50 = scmp.ne.s32.totalorder %s42, %s45
    %p51 = scmp.eq.s32.totalorder %s11, 0
    %p52 = por %p50, %p51
    %p53 = scmp.ne.s32.totalorder %s42, %s45
    %p54 = scmp.eq.s32.totalorder %s16, 1
    %p55 = por %p53, %p54
    %p56 = scmp.ne.s32.totalorder %s45, %s46
    %p57 = scmp.eq.s32.totalorder %s16, 0
    %p58 = por %p56, %p57
    %p59 = scmp.ne.s32.totalorder %s45, %s46
    %p60 = scmp.eq.s32.totalorder %s17, 1
    %p61 = por %p59, %p60
    %p63 = scmp.ne.s32.totalorder %s46, %s62
    %p64 = scmp.eq.s32.totalorder %s17, 0
    %p65 = por %p63, %p64
    %s66 = ssub.s32 %s18, %s37
    %s67 = ssub.s32 %s20, %s29
    %s68 = sor.u32 %s66, %s67
    %p69 = scmp.eq.s32.totalorder %s68, 0
    %s71 = sadd.s32 %s70, 1
    %s72 = scalar_select %p69, %s70, %s71
    %p75 = pneg %p69
    %p76 = scmp.eq.s32.totalorder %s11, 1
    %p77 = por %p75, %p76
    %p78 = scmp.ne.s32.totalorder %s70, %s73
    %p79 = scmp.eq.s32.totalorder %s11, 0
    %p80 = por %p78, %p79
    %p81 = scmp.ne.s32.totalorder %s70, %s73
    %p82 = scmp.eq.s32.totalorder %s16, 1
    %p83 = por %p81, %p82
    %p84 = scmp.ne.s32.totalorder %s73, %s74
    %p85 = scmp.eq.s32.totalorder %s16, 0
    %p86 = por %p84, %p85
    %p87 = scmp.ne.s32.totalorder %s73, %s74
    %p88 = scmp.eq.s32.totalorder %s17, 1
    %p89 = por %p87, %p88
    %p91 = scmp.ne.s32.totalorder %s74, %s90
    %p92 = scmp.eq.s32.totalorder %s17, 0
    %p93 = por %p91, %p92
    %s94 = ssub.s32 %s18, %s37
    %s95 = ssub.s32 %s19, %s33
    %s96 = sor.u32 %s94, %s95
    %p97 = scmp.eq.s32.totalorder %s96, 0
    %s99 = sadd.s32 %s98, 1
    %s100 = scalar_select %p97, %s98, %s99
    %p103 = pneg %p97
    %p104 = scmp.eq.s32.totalorder %s11, 1
    %p105 = por %p103, %p104
    %p106 = scmp.ne.s32.totalorder %s98, %s101
    %p107 = scmp.eq.s32.totalorder %s11, 0
    %p108 = por %p106, %p107
    %p109 = scmp.ne.s32.totalorder %s98, %s101
    %p110 = scmp.eq.s32.totalorder %s16, 1
    %p111 = por %p109, %p110
    %p112 = scmp.ne.s32.totalorder %s101, %s102
    %p113 = scmp.eq.s32.totalorder %s16, 0
    %p114 = por %p112, %p113
    %p115 = scmp.ne.s32.totalorder %s101, %s102
    %p116 = scmp.eq.s32.totalorder %s17, 1
    %p117 = por %p115, %p116
    %p119 = scmp.ne.s32.totalorder %s102, %s118
    %p120 = scmp.eq.s32.totalorder %s17, 0
    %p121 = por %p119, %p120
    %s122 = ssub.s32 %s18, %s37
    %s123 = ssub.s32 %s20, %s29
    %s124 = sor.u32 %s122, %s123
    %p125 = scmp.eq.s32.totalorder %s124, 0
    %s127 = sadd.s32 %s126, 1
    %s128 = scalar_select %p125, %s126, %s127
    %p131 = pneg %p125
    %p132 = scmp.eq.s32.totalorder %s11, 1
    %p133 = por %p131, %p132
    %p134 = scmp.ne.s32.totalorder %s126, %s129
    %p135 = scmp.eq.s32.totalorder %s11, 0
    %p136 = por %p134, %p135
    %p137 = scmp.ne.s32.totalorder %s126, %s129
    %p138 = scmp.eq.s32.totalorder %s16, 1
    %p139 = por %p137, %p138
    %p140 = scmp.ne.s32.totalorder %s129, %s130
    %p141 = scmp.eq.s32.totalorder %s16, 0
    %p142 = por %p140, %p141
    %p143 = scmp.ne.s32.totalorder %s129, %s130
    %p144 = scmp.eq.s32.totalorder %s17, 1
    %p145 = por %p143, %p144
    %p147 = scmp.ne.s32.totalorder %s130, %s146
    %p148 = scmp.eq.s32.totalorder %s17, 0
    %p149 = por %p147, %p148
    %s150 = ssub.s32 %s18, %s37
    %s151 = ssub.s32 %s20, %s29
    %s152 = sor.u32 %s150, %s151
    %p153 = scmp.eq.s32.totalorder %s152, 0
    %s155 = sadd.s32 %s154, 1
    %s156 = scalar_select %p153, %s154, %s155
    %p159 = pneg %p153
    %p160 = scmp.eq.s32.totalorder %s11, 1
    %p161 = por %p159, %p160
    %p162 = scmp.ne.s32.totalorder %s154, %s157
    %p163 = scmp.eq.s32.totalorder %s11, 0
    %p164 = por %p162, %p163
    %p165 = scmp.ne.s32.totalorder %s154, %s157
    %p166 = scmp.eq.s32.totalorder %s16, 1
    %p167 = por %p165, %p166
    %p168 = scmp.ne.s32.totalorder %s157, %s158
    %p169 = scmp.eq.s32.totalorder %s16, 0
    %p170 = por %p168, %p169
    %p171 = scmp.ne.s32.totalorder %s157, %s158
    %p172 = scmp.eq.s32.totalorder %s17, 1
    %p173 = por %p171, %p172
    %p175 = scmp.ne.s32.totalorder %s158, %s174
    %p176 = scmp.eq.s32.totalorder %s17, 0
    %p177 = por %p175, %p176
    %s178 = ssub.s32 %s18, %s37
    %s179 = ssub.s32 %s19, %s33
    %s180 = sor.u32 %s178, %s179
    %p181 = scmp.eq.s32.totalorder %s180, 0
    %s183 = sadd.s32 %s182, 1
    %s184 = scalar_select %p181, %s182, %s183
    %p187 = pneg %p181
    %p188 = scmp.eq.s32.totalorder %s11, 1
    %p189 = por %p187, %p188
    %p190 = scmp.ne.s32.totalorder %s182, %s185
    %p191 = scmp.eq.s32.totalorder %s11, 0
    %p192 = por %p190, %p191
    %p193 = scmp.ne.s32.totalorder %s182, %s185
    %p194 = scmp.eq.s32.totalorder %s16, 1
    %p195 = por %p193, %p194
    %p196 = scmp.ne.s32.totalorder %s185, %s186
    %p197 = scmp.eq.s32.totalorder %s16, 0
    %p198 = por %p196, %p197
    %p199 = scmp.ne.s32.totalorder %s185, %s186
    %p200 = scmp.eq.s32.totalorder %s17, 1
    %p201 = por %p199, %p200
    %p203 = scmp.ne.s32.totalorder %s186, %s202
    %p204 = scmp.eq.s32.totalorder %s17, 0
    %p205 = por %p203, %p204
    %p206 = scmp.le.s32.totalorder 1, %s11
    %p207 = scmp.lt.s32.totalorder %s11, 3
    %p208 = pnand %p206, %p207
    %p209 = pneg %p208
    // Predicated region
    $region9: #{transformer_forward.59} parent=5 // pred_check
      _
    $region10: #{transformer_forward.59} parent=5 // pred_check_branch
      %211 = sbr.rel (%p208) target = $region12
    $region11: #{transformer_forward.59} parent=5 // pred_region
      %s212 = ssub.s32 %s11, 1
    $region12: #{transformer_forward.59} parent=5 // pred_fallthru
      _
    %p213 = scmp.lt.s32.totalorder %s11, 2
    // Predicated region
    $region13: #{transformer_forward.59} parent=5 // pred_check
      %p214 = pneg %p213
    $region14: #{transformer_forward.59} parent=5 // pred_check_branch
      %216 = sbr.rel (%p214) target = $region16
    $region15: #{transformer_forward.59} parent=5 // pred_region
      // Predicated region
      $region17: #{transformer_forward.59} parent=15 // pred_check
        %p217 = pneg %p52
      $region18: #{transformer_forward.59} parent=15 // pred_check_branch
        %219 = sbr.rel (%p217) target = $region20
      $region19: #{transformer_forward.59} parent=15 // pred_region
        %p220 = scmp.lt.s32.totalorder %s18, 1
        %s221 = scalar_select %p220, %s18, 1
        %p222 = scmp.lt.s32.totalorder %s19, 0
        %s223 = scalar_select %p222, %s19, 0
        %s224 = sadd.s32 %s223, %s221
        %s225 = smul.addr %s224, 8
        %s226 = scalar_lea.vmem %s0, %s225
      $region20: #{transformer_forward.59} parent=15 // pred_fallthru
        _
      // Predicated region
      $region21: #{transformer_forward.59} parent=15 // pred_check
        %p227 = pneg %p80
      $region22: #{transformer_forward.59} parent=15 // pred_check_branch
        %229 = sbr.rel (%p227) target = $region24
      $region23: #{transformer_forward.59} parent=15 // pred_region
        %p230 = scmp.lt.s32.totalorder %s18, 1
        %s231 = scalar_select %p230, %s18, 1
        %p232 = scmp.lt.s32.totalorder %s20, 0
        %s233 = scalar_select %p232, %s20, 0
        %s234 = sadd.s32 %s233, %s231
        %s235 = scalar_lea.vmem %s1, %s234
      $region24: #{transformer_forward.59} parent=15 // pred_fallthru
        _
      // Predicated region
      $region25: #{transformer_forward.59} parent=15 // pred_check
        %p236 = pneg %p108
      $region26: #{transformer_forward.59} parent=15 // pred_check_branch
        %238 = sbr.rel (%p236) target = $region28
      $region27: #{transformer_forward.59} parent=15 // pred_region
        %p239 = scmp.lt.s32.totalorder %s18, 1
        %s240 = scalar_select %p239, %s18, 1
        %p241 = scmp.lt.s32.totalorder %s19, 0
        %s242 = scalar_select %p241, %s19, 0
        %s243 = sadd.s32 %s242, %s240
        %s244 = smul.addr %s243, 4
        %s245 = scalar_lea.vmem %s2, %s244
      $region28: #{transformer_forward.59} parent=15 // pred_fallthru
        _
      // Predicated region
      $region29: #{transformer_forward.59} parent=15 // pred_check
        %p246 = pneg %p136
      $region30: #{transformer_forward.59} parent=15 // pred_check_branch
        %248 = sbr.rel (%p246) target = $region32
      $region31: #{transformer_forward.59} parent=15 // pred_region
        %p249 = scmp.lt.s32.totalorder %s18, 1
        %s250 = scalar_select %p249, %s18, 1
        %p251 = scmp.lt.s32.totalorder %s20, 0
        %s252 = scalar_select %p251, %s20, 0
        %s253 = smul.addr %s252, 2
        %s254 = smul.addr %s250, 2
        %s255 = sadd.s32 %s253, %s254
        %s256 = smul.addr %s255, 4
        %s257 = scalar_lea.vmem %s3, %s256
      $region32: #{transformer_forward.59} parent=15 // pred_fallthru
        _
      // Predicated region
      $region33: #{transformer_forward.59} parent=15 // pred_check
        %p258 = pneg %p164
      $region34: #{transformer_forward.59} parent=15 // pred_check_branch
        %260 = sbr.rel (%p258) target = $region36
      $region35: #{transformer_forward.59} parent=15 // pred_region
        %p261 = scmp.lt.s32.totalorder %s18, 1
        %s262 = scalar_select %p261, %s18, 1
        %p263 = scmp.lt.s32.totalorder %s20, 0
        %s264 = scalar_select %p263, %s20, 0
        %s265 = smul.addr %s264, 2
        %s266 = sadd.s32 1, %s265
        %s267 = smul.addr %s262, 2
        %s268 = sadd.s32 %s266, %s267
        %s269 = smul.addr %s268, 4
        %s270 = scalar_lea.vmem %s4, %s269
      $region36: #{transformer_forward.59} parent=15 // pred_fallthru
        _
    $region16: #{transformer_forward.59} parent=5 // pred_fallthru
      _
    %p271 = scmp.le.s32.totalorder 1, %s11
    %p272 = scmp.lt.s32.totalorder %s11, 3
    %p273 = pnand %p271, %p272
    %p274 = pneg %p273
    // Predicated region
    $region37: #{transformer_forward.59} parent=5 // pred_check
      _
    $region38: #{transformer_forward.59} parent=5 // pred_check_branch
      %276 = sbr.rel (%p273) target = $region40
    $region39: #{transformer_forward.59} parent=5 // pred_region
      %s277 = ssub.s32 %s11, 1
      %p278 = scmp.lt.s32.totalorder %s21, 1
      %s279 = scalar_select %p278, %s21, 1
      %p280 = scmp.lt.s32.totalorder %s22, 0
      %s281 = scalar_select %p280, %s22, 0
      %s282 = sadd.s32 %s281, %s279
      %s283 = smul.addr %s282, 8
      %s284 = scalar_lea.vmem %s0, %s283
      %p285 = pneg %p58
      %p286 = pneg %p55
      %p287 = scmp.lt.s32.totalorder %s21, 1
      %s288 = scalar_select %p287, %s21, 1
      %p289 = scmp.lt.s32.totalorder %s23, 0
      %s290 = scalar_select %p289, %s23, 0
      %s291 = sadd.s32 %s290, %s288
      %s292 = scalar_lea.vmem %s1, %s291
      %p293 = pneg %p86
      %p294 = pneg %p83
      %p295 = scmp.lt.s32.totalorder %s21, 1
      %s296 = scalar_select %p295, %s21, 1
      %p297 = scmp.lt.s32.totalorder %s22, 0
      %s298 = scalar_select %p297, %s22, 0
      %s299 = sadd.s32 %s298, %s296
      %s300 = smul.addr %s299, 4
      %s301 = scalar_lea.vmem %s2, %s300
      %p302 = pneg %p114
      %p303 = pneg %p111
      %p304 = scmp.lt.s32.totalorder %s21, 1
      %s305 = scalar_select %p304, %s21, 1
      %p306 = scmp.lt.s32.totalorder %s23, 0
      %s307 = scalar_select %p306, %s23, 0
      %s308 = smul.addr %s307, 2
      %s309 = smul.addr %s305, 2
      %s310 = sadd.s32 %s308, %s309
      %s311 = smul.addr %s310, 4
      %s312 = scalar_lea.vmem %s3, %s311
      %p313 = pneg %p142
      %p314 = pneg %p139
      %p315 = scmp.lt.s32.totalorder %s21, 1
      %s316 = scalar_select %p315, %s21, 1
      %p317 = scmp.lt.s32.totalorder %s23, 0
      %s318 = scalar_select %p317, %s23, 0
      %s319 = smul.addr %s318, 2
      %s320 = sadd.s32 1, %s319
      %s321 = smul.addr %s316, 2
      %s322 = sadd.s32 %s320, %s321
      %s323 = smul.addr %s322, 4
      %s324 = scalar_lea.vmem %s4, %s323
      %p325 = pneg %p170
      %p326 = pneg %p167
      %p327 = pneg %p198
      %p328 = pneg %p195
      %p329 = scmp.lt.s32.totalorder %s21, 1
      %s330 = scalar_select %p329, %s21, 1
      %p331 = scmp.lt.s32.totalorder %s22, 0
      %s332 = scalar_select %p331, %s22, 0
      %s333 = sadd.s32 %s332, %s330
      %s334 = smul.addr %s333, 4
      %s335 = scalar_lea.vmem %s5, %s334
      %p336 = scmp.lt.s32.totalorder %s21, 1
      %s337 = scalar_select %p336, %s21, 1
      %p338 = scmp.lt.s32.totalorder %s22, 0
      %s339 = scalar_select %p338, %s22, 0
      %s340 = sadd.s32 %s339, %s337
      %s341 = smul.addr %s340, 8
      %s342 = scalar_lea.vmem %s0, %s341
      %p343 = scmp.lt.s32.totalorder %s21, 1
      %s344 = scalar_select %p343, %s21, 1
      %p345 = scmp.lt.s32.totalorder %s23, 0
      %s346 = scalar_select %p345, %s23, 0
      %s347 = sadd.s32 %s346, %s344
      %s348 = scalar_lea.vmem %s1, %s347
      %p349 = scmp.lt.s32.totalorder %s21, 1
      %s350 = scalar_select %p349, %s21, 1
      %p351 = scmp.lt.s32.totalorder %s22, 0
      %s352 = scalar_select %p351, %s22, 0
      %s353 = sadd.s32 %s352, %s350
      %s354 = smul.addr %s353, 4
      %s355 = scalar_lea.vmem %s2, %s354
      %p356 = scmp.lt.s32.totalorder %s21, 1
      %s357 = scalar_select %p356, %s21, 1
      %p358 = scmp.lt.s32.totalorder %s23, 0
      %s359 = scalar_select %p358, %s23, 0
      %s360 = smul.addr %s359, 2
      %s361 = smul.addr %s357, 2
      %s362 = sadd.s32 %s360, %s361
      %s363 = smul.addr %s362, 4
      %s364 = scalar_lea.vmem %s3, %s363
      %p365 = scmp.lt.s32.totalorder %s21, 1
      %s366 = scalar_select %p365, %s21, 1
      %p367 = scmp.lt.s32.totalorder %s23, 0
      %s368 = scalar_select %p367, %s23, 0
      %s369 = smul.addr %s368, 2
      %s370 = sadd.s32 1, %s369
      %s371 = smul.addr %s366, 2
      %s372 = sadd.s32 %s370, %s371
      %s373 = smul.addr %s372, 4
      %s374 = scalar_lea.vmem %s4, %s373
      %p375 = scmp.lt.s32.totalorder %s21, 1
      %s376 = scalar_select %p375, %s21, 1
      %p377 = scmp.lt.s32.totalorder %s22, 0
      %s378 = scalar_select %p377, %s22, 0
      %s379 = sadd.s32 %s378, %s376
      %s380 = smul.addr %s379, 4
      %s381 = scalar_lea.vmem %s5, %s380
      %p383 = scmp.eq.s32.totalorder %s23, 0
      // Predicated region
      $region41: #{transformer_forward.59} parent=39 // pred_check
        %p384 = pneg %p383
      $region42: #{transformer_forward.59} parent=39 // pred_check_branch
        %386 = sbr.rel (%p384) target = $region44
      $region43: #{transformer_forward.59} parent=39 // pred_region
        %vm387 = vcmask 7168
        %388 = vst.msk [vmem:[#allocation2] sm:$0xff] %vm387, -inf
        %389 = vst.msk [vmem:[#allocation2 + $0x8] sm:$0xff] %vm387, -inf
        %390 = vst.msk [vmem:[#allocation2 + $0x10] sm:$0xff] %vm387, -inf
        %391 = vst.msk [vmem:[#allocation2 + $0x18] sm:$0xff] %vm387, -inf
        %392 = vst.msk [vmem:[#allocation3] sm:$0xff] %vm387, 0.0
        %393 = vst.msk [vmem:[#allocation3 + $0x8] sm:$0xff] %vm387, 0.0
        %394 = vst.msk [vmem:[#allocation3 + $0x10] sm:$0xff] %vm387, 0.0
        %395 = vst.msk [vmem:[#allocation3 + $0x18] sm:$0xff] %vm387, 0.0
        %vm396 = vcmask 64512
        %397 = vst.msk [vmem:[#allocation4] sm:$0xff] %vm396, 0.0
        %398 = vst.msk [vmem:[#allocation4 + $0x8] sm:$0xff] %vm396, 0.0
        %399 = vst.msk [vmem:[#allocation4 + $0x10] sm:$0xff] %vm396, 0.0
        %400 = vst.msk [vmem:[#allocation4 + $0x18] sm:$0xff] %vm396, 0.0
      $region44: #{transformer_forward.59} parent=39 // pred_fallthru
        _
      %v401 = vld [vmem:[%s342] sm:$0xff]
      %v402 = vld [vmem:[%s348] sm:$0x1]
      %404 = vset.pattern.permute.xlu0 0
      %405 = vperm.xlu0 %404, %v401
      %v406 = vpop.permute.xlu0 %405
      %v409 = vlaneseq
      %v410 = vshrl.u32 %v409, 7
      %v411 = vsub.s32 0, %v410
      %v412 = vrot.slane %v402, %v411
      %v414 = vmul.f32 %v406, %v412
      %v415 = vsub.f32 %v414, 1.0
      %v416 = vmul.f32 %v415, 1e+09
      %v417 = vld [vmem:[%s355] sm:$0xf]
      %v418 = vld [vmem:[%s364] sm:$0xf]
      %v419 = vld [vmem:[%s374] sm:$0xf]
      %vm420 = vcmask 64512
      %v422 = vsel %vm420, %v417, 0
      %v425 = vsel %vm420, %v418, 0
      %427 = vmatprep.subr.bf16.mxu0 0
      %428 = vmatpush1.bf16.xpose.msra.mxu0 %v425
      %429 = vmatprep.subr.bf16.mxu0 0
      %430 = vmatpush1.bf16.xpose.msra.mxu0 0
      %431 = vmatprep.subr.bf16.mxu0 0
      %432 = vmatpush1.bf16.xpose.msra.mxu0 0
      %433 = vmatprep.subr.bf16.mxu0 0
      %434 = vmatpush1.bf16.xpose.msra.mxu0 0
      %435 = vmatprep.subr.bf16.mxu0 0
      %436 = vmatpush1.bf16.xpose.msra.mxu0 0
      %437 = vmatprep.subr.bf16.mxu0 0
      %438 = vmatpush1.bf16.xpose.msra.mxu0 0
      %439 = vmatprep.subr.bf16.mxu0 0
      %440 = vmatpush1.bf16.xpose.msra.mxu0 0
      %441 = vmatprep.subr.bf16.mxu0 0
      %442 = vmatpush1.bf16.xpose.msra.mxu0 0
      %443 = vmatprep.subr.bf16.mxu0 0
      %444 = vmatpush1.bf16.xpose.msra.mxu0 0
      %445 = vmatprep.subr.bf16.mxu0 0
      %446 = vmatpush1.bf16.xpose.msra.mxu0 0
      %447 = vmatprep.subr.bf16.mxu0 0
      %448 = vmatpush1.bf16.xpose.msra.mxu0 0
      %449 = vmatprep.subr.bf16.mxu0 0
      %450 = vmatpush1.bf16.xpose.msra.mxu0 0
      %451 = vmatprep.subr.bf16.mxu0 0
      %452 = vmatpush1.bf16.xpose.msra.mxu0 0
      %453 = vmatprep.subr.bf16.mxu0 0
      %454 = vmatpush1.bf16.xpose.msra.mxu0 0
      %455 = vmatprep.subr.bf16.mxu0 0
      %456 = vmatpush1.bf16.xpose.msra.mxu0 0
      %457 = vmatprep.subr.bf16.mxu0 0
      %458 = vmatpush1.bf16.xpose.msra.mxu0 0
      %459 = vmatprep.mubr.bf16.mxu0 0
      %460 = vmatmul.mubr.bf16.gmra.mrb[0].mxu0 %v422
      %v461 = vpop.f32.mrb[0].mxu0
      %v462 = vadd.f32 0.0, %v461
      %v463 = vpop.f32.mrb[0].mxu0
      %v464 = vpop.f32.mrb[0].mxu0
      %v465 = vpop.f32.mrb[0].mxu0
      %466 = vdwg.mxu0
      %v467 = vmul.f32 %v462, 0.35355338
      %v468 = vadd.f32 %v467, %v416
      %v469 = vld [vmem:[#allocation2] sm:$0xff]
      %v470 = vsel %vm420, %v468, -inf
      %471 = vmax.xlane.f32.xlu0 %v470
      %v472 = vpop.xlane.xlu0 %471
      %v473 = vmax.f32 %v469, %v472
      %v474 = vsub.f32 %v469, %v473
      %v475 = vmul.f32 %v474, 1.442695
      %v476 = vpow.pop %v475
      %478 = vset.pattern.permute.xlu0 0
      %479 = vperm.xlu0 %478, %v473
      %v480 = vpop.permute.xlu0 %479
      %v482 = vsub.f32 %v468, %v480
      %v483 = vmul.f32 %v482, 1.442695
      %v484 = vpow.pop %v483
      %v485 = vld [vmem:[#allocation3] sm:$0xff]
      %v486 = vmul.f32 %v476, %v485
      %v487 = vsel %vm420, %v484, 0.0
      %488 = vadd.xlane.f32.xlu0 %v487
      %v489 = vpop.xlane.xlu0 %488
      %v490 = vadd.f32 %v486, %v489
      %vm491 = vcmask 7168
      %492 = vst.msk [vmem:[#allocation3] sm:$0xff] %vm491, %v490
      %v493 = vld [vmem:[#allocation4] sm:$0xff]
      %495 = vset.pattern.permute.xlu0 0
      %496 = vperm.xlu0 %495, %v476
      %v497 = vpop.permute.xlu0 %496
      %v499 = vmul.f32 %v497, %v493
      %v500 = vpack.c.bf16 %v484, %v484
      %v502 = vsel %vm420, %v500, 0
      %vm504 = vcmask 1043456
      %v506 = vsel %vm504, %v419, 0
      %508 = vmatprep.subr.bf16.mxu0 0
      %509 = vmatpush1.bf16.msra.mxu0 %v506
      %510 = vmatprep.subr.bf16.mxu0 0
      %511 = vmatpush1.bf16.msra.mxu0 0
      %512 = vmatprep.subr.bf16.mxu0 0
      %513 = vmatpush1.bf16.msra.mxu0 0
      %514 = vmatprep.subr.bf16.mxu0 0
      %515 = vmatpush1.bf16.msra.mxu0 0
      %516 = vmatprep.subr.bf16.mxu0 0
      %517 = vmatpush1.bf16.msra.mxu0 0
      %518 = vmatprep.subr.bf16.mxu0 0
      %519 = vmatpush1.bf16.msra.mxu0 0
      %520 = vmatprep.subr.bf16.mxu0 0
      %521 = vmatpush1.bf16.msra.mxu0 0
      %522 = vmatprep.subr.bf16.mxu0 0
      %523 = vmatpush1.bf16.msra.mxu0 0
      %524 = vmatprep.subr.bf16.mxu0 0
      %525 = vmatpush1.bf16.msra.mxu0 0
      %526 = vmatprep.subr.bf16.mxu0 0
      %527 = vmatpush1.bf16.msra.mxu0 0
      %528 = vmatprep.subr.bf16.mxu0 0
      %529 = vmatpush1.bf16.msra.mxu0 0
      %530 = vmatprep.subr.bf16.mxu0 0
      %531 = vmatpush1.bf16.msra.mxu0 0
      %532 = vmatprep.subr.bf16.mxu0 0
      %533 = vmatpush1.bf16.msra.mxu0 0
      %534 = vmatprep.subr.bf16.mxu0 0
      %535 = vmatpush1.bf16.msra.mxu0 0
      %536 = vmatprep.subr.bf16.mxu0 0
      %537 = vmatpush1.bf16.msra.mxu0 0
      %538 = vmatprep.subr.bf16.mxu0 0
      %539 = vmatpush1.bf16.msra.mxu0 0
      %540 = vmatprep.mubr.bf16.mxu0 0
      %541 = vmatmul.mubr.bf16.gmra.mrb[0].mxu0 %v502
      %v542 = vpop.f32.mrb[0].mxu0
      %v543 = vadd.f32 0.0, %v542
      %v544 = vpop.f32.mrb[0].mxu0
      %v545 = vpop.f32.mrb[0].mxu0
      %v546 = vpop.f32.mrb[0].mxu0
      %547 = vdwg.mxu0
      %v548 = vadd.f32 %v499, %v543
      %549 = vst.msk [vmem:[#allocation4] sm:$0xff] %vm420, %v548
      %550 = vst.msk [vmem:[#allocation2] sm:$0xff] %vm491, %v473
      %v552 = vunpack.c.l.b16 %v417
      %v553 = vpack.c.b16 %v552, %v552
      %554 = vrot.lane.b32.xlu0 %v553, 120
      %v555 = vpop.permute.xlu0 %554
      %v557 = vunpack.c.l.b16 %v418
      %v558 = vpack.c.b16 %v557, %v557
      %559 = vrot.lane.b32.xlu0 %v558, 120
      %v560 = vpop.permute.xlu0 %559
      %v562 = vsel %vm420, %v555, 0
      %v565 = vsel %vm420, %v560, 0
      %567 = vmatprep.subr.bf16.mxu0 0
      %568 = vmatpush1.bf16.xpose.msra.mxu0 %v565
      %569 = vmatprep.subr.bf16.mxu0 0
      %570 = vmatpush1.bf16.xpose.msra.mxu0 0
      %571 = vmatprep.subr.bf16.mxu0 0
      %572 = vmatpush1.bf16.xpose.msra.mxu0 0
      %573 = vmatprep.subr.bf16.mxu0 0
      %574 = vmatpush1.bf16.xpose.msra.mxu0 0
      %575 = vmatprep.subr.bf16.mxu0 0
      %576 = vmatpush1.bf16.xpose.msra.mxu0 0
      %577 = vmatprep.subr.bf16.mxu0 0
      %578 = vmatpush1.bf16.xpose.msra.mxu0 0
      %579 = vmatprep.subr.bf16.mxu0 0
      %580 = vmatpush1.bf16.xpose.msra.mxu0 0
      %581 = vmatprep.subr.bf16.mxu0 0
      %582 = vmatpush1.bf16.xpose.msra.mxu0 0
      %583 = vmatprep.subr.bf16.mxu0 0
      %584 = vmatpush1.bf16.xpose.msra.mxu0 0
      %585 = vmatprep.subr.bf16.mxu0 0
      %586 = vmatpush1.bf16.xpose.msra.mxu0 0
      %587 = vmatprep.subr.bf16.mxu0 0
      %588 = vmatpush1.bf16.xpose.msra.mxu0 0
      %589 = vmatprep.subr.bf16.mxu0 0
      %590 = vmatpush1.bf16.xpose.msra.mxu0 0
      %591 = vmatprep.subr.bf16.mxu0 0
      %592 = vmatpush1.bf16.xpose.msra.mxu0 0
      %593 = vmatprep.subr.bf16.mxu0 0
      %594 = vmatpush1.bf16.xpose.msra.mxu0 0
      %595 = vmatprep.subr.bf16.mxu0 0
      %596 = vmatpush1.bf16.xpose.msra.mxu0 0
      %597 = vmatprep.subr.bf16.mxu0 0
      %598 = vmatpush1.bf16.xpose.msra.mxu0 0
      %599 = vmatprep.mubr.bf16.mxu0 0
      %600 = vmatmul.mubr.bf16.gmra.mrb[0].mxu0 %v562
      %v601 = vpop.f32.mrb[0].mxu0
      %v602 = vadd.f32 0.0, %v601
      %v603 = vpop.f32.mrb[0].mxu0
      %v604 = vpop.f32.mrb[0].mxu0
      %v605 = vpop.f32.mrb[0].mxu0
      %606 = vdwg.mxu0
      %v607 = vmul.f32 %v602, 0.35355338
      %v608 = vadd.f32 %v607, %v416
      %s609 = scalar_lea.vmem [#allocation2], 8
      %v610 = vld [vmem:[%s609] sm:$0xff]
      %v611 = vsel %vm420, %v608, -inf
      %612 = vmax.xlane.f32.xlu0 %v611
      %v613 = vpop.xlane.xlu0 %612
      %v614 = vmax.f32 %v610, %v613
      %v615 = vsub.f32 %v610, %v614
      %v616 = vmul.f32 %v615, 1.442695
      %v617 = vpow.pop %v616
      %619 = vset.pattern.permute.xlu0 0
      %620 = vperm.xlu0 %619, %v614
      %v621 = vpop.permute.xlu0 %620
      %v623 = vsub.f32 %v608, %v621
      %v624 = vmul.f32 %v623, 1.442695
      %v625 = vpow.pop %v624
      %s626 = scalar_lea.vmem [#allocation3], 8
      %v627 = vld [vmem:[%s626] sm:$0xff]
      %v628 = vmul.f32 %v617, %v627
      %v629 = vsel %vm420, %v625, 0.0
      %630 = vadd.xlane.f32.xlu0 %v629
      %v631 = vpop.xlane.xlu0 %630
      %v632 = vadd.f32 %v628, %v631
      %633 = vst.msk [vmem:[%s626] sm:$0xff] %vm491, %v632
      %s634 = scalar_lea.vmem [#allocation4], 8
      %v635 = vld [vmem:[%s634] sm:$0xff]
      %637 = vset.pattern.permute.xlu0 0
      %638 = vperm.xlu0 %637, %v617
      %v639 = vpop.permute.xlu0 %638
      %v641 = vmul.f32 %v639, %v635
      %v642 = vpack.c.bf16 %v625, %v625
      %v644 = vunpack.c.l.b16 %v419
      %v645 = vpack.c.b16 %v644, %v644
      %646 = vrot.lane.b32.xlu0 %v645, 120
      %v647 = vpop.permute.xlu0 %646
      %v649 = vsel %vm420, %v642, 0
      %v652 = vsel %vm504, %v647, 0
      %654 = vmatprep.subr.bf16.mxu0 0
      %655 = vmatpush1.bf16.msra.mxu0 %v652
      %656 = vmatprep.subr.bf16.mxu0 0
      %657 = vmatpush1.bf16.msra.mxu0 0
      %658 = vmatprep.subr.bf16.mxu0 0
      %659 = vmatpush1.bf16.msra.mxu0 0
      %660 = vmatprep.subr.bf16.mxu0 0
      %661 = vmatpush1.bf16.msra.mxu0 0
      %662 = vmatprep.subr.bf16.mxu0 0
      %663 = vmatpush1.bf16.msra.mxu0 0
      %664 = vmatprep.subr.bf16.mxu0 0
      %665 = vmatpush1.bf16.msra.mxu0 0
      %666 = vmatprep.subr.bf16.mxu0 0
      %667 = vmatpush1.bf16.msra.mxu0 0
      %668 = vmatprep.subr.bf16.mxu0 0
      %669 = vmatpush1.bf16.msra.mxu0 0
      %670 = vmatprep.subr.bf16.mxu0 0
      %671 = vmatpush1.bf16.msra.mxu0 0
      %672 = vmatprep.subr.bf16.mxu0 0
      %673 = vmatpush1.bf16.msra.mxu0 0
      %674 = vmatprep.subr.bf16.mxu0 0
      %675 = vmatpush1.bf16.msra.mxu0 0
      %676 = vmatprep.subr.bf16.mxu0 0
      %677 = vmatpush1.bf16.msra.mxu0 0
      %678 = vmatprep.subr.bf16.mxu0 0
      %679 = vmatpush1.bf16.msra.mxu0 0
      %680 = vmatprep.subr.bf16.mxu0 0
      %681 = vmatpush1.bf16.msra.mxu0 0
      %682 = vmatprep.subr.bf16.mxu0 0
      %683 = vmatpush1.bf16.msra.mxu0 0
      %684 = vmatprep.subr.bf16.mxu0 0
      %685 = vmatpush1.bf16.msra.mxu0 0
      %686 = vmatprep.mubr.bf16.mxu0 0
      %687 = vmatmul.mubr.bf16.gmra.mrb[0].mxu0 %v649
      %v688 = vpop.f32.mrb[0].mxu0
      %v689 = vadd.f32 0.0, %v688
      %v690 = vpop.f32.mrb[0].mxu0
      %v691 = vpop.f32.mrb[0].mxu0
      %v692 = vpop.f32.mrb[0].mxu0
      %693 = vdwg.mxu0
      %v694 = vadd.f32 %v641, %v689
      %695 = vst.msk [vmem:[%s634] sm:$0xff] %vm420, %v694
      %696 = vst.msk [vmem:[%s609] sm:$0xff] %vm491, %v614
      %697 = vrot.lane.b32.xlu0 %v553, 112
      %v698 = vpop.permute.xlu0 %697
      %699 = vrot.lane.b32.xlu0 %v558, 112
      %v700 = vpop.permute.xlu0 %699
      %v702 = vsel %vm420, %v698, 0
      %v705 = vsel %vm420, %v700, 0
      %707 = vmatprep.subr.bf16.mxu0 0
      %708 = vmatpush1.bf16.xpose.msra.mxu0 %v705
      %709 = vmatprep.subr.bf16.mxu0 0
      %710 = vmatpush1.bf16.xpose.msra.mxu0 0
      %711 = vmatprep.subr.bf16.mxu0 0
      %712 = vmatpush1.bf16.xpose.msra.mxu0 0
      %713 = vmatprep.subr.bf16.mxu0 0
      %714 = vmatpush1.bf16.xpose.msra.mxu0 0
      %715 = vmatprep.subr.bf16.mxu0 0
      %716 = vmatpush1.bf16.xpose.msra.mxu0 0
      %717 = vmatprep.subr.bf16.mxu0 0
      %718 = vmatpush1.bf16.xpose.msra.mxu0 0
      %719 = vmatprep.subr.bf16.mxu0 0
      %720 = vmatpush1.bf16.xpose.msra.mxu0 0
      %721 = vmatprep.subr.bf16.mxu0 0
      %722 = vmatpush1.bf16.xpose.msra.mxu0 0
      %723 = vmatprep.subr.bf16.mxu0 0
      %724 = vmatpush1.bf16.xpose.msra.mxu0 0
      %725 = vmatprep.subr.bf16.mxu0 0
      %726 = vmatpush1.bf16.xpose.msra.mxu0 0
      %727 = vmatprep.subr.bf16.mxu0 0
      %728 = vmatpush1.bf16.xpose.msra.mxu0 0
      %729 = vmatprep.subr.bf16.mxu0 0
      %730 = vmatpush1.bf16.xpose.msra.mxu0 0
      %731 = vmatprep.subr.bf16.mxu0 0
      %732 = vmatpush1.bf16.xpose.msra.mxu0 0
      %733 = vmatprep.subr.bf16.mxu0 0
      %734 = vmatpush1.bf16.xpose.msra.mxu0 0
      %735 = vmatprep.subr.bf16.mxu0 0
      %736 = vmatpush1.bf16.xpose.msra.mxu0 0
      %737 = vmatprep.subr.bf16.mxu0 0
      %738 = vmatpush1.bf16.xpose.msra.mxu0 0
      %739 = vmatprep.mubr.bf16.mxu0 0
      %740 = vmatmul.mubr.bf16.gmra.mrb[0].mxu0 %v702
      %v741 = vpop.f32.mrb[0].mxu0
      %v742 = vadd.f32 0.0, %v741
      %v743 = vpop.f32.mrb[0].mxu0
      %v744 = vpop.f32.mrb[0].mxu0
      %v745 = vpop.f32.mrb[0].mxu0
      %746 = vdwg.mxu0
      %v747 = vmul.f32 %v742, 0.35355338
      %v748 = vadd.f32 %v747, %v416
      %s749 = scalar_lea.vmem [#allocation2], 16
      %v750 = vld [vmem:[%s749] sm:$0xff]
      %v751 = vsel %vm420, %v748, -inf
      %752 = vmax.xlane.f32.xlu0 %v751
      %v753 = vpop.xlane.xlu0 %752
      %v754 = vmax.f32 %v750, %v753
      %v755 = vsub.f32 %v750, %v754
      %v756 = vmul.f32 %v755, 1.442695
      %v757 = vpow.pop %v756
      %759 = vset.pattern.permute.xlu0 0
      %760 = vperm.xlu0 %759, %v754
      %v761 = vpop.permute.xlu0 %760
      %v763 = vsub.f32 %v748, %v761
      %v764 = vmul.f32 %v763, 1.442695
      %v765 = vpow.pop %v764
      %s766 = scalar_lea.vmem [#allocation3], 16
      %v767 = vld [vmem:[%s766] sm:$0xff]
      %v768 = vmul.f32 %v757, %v767
      %v769 = vsel %vm420, %v765, 0.0
      %770 = vadd.xlane.f32.xlu0 %v769
      %v771 = vpop.xlane.xlu0 %770
      %v772 = vadd.f32 %v768, %v771
      %773 = vst.msk [vmem:[%s766] sm:$0xff] %vm491, %v772
      %s774 = scalar_lea.vmem [#allocation4], 16
      %v775 = vld [vmem:[%s774] sm:$0xff]
      %777 = vset.pattern.permute.xlu0 0
      %778 = vperm.xlu0 %777, %v757
      %v779 = vpop.permute.xlu0 %778
      %v781 = vmul.f32 %v779, %v775
      %v782 = vpack.c.bf16 %v765, %v765
      %783 = vrot.lane.b32.xlu0 %v645, 112
      %v784 = vpop.permute.xlu0 %783
      %v786 = vsel %vm420, %v782, 0
      %v789 = vsel %vm504, %v784, 0
      %791 = vmatprep.subr.bf16.mxu0 0
      %792 = vmatpush1.bf16.msra.mxu0 %v789
      %793 = vmatprep.subr.bf16.mxu0 0
      %794 = vmatpush1.bf16.msra.mxu0 0
      %795 = vmatprep.subr.bf16.mxu0 0
      %796 = vmatpush1.bf16.msra.mxu0 0
      %797 = vmatprep.subr.bf16.mxu0 0
      %798 = vmatpush1.bf16.msra.mxu0 0
      %799 = vmatprep.subr.bf16.mxu0 0
      %800 = vmatpush1.bf16.msra.mxu0 0
      %801 = vmatprep.subr.bf16.mxu0 0
      %802 = vmatpush1.bf16.msra.mxu0 0
      %803 = vmatprep.subr.bf16.mxu0 0
      %804 = vmatpush1.bf16.msra.mxu0 0
      %805 = vmatprep.subr.bf16.mxu0 0
      %806 = vmatpush1.bf16.msra.mxu0 0
      %807 = vmatprep.subr.bf16.mxu0 0
      %808 = vmatpush1.bf16.msra.mxu0 0
      %809 = vmatprep.subr.bf16.mxu0 0
      %810 = vmatpush1.bf16.msra.mxu0 0
      %811 = vmatprep.subr.bf16.mxu0 0
      %812 = vmatpush1.bf16.msra.mxu0 0
      %813 = vmatprep.subr.bf16.mxu0 0
      %814 = vmatpush1.bf16.msra.mxu0 0
      %815 = vmatprep.subr.bf16.mxu0 0
      %816 = vmatpush1.bf16.msra.mxu0 0
      %817 = vmatprep.subr.bf16.mxu0 0
      %818 = vmatpush1.bf16.msra.mxu0 0
      %819 = vmatprep.subr.bf16.mxu0 0
      %820 = vmatpush1.bf16.msra.mxu0 0
      %821 = vmatprep.subr.bf16.mxu0 0
      %822 = vmatpush1.bf16.msra.mxu0 0
      %823 = vmatprep.mubr.bf16.mxu0 0
      %824 = vmatmul.mubr.bf16.gmra.mrb[0].mxu0 %v786
      %v825 = vpop.f32.mrb[0].mxu0
      %v826 = vadd.f32 0.0, %v825
      %v827 = vpop.f32.mrb[0].mxu0
      %v828 = vpop.f32.mrb[0].mxu0
      %v829 = vpop.f32.mrb[0].mxu0
      %830 = vdwg.mxu0
      %v831 = vadd.f32 %v781, %v826
      %832 = vst.msk [vmem:[%s774] sm:$0xff] %vm420, %v831
      %833 = vst.msk [vmem:[%s749] sm:$0xff] %vm491, %v754
      %834 = vrot.lane.b32.xlu0 %v553, 104
      %v835 = vpop.permute.xlu0 %834
      %836 = vrot.lane.b32.xlu0 %v558, 104
      %v837 = vpop.permute.xlu0 %836
      %v839 = vsel %vm420, %v835, 0
      %v842 = vsel %vm420, %v837, 0
      %844 = vmatprep.subr.bf16.mxu0 0
      %845 = vmatpush1.bf16.xpose.msra.mxu0 %v842
      %846 = vmatprep.subr.bf16.mxu0 0
      %847 = vmatpush1.bf16.xpose.msra.mxu0 0
      %848 = vmatprep.subr.bf16.mxu0 0
      %849 = vmatpush1.bf16.xpose.msra.mxu0 0
      %850 = vmatprep.subr.bf16.mxu0 0
      %851 = vmatpush1.bf16.xpose.msra.mxu0 0
      %852 = vmatprep.subr.bf16.mxu0 0
      %853 = vmatpush1.bf16.xpose.msra.mxu0 0
      %854 = vmatprep.subr.bf16.mxu0 0
      %855 = vmatpush1.bf16.xpose.msra.mxu0 0
      %856 = vmatprep.subr.bf16.mxu0 0
      %857 = vmatpush1.bf16.xpose.msra.mxu0 0
      %858 = vmatprep.subr.bf16.mxu0 0
      %859 = vmatpush1.bf16.xpose.msra.mxu0 0
      %860 = vmatprep.subr.bf16.mxu0 0
      %861 = vmatpush1.bf16.xpose.msra.mxu0 0
      %862 = vmatprep.subr.bf16.mxu0 0
      %863 = vmatpush1.bf16.xpose.msra.mxu0 0
      %864 = vmatprep.subr.bf16.mxu0 0
      %865 = vmatpush1.bf16.xpose.msra.mxu0 0
      %866 = vmatprep.subr.bf16.mxu0 0
      %867 = vmatpush1.bf16.xpose.msra.mxu0 0
      %868 = vmatprep.subr.bf16.mxu0 0
      %869 = vmatpush1.bf16.xpose.msra.mxu0 0
      %870 = vmatprep.subr.bf16.mxu0 0
      %871 = vmatpush1.bf16.xpose.msra.mxu0 0
      %872 = vmatprep.subr.bf16.mxu0 0
      %873 = vmatpush1.bf16.xpose.msra.mxu0 0
      %874 = vmatprep.subr.bf16.mxu0 0
      %875 = vmatpush1.bf16.xpose.msra.mxu0 0
      %876 = vmatprep.mubr.bf16.mxu0 0
      %877 = vmatmul.mubr.bf16.gmra.mrb[0].mxu0 %v839
      %v878 = vpop.f32.mrb[0].mxu0
      %v879 = vadd.f32 0.0, %v878
      %v880 = vpop.f32.mrb[0].mxu0
      %v881 = vpop.f32.mrb[0].mxu0
      %v882 = vpop.f32.mrb[0].mxu0
      %883 = vdwg.mxu0
      %v884 = vmul.f32 %v879, 0.35355338
      %v885 = vadd.f32 %v884, %v416
      %s886 = scalar_lea.vmem [#allocation2], 24
      %v887 = vld [vmem:[%s886] sm:$0xff]
      %v888 = vsel %vm420, %v885, -inf
      %889 = vmax.xlane.f32.xlu0 %v888
      %v890 = vpop.xlane.xlu0 %889
      %v891 = vmax.f32 %v887, %v890
      %v892 = vsub.f32 %v887, %v891
      %v893 = vmul.f32 %v892, 1.442695
      %v894 = vpow.pop %v893
      %896 = vset.pattern.permute.xlu0 0
      %897 = vperm.xlu0 %896, %v891
      %v898 = vpop.permute.xlu0 %897
      %v900 = vsub.f32 %v885, %v898
      %v901 = vmul.f32 %v900, 1.442695
      %v902 = vpow.pop %v901
      %s903 = scalar_lea.vmem [#allocation3], 24
      %v904 = vld [vmem:[%s903] sm:$0xff]
      %v905 = vmul.f32 %v894, %v904
      %v906 = vsel %vm420, %v902, 0.0
      %907 = vadd.xlane.f32.xlu0 %v906
      %v908 = vpop.xlane.xlu0 %907
      %v909 = vadd.f32 %v905, %v908
      %910 = vst.msk [vmem:[%s903] sm:$0xff] %vm491, %v909
      %s911 = scalar_lea.vmem [#allocation4], 24
      %v912 = vld [vmem:[%s911] sm:$0xff]
      %914 = vset.pattern.permute.xlu0 0
      %915 = vperm.xlu0 %914, %v894
      %v916 = vpop.permute.xlu0 %915
      %v918 = vmul.f32 %v916, %v912
      %v919 = vpack.c.bf16 %v902, %v902
      %920 = vrot.lane.b32.xlu0 %v645, 104
      %v921 = vpop.permute.xlu0 %920
      %v923 = vsel %vm420, %v919, 0
      %v926 = vsel %vm504, %v921, 0
      %928 = vmatprep.subr.bf16.mxu0 0
      %929 = vmatpush1.bf16.msra.mxu0 %v926
      %930 = vmatprep.subr.bf16.mxu0 0
      %931 = vmatpush1.bf16.msra.mxu0 0
      %932 = vmatprep.subr.bf16.mxu0 0
      %933 = vmatpush1.bf16.msra.mxu0 0
      %934 = vmatprep.subr.bf16.mxu0 0
      %935 = vmatpush1.bf16.msra.mxu0 0
      %936 = vmatprep.subr.bf16.mxu0 0
      %937 = vmatpush1.bf16.msra.mxu0 0
      %938 = vmatprep.subr.bf16.mxu0 0
      %939 = vmatpush1.bf16.msra.mxu0 0
      %940 = vmatprep.subr.bf16.mxu0 0
      %941 = vmatpush1.bf16.msra.mxu0 0
      %942 = vmatprep.subr.bf16.mxu0 0
      %943 = vmatpush1.bf16.msra.mxu0 0
      %944 = vmatprep.subr.bf16.mxu0 0
      %945 = vmatpush1.bf16.msra.mxu0 0
      %946 = vmatprep.subr.bf16.mxu0 0
      %947 = vmatpush1.bf16.msra.mxu0 0
      %948 = vmatprep.subr.bf16.mxu0 0
      %949 = vmatpush1.bf16.msra.mxu0 0
      %950 = vmatprep.subr.bf16.mxu0 0
      %951 = vmatpush1.bf16.msra.mxu0 0
      %952 = vmatprep.subr.bf16.mxu0 0
      %953 = vmatpush1.bf16.msra.mxu0 0
      %954 = vmatprep.subr.bf16.mxu0 0
      %955 = vmatpush1.bf16.msra.mxu0 0
      %956 = vmatprep.subr.bf16.mxu0 0
      %957 = vmatpush1.bf16.msra.mxu0 0
      %958 = vmatprep.subr.bf16.mxu0 0
      %959 = vmatpush1.bf16.msra.mxu0 0
      %960 = vmatprep.mubr.bf16.mxu0 0
      %961 = vmatmul.mubr.bf16.gmra.mrb[0].mxu0 %v923
      %v962 = vpop.f32.mrb[0].mxu0
      %v963 = vadd.f32 0.0, %v962
      %v964 = vpop.f32.mrb[0].mxu0
      %v965 = vpop.f32.mrb[0].mxu0
      %v966 = vpop.f32.mrb[0].mxu0
      %967 = vdwg.mxu0
      %v968 = vadd.f32 %v918, %v963
      %969 = vst.msk [vmem:[%s911] sm:$0xff] %vm420, %v968
      %970 = vst.msk [vmem:[%s886] sm:$0xff] %vm491, %v891
      // Predicated region
      $region45: #{transformer_forward.59} parent=39 // pred_check
        %p971 = pneg %p383
      $region46: #{transformer_forward.59} parent=39 // pred_check_branch
        %973 = sbr.rel (%p971) target = $region48
      $region47: #{transformer_forward.59} parent=39 // pred_region
        %v974 = vld [vmem:[#allocation4] sm:$0xff]
        %v975 = vld [vmem:[#allocation3] sm:$0xff]
        %v976 = vrcp.pop %v975
        %978 = vset.pattern.permute.xlu0 0
        %979 = vperm.xlu0 %978, %v976
        %v980 = vpop.permute.xlu0 %979
        %v982 = vmul.f32 %v974, %v980
        %v983 = vld [vmem:[%s634] sm:$0xff]
        %v984 = vld [vmem:[%s626] sm:$0xff]
        %v985 = vrcp.pop %v984
        %987 = vset.pattern.permute.xlu0 0
        %988 = vperm.xlu0 %987, %v985
        %v989 = vpop.permute.xlu0 %988
        %v991 = vmul.f32 %v983, %v989
        %v992 = vld [vmem:[%s774] sm:$0xff]
        %v993 = vld [vmem:[%s766] sm:$0xff]
        %v994 = vrcp.pop %v993
        %996 = vset.pattern.permute.xlu0 0
        %997 = vperm.xlu0 %996, %v994
        %v998 = vpop.permute.xlu0 %997
        %v1000 = vmul.f32 %v992, %v998
        %v1001 = vld [vmem:[%s911] sm:$0xff]
        %v1002 = vld [vmem:[%s903] sm:$0xff]
        %v1003 = vrcp.pop %v1002
        %1005 = vset.pattern.permute.xlu0 0
        %1006 = vperm.xlu0 %1005, %v1003
        %v1007 = vpop.permute.xlu0 %1006
        %v1009 = vmul.f32 %v1001, %v1007
        %1011 = vrot.lane.b32.xlu0 %v991, 8
        %v1012 = vpop.permute.xlu0 %1011
        %1015 = vrot.lane.b32.xlu0 %v1000, 16
        %v1016 = vpop.permute.xlu0 %1015
        %1019 = vrot.lane.b32.xlu0 %v1009, 24
        %v1020 = vpop.permute.xlu0 %1019
        %v1022 = vsel %vm420, %v982, %v1012
        %vm1023 = vcmask 130048
        %v1024 = vsel %vm1023, %v1022, %v1016
        %vm1025 = vcmask 195584
        %v1026 = vsel %vm1025, %v1024, %v1020
        %vm1027 = vcmask 261120
        %v1028 = vsel %vm1027, %v1026, 0.0
        %v1029 = vpack.c.bf16 %v1028, %v1028
        %1030 = vst [vmem:[%s381] sm:$0xf] %v1029
      $region48: #{transformer_forward.59} parent=39 // pred_fallthru
        _
      %p1031 = scmp.lt.s32.totalorder %s21, 1
      %s1032 = scalar_select %p1031, %s21, 1
      %p1033 = scmp.lt.s32.totalorder %s22, 0
      %s1034 = scalar_select %p1033, %s22, 0
      %s1035 = sadd.s32 %s1034, %s1032
      %s1036 = smul.addr %s1035, 4
      %s1037 = scalar_lea.vmem %s5, %s1036
      // Predicated region
      $region49: #{transformer_forward.59} parent=39 // pred_check
        %p1038 = pneg %p195
      $region50: #{transformer_forward.59} parent=39 // pred_check_branch
        %1040 = sbr.rel (%p1038) target = $region52
      $region51: #{transformer_forward.59} parent=39 // pred_region
        _
      $region52: #{transformer_forward.59} parent=39 // pred_fallthru
        _
    $region40: #{transformer_forward.59} parent=5 // pred_fallthru
      _
    %p1041 = scmp.le.s32.totalorder 2, %s11
    // Predicated region
    $region53: #{transformer_forward.59} parent=5 // pred_check
      %p1042 = pneg %p1041
    $region54: #{transformer_forward.59} parent=5 // pred_check_branch
      %1044 = sbr.rel (%p1042) target = $region56
    $region55: #{transformer_forward.59} parent=5 // pred_region
      %s1045 = ssub.s32 %s11, 2
      // Predicated region
      $region57: #{transformer_forward.59} parent=55 // pred_check
        %p1046 = pneg %p201
      $region58: #{transformer_forward.59} parent=55 // pred_check_branch
        %1048 = sbr.rel (%p1046) target = $region60
      $region59: #{transformer_forward.59} parent=55 // pred_region
        %p1049 = scmp.lt.s32.totalorder %s24, 1
        %s1050 = scalar_select %p1049, %s24, 1
        %p1051 = scmp.lt.s32.totalorder %s25, 0
        %s1052 = scalar_select %p1051, %s25, 0
        %s1053 = sadd.s32 %s1052, %s1050
        %s1054 = smul.addr %s1053, 4
        %s1055 = scalar_lea.vmem %s5, %s1054
      $region60: #{transformer_forward.59} parent=55 // pred_fallthru
        _
    $region56: #{transformer_forward.59} parent=5 // pred_fallthru
      _
  $region6: #{transformer_forward.59} parent=0 // loop_footer
    %s15 = sadd.s32 1, %s11
  $region7: #{transformer_forward.59} parent=0 // loop_footer_branch
    %10 = sbr.rel target = $region3
  $region8: #{transformer_forward.59} parent=0 // loop_exit
    _

</llo_original>
